<compile_context>
chip_gen: v5e
topology: v5e:2x2
jax: 0.10.0
libtpu: 0.0.40
codegen_flags: <defaults>
</compile_context>

<pallas_src>
import functools

import jax
import jax.numpy as jnp
from jax.experimental import pallas as pl
from jax.experimental.pallas import tpu as pltpu


# ----------------------------- in-kernel helpers -----------------------------

def _reflect_pad_into(xp_ref, x, pad, H, W):
    """Reflection-pad `x` (H, W, C) into the top-left (H+2p, W+2p) region of xp_ref.

    `x` must already be in the scratch dtype (bf16).  Edge row/col is not repeated,
    matching torch.nn.ReflectionPad2d.  pad <= 2 here, so the handful of narrow
    column stores is negligible.
    # TODO(synk): for pad > 2, assemble whole padded rows and store row-wise to
    #             avoid width-1 masked column stores (v5e single-vst-slot concern).
    """
    p = pad
    Hp = H + 2 * p
    # interior
    xp_ref[p:p + H, p:p + W, :] = x
    # reflected rows (whole-width stores)
    for i in range(1, p + 1):
        xp_ref[p - i:p - i + 1, p:p + W, :] = x[i:i + 1]
        xp_ref[p + H - 1 + i:p + H + i, p:p + W, :] = x[H - 1 - i:H - i]
    # reflected columns (on the row-padded buffer, so the corners come out right)
    for j in range(1, p + 1):
        xp_ref[:Hp, p - j:p - j + 1, :] = xp_ref[:Hp, p + j:p + j + 1, :]
        xp_ref[:Hp, p + W - 1 + j:p + W + j, :] = xp_ref[:Hp, p + W - 1 - j:p + W - j, :]


def _conv3x3(xp_ref, w_ref, dil, H, W, C):
    """3x3 conv as 9 per-tap accumulating MXU matmuls.

    xp_ref holds the reflection-padded activation (bf16); w_ref is (9, C, C) bf16
    with taps in (ky, kx) row-major order.  Accumulation is f32.
    """
    acc = None
    t = 0
    for ky in range(3):
        for kx in range(3):
            patch = xp_ref[ky * dil:ky * dil + H, kx * dil:kx * dil + W, :]
            # (H, W, C) -> (H*W, C): W % 8 == 0, so the merge is layout-free.
            p2d = patch.reshape(H * W, C)
            d = jnp.dot(p2d, w_ref[t], preferred_element_type=jnp.float32)
            acc = d if acc is None else acc + d
            t += 1
    return acc                                           # (H*W, C) f32


def _instance_norm(y, inv_hw, eps=1e-5):
    """InstanceNorm2d (affine=False) over rows of y (H*W, C).

    Two-pass (centered) biased variance in f32, matching PyTorch and avoiding
    E[x^2] - E[x]^2 cancellation at large H*W.
    """
    mean = jnp.sum(y, axis=0, keepdims=True) * inv_hw
    yc = y - mean
    var = jnp.sum(yc * yc, axis=0, keepdims=True) * inv_hw
    return yc * jax.lax.rsqrt(var + eps)


# ---------------------------------- kernel -----------------------------------

def _resnet_block_kernel(x_ref, w1_ref, w2_ref, o_ref, xp_ref,
                         *, dilation, H, W, C):
    inv_hw = 1.0 / float(H * W)

    # stage 1: ReflPad(d) -> Conv3x3(dilation=d) -> InstanceNorm -> ReLU
    _reflect_pad_into(xp_ref, x_ref[...].astype(jnp.bfloat16), dilation, H, W)
    h = _conv3x3(xp_ref, w1_ref, dilation, H, W, C)
    h = jnp.maximum(_instance_norm(h, inv_hw), 0.0)

    # stage 2: ReflPad(1) -> Conv3x3(dilation=1) -> InstanceNorm
    # (reuses the same pad scratch; only its [0:H+2, 0:W+2] region is read)
    _reflect_pad_into(xp_ref, h.reshape(H, W, C).astype(jnp.bfloat16), 1, H, W)
    z = _instance_norm(_conv3x3(xp_ref, w2_ref, 1, H, W, C), inv_hw)

    # residual: re-read x here instead of keeping it live across both conv stages.
    o_ref[...] = (x_ref[...].reshape(H * W, C) + z).astype(o_ref.dtype)


# --------------------------------- wrapper -----------------------------------

def _vmem_limit_bytes():
    """Per-generation scoped-VMEM budget: cap below physical on v7x (64 MiB/TC),
    raise well above the 16/32 MiB defaults on v5e/v6e (128 MiB physical)."""
    try:
        kind = jax.devices()[0].device_kind.lower()
    except Exception:                      # non-TPU tracing environments
        kind = ""
    if "v7" in kind or "7x" in kind:
        return 48 * 1024 * 1024
    return 96 * 1024 * 1024


def resnet_block_forward(x_nchw, w1, b1, w2, b2, dilation):
    """x_nchw: (N, C, H, W).  w*: (C, C, 3, 3) PyTorch OIHW.  b*: (C,).

    b1/b2 are accepted for interface parity but unused: a per-channel conv bias is
    exactly cancelled by the affine-free InstanceNorm that follows it.
    """
    del b1, b2
    N, C, H, W = x_nchw.shape
    assert H % 8 == 0 and W % 8 == 0, "spatial dims assumed sublane-aligned"
    assert 1 <= dilation < min(H, W)

    # NHWC: channels on the lane axis so the per-tap channel contraction is a matmul.
    x_nhwc = jnp.transpose(x_nchw, (0, 2, 3, 1)).astype(jnp.float32)

    def prep_w(w):
        # OIHW -> (ky, kx, cin, cout) -> (9, Cin, Cout); bf16 for the MXU.
        return jnp.transpose(w, (2, 3, 1, 0)).reshape(9, C, C).astype(jnp.bfloat16)

    w1_k, w2_k = prep_w(w1), prep_w(w2)

    kernel = functools.partial(_resnet_block_kernel,
                               dilation=dilation, H=H, W=W, C=C)

    pad = dilation   # stage-1 pad; stage 2 (pad=1) reuses a sub-region of the scratch

    out_flat = pl.pallas_call(
        kernel,
        out_shape=jax.ShapeDtypeStruct((N, H * W, C), jnp.float32),
        grid_spec=pltpu.PrefetchScalarGridSpec(
            num_scalar_prefetch=0,
            grid=(N,),
            in_specs=[
                pl.BlockSpec((None, H, W, C), lambda n: (n, 0, 0, 0)),
                pl.BlockSpec((9, C, C), lambda n: (0, 0, 0)),
                pl.BlockSpec((9, C, C), lambda n: (0, 0, 0)),
            ],
            out_specs=pl.BlockSpec((None, H * W, C), lambda n: (n, 0, 0)),
            scratch_shapes=[
                # one reused bf16 reflection-pad buffer (sized for the larger pad)
                pltpu.VMEM((H + 2 * pad, W + 2 * pad, C), jnp.bfloat16),
            ],
        ),
        compiler_params=pltpu.CompilerParams(
            dimension_semantics=("parallel",),
            vmem_limit_bytes=_vmem_limit_bytes(),
        ),
    )(x_nhwc, w1_k, w2_k)

    out_nhwc = out_flat.reshape(N, H, W, C)     # (N, H*W, C) is NHWC memory; free
    return jnp.transpose(out_nhwc, (0, 3, 1, 2))


# ----------------------------- pure-JAX reference ----------------------------

def _ref_forward(x_nchw, w1, b1, w2, b2, dilation, eps=1e-5):
    """Mirrors the original module (biases included) at the kernel's precision:
    bf16 conv operands, f32 accumulation / norm math."""
    def conv(x, w, b, dil, pad):
        xp = jnp.pad(x, ((0, 0), (0, 0), (pad, pad), (pad, pad)), mode="reflect")
        y = jax.lax.conv_general_dilated(
            xp.astype(jnp.bfloat16), w.astype(jnp.bfloat16),
            window_strides=(1, 1), padding="VALID", rhs_dilation=(dil, dil),
            dimension_numbers=("NCHW", "OIHW", "NCHW"),
            preferred_element_type=jnp.float32)
        return y + b.reshape(1, -1, 1, 1).astype(jnp.float32)

    def inorm(y):
        m = jnp.mean(y, axis=(2, 3), keepdims=True)
        v = jnp.mean((y - m) ** 2, axis=(2, 3), keepdims=True)
        return (y - m) * jax.lax.rsqrt(v + eps)

    h = jnp.maximum(inorm(conv(x_nchw, w1, b1, dilation, dilation)), 0.0)
    h = inorm(conv(h, w2, b2, 1, 1))
    return x_nchw + h


# ----------------------------------- main ------------------------------------

if __name__ == "__main__":
    N, C, H, W = 2, 4, 16, 16
    dilation = 2

    key = jax.random.PRNGKey(0)
    kx_, kw1, kb1, kw2, kb2 = jax.random.split(key, 5)

    x = jax.random.normal(kx_, (N, C, H, W), dtype=jnp.float32)
    scale = 1.0 / (C * 3 * 3) ** 0.5
    w1 = jax.random.uniform(kw1, (C, C, 3, 3), jnp.float32, -scale, scale)
    b1 = jax.random.uniform(kb1, (C,), jnp.float32, -scale, scale)
    w2 = jax.random.uniform(kw2, (C, C, 3, 3), jnp.float32, -scale, scale)
    b2 = jax.random.uniform(kb2, (C,), jnp.float32, -scale, scale)

    fwd = jax.jit(lambda *a: resnet_block_forward(*a, dilation=dilation))
    out = jax.block_until_ready(fwd(x, w1, b1, w2, b2))

    ref = _ref_forward(x, w1, b1, w2, b2, dilation)
    assert out.shape == (N, C, H, W)
    max_err = jnp.max(jnp.abs(out - ref))
    assert jnp.allclose(out, ref, atol=1e-2, rtol=1e-2), (
        f"mismatch vs reference (max abs err {max_err})")

    print("KERNEL_OK")
</pallas_src>

<mosaic_0001>
module attributes {stable_mosaic.version = 11 : i64} {
  func.func @_resnet_block_kernel(%arg0: i32, %arg1: memref<1x16x16x4xf32, #tpu.memory_space<vmem>>, %arg2: memref<9x4x4xbf16, #tpu.memory_space<vmem>>, %arg3: memref<9x4x4xbf16, #tpu.memory_space<vmem>>, %arg4: memref<1x256x4xf32, #tpu.memory_space<vmem>>, %arg5: memref<20x20x4xbf16, #tpu.memory_space<vmem>>) attributes {dimension_semantics = [#tpu.dimension_semantics<parallel>], iteration_bounds = array<i64: 2>, scalar_prefetch = 0 : i64, scratch_operands = 1 : i64, tpu.core_type = #tpu.core_type<tc>, window_params = [{transform_indices = @transform_0, window_bounds = array<i64: 1, 16, 16, 4>}, {pipeline_mode = #tpu.pipeline_mode<synchronous>, transform_indices = @transform_1, window_bounds = array<i64: 9, 4, 4>}, {pipeline_mode = #tpu.pipeline_mode<synchronous>, transform_indices = @transform_2, window_bounds = array<i64: 9, 4, 4>}, {transform_indices = @transform_3, window_bounds = array<i64: 1, 256, 4>}]} {
    %c0 = arith.constant 0 : index
    %c0_0 = arith.constant 0 : index
    %c0_1 = arith.constant 0 : index
    %c0_2 = arith.constant 0 : index
    %0 = vector.load %arg1[%c0, %c0_0, %c0_1, %c0_2] : memref<1x16x16x4xf32, #tpu.memory_space<vmem>>, vector<1x16x16x4xf32>
    %1 = vector.shape_cast %0 : vector<1x16x16x4xf32> to vector<16x16x4xf32>
    %2 = arith.truncf %1 : vector<16x16x4xf32> to vector<16x16x4xbf16>
    %c2 = arith.constant 2 : index
    %c2_3 = arith.constant 2 : index
    %c0_4 = arith.constant 0 : index
    %3 = vector.load %arg5[%c2, %c2_3, %c0_4] : memref<20x20x4xbf16, #tpu.memory_space<vmem>>, vector<16x16x4xbf16>
    tpu.vector_store %arg5[%c2, %c2_3, %c0_4], %2 {strides = array<i32>} : memref<20x20x4xbf16, #tpu.memory_space<vmem>>, vector<16x16x4xbf16>,
    %4 = vector.extract_strided_slice %2 {offsets = [1, 0, 0], sizes = [1, 16, 4], strides = [1, 1, 1]} : vector<16x16x4xbf16> to vector<1x16x4xbf16>
    %c1 = arith.constant 1 : index
    %c2_5 = arith.constant 2 : index
    %c0_6 = arith.constant 0 : index
    %5 = vector.load %arg5[%c1, %c2_5, %c0_6] : memref<20x20x4xbf16, #tpu.memory_space<vmem>>, vector<1x16x4xbf16>
    tpu.vector_store %arg5[%c1, %c2_5, %c0_6], %4 {strides = array<i32>} : memref<20x20x4xbf16, #tpu.memory_space<vmem>>, vector<1x16x4xbf16>,
    %6 = vector.extract_strided_slice %2 {offsets = [14, 0, 0], sizes = [1, 16, 4], strides = [1, 1, 1]} : vector<16x16x4xbf16> to vector<1x16x4xbf16>
    %c18 = arith.constant 18 : index
    %c2_7 = arith.constant 2 : index
    %c0_8 = arith.constant 0 : index
    %7 = vector.load %arg5[%c18, %c2_7, %c0_8] : memref<20x20x4xbf16, #tpu.memory_space<vmem>>, vector<1x16x4xbf16>
    tpu.vector_store %arg5[%c18, %c2_7, %c0_8], %6 {strides = array<i32>} : memref<20x20x4xbf16, #tpu.memory_space<vmem>>, vector<1x16x4xbf16>,
    %8 = vector.extract_strided_slice %2 {offsets = [2, 0, 0], sizes = [1, 16, 4], strides = [1, 1, 1]} : vector<16x16x4xbf16> to vector<1x16x4xbf16>
    %c0_9 = arith.constant 0 : index
    %c2_10 = arith.constant 2 : index
    %c0_11 = arith.constant 0 : index
    %9 = vector.load %arg5[%c0_9, %c2_10, %c0_11] : memref<20x20x4xbf16, #tpu.memory_space<vmem>>, vector<1x16x4xbf16>
    tpu.vector_store %arg5[%c0_9, %c2_10, %c0_11], %8 {strides = array<i32>} : memref<20x20x4xbf16, #tpu.memory_space<vmem>>, vector<1x16x4xbf16>,
    %10 = vector.extract_strided_slice %2 {offsets = [13, 0, 0], sizes = [1, 16, 4], strides = [1, 1, 1]} : vector<16x16x4xbf16> to vector<1x16x4xbf16>
    %c19 = arith.constant 19 : index
    %c2_12 = arith.constant 2 : index
    %c0_13 = arith.constant 0 : index
    %11 = vector.load %arg5[%c19, %c2_12, %c0_13] : memref<20x20x4xbf16, #tpu.memory_space<vmem>>, vector<1x16x4xbf16>
    tpu.vector_store %arg5[%c19, %c2_12, %c0_13], %10 {strides = array<i32>} : memref<20x20x4xbf16, #tpu.memory_space<vmem>>, vector<1x16x4xbf16>,
    %c0_14 = arith.constant 0 : index
    %c3 = arith.constant 3 : index
    %c0_15 = arith.constant 0 : index
    %12 = vector.load %arg5[%c0_14, %c3, %c0_15] : memref<20x20x4xbf16, #tpu.memory_space<vmem>>, vector<20x1x4xbf16>
    %c0_16 = arith.constant 0 : index
    %c1_17 = arith.constant 1 : index
    %c0_18 = arith.constant 0 : index
    %13 = vector.load %arg5[%c0_16, %c1_17, %c0_18] : memref<20x20x4xbf16, #tpu.memory_space<vmem>>, vector<20x1x4xbf16>
    tpu.vector_store %arg5[%c0_16, %c1_17, %c0_18], %12 {strides = array<i32>} : memref<20x20x4xbf16, #tpu.memory_space<vmem>>, vector<20x1x4xbf16>,
    %c0_19 = arith.constant 0 : index
    %c16 = arith.constant 16 : index
    %c0_20 = arith.constant 0 : index
    %14 = vector.load %arg5[%c0_19, %c16, %c0_20] : memref<20x20x4xbf16, #tpu.memory_space<vmem>>, vector<20x1x4xbf16>
    %c0_21 = arith.constant 0 : index
    %c18_22 = arith.constant 18 : index
    %c0_23 = arith.constant 0 : index
    %15 = vector.load %arg5[%c0_21, %c18_22, %c0_23] : memref<20x20x4xbf16, #tpu.memory_space<vmem>>, vector<20x1x4xbf16>
    tpu.vector_store %arg5[%c0_21, %c18_22, %c0_23], %14 {strides = array<i32>} : memref<20x20x4xbf16, #tpu.memory_space<vmem>>, vector<20x1x4xbf16>,
    %c0_24 = arith.constant 0 : index
    %c4 = arith.constant 4 : index
    %c0_25 = arith.constant 0 : index
    %16 = vector.load %arg5[%c0_24, %c4, %c0_25] : memref<20x20x4xbf16, #tpu.memory_space<vmem>>, vector<20x1x4xbf16>
    %c0_26 = arith.constant 0 : index
    %c0_27 = arith.constant 0 : index
    %c0_28 = arith.constant 0 : index
    %17 = vector.load %arg5[%c0_26, %c0_27, %c0_28] : memref<20x20x4xbf16, #tpu.memory_space<vmem>>, vector<20x1x4xbf16>
    tpu.vector_store %arg5[%c0_26, %c0_27, %c0_28], %16 {strides = array<i32>} : memref<20x20x4xbf16, #tpu.memory_space<vmem>>, vector<20x1x4xbf16>,
    %c0_29 = arith.constant 0 : index
    %c15 = arith.constant 15 : index
    %c0_30 = arith.constant 0 : index
    %18 = vector.load %arg5[%c0_29, %c15, %c0_30] : memref<20x20x4xbf16, #tpu.memory_space<vmem>>, vector<20x1x4xbf16>
    %c0_31 = arith.constant 0 : index
    %c19_32 = arith.constant 19 : index
    %c0_33 = arith.constant 0 : index
    %19 = vector.load %arg5[%c0_31, %c19_32, %c0_33] : memref<20x20x4xbf16, #tpu.memory_space<vmem>>, vector<20x1x4xbf16>
    tpu.vector_store %arg5[%c0_31, %c19_32, %c0_33], %18 {strides = array<i32>} : memref<20x20x4xbf16, #tpu.memory_space<vmem>>, vector<20x1x4xbf16>,
    %c0_34 = arith.constant 0 : index
    %c0_35 = arith.constant 0 : index
    %c0_36 = arith.constant 0 : index
    %20 = vector.load %arg5[%c0_34, %c0_35, %c0_36] : memref<20x20x4xbf16, #tpu.memory_space<vmem>>, vector<16x16x4xbf16>
    %21 = vector.shape_cast %20 : vector<16x16x4xbf16> to vector<256x4xbf16>
    %c0_37 = arith.constant 0 : index
    %c0_38 = arith.constant 0 : index
    %c0_39 = arith.constant 0 : index
    %22 = vector.load %arg2[%c0_37, %c0_38, %c0_39] : memref<9x4x4xbf16, #tpu.memory_space<vmem>>, vector<1x4x4xbf16>
    %23 = vector.shape_cast %22 : vector<1x4x4xbf16> to vector<4x4xbf16>
    %cst = arith.constant dense<0.000000e+00> : vector<256x4xf32>
    %24 = tpu.matmul %21, %23, %cst {dimension_numbers = #tpu.dot_dimension_numbers<[1], [0], [0], [1], [0, 0, 1, 1], [], []>} : vector<256x4xbf16>, vector<4x4xbf16>, vector<256x4xf32> -> vector<256x4xf32>
    %c0_40 = arith.constant 0 : index
    %c2_41 = arith.constant 2 : index
    %c0_42 = arith.constant 0 : index
    %25 = vector.load %arg5[%c0_40, %c2_41, %c0_42] : memref<20x20x4xbf16, #tpu.memory_space<vmem>>, vector<16x16x4xbf16>
    %26 = vector.shape_cast %25 : vector<16x16x4xbf16> to vector<256x4xbf16>
    %c1_43 = arith.constant 1 : index
    %c0_44 = arith.constant 0 : index
    %c0_45 = arith.constant 0 : index
    %27 = vector.load %arg2[%c1_43, %c0_44, %c0_45] : memref<9x4x4xbf16, #tpu.memory_space<vmem>>, vector<1x4x4xbf16>
    %28 = vector.shape_cast %27 : vector<1x4x4xbf16> to vector<4x4xbf16>
    %cst_46 = arith.constant dense<0.000000e+00> : vector<256x4xf32>
    %29 = tpu.matmul %26, %28, %cst_46 {dimension_numbers = #tpu.dot_dimension_numbers<[1], [0], [0], [1], [0, 0, 1, 1], [], []>} : vector<256x4xbf16>, vector<4x4xbf16>, vector<256x4xf32> -> vector<256x4xf32>
    %30 = arith.addf %24, %29 : vector<256x4xf32>
    %c0_47 = arith.constant 0 : index
    %c4_48 = arith.constant 4 : index
    %c0_49 = arith.constant 0 : index
    %31 = vector.load %arg5[%c0_47, %c4_48, %c0_49] : memref<20x20x4xbf16, #tpu.memory_space<vmem>>, vector<16x16x4xbf16>
    %32 = vector.shape_cast %31 : vector<16x16x4xbf16> to vector<256x4xbf16>
    %c2_50 = arith.constant 2 : index
    %c0_51 = arith.constant 0 : index
    %c0_52 = arith.constant 0 : index
    %33 = vector.load %arg2[%c2_50, %c0_51, %c0_52] : memref<9x4x4xbf16, #tpu.memory_space<vmem>>, vector<1x4x4xbf16>
    %34 = vector.shape_cast %33 : vector<1x4x4xbf16> to vector<4x4xbf16>
    %cst_53 = arith.constant dense<0.000000e+00> : vector<256x4xf32>
    %35 = tpu.matmul %32, %34, %cst_53 {dimension_numbers = #tpu.dot_dimension_numbers<[1], [0], [0], [1], [0, 0, 1, 1], [], []>} : vector<256x4xbf16>, vector<4x4xbf16>, vector<256x4xf32> -> vector<256x4xf32>
    %36 = arith.addf %30, %35 : vector<256x4xf32>
    %c2_54 = arith.constant 2 : index
    %c0_55 = arith.constant 0 : index
    %c0_56 = arith.constant 0 : index
    %37 = vector.load %arg5[%c2_54, %c0_55, %c0_56] : memref<20x20x4xbf16, #tpu.memory_space<vmem>>, vector<16x16x4xbf16>
    %38 = vector.shape_cast %37 : vector<16x16x4xbf16> to vector<256x4xbf16>
    %c3_57 = arith.constant 3 : index
    %c0_58 = arith.constant 0 : index
    %c0_59 = arith.constant 0 : index
    %39 = vector.load %arg2[%c3_57, %c0_58, %c0_59] : memref<9x4x4xbf16, #tpu.memory_space<vmem>>, vector<1x4x4xbf16>
    %40 = vector.shape_cast %39 : vector<1x4x4xbf16> to vector<4x4xbf16>
    %cst_60 = arith.constant dense<0.000000e+00> : vector<256x4xf32>
    %41 = tpu.matmul %38, %40, %cst_60 {dimension_numbers = #tpu.dot_dimension_numbers<[1], [0], [0], [1], [0, 0, 1, 1], [], []>} : vector<256x4xbf16>, vector<4x4xbf16>, vector<256x4xf32> -> vector<256x4xf32>
    %42 = arith.addf %36, %41 : vector<256x4xf32>
    %c2_61 = arith.constant 2 : index
    %c2_62 = arith.constant 2 : index
    %c0_63 = arith.constant 0 : index
    %43 = vector.load %arg5[%c2_61, %c2_62, %c0_63] : memref<20x20x4xbf16, #tpu.memory_space<vmem>>, vector<16x16x4xbf16>
    %44 = vector.shape_cast %43 : vector<16x16x4xbf16> to vector<256x4xbf16>
    %c4_64 = arith.constant 4 : index
    %c0_65 = arith.constant 0 : index
    %c0_66 = arith.constant 0 : index
    %45 = vector.load %arg2[%c4_64, %c0_65, %c0_66] : memref<9x4x4xbf16, #tpu.memory_space<vmem>>, vector<1x4x4xbf16>
    %46 = vector.shape_cast %45 : vector<1x4x4xbf16> to vector<4x4xbf16>
    %cst_67 = arith.constant dense<0.000000e+00> : vector<256x4xf32>
    %47 = tpu.matmul %44, %46, %cst_67 {dimension_numbers = #tpu.dot_dimension_numbers<[1], [0], [0], [1], [0, 0, 1, 1], [], []>} : vector<256x4xbf16>, vector<4x4xbf16>, vector<256x4xf32> -> vector<256x4xf32>
    %48 = arith.addf %42, %47 : vector<256x4xf32>
    %c2_68 = arith.constant 2 : index
    %c4_69 = arith.constant 4 : index
    %c0_70 = arith.constant 0 : index
    %49 = vector.load %arg5[%c2_68, %c4_69, %c0_70] : memref<20x20x4xbf16, #tpu.memory_space<vmem>>, vector<16x16x4xbf16>
    %50 = vector.shape_cast %49 : vector<16x16x4xbf16> to vector<256x4xbf16>
    %c5 = arith.constant 5 : index
    %c0_71 = arith.constant 0 : index
    %c0_72 = arith.constant 0 : index
    %51 = vector.load %arg2[%c5, %c0_71, %c0_72] : memref<9x4x4xbf16, #tpu.memory_space<vmem>>, vector<1x4x4xbf16>
    %52 = vector.shape_cast %51 : vector<1x4x4xbf16> to vector<4x4xbf16>
    %cst_73 = arith.constant dense<0.000000e+00> : vector<256x4xf32>
    %53 = tpu.matmul %50, %52, %cst_73 {dimension_numbers = #tpu.dot_dimension_numbers<[1], [0], [0], [1], [0, 0, 1, 1], [], []>} : vector<256x4xbf16>, vector<4x4xbf16>, vector<256x4xf32> -> vector<256x4xf32>
    %54 = arith.addf %48, %53 : vector<256x4xf32>
    %c4_74 = arith.constant 4 : index
    %c0_75 = arith.constant 0 : index
    %c0_76 = arith.constant 0 : index
    %55 = vector.load %arg5[%c4_74, %c0_75, %c0_76] : memref<20x20x4xbf16, #tpu.memory_space<vmem>>, vector<16x16x4xbf16>
    %56 = vector.shape_cast %55 : vector<16x16x4xbf16> to vector<256x4xbf16>
    %c6 = arith.constant 6 : index
    %c0_77 = arith.constant 0 : index
    %c0_78 = arith.constant 0 : index
    %57 = vector.load %arg2[%c6, %c0_77, %c0_78] : memref<9x4x4xbf16, #tpu.memory_space<vmem>>, vector<1x4x4xbf16>
    %58 = vector.shape_cast %57 : vector<1x4x4xbf16> to vector<4x4xbf16>
    %cst_79 = arith.constant dense<0.000000e+00> : vector<256x4xf32>
    %59 = tpu.matmul %56, %58, %cst_79 {dimension_numbers = #tpu.dot_dimension_numbers<[1], [0], [0], [1], [0, 0, 1, 1], [], []>} : vector<256x4xbf16>, vector<4x4xbf16>, vector<256x4xf32> -> vector<256x4xf32>
    %60 = arith.addf %54, %59 : vector<256x4xf32>
    %c4_80 = arith.constant 4 : index
    %c2_81 = arith.constant 2 : index
    %c0_82 = arith.constant 0 : index
    %61 = vector.load %arg5[%c4_80, %c2_81, %c0_82] : memref<20x20x4xbf16, #tpu.memory_space<vmem>>, vector<16x16x4xbf16>
    %62 = vector.shape_cast %61 : vector<16x16x4xbf16> to vector<256x4xbf16>
    %c7 = arith.constant 7 : index
    %c0_83 = arith.constant 0 : index
    %c0_84 = arith.constant 0 : index
    %63 = vector.load %arg2[%c7, %c0_83, %c0_84] : memref<9x4x4xbf16, #tpu.memory_space<vmem>>, vector<1x4x4xbf16>
    %64 = vector.shape_cast %63 : vector<1x4x4xbf16> to vector<4x4xbf16>
    %cst_85 = arith.constant dense<0.000000e+00> : vector<256x4xf32>
    %65 = tpu.matmul %62, %64, %cst_85 {dimension_numbers = #tpu.dot_dimension_numbers<[1], [0], [0], [1], [0, 0, 1, 1], [], []>} : vector<256x4xbf16>, vector<4x4xbf16>, vector<256x4xf32> -> vector<256x4xf32>
    %66 = arith.addf %60, %65 : vector<256x4xf32>
    %c4_86 = arith.constant 4 : index
    %c4_87 = arith.constant 4 : index
    %c0_88 = arith.constant 0 : index
    %67 = vector.load %arg5[%c4_86, %c4_87, %c0_88] : memref<20x20x4xbf16, #tpu.memory_space<vmem>>, vector<16x16x4xbf16>
    %68 = vector.shape_cast %67 : vector<16x16x4xbf16> to vector<256x4xbf16>
    %c8 = arith.constant 8 : index
    %c0_89 = arith.constant 0 : index
    %c0_90 = arith.constant 0 : index
    %69 = vector.load %arg2[%c8, %c0_89, %c0_90] : memref<9x4x4xbf16, #tpu.memory_space<vmem>>, vector<1x4x4xbf16>
    %70 = vector.shape_cast %69 : vector<1x4x4xbf16> to vector<4x4xbf16>
    %cst_91 = arith.constant dense<0.000000e+00> : vector<256x4xf32>
    %71 = tpu.matmul %68, %70, %cst_91 {dimension_numbers = #tpu.dot_dimension_numbers<[1], [0], [0], [1], [0, 0, 1, 1], [], []>} : vector<256x4xbf16>, vector<4x4xbf16>, vector<256x4xf32> -> vector<256x4xf32>
    %72 = arith.addf %66, %71 : vector<256x4xf32>
    %cst_92 = arith.constant dense<0.000000e+00> : vector<4xf32>
    %73 = vector.multi_reduction <add>, %72, %cst_92 [0] : vector<256x4xf32> to vector<4xf32>
    %74 = vector.shape_cast %73 : vector<4xf32> to vector<1x4xf32>
    %cst_93 = arith.constant 3.906250e-03 : f32
    %75 = vector.broadcast %cst_93 : f32 to vector<1x4xf32>
    %76 = arith.mulf %74, %75 : vector<1x4xf32>
    %77 = vector.broadcast %76 : vector<1x4xf32> to vector<256x4xf32>
    %78 = arith.subf %72, %77 : vector<256x4xf32>
    %79 = arith.mulf %78, %78 : vector<256x4xf32>
    %cst_94 = arith.constant dense<0.000000e+00> : vector<4xf32>
    %80 = vector.multi_reduction <add>, %79, %cst_94 [0] : vector<256x4xf32> to vector<4xf32>
    %81 = vector.shape_cast %80 : vector<4xf32> to vector<1x4xf32>
    %cst_95 = arith.constant 3.906250e-03 : f32
    %82 = vector.broadcast %cst_95 : f32 to vector<1x4xf32>
    %83 = arith.mulf %81, %82 : vector<1x4xf32>
    %cst_96 = arith.constant 9.99999974E-6 : f32
    %84 = vector.broadcast %cst_96 : f32 to vector<1x4xf32>
    %85 = arith.addf %83, %84 : vector<1x4xf32>
    %86 = math.rsqrt %85 : vector<1x4xf32>
    %87 = vector.broadcast %86 : vector<1x4xf32> to vector<256x4xf32>
    %88 = arith.mulf %78, %87 : vector<256x4xf32>
    %cst_97 = arith.constant 0.000000e+00 : f32
    %89 = vector.broadcast %cst_97 : f32 to vector<256x4xf32>
    %90 = arith.maximumf %88, %89 : vector<256x4xf32>
    %91 = vector.shape_cast %90 : vector<256x4xf32> to vector<16x16x4xf32>
    %92 = arith.truncf %91 : vector<16x16x4xf32> to vector<16x16x4xbf16>
    %c1_98 = arith.constant 1 : index
    %c1_99 = arith.constant 1 : index
    %c0_100 = arith.constant 0 : index
    %93 = vector.load %arg5[%c1_98, %c1_99, %c0_100] : memref<20x20x4xbf16, #tpu.memory_space<vmem>>, vector<16x16x4xbf16>
    tpu.vector_store %arg5[%c1_98, %c1_99, %c0_100], %92 {strides = array<i32>} : memref<20x20x4xbf16, #tpu.memory_space<vmem>>, vector<16x16x4xbf16>,
    %94 = vector.extract_strided_slice %92 {offsets = [1, 0, 0], sizes = [1, 16, 4], strides = [1, 1, 1]} : vector<16x16x4xbf16> to vector<1x16x4xbf16>
    %c0_101 = arith.constant 0 : index
    %c1_102 = arith.constant 1 : index
    %c0_103 = arith.constant 0 : index
    %95 = vector.load %arg5[%c0_101, %c1_102, %c0_103] : memref<20x20x4xbf16, #tpu.memory_space<vmem>>, vector<1x16x4xbf16>
    tpu.vector_store %arg5[%c0_101, %c1_102, %c0_103], %94 {strides = array<i32>} : memref<20x20x4xbf16, #tpu.memory_space<vmem>>, vector<1x16x4xbf16>,
    %96 = vector.extract_strided_slice %92 {offsets = [14, 0, 0], sizes = [1, 16, 4], strides = [1, 1, 1]} : vector<16x16x4xbf16> to vector<1x16x4xbf16>
    %c17 = arith.constant 17 : index
    %c1_104 = arith.constant 1 : index
    %c0_105 = arith.constant 0 : index
    %97 = vector.load %arg5[%c17, %c1_104, %c0_105] : memref<20x20x4xbf16, #tpu.memory_space<vmem>>, vector<1x16x4xbf16>
    tpu.vector_store %arg5[%c17, %c1_104, %c0_105], %96 {strides = array<i32>} : memref<20x20x4xbf16, #tpu.memory_space<vmem>>, vector<1x16x4xbf16>,
    %c0_106 = arith.constant 0 : index
    %c2_107 = arith.constant 2 : index
    %c0_108 = arith.constant 0 : index
    %98 = vector.load %arg5[%c0_106, %c2_107, %c0_108] : memref<20x20x4xbf16, #tpu.memory_space<vmem>>, vector<18x1x4xbf16>
    %c0_109 = arith.constant 0 : index
    %c0_110 = arith.constant 0 : index
    %c0_111 = arith.constant 0 : index
    %99 = vector.load %arg5[%c0_109, %c0_110, %c0_111] : memref<20x20x4xbf16, #tpu.memory_space<vmem>>, vector<18x1x4xbf16>
    tpu.vector_store %arg5[%c0_109, %c0_110, %c0_111], %98 {strides = array<i32>} : memref<20x20x4xbf16, #tpu.memory_space<vmem>>, vector<18x1x4xbf16>,
    %c0_112 = arith.constant 0 : index
    %c15_113 = arith.constant 15 : index
    %c0_114 = arith.constant 0 : index
    %100 = vector.load %arg5[%c0_112, %c15_113, %c0_114] : memref<20x20x4xbf16, #tpu.memory_space<vmem>>, vector<18x1x4xbf16>
    %c0_115 = arith.constant 0 : index
    %c17_116 = arith.constant 17 : index
    %c0_117 = arith.constant 0 : index
    %101 = vector.load %arg5[%c0_115, %c17_116, %c0_117] : memref<20x20x4xbf16, #tpu.memory_space<vmem>>, vector<18x1x4xbf16>
    tpu.vector_store %arg5[%c0_115, %c17_116, %c0_117], %100 {strides = array<i32>} : memref<20x20x4xbf16, #tpu.memory_space<vmem>>, vector<18x1x4xbf16>,
    %c0_118 = arith.constant 0 : index
    %c0_119 = arith.constant 0 : index
    %c0_120 = arith.constant 0 : index
    %102 = vector.load %arg5[%c0_118, %c0_119, %c0_120] : memref<20x20x4xbf16, #tpu.memory_space<vmem>>, vector<16x16x4xbf16>
    %103 = vector.shape_cast %102 : vector<16x16x4xbf16> to vector<256x4xbf16>
    %c0_121 = arith.constant 0 : index
    %c0_122 = arith.constant 0 : index
    %c0_123 = arith.constant 0 : index
    %104 = vector.load %arg3[%c0_121, %c0_122, %c0_123] : memref<9x4x4xbf16, #tpu.memory_space<vmem>>, vector<1x4x4xbf16>
    %105 = vector.shape_cast %104 : vector<1x4x4xbf16> to vector<4x4xbf16>
    %cst_124 = arith.constant dense<0.000000e+00> : vector<256x4xf32>
    %106 = tpu.matmul %103, %105, %cst_124 {dimension_numbers = #tpu.dot_dimension_numbers<[1], [0], [0], [1], [0, 0, 1, 1], [], []>} : vector<256x4xbf16>, vector<4x4xbf16>, vector<256x4xf32> -> vector<256x4xf32>
    %c0_125 = arith.constant 0 : index
    %c1_126 = arith.constant 1 : index
    %c0_127 = arith.constant 0 : index
    %107 = vector.load %arg5[%c0_125, %c1_126, %c0_127] : memref<20x20x4xbf16, #tpu.memory_space<vmem>>, vector<16x16x4xbf16>
    %108 = vector.shape_cast %107 : vector<16x16x4xbf16> to vector<256x4xbf16>
    %c1_128 = arith.constant 1 : index
    %c0_129 = arith.constant 0 : index
    %c0_130 = arith.constant 0 : index
    %109 = vector.load %arg3[%c1_128, %c0_129, %c0_130] : memref<9x4x4xbf16, #tpu.memory_space<vmem>>, vector<1x4x4xbf16>
    %110 = vector.shape_cast %109 : vector<1x4x4xbf16> to vector<4x4xbf16>
    %cst_131 = arith.constant dense<0.000000e+00> : vector<256x4xf32>
    %111 = tpu.matmul %108, %110, %cst_131 {dimension_numbers = #tpu.dot_dimension_numbers<[1], [0], [0], [1], [0, 0, 1, 1], [], []>} : vector<256x4xbf16>, vector<4x4xbf16>, vector<256x4xf32> -> vector<256x4xf32>
    %112 = arith.addf %106, %111 : vector<256x4xf32>
    %c0_132 = arith.constant 0 : index
    %c2_133 = arith.constant 2 : index
    %c0_134 = arith.constant 0 : index
    %113 = vector.load %arg5[%c0_132, %c2_133, %c0_134] : memref<20x20x4xbf16, #tpu.memory_space<vmem>>, vector<16x16x4xbf16>
    %114 = vector.shape_cast %113 : vector<16x16x4xbf16> to vector<256x4xbf16>
    %c2_135 = arith.constant 2 : index
    %c0_136 = arith.constant 0 : index
    %c0_137 = arith.constant 0 : index
    %115 = vector.load %arg3[%c2_135, %c0_136, %c0_137] : memref<9x4x4xbf16, #tpu.memory_space<vmem>>, vector<1x4x4xbf16>
    %116 = vector.shape_cast %115 : vector<1x4x4xbf16> to vector<4x4xbf16>
    %cst_138 = arith.constant dense<0.000000e+00> : vector<256x4xf32>
    %117 = tpu.matmul %114, %116, %cst_138 {dimension_numbers = #tpu.dot_dimension_numbers<[1], [0], [0], [1], [0, 0, 1, 1], [], []>} : vector<256x4xbf16>, vector<4x4xbf16>, vector<256x4xf32> -> vector<256x4xf32>
    %118 = arith.addf %112, %117 : vector<256x4xf32>
    %c1_139 = arith.constant 1 : index
    %c0_140 = arith.constant 0 : index
    %c0_141 = arith.constant 0 : index
    %119 = vector.load %arg5[%c1_139, %c0_140, %c0_141] : memref<20x20x4xbf16, #tpu.memory_space<vmem>>, vector<16x16x4xbf16>
    %120 = vector.shape_cast %119 : vector<16x16x4xbf16> to vector<256x4xbf16>
    %c3_142 = arith.constant 3 : index
    %c0_143 = arith.constant 0 : index
    %c0_144 = arith.constant 0 : index
    %121 = vector.load %arg3[%c3_142, %c0_143, %c0_144] : memref<9x4x4xbf16, #tpu.memory_space<vmem>>, vector<1x4x4xbf16>
    %122 = vector.shape_cast %121 : vector<1x4x4xbf16> to vector<4x4xbf16>
    %cst_145 = arith.constant dense<0.000000e+00> : vector<256x4xf32>
    %123 = tpu.matmul %120, %122, %cst_145 {dimension_numbers = #tpu.dot_dimension_numbers<[1], [0], [0], [1], [0, 0, 1, 1], [], []>} : vector<256x4xbf16>, vector<4x4xbf16>, vector<256x4xf32> -> vector<256x4xf32>
    %124 = arith.addf %118, %123 : vector<256x4xf32>
    %c1_146 = arith.constant 1 : index
    %c1_147 = arith.constant 1 : index
    %c0_148 = arith.constant 0 : index
    %125 = vector.load %arg5[%c1_146, %c1_147, %c0_148] : memref<20x20x4xbf16, #tpu.memory_space<vmem>>, vector<16x16x4xbf16>
    %126 = vector.shape_cast %125 : vector<16x16x4xbf16> to vector<256x4xbf16>
    %c4_149 = arith.constant 4 : index
    %c0_150 = arith.constant 0 : index
    %c0_151 = arith.constant 0 : index
    %127 = vector.load %arg3[%c4_149, %c0_150, %c0_151] : memref<9x4x4xbf16, #tpu.memory_space<vmem>>, vector<1x4x4xbf16>
    %128 = vector.shape_cast %127 : vector<1x4x4xbf16> to vector<4x4xbf16>
    %cst_152 = arith.constant dense<0.000000e+00> : vector<256x4xf32>
    %129 = tpu.matmul %126, %128, %cst_152 {dimension_numbers = #tpu.dot_dimension_numbers<[1], [0], [0], [1], [0, 0, 1, 1], [], []>} : vector<256x4xbf16>, vector<4x4xbf16>, vector<256x4xf32> -> vector<256x4xf32>
    %130 = arith.addf %124, %129 : vector<256x4xf32>
    %c1_153 = arith.constant 1 : index
    %c2_154 = arith.constant 2 : index
    %c0_155 = arith.constant 0 : index
    %131 = vector.load %arg5[%c1_153, %c2_154, %c0_155] : memref<20x20x4xbf16, #tpu.memory_space<vmem>>, vector<16x16x4xbf16>
    %132 = vector.shape_cast %131 : vector<16x16x4xbf16> to vector<256x4xbf16>
    %c5_156 = arith.constant 5 : index
    %c0_157 = arith.constant 0 : index
    %c0_158 = arith.constant 0 : index
    %133 = vector.load %arg3[%c5_156, %c0_157, %c0_158] : memref<9x4x4xbf16, #tpu.memory_space<vmem>>, vector<1x4x4xbf16>
    %134 = vector.shape_cast %133 : vector<1x4x4xbf16> to vector<4x4xbf16>
    %cst_159 = arith.constant dense<0.000000e+00> : vector<256x4xf32>
    %135 = tpu.matmul %132, %134, %cst_159 {dimension_numbers = #tpu.dot_dimension_numbers<[1], [0], [0], [1], [0, 0, 1, 1], [], []>} : vector<256x4xbf16>, vector<4x4xbf16>, vector<256x4xf32> -> vector<256x4xf32>
    %136 = arith.addf %130, %135 : vector<256x4xf32>
    %c2_160 = arith.constant 2 : index
    %c0_161 = arith.constant 0 : index
    %c0_162 = arith.constant 0 : index
    %137 = vector.load %arg5[%c2_160, %c0_161, %c0_162] : memref<20x20x4xbf16, #tpu.memory_space<vmem>>, vector<16x16x4xbf16>
    %138 = vector.shape_cast %137 : vector<16x16x4xbf16> to vector<256x4xbf16>
    %c6_163 = arith.constant 6 : index
    %c0_164 = arith.constant 0 : index
    %c0_165 = arith.constant 0 : index
    %139 = vector.load %arg3[%c6_163, %c0_164, %c0_165] : memref<9x4x4xbf16, #tpu.memory_space<vmem>>, vector<1x4x4xbf16>
    %140 = vector.shape_cast %139 : vector<1x4x4xbf16> to vector<4x4xbf16>
    %cst_166 = arith.constant dense<0.000000e+00> : vector<256x4xf32>
    %141 = tpu.matmul %138, %140, %cst_166 {dimension_numbers = #tpu.dot_dimension_numbers<[1], [0], [0], [1], [0, 0, 1, 1], [], []>} : vector<256x4xbf16>, vector<4x4xbf16>, vector<256x4xf32> -> vector<256x4xf32>
    %142 = arith.addf %136, %141 : vector<256x4xf32>
    %c2_167 = arith.constant 2 : index
    %c1_168 = arith.constant 1 : index
    %c0_169 = arith.constant 0 : index
    %143 = vector.load %arg5[%c2_167, %c1_168, %c0_169] : memref<20x20x4xbf16, #tpu.memory_space<vmem>>, vector<16x16x4xbf16>
    %144 = vector.shape_cast %143 : vector<16x16x4xbf16> to vector<256x4xbf16>
    %c7_170 = arith.constant 7 : index
    %c0_171 = arith.constant 0 : index
    %c0_172 = arith.constant 0 : index
    %145 = vector.load %arg3[%c7_170, %c0_171, %c0_172] : memref<9x4x4xbf16, #tpu.memory_space<vmem>>, vector<1x4x4xbf16>
    %146 = vector.shape_cast %145 : vector<1x4x4xbf16> to vector<4x4xbf16>
    %cst_173 = arith.constant dense<0.000000e+00> : vector<256x4xf32>
    %147 = tpu.matmul %144, %146, %cst_173 {dimension_numbers = #tpu.dot_dimension_numbers<[1], [0], [0], [1], [0, 0, 1, 1], [], []>} : vector<256x4xbf16>, vector<4x4xbf16>, vector<256x4xf32> -> vector<256x4xf32>
    %148 = arith.addf %142, %147 : vector<256x4xf32>
    %c2_174 = arith.constant 2 : index
    %c2_175 = arith.constant 2 : index
    %c0_176 = arith.constant 0 : index
    %149 = vector.load %arg5[%c2_174, %c2_175, %c0_176] : memref<20x20x4xbf16, #tpu.memory_space<vmem>>, vector<16x16x4xbf16>
    %150 = vector.shape_cast %149 : vector<16x16x4xbf16> to vector<256x4xbf16>
    %c8_177 = arith.constant 8 : index
    %c0_178 = arith.constant 0 : index
    %c0_179 = arith.constant 0 : index
    %151 = vector.load %arg3[%c8_177, %c0_178, %c0_179] : memref<9x4x4xbf16, #tpu.memory_space<vmem>>, vector<1x4x4xbf16>
    %152 = vector.shape_cast %151 : vector<1x4x4xbf16> to vector<4x4xbf16>
    %cst_180 = arith.constant dense<0.000000e+00> : vector<256x4xf32>
    %153 = tpu.matmul %150, %152, %cst_180 {dimension_numbers = #tpu.dot_dimension_numbers<[1], [0], [0], [1], [0, 0, 1, 1], [], []>} : vector<256x4xbf16>, vector<4x4xbf16>, vector<256x4xf32> -> vector<256x4xf32>
    %154 = arith.addf %148, %153 : vector<256x4xf32>
    %cst_181 = arith.constant dense<0.000000e+00> : vector<4xf32>
    %155 = vector.multi_reduction <add>, %154, %cst_181 [0] : vector<256x4xf32> to vector<4xf32>
    %156 = vector.shape_cast %155 : vector<4xf32> to vector<1x4xf32>
    %cst_182 = arith.constant 3.906250e-03 : f32
    %157 = vector.broadcast %cst_182 : f32 to vector<1x4xf32>
    %158 = arith.mulf %156, %157 : vector<1x4xf32>
    %159 = vector.broadcast %158 : vector<1x4xf32> to vector<256x4xf32>
    %160 = arith.subf %154, %159 : vector<256x4xf32>
    %161 = arith.mulf %160, %160 : vector<256x4xf32>
    %cst_183 = arith.constant dense<0.000000e+00> : vector<4xf32>
    %162 = vector.multi_reduction <add>, %161, %cst_183 [0] : vector<256x4xf32> to vector<4xf32>
    %163 = vector.shape_cast %162 : vector<4xf32> to vector<1x4xf32>
    %cst_184 = arith.constant 3.906250e-03 : f32
    %164 = vector.broadcast %cst_184 : f32 to vector<1x4xf32>
    %165 = arith.mulf %163, %164 : vector<1x4xf32>
    %cst_185 = arith.constant 9.99999974E-6 : f32
    %166 = vector.broadcast %cst_185 : f32 to vector<1x4xf32>
    %167 = arith.addf %165, %166 : vector<1x4xf32>
    %168 = math.rsqrt %167 : vector<1x4xf32>
    %169 = vector.broadcast %168 : vector<1x4xf32> to vector<256x4xf32>
    %170 = arith.mulf %160, %169 : vector<256x4xf32>
    %c0_186 = arith.constant 0 : index
    %c0_187 = arith.constant 0 : index
    %c0_188 = arith.constant 0 : index
    %c0_189 = arith.constant 0 : index
    %171 = vector.load %arg1[%c0_186, %c0_187, %c0_188, %c0_189] : memref<1x16x16x4xf32, #tpu.memory_space<vmem>>, vector<1x16x16x4xf32>
    %172 = vector.shape_cast %171 : vector<1x16x16x4xf32> to vector<16x16x4xf32>
    %173 = vector.shape_cast %172 : vector<16x16x4xf32> to vector<256x4xf32>
    %174 = arith.addf %173, %170 : vector<256x4xf32>
    %c0_190 = arith.constant 0 : index
    %c0_191 = arith.constant 0 : index
    %c0_192 = arith.constant 0 : index
    %175 = vector.load %arg4[%c0_190, %c0_191, %c0_192] : memref<1x256x4xf32, #tpu.memory_space<vmem>>, vector<1x256x4xf32>
    %176 = vector.shape_cast %175 : vector<1x256x4xf32> to vector<256x4xf32>
    %177 = vector.shape_cast %174 : vector<256x4xf32> to vector<1x256x4xf32>
    tpu.vector_store %arg4[%c0_190, %c0_191, %c0_192], %177 {strides = array<i32>} : memref<1x256x4xf32, #tpu.memory_space<vmem>>, vector<1x256x4xf32>,
    return
  }
  func.func @transform_0(%arg0: i32) -> (i32, i32, i32, i32) {
    %c0_i32 = arith.constant 0 : i32
    %c0_i32_0 = arith.constant 0 : i32
    %c0_i32_1 = arith.constant 0 : i32
    %c0_i32_2 = arith.constant 0 : i32
    return %arg0, %c0_i32, %c0_i32_0, %c0_i32_1 : i32, i32, i32, i32
  }
  func.func @transform_1(%arg0: i32) -> (i32, i32, i32) {
    %c0_i32 = arith.constant 0 : i32
    %c0_i32_0 = arith.constant 0 : i32
    %c0_i32_1 = arith.constant 0 : i32
    %c0_i32_2 = arith.constant 0 : i32
    return %c0_i32, %c0_i32_0, %c0_i32_1 : i32, i32, i32
  }
  func.func @transform_2(%arg0: i32) -> (i32, i32, i32) {
    %c0_i32 = arith.constant 0 : i32
    %c0_i32_0 = arith.constant 0 : i32
    %c0_i32_1 = arith.constant 0 : i32
    %c0_i32_2 = arith.constant 0 : i32
    return %c0_i32, %c0_i32_0, %c0_i32_1 : i32, i32, i32
  }
  func.func @transform_3(%arg0: i32) -> (i32, i32, i32) {
    %c0_i32 = arith.constant 0 : i32
    %c0_i32_0 = arith.constant 0 : i32
    %c0_i32_1 = arith.constant 0 : i32
    return %arg0, %c0_i32, %c0_i32_0 : i32, i32, i32
  }
}

</mosaic_0001>

<llo_original>
// kernel: _lambda_.1
$region0: #{_lambda_.1}
  #allocation0 [shape = 'u32[]', space=smem, size = 0x4, offset = 0x4, fixed_abs, tag = 'smem constant byte address 0x4 - core index']
  #allocation1 [shape = 'u32[72,128]{1,0:T(1,128)}', space=vmem, size = 0x9000, scoped, tag = 'internal scratch']
  #allocation2 [shape = 'bf16[20,20,4]{2,1,0:T(8,128)(2,1)}', space=vmem, size = 0x1e000, scoped, tag = 'scratch operand']
  %s0 = inlined_call_operand.vmem [shape: f32[2,16,16,4], index: 0, kind: input, shape index: {}]
  %s1 = inlined_call_operand.vmem [shape: bf16[9,4,4], index: 1, kind: input, shape index: {}]
  %s2 = inlined_call_operand.vmem [shape: bf16[9,4,4], index: 2, kind: input, shape index: {}]
  %s3 = inlined_call_operand.vmem [shape: f32[2,256,4], index: 3, kind: output, shape index: {}]
  %s4 = sld [smem:[#allocation0]]
  $region45: #{_lambda_.1} parent=0
    _
  %s6 = ssub.s32 1, %s4
  %s7 = scalar_select 0, %s6, %s4
  loop: start=0, step=1, limit=4
  $region2: #{_lambda_.1} parent=0 // loop_pre_header
    _
  $region3: #{_lambda_.1} parent=0 // loop_header
    %s9 = sphi 0, %s13
    %p10 = scmp.ge.s32.totalorder %s9, 4
    %s19 = sphi 0, %s21
    %s22 = sphi 0, %s19
    %s23 = sphi 0, %s22
    %s39 = sphi 0, %s23
    %s43 = sphi 0, %s43
    %s45 = sphi 0, %s43
    %s46 = sphi 0, %s45
    %s60 = sphi 0, %s46
    %s64 = sphi 0, %s64
    %s66 = sphi 0, %s64
    %s67 = sphi 0, %s66
    %s81 = sphi 0, %s67
    %s87 = sphi 0, %s89
    %s90 = sphi 0, %s87
    %s91 = sphi 0, %s90
    %s107 = sphi 0, %s91
  $region4: #{_lambda_.1} parent=0 // loop_header_branch
    %12 = sbr.rel (%p10) target = $region8
  $region5: #{_lambda_.1} parent=0 // loop_body
    %s14 = ssub.s32 %s9, 1
    %s15 = ssub.s32 %s9, 2
    %s16 = sadd.s32 %s9, 1
    %s17 = ssub.s32 %s9, %s16
    %p18 = scmp.eq.s32.totalorder %s17, 0
    %s20 = sadd.s32 %s19, 1
    %s21 = scalar_select %p18, %s19, %s20
    %p24 = pneg %p18
    %p25 = scmp.eq.s32.totalorder %s9, 1
    %p26 = por %p24, %p25
    %p27 = scmp.ne.s32.totalorder %s19, %s22
    %p28 = scmp.eq.s32.totalorder %s9, 0
    %p29 = por %p27, %p28
    %p30 = scmp.ne.s32.totalorder %s19, %s22
    %p31 = scmp.eq.s32.totalorder %s14, 1
    %p32 = por %p30, %p31
    %p33 = scmp.ne.s32.totalorder %s22, %s23
    %p34 = scmp.eq.s32.totalorder %s14, 0
    %p35 = por %p33, %p34
    %p36 = scmp.ne.s32.totalorder %s22, %s23
    %p37 = scmp.eq.s32.totalorder %s15, 1
    %p38 = por %p36, %p37
    %p40 = scmp.ne.s32.totalorder %s23, %s39
    %p41 = scmp.eq.s32.totalorder %s15, 0
    %p42 = por %p40, %p41
    %s44 = sadd.s32 %s43, 1
    %p47 = scmp.eq.s32.totalorder %s9, 1
    %p48 = scmp.ne.s32.totalorder %s43, %s45
    %p49 = scmp.eq.s32.totalorder %s9, 0
    %p50 = por %p48, %p49
    %p51 = scmp.ne.s32.totalorder %s43, %s45
    %p52 = scmp.eq.s32.totalorder %s14, 1
    %p53 = por %p51, %p52
    %p54 = scmp.ne.s32.totalorder %s45, %s46
    %p55 = scmp.eq.s32.totalorder %s14, 0
    %p56 = por %p54, %p55
    %p57 = scmp.ne.s32.totalorder %s45, %s46
    %p58 = scmp.eq.s32.totalorder %s15, 1
    %p59 = por %p57, %p58
    %p61 = scmp.ne.s32.totalorder %s46, %s60
    %p62 = scmp.eq.s32.totalorder %s15, 0
    %p63 = por %p61, %p62
    %s65 = sadd.s32 %s64, 1
    %p68 = scmp.eq.s32.totalorder %s9, 1
    %p69 = scmp.ne.s32.totalorder %s64, %s66
    %p70 = scmp.eq.s32.totalorder %s9, 0
    %p71 = por %p69, %p70
    %p72 = scmp.ne.s32.totalorder %s64, %s66
    %p73 = scmp.eq.s32.totalorder %s14, 1
    %p74 = por %p72, %p73
    %p75 = scmp.ne.s32.totalorder %s66, %s67
    %p76 = scmp.eq.s32.totalorder %s14, 0
    %p77 = por %p75, %p76
    %p78 = scmp.ne.s32.totalorder %s66, %s67
    %p79 = scmp.eq.s32.totalorder %s15, 1
    %p80 = por %p78, %p79
    %p82 = scmp.ne.s32.totalorder %s67, %s81
    %p83 = scmp.eq.s32.totalorder %s15, 0
    %p84 = por %p82, %p83
    %s85 = ssub.s32 %s9, %s16
    %p86 = scmp.eq.s32.totalorder %s85, 0
    %s88 = sadd.s32 %s87, 1
    %s89 = scalar_select %p86, %s87, %s88
    %p92 = pneg %p86
    %p93 = scmp.eq.s32.totalorder %s9, 1
    %p94 = por %p92, %p93
    %p95 = scmp.ne.s32.totalorder %s87, %s90
    %p96 = scmp.eq.s32.totalorder %s9, 0
    %p97 = por %p95, %p96
    %p98 = scmp.ne.s32.totalorder %s87, %s90
    %p99 = scmp.eq.s32.totalorder %s14, 1
    %p100 = por %p98, %p99
    %p101 = scmp.ne.s32.totalorder %s90, %s91
    %p102 = scmp.eq.s32.totalorder %s14, 0
    %p103 = por %p101, %p102
    %p104 = scmp.ne.s32.totalorder %s90, %s91
    %p105 = scmp.eq.s32.totalorder %s15, 1
    %p106 = por %p104, %p105
    %p108 = scmp.ne.s32.totalorder %s91, %s107
    %p109 = scmp.eq.s32.totalorder %s15, 0
    %p110 = por %p108, %p109
    %p111 = scmp.le.s32.totalorder 1, %s9
    %p112 = scmp.lt.s32.totalorder %s9, 3
    %p113 = pnand %p111, %p112
    %p114 = pneg %p113
    // Predicated region
    $region9: #{_lambda_.1} parent=5 // pred_check
      _
    $region10: #{_lambda_.1} parent=5 // pred_check_branch
      %116 = sbr.rel (%p113) target = $region12
    $region11: #{_lambda_.1} parent=5 // pred_region
      %s117 = ssub.s32 %s9, 1
      // Predicated region
      $region13: #{_lambda_.1} parent=11 // pred_check
        %p118 = pneg %p56
      $region14: #{_lambda_.1} parent=11 // pred_check_branch
        %120 = sbr.rel (%p118) target = $region16
      $region15: #{_lambda_.1} parent=11 // pred_region
        _
      $region16: #{_lambda_.1} parent=11 // pred_fallthru
        _
      // Predicated region
      $region17: #{_lambda_.1} parent=11 // pred_check
        %p121 = pneg %p77
      $region18: #{_lambda_.1} parent=11 // pred_check_branch
        %123 = sbr.rel (%p121) target = $region20
      $region19: #{_lambda_.1} parent=11 // pred_region
        _
      $region20: #{_lambda_.1} parent=11 // pred_fallthru
        _
    $region12: #{_lambda_.1} parent=5 // pred_fallthru
      _
    %p124 = scmp.lt.s32.totalorder %s9, 2
    // Predicated region
    $region21: #{_lambda_.1} parent=5 // pred_check
      %p125 = pneg %p124
    $region22: #{_lambda_.1} parent=5 // pred_check_branch
      %127 = sbr.rel (%p125) target = $region24
    $region23: #{_lambda_.1} parent=5 // pred_region
      // Predicated region
      $region25: #{_lambda_.1} parent=23 // pred_check
        %p128 = pneg %p29
      $region26: #{_lambda_.1} parent=23 // pred_check_branch
        %130 = sbr.rel (%p128) target = $region28
      $region27: #{_lambda_.1} parent=23 // pred_region
        %p131 = scmp.lt.s32.totalorder %s9, 1
        %s132 = scalar_select %p131, %s9, 1
        %s133 = smul.addr %s132, 32
        %s134 = smul.addr %s133, 8
        %s135 = scalar_lea.vmem %s0, %s134
      $region28: #{_lambda_.1} parent=23 // pred_fallthru
        _
    $region24: #{_lambda_.1} parent=5 // pred_fallthru
      _
    %p136 = scmp.le.s32.totalorder 1, %s9
    %p137 = scmp.lt.s32.totalorder %s9, 3
    %p138 = pnand %p136, %p137
    %p139 = pneg %p138
    // Predicated region
    $region29: #{_lambda_.1} parent=5 // pred_check
      _
    $region30: #{_lambda_.1} parent=5 // pred_check_branch
      %141 = sbr.rel (%p138) target = $region32
    $region31: #{_lambda_.1} parent=5 // pred_region
      %s142 = ssub.s32 %s9, 1
      %p143 = scmp.lt.s32.totalorder %s14, 1
      %s144 = scalar_select %p143, %s14, 1
      %s145 = smul.addr %s144, 32
      %s146 = smul.addr %s145, 8
      %s147 = scalar_lea.vmem %s0, %s146
      %p148 = pneg %p35
      %p149 = pneg %p32
      %p150 = pneg %p56
      %p151 = pneg %p53
      %p152 = pneg %p77
      %p153 = pneg %p74
      %p154 = pneg %p103
      %p155 = pneg %p100
      %p156 = scmp.lt.s32.totalorder %s14, 1
      %s157 = scalar_select %p156, %s14, 1
      %s158 = smul.addr %s157, 32
      %s159 = smul.addr %s158, 8
      %s160 = scalar_lea.vmem %s3, %s159
      %p161 = scmp.lt.s32.totalorder %s14, 1
      %s162 = scalar_select %p161, %s14, 1
      %s163 = smul.addr %s162, 32
      %s164 = smul.addr %s163, 8
      %s165 = scalar_lea.vmem %s0, %s164
      %p166 = scmp.lt.s32.totalorder %s14, 1
      %s167 = scalar_select %p166, %s14, 1
      %s168 = smul.addr %s167, 32
      %s169 = smul.addr %s168, 8
      %s170 = scalar_lea.vmem %s3, %s169
      %v172 = vld [vmem:[%s165] sm:$0xff]
      %v173 = vld [vmem:[%s165 + $0x8] sm:$0xff]
      %v174 = vld [vmem:[%s165 + $0x10] sm:$0xff]
      %v175 = vld [vmem:[%s165 + $0x18] sm:$0xff]
      %v176 = vld [vmem:[%s165 + $0x20] sm:$0xff]
      %v177 = vld [vmem:[%s165 + $0x28] sm:$0xff]
      %v178 = vld [vmem:[%s165 + $0x30] sm:$0xff]
      %v179 = vld [vmem:[%s165 + $0x38] sm:$0xff]
      %v180 = vld [vmem:[%s165 + $0x40] sm:$0xff]
      %v181 = vld [vmem:[%s165 + $0x48] sm:$0xff]
      %v182 = vld [vmem:[%s165 + $0x50] sm:$0xff]
      %v183 = vld [vmem:[%s165 + $0x58] sm:$0xff]
      %v184 = vld [vmem:[%s165 + $0x60] sm:$0xff]
      %v185 = vld [vmem:[%s165 + $0x68] sm:$0xff]
      %v186 = vld [vmem:[%s165 + $0x70] sm:$0xff]
      %v187 = vld [vmem:[%s165 + $0x78] sm:$0xff]
      %v188 = vld [vmem:[%s165 + $0x80] sm:$0xff]
      %v189 = vld [vmem:[%s165 + $0x88] sm:$0xff]
      %v190 = vld [vmem:[%s165 + $0x90] sm:$0xff]
      %v191 = vld [vmem:[%s165 + $0x98] sm:$0xff]
      %v192 = vld [vmem:[%s165 + $0xa0] sm:$0xff]
      %v193 = vld [vmem:[%s165 + $0xa8] sm:$0xff]
      %v194 = vld [vmem:[%s165 + $0xb0] sm:$0xff]
      %v195 = vld [vmem:[%s165 + $0xb8] sm:$0xff]
      %v196 = vld [vmem:[%s165 + $0xc0] sm:$0xff]
      %v197 = vld [vmem:[%s165 + $0xc8] sm:$0xff]
      %v198 = vld [vmem:[%s165 + $0xd0] sm:$0xff]
      %v199 = vld [vmem:[%s165 + $0xd8] sm:$0xff]
      %v200 = vld [vmem:[%s165 + $0xe0] sm:$0xff]
      %v201 = vld [vmem:[%s165 + $0xe8] sm:$0xff]
      %v202 = vld [vmem:[%s165 + $0xf0] sm:$0xff]
      %v203 = vld [vmem:[%s165 + $0xf8] sm:$0xff]
      %v204 = vpack.c.bf16 %v172, %v172
      %v205 = vpack.c.bf16 %v173, %v173
      %v206 = vpack.c.bf16 %v174, %v174
      %v207 = vpack.c.bf16 %v175, %v175
      %v208 = vpack.c.bf16 %v176, %v176
      %v209 = vpack.c.bf16 %v177, %v177
      %v210 = vpack.c.bf16 %v178, %v178
      %v211 = vpack.c.bf16 %v179, %v179
      %v212 = vpack.c.bf16 %v180, %v180
      %v213 = vpack.c.bf16 %v181, %v181
      %v214 = vpack.c.bf16 %v182, %v182
      %v215 = vpack.c.bf16 %v183, %v183
      %v216 = vpack.c.bf16 %v184, %v184
      %v217 = vpack.c.bf16 %v185, %v185
      %v218 = vpack.c.bf16 %v186, %v186
      %v219 = vpack.c.bf16 %v187, %v187
      %v220 = vpack.c.bf16 %v188, %v188
      %v221 = vpack.c.bf16 %v189, %v189
      %v222 = vpack.c.bf16 %v190, %v190
      %v223 = vpack.c.bf16 %v191, %v191
      %v224 = vpack.c.bf16 %v192, %v192
      %v225 = vpack.c.bf16 %v193, %v193
      %v226 = vpack.c.bf16 %v194, %v194
      %v227 = vpack.c.bf16 %v195, %v195
      %v228 = vpack.c.bf16 %v196, %v196
      %v229 = vpack.c.bf16 %v197, %v197
      %v230 = vpack.c.bf16 %v198, %v198
      %v231 = vpack.c.bf16 %v199, %v199
      %v232 = vpack.c.bf16 %v200, %v200
      %v233 = vpack.c.bf16 %v201, %v201
      %v234 = vpack.c.bf16 %v202, %v202
      %v235 = vpack.c.bf16 %v203, %v203
      %vm268 = vcmask 1040384
      %vm269 = vcmask 1044484
      %vm270 = vmor %vm268, %vm269
      %v271 = vrot.slane %v204, 7
      %v272 = vrot.slane %v271, 4
      %v273 = vrot.slane %v205, 7
      %v274 = vsel %vm270, %v272, %v273
      %v275 = vrot.slane %v273, 4
      %v276 = vrot.slane %v206, 7
      %v277 = vrot.slane %v276, 4
      %v278 = vrot.slane %v207, 7
      %v279 = vsel %vm270, %v277, %v278
      %v280 = vrot.slane %v278, 4
      %v281 = vrot.slane %v208, 7
      %v282 = vrot.slane %v281, 4
      %v283 = vrot.slane %v209, 7
      %v284 = vsel %vm270, %v282, %v283
      %v285 = vrot.slane %v283, 4
      %v286 = vrot.slane %v210, 7
      %v287 = vrot.slane %v286, 4
      %v288 = vrot.slane %v211, 7
      %v289 = vsel %vm270, %v287, %v288
      %v290 = vrot.slane %v288, 4
      %v291 = vrot.slane %v212, 7
      %v292 = vrot.slane %v291, 4
      %v293 = vrot.slane %v213, 7
      %v294 = vsel %vm270, %v292, %v293
      %v295 = vrot.slane %v293, 4
      %v296 = vrot.slane %v214, 7
      %v297 = vrot.slane %v296, 4
      %v298 = vrot.slane %v215, 7
      %v299 = vsel %vm270, %v297, %v298
      %v300 = vrot.slane %v298, 4
      %v301 = vrot.slane %v216, 7
      %v302 = vrot.slane %v301, 4
      %v303 = vrot.slane %v217, 7
      %v304 = vsel %vm270, %v302, %v303
      %v305 = vrot.slane %v303, 4
      %v306 = vrot.slane %v218, 7
      %v307 = vrot.slane %v306, 4
      %v308 = vrot.slane %v219, 7
      %v309 = vsel %vm270, %v307, %v308
      %v310 = vrot.slane %v308, 4
      %v311 = vrot.slane %v220, 7
      %v312 = vrot.slane %v311, 4
      %v313 = vrot.slane %v221, 7
      %v314 = vsel %vm270, %v312, %v313
      %v315 = vrot.slane %v313, 4
      %v316 = vrot.slane %v222, 7
      %v317 = vrot.slane %v316, 4
      %v318 = vrot.slane %v223, 7
      %v319 = vsel %vm270, %v317, %v318
      %v320 = vrot.slane %v318, 4
      %v321 = vrot.slane %v224, 7
      %v322 = vrot.slane %v321, 4
      %v323 = vrot.slane %v225, 7
      %v324 = vsel %vm270, %v322, %v323
      %v325 = vrot.slane %v323, 4
      %v326 = vrot.slane %v226, 7
      %v327 = vrot.slane %v326, 4
      %v328 = vrot.slane %v227, 7
      %v329 = vsel %vm270, %v327, %v328
      %v330 = vrot.slane %v328, 4
      %v331 = vrot.slane %v228, 7
      %v332 = vrot.slane %v331, 4
      %v333 = vrot.slane %v229, 7
      %v334 = vsel %vm270, %v332, %v333
      %v335 = vrot.slane %v333, 4
      %v336 = vrot.slane %v230, 7
      %v337 = vrot.slane %v336, 4
      %v338 = vrot.slane %v231, 7
      %v339 = vsel %vm270, %v337, %v338
      %v340 = vrot.slane %v338, 4
      %v341 = vrot.slane %v232, 7
      %v342 = vrot.slane %v341, 4
      %v343 = vrot.slane %v233, 7
      %v344 = vsel %vm270, %v342, %v343
      %v345 = vrot.slane %v343, 4
      %v346 = vrot.slane %v234, 7
      %v347 = vrot.slane %v346, 4
      %v348 = vrot.slane %v235, 7
      %v349 = vsel %vm270, %v347, %v348
      %v350 = vrot.slane %v348, 4
      %s399 = scalar_lea.vmem [#allocation2], 24
      %vm400 = vcmask 27649
      %401 = vst.msk [vmem:[%s399] sm:$0xe] %vm400, %v271
      %vm402 = vcmask 27648
      %403 = vst.msk [vmem:[%s399 + $0x4] sm:$0xf] %vm402, %v274
      %vm404 = vcmask 24576
      %405 = vst.msk [vmem:[%s399 + $0x8] sm:$0x1] %vm404, %v275
      %406 = vst.msk [vmem:[%s399 + $0xc] sm:$0xe] %vm400, %v276
      %407 = vst.msk [vmem:[%s399 + $0x10] sm:$0xf] %vm402, %v279
      %408 = vst.msk [vmem:[%s399 + $0x14] sm:$0x1] %vm404, %v280
      %409 = vst.msk [vmem:[%s399 + $0x18] sm:$0xe] %vm400, %v281
      %410 = vst.msk [vmem:[%s399 + $0x1c] sm:$0xf] %vm402, %v284
      %411 = vst.msk [vmem:[%s399 + $0x20] sm:$0x1] %vm404, %v285
      %412 = vst.msk [vmem:[%s399 + $0x24] sm:$0xe] %vm400, %v286
      %413 = vst.msk [vmem:[%s399 + $0x28] sm:$0xf] %vm402, %v289
      %414 = vst.msk [vmem:[%s399 + $0x2c] sm:$0x1] %vm404, %v290
      %415 = vst.msk [vmem:[%s399 + $0x30] sm:$0xe] %vm400, %v291
      %416 = vst.msk [vmem:[%s399 + $0x34] sm:$0xf] %vm402, %v294
      %417 = vst.msk [vmem:[%s399 + $0x38] sm:$0x1] %vm404, %v295
      %418 = vst.msk [vmem:[%s399 + $0x3c] sm:$0xe] %vm400, %v296
      %419 = vst.msk [vmem:[%s399 + $0x40] sm:$0xf] %vm402, %v299
      %420 = vst.msk [vmem:[%s399 + $0x44] sm:$0x1] %vm404, %v300
      %421 = vst.msk [vmem:[%s399 + $0x48] sm:$0xe] %vm400, %v301
      %422 = vst.msk [vmem:[%s399 + $0x4c] sm:$0xf] %vm402, %v304
      %423 = vst.msk [vmem:[%s399 + $0x50] sm:$0x1] %vm404, %v305
      %424 = vst.msk [vmem:[%s399 + $0x54] sm:$0xe] %vm400, %v306
      %425 = vst.msk [vmem:[%s399 + $0x58] sm:$0xf] %vm402, %v309
      %426 = vst.msk [vmem:[%s399 + $0x5c] sm:$0x1] %vm404, %v310
      %427 = vst.msk [vmem:[%s399 + $0x60] sm:$0xe] %vm400, %v311
      %428 = vst.msk [vmem:[%s399 + $0x64] sm:$0xf] %vm402, %v314
      %429 = vst.msk [vmem:[%s399 + $0x68] sm:$0x1] %vm404, %v315
      %430 = vst.msk [vmem:[%s399 + $0x6c] sm:$0xe] %vm400, %v316
      %431 = vst.msk [vmem:[%s399 + $0x70] sm:$0xf] %vm402, %v319
      %432 = vst.msk [vmem:[%s399 + $0x74] sm:$0x1] %vm404, %v320
      %433 = vst.msk [vmem:[%s399 + $0x78] sm:$0xe] %vm400, %v321
      %434 = vst.msk [vmem:[%s399 + $0x7c] sm:$0xf] %vm402, %v324
      %435 = vst.msk [vmem:[%s399 + $0x80] sm:$0x1] %vm404, %v325
      %436 = vst.msk [vmem:[%s399 + $0x84] sm:$0xe] %vm400, %v326
      %437 = vst.msk [vmem:[%s399 + $0x88] sm:$0xf] %vm402, %v329
      %438 = vst.msk [vmem:[%s399 + $0x8c] sm:$0x1] %vm404, %v330
      %439 = vst.msk [vmem:[%s399 + $0x90] sm:$0xe] %vm400, %v331
      %440 = vst.msk [vmem:[%s399 + $0x94] sm:$0xf] %vm402, %v334
      %441 = vst.msk [vmem:[%s399 + $0x98] sm:$0x1] %vm404, %v335
      %442 = vst.msk [vmem:[%s399 + $0x9c] sm:$0xe] %vm400, %v336
      %443 = vst.msk [vmem:[%s399 + $0xa0] sm:$0xf] %vm402, %v339
      %444 = vst.msk [vmem:[%s399 + $0xa4] sm:$0x1] %vm404, %v340
      %445 = vst.msk [vmem:[%s399 + $0xa8] sm:$0xe] %vm400, %v341
      %446 = vst.msk [vmem:[%s399 + $0xac] sm:$0xf] %vm402, %v344
      %447 = vst.msk [vmem:[%s399 + $0xb0] sm:$0x1] %vm404, %v345
      %448 = vst.msk [vmem:[%s399 + $0xb4] sm:$0xe] %vm400, %v346
      %449 = vst.msk [vmem:[%s399 + $0xb8] sm:$0xf] %vm402, %v349
      %450 = vst.msk [vmem:[%s399 + $0xbc] sm:$0x1] %vm404, %v350
      %s451 = scalar_lea.vmem [#allocation2], 12
      %452 = vst.msk [vmem:[%s451] sm:$0xe] %vm400, %v276
      %453 = vst.msk [vmem:[%s451 + $0x4] sm:$0xf] %vm402, %v279
      %454 = vst.msk [vmem:[%s451 + $0x8] sm:$0x1] %vm404, %v280
      %s455 = scalar_lea.vmem [#allocation2], 216
      %456 = vst.msk [vmem:[%s455] sm:$0xe] %vm400, %v341
      %457 = vst.msk [vmem:[%s455 + $0x4] sm:$0xf] %vm402, %v344
      %458 = vst.msk [vmem:[%s455 + $0x8] sm:$0x1] %vm404, %v345
      %459 = vst.msk [vmem:[#allocation2] sm:$0xe] %vm400, %v281
      %460 = vst.msk [vmem:[#allocation2 + $0x4] sm:$0xf] %vm402, %v284
      %461 = vst.msk [vmem:[#allocation2 + $0x8] sm:$0x1] %vm404, %v285
      %s462 = scalar_lea.vmem [#allocation2], 228
      %463 = vst.msk [vmem:[%s462] sm:$0xe] %vm400, %v336
      %464 = vst.msk [vmem:[%s462 + $0x4] sm:$0xf] %vm402, %v339
      %465 = vst.msk [vmem:[%s462 + $0x8] sm:$0x1] %vm404, %v340
      %v466 = vld [vmem:[#allocation2] sm:$0x2]
      %v467 = vld [vmem:[#allocation2 + $0xc] sm:$0x2]
      %v468 = vld [vmem:[#allocation2 + $0x18] sm:$0x2]
      %v469 = vld [vmem:[#allocation2 + $0x24] sm:$0x2]
      %v470 = vld [vmem:[#allocation2 + $0x30] sm:$0x2]
      %v471 = vld [vmem:[#allocation2 + $0x3c] sm:$0x2]
      %v472 = vld [vmem:[#allocation2 + $0x48] sm:$0x2]
      %v473 = vld [vmem:[#allocation2 + $0x54] sm:$0x2]
      %v474 = vld [vmem:[#allocation2 + $0x60] sm:$0x2]
      %v475 = vld [vmem:[#allocation2 + $0x6c] sm:$0x2]
      %v476 = vld [vmem:[#allocation2 + $0x78] sm:$0x2]
      %v477 = vld [vmem:[#allocation2 + $0x84] sm:$0x2]
      %v478 = vld [vmem:[#allocation2 + $0x90] sm:$0x2]
      %v479 = vld [vmem:[#allocation2 + $0x9c] sm:$0x2]
      %v480 = vld [vmem:[#allocation2 + $0xa8] sm:$0x2]
      %v481 = vld [vmem:[#allocation2 + $0xb4] sm:$0x2]
      %v482 = vld [vmem:[#allocation2 + $0xc0] sm:$0x2]
      %v483 = vld [vmem:[#allocation2 + $0xcc] sm:$0x2]
      %v484 = vld [vmem:[#allocation2 + $0xd8] sm:$0x2]
      %v485 = vld [vmem:[#allocation2 + $0xe4] sm:$0x2]
      %v506 = vrot.slane %v466, 5
      %v507 = vrot.slane %v506, 4
      %v508 = vrot.slane %v467, 5
      %v509 = vrot.slane %v508, 4
      %v510 = vrot.slane %v468, 5
      %v511 = vrot.slane %v510, 4
      %v512 = vrot.slane %v469, 5
      %v513 = vrot.slane %v512, 4
      %v514 = vrot.slane %v470, 5
      %v515 = vrot.slane %v514, 4
      %v516 = vrot.slane %v471, 5
      %v517 = vrot.slane %v516, 4
      %v518 = vrot.slane %v472, 5
      %v519 = vrot.slane %v518, 4
      %v520 = vrot.slane %v473, 5
      %v521 = vrot.slane %v520, 4
      %v522 = vrot.slane %v474, 5
      %v523 = vrot.slane %v522, 4
      %v524 = vrot.slane %v475, 5
      %v525 = vrot.slane %v524, 4
      %v526 = vrot.slane %v476, 5
      %v527 = vrot.slane %v526, 4
      %v528 = vrot.slane %v477, 5
      %v529 = vrot.slane %v528, 4
      %v530 = vrot.slane %v478, 5
      %v531 = vrot.slane %v530, 4
      %v532 = vrot.slane %v479, 5
      %v533 = vrot.slane %v532, 4
      %v534 = vrot.slane %v480, 5
      %v535 = vrot.slane %v534, 4
      %v536 = vrot.slane %v481, 5
      %v537 = vrot.slane %v536, 4
      %v538 = vrot.slane %v482, 5
      %v539 = vrot.slane %v538, 4
      %v540 = vrot.slane %v483, 5
      %v541 = vrot.slane %v540, 4
      %v542 = vrot.slane %v484, 5
      %v543 = vrot.slane %v542, 4
      %v544 = vrot.slane %v485, 5
      %v545 = vrot.slane %v544, 4
      %vm566 = vcmask 24576
      %vm567 = vsmask.f32 7938
      %vm568 = vmand %vm566, %vm567
      %v569 = vld [vmem:[#allocation2] sm:$0x1]
      %v570 = vsel %vm568, %v507, %v569
      %571 = vst [vmem:[#allocation2] sm:$0x1] %v570
      %v572 = vld [vmem:[#allocation2 + $0xc] sm:$0x1]
      %v573 = vsel %vm568, %v509, %v572
      %574 = vst [vmem:[#allocation2 + $0xc] sm:$0x1] %v573
      %v575 = vld [vmem:[#allocation2 + $0x18] sm:$0x1]
      %v576 = vsel %vm568, %v511, %v575
      %577 = vst [vmem:[#allocation2 + $0x18] sm:$0x1] %v576
      %v578 = vld [vmem:[#allocation2 + $0x24] sm:$0x1]
      %v579 = vsel %vm568, %v513, %v578
      %580 = vst [vmem:[#allocation2 + $0x24] sm:$0x1] %v579
      %v581 = vld [vmem:[#allocation2 + $0x30] sm:$0x1]
      %v582 = vsel %vm568, %v515, %v581
      %583 = vst [vmem:[#allocation2 + $0x30] sm:$0x1] %v582
      %v584 = vld [vmem:[#allocation2 + $0x3c] sm:$0x1]
      %v585 = vsel %vm568, %v517, %v584
      %586 = vst [vmem:[#allocation2 + $0x3c] sm:$0x1] %v585
      %v587 = vld [vmem:[#allocation2 + $0x48] sm:$0x1]
      %v588 = vsel %vm568, %v519, %v587
      %589 = vst [vmem:[#allocation2 + $0x48] sm:$0x1] %v588
      %v590 = vld [vmem:[#allocation2 + $0x54] sm:$0x1]
      %v591 = vsel %vm568, %v521, %v590
      %592 = vst [vmem:[#allocation2 + $0x54] sm:$0x1] %v591
      %v593 = vld [vmem:[#allocation2 + $0x60] sm:$0x1]
      %v594 = vsel %vm568, %v523, %v593
      %595 = vst [vmem:[#allocation2 + $0x60] sm:$0x1] %v594
      %v596 = vld [vmem:[#allocation2 + $0x6c] sm:$0x1]
      %v597 = vsel %vm568, %v525, %v596
      %598 = vst [vmem:[#allocation2 + $0x6c] sm:$0x1] %v597
      %v599 = vld [vmem:[#allocation2 + $0x78] sm:$0x1]
      %v600 = vsel %vm568, %v527, %v599
      %601 = vst [vmem:[#allocation2 + $0x78] sm:$0x1] %v600
      %v602 = vld [vmem:[#allocation2 + $0x84] sm:$0x1]
      %v603 = vsel %vm568, %v529, %v602
      %604 = vst [vmem:[#allocation2 + $0x84] sm:$0x1] %v603
      %v605 = vld [vmem:[#allocation2 + $0x90] sm:$0x1]
      %v606 = vsel %vm568, %v531, %v605
      %607 = vst [vmem:[#allocation2 + $0x90] sm:$0x1] %v606
      %v608 = vld [vmem:[#allocation2 + $0x9c] sm:$0x1]
      %v609 = vsel %vm568, %v533, %v608
      %610 = vst [vmem:[#allocation2 + $0x9c] sm:$0x1] %v609
      %v611 = vld [vmem:[#allocation2 + $0xa8] sm:$0x1]
      %v612 = vsel %vm568, %v535, %v611
      %613 = vst [vmem:[#allocation2 + $0xa8] sm:$0x1] %v612
      %v614 = vld [vmem:[#allocation2 + $0xb4] sm:$0x1]
      %v615 = vsel %vm568, %v537, %v614
      %616 = vst [vmem:[#allocation2 + $0xb4] sm:$0x1] %v615
      %v617 = vld [vmem:[#allocation2 + $0xc0] sm:$0x1]
      %v618 = vsel %vm568, %v539, %v617
      %619 = vst [vmem:[#allocation2 + $0xc0] sm:$0x1] %v618
      %v620 = vld [vmem:[#allocation2 + $0xcc] sm:$0x1]
      %v621 = vsel %vm568, %v541, %v620
      %622 = vst [vmem:[#allocation2 + $0xcc] sm:$0x1] %v621
      %v623 = vld [vmem:[#allocation2 + $0xd8] sm:$0x1]
      %v624 = vsel %vm568, %v543, %v623
      %625 = vst [vmem:[#allocation2 + $0xd8] sm:$0x1] %v624
      %v626 = vld [vmem:[#allocation2 + $0xe4] sm:$0x1]
      %v627 = vsel %vm568, %v545, %v626
      %628 = vst [vmem:[#allocation2 + $0xe4] sm:$0x1] %v627
      %v629 = vld [vmem:[#allocation2 + $0x8] sm:$0x1]
      %v630 = vld [vmem:[#allocation2 + $0x14] sm:$0x1]
      %v631 = vld [vmem:[#allocation2 + $0x20] sm:$0x1]
      %v632 = vld [vmem:[#allocation2 + $0x2c] sm:$0x1]
      %v633 = vld [vmem:[#allocation2 + $0x38] sm:$0x1]
      %v634 = vld [vmem:[#allocation2 + $0x44] sm:$0x1]
      %v635 = vld [vmem:[#allocation2 + $0x50] sm:$0x1]
      %v636 = vld [vmem:[#allocation2 + $0x5c] sm:$0x1]
      %v637 = vld [vmem:[#allocation2 + $0x68] sm:$0x1]
      %v638 = vld [vmem:[#allocation2 + $0x74] sm:$0x1]
      %v639 = vld [vmem:[#allocation2 + $0x80] sm:$0x1]
      %v640 = vld [vmem:[#allocation2 + $0x8c] sm:$0x1]
      %v641 = vld [vmem:[#allocation2 + $0x98] sm:$0x1]
      %v642 = vld [vmem:[#allocation2 + $0xa4] sm:$0x1]
      %v643 = vld [vmem:[#allocation2 + $0xb0] sm:$0x1]
      %v644 = vld [vmem:[#allocation2 + $0xbc] sm:$0x1]
      %v645 = vld [vmem:[#allocation2 + $0xc8] sm:$0x1]
      %v646 = vld [vmem:[#allocation2 + $0xd4] sm:$0x1]
      %v647 = vld [vmem:[#allocation2 + $0xe0] sm:$0x1]
      %v648 = vld [vmem:[#allocation2 + $0xec] sm:$0x1]
      %v669 = vrot.slane %v629, 7
      %v670 = vrot.slane %v630, 7
      %v671 = vrot.slane %v631, 7
      %v672 = vrot.slane %v632, 7
      %v673 = vrot.slane %v633, 7
      %v674 = vrot.slane %v634, 7
      %v675 = vrot.slane %v635, 7
      %v676 = vrot.slane %v636, 7
      %v677 = vrot.slane %v637, 7
      %v678 = vrot.slane %v638, 7
      %v679 = vrot.slane %v639, 7
      %v680 = vrot.slane %v640, 7
      %v681 = vrot.slane %v641, 7
      %v682 = vrot.slane %v642, 7
      %v683 = vrot.slane %v643, 7
      %v684 = vrot.slane %v644, 7
      %v685 = vrot.slane %v645, 7
      %v686 = vrot.slane %v646, 7
      %v687 = vrot.slane %v647, 7
      %v688 = vrot.slane %v648, 7
      %vm709 = vcmask 25601
      %vm710 = vsmask.f32 1280
      %vm711 = vmand %vm709, %vm710
      %v712 = vld [vmem:[#allocation2 + $0x8] sm:$0x2]
      %v713 = vsel %vm711, %v669, %v712
      %714 = vst [vmem:[#allocation2 + $0x8] sm:$0x2] %v713
      %v715 = vld [vmem:[#allocation2 + $0x14] sm:$0x2]
      %v716 = vsel %vm711, %v670, %v715
      %717 = vst [vmem:[#allocation2 + $0x14] sm:$0x2] %v716
      %v718 = vld [vmem:[#allocation2 + $0x20] sm:$0x2]
      %v719 = vsel %vm711, %v671, %v718
      %720 = vst [vmem:[#allocation2 + $0x20] sm:$0x2] %v719
      %v721 = vld [vmem:[#allocation2 + $0x2c] sm:$0x2]
      %v722 = vsel %vm711, %v672, %v721
      %723 = vst [vmem:[#allocation2 + $0x2c] sm:$0x2] %v722
      %v724 = vld [vmem:[#allocation2 + $0x38] sm:$0x2]
      %v725 = vsel %vm711, %v673, %v724
      %726 = vst [vmem:[#allocation2 + $0x38] sm:$0x2] %v725
      %v727 = vld [vmem:[#allocation2 + $0x44] sm:$0x2]
      %v728 = vsel %vm711, %v674, %v727
      %729 = vst [vmem:[#allocation2 + $0x44] sm:$0x2] %v728
      %v730 = vld [vmem:[#allocation2 + $0x50] sm:$0x2]
      %v731 = vsel %vm711, %v675, %v730
      %732 = vst [vmem:[#allocation2 + $0x50] sm:$0x2] %v731
      %v733 = vld [vmem:[#allocation2 + $0x5c] sm:$0x2]
      %v734 = vsel %vm711, %v676, %v733
      %735 = vst [vmem:[#allocation2 + $0x5c] sm:$0x2] %v734
      %v736 = vld [vmem:[#allocation2 + $0x68] sm:$0x2]
      %v737 = vsel %vm711, %v677, %v736
      %738 = vst [vmem:[#allocation2 + $0x68] sm:$0x2] %v737
      %v739 = vld [vmem:[#allocation2 + $0x74] sm:$0x2]
      %v740 = vsel %vm711, %v678, %v739
      %741 = vst [vmem:[#allocation2 + $0x74] sm:$0x2] %v740
      %v742 = vld [vmem:[#allocation2 + $0x80] sm:$0x2]
      %v743 = vsel %vm711, %v679, %v742
      %744 = vst [vmem:[#allocation2 + $0x80] sm:$0x2] %v743
      %v745 = vld [vmem:[#allocation2 + $0x8c] sm:$0x2]
      %v746 = vsel %vm711, %v680, %v745
      %747 = vst [vmem:[#allocation2 + $0x8c] sm:$0x2] %v746
      %v748 = vld [vmem:[#allocation2 + $0x98] sm:$0x2]
      %v749 = vsel %vm711, %v681, %v748
      %750 = vst [vmem:[#allocation2 + $0x98] sm:$0x2] %v749
      %v751 = vld [vmem:[#allocation2 + $0xa4] sm:$0x2]
      %v752 = vsel %vm711, %v682, %v751
      %753 = vst [vmem:[#allocation2 + $0xa4] sm:$0x2] %v752
      %v754 = vld [vmem:[#allocation2 + $0xb0] sm:$0x2]
      %v755 = vsel %vm711, %v683, %v754
      %756 = vst [vmem:[#allocation2 + $0xb0] sm:$0x2] %v755
      %v757 = vld [vmem:[#allocation2 + $0xbc] sm:$0x2]
      %v758 = vsel %vm711, %v684, %v757
      %759 = vst [vmem:[#allocation2 + $0xbc] sm:$0x2] %v758
      %v760 = vld [vmem:[#allocation2 + $0xc8] sm:$0x2]
      %v761 = vsel %vm711, %v685, %v760
      %762 = vst [vmem:[#allocation2 + $0xc8] sm:$0x2] %v761
      %v763 = vld [vmem:[#allocation2 + $0xd4] sm:$0x2]
      %v764 = vsel %vm711, %v686, %v763
      %765 = vst [vmem:[#allocation2 + $0xd4] sm:$0x2] %v764
      %v766 = vld [vmem:[#allocation2 + $0xe0] sm:$0x2]
      %v767 = vsel %vm711, %v687, %v766
      %768 = vst [vmem:[#allocation2 + $0xe0] sm:$0x2] %v767
      %v769 = vld [vmem:[#allocation2 + $0xec] sm:$0x2]
      %v770 = vsel %vm711, %v688, %v769
      %771 = vst [vmem:[#allocation2 + $0xec] sm:$0x2] %v770
      %v772 = vld [vmem:[#allocation2] sm:$0x4]
      %v773 = vld [vmem:[#allocation2 + $0xc] sm:$0x4]
      %v774 = vld [vmem:[#allocation2 + $0x18] sm:$0x4]
      %v775 = vld [vmem:[#allocation2 + $0x24] sm:$0x4]
      %v776 = vld [vmem:[#allocation2 + $0x30] sm:$0x4]
      %v777 = vld [vmem:[#allocation2 + $0x3c] sm:$0x4]
      %v778 = vld [vmem:[#allocation2 + $0x48] sm:$0x4]
      %v779 = vld [vmem:[#allocation2 + $0x54] sm:$0x4]
      %v780 = vld [vmem:[#allocation2 + $0x60] sm:$0x4]
      %v781 = vld [vmem:[#allocation2 + $0x6c] sm:$0x4]
      %v782 = vld [vmem:[#allocation2 + $0x78] sm:$0x4]
      %v783 = vld [vmem:[#allocation2 + $0x84] sm:$0x4]
      %v784 = vld [vmem:[#allocation2 + $0x90] sm:$0x4]
      %v785 = vld [vmem:[#allocation2 + $0x9c] sm:$0x4]
      %v786 = vld [vmem:[#allocation2 + $0xa8] sm:$0x4]
      %v787 = vld [vmem:[#allocation2 + $0xb4] sm:$0x4]
      %v788 = vld [vmem:[#allocation2 + $0xc0] sm:$0x4]
      %v789 = vld [vmem:[#allocation2 + $0xcc] sm:$0x4]
      %v790 = vld [vmem:[#allocation2 + $0xd8] sm:$0x4]
      %v791 = vld [vmem:[#allocation2 + $0xe4] sm:$0x4]
      %v812 = vrot.slane %v772, 6
      %v813 = vrot.slane %v812, 4
      %v814 = vrot.slane %v773, 6
      %v815 = vrot.slane %v814, 4
      %v816 = vrot.slane %v774, 6
      %v817 = vrot.slane %v816, 4
      %v818 = vrot.slane %v775, 6
      %v819 = vrot.slane %v818, 4
      %v820 = vrot.slane %v776, 6
      %v821 = vrot.slane %v820, 4
      %v822 = vrot.slane %v777, 6
      %v823 = vrot.slane %v822, 4
      %v824 = vrot.slane %v778, 6
      %v825 = vrot.slane %v824, 4
      %v826 = vrot.slane %v779, 6
      %v827 = vrot.slane %v826, 4
      %v828 = vrot.slane %v780, 6
      %v829 = vrot.slane %v828, 4
      %v830 = vrot.slane %v781, 6
      %v831 = vrot.slane %v830, 4
      %v832 = vrot.slane %v782, 6
      %v833 = vrot.slane %v832, 4
      %v834 = vrot.slane %v783, 6
      %v835 = vrot.slane %v834, 4
      %v836 = vrot.slane %v784, 6
      %v837 = vrot.slane %v836, 4
      %v838 = vrot.slane %v785, 6
      %v839 = vrot.slane %v838, 4
      %v840 = vrot.slane %v786, 6
      %v841 = vrot.slane %v840, 4
      %v842 = vrot.slane %v787, 6
      %v843 = vrot.slane %v842, 4
      %v844 = vrot.slane %v788, 6
      %v845 = vrot.slane %v844, 4
      %v846 = vrot.slane %v789, 6
      %v847 = vrot.slane %v846, 4
      %v848 = vrot.slane %v790, 6
      %v849 = vrot.slane %v848, 4
      %v850 = vrot.slane %v791, 6
      %v851 = vrot.slane %v850, 4
      %vm872 = vsmask.f32 256
      %vm873 = vmand %vm566, %vm872
      %v874 = vld [vmem:[#allocation2] sm:$0x1]
      %v875 = vsel %vm873, %v813, %v874
      %876 = vst [vmem:[#allocation2] sm:$0x1] %v875
      %v877 = vld [vmem:[#allocation2 + $0xc] sm:$0x1]
      %v878 = vsel %vm873, %v815, %v877
      %879 = vst [vmem:[#allocation2 + $0xc] sm:$0x1] %v878
      %v880 = vld [vmem:[#allocation2 + $0x18] sm:$0x1]
      %v881 = vsel %vm873, %v817, %v880
      %882 = vst [vmem:[#allocation2 + $0x18] sm:$0x1] %v881
      %v883 = vld [vmem:[#allocation2 + $0x24] sm:$0x1]
      %v884 = vsel %vm873, %v819, %v883
      %885 = vst [vmem:[#allocation2 + $0x24] sm:$0x1] %v884
      %v886 = vld [vmem:[#allocation2 + $0x30] sm:$0x1]
      %v887 = vsel %vm873, %v821, %v886
      %888 = vst [vmem:[#allocation2 + $0x30] sm:$0x1] %v887
      %v889 = vld [vmem:[#allocation2 + $0x3c] sm:$0x1]
      %v890 = vsel %vm873, %v823, %v889
      %891 = vst [vmem:[#allocation2 + $0x3c] sm:$0x1] %v890
      %v892 = vld [vmem:[#allocation2 + $0x48] sm:$0x1]
      %v893 = vsel %vm873, %v825, %v892
      %894 = vst [vmem:[#allocation2 + $0x48] sm:$0x1] %v893
      %v895 = vld [vmem:[#allocation2 + $0x54] sm:$0x1]
      %v896 = vsel %vm873, %v827, %v895
      %897 = vst [vmem:[#allocation2 + $0x54] sm:$0x1] %v896
      %v898 = vld [vmem:[#allocation2 + $0x60] sm:$0x1]
      %v899 = vsel %vm873, %v829, %v898
      %900 = vst [vmem:[#allocation2 + $0x60] sm:$0x1] %v899
      %v901 = vld [vmem:[#allocation2 + $0x6c] sm:$0x1]
      %v902 = vsel %vm873, %v831, %v901
      %903 = vst [vmem:[#allocation2 + $0x6c] sm:$0x1] %v902
      %v904 = vld [vmem:[#allocation2 + $0x78] sm:$0x1]
      %v905 = vsel %vm873, %v833, %v904
      %906 = vst [vmem:[#allocation2 + $0x78] sm:$0x1] %v905
      %v907 = vld [vmem:[#allocation2 + $0x84] sm:$0x1]
      %v908 = vsel %vm873, %v835, %v907
      %909 = vst [vmem:[#allocation2 + $0x84] sm:$0x1] %v908
      %v910 = vld [vmem:[#allocation2 + $0x90] sm:$0x1]
      %v911 = vsel %vm873, %v837, %v910
      %912 = vst [vmem:[#allocation2 + $0x90] sm:$0x1] %v911
      %v913 = vld [vmem:[#allocation2 + $0x9c] sm:$0x1]
      %v914 = vsel %vm873, %v839, %v913
      %915 = vst [vmem:[#allocation2 + $0x9c] sm:$0x1] %v914
      %v916 = vld [vmem:[#allocation2 + $0xa8] sm:$0x1]
      %v917 = vsel %vm873, %v841, %v916
      %918 = vst [vmem:[#allocation2 + $0xa8] sm:$0x1] %v917
      %v919 = vld [vmem:[#allocation2 + $0xb4] sm:$0x1]
      %v920 = vsel %vm873, %v843, %v919
      %921 = vst [vmem:[#allocation2 + $0xb4] sm:$0x1] %v920
      %v922 = vld [vmem:[#allocation2 + $0xc0] sm:$0x1]
      %v923 = vsel %vm873, %v845, %v922
      %924 = vst [vmem:[#allocation2 + $0xc0] sm:$0x1] %v923
      %v925 = vld [vmem:[#allocation2 + $0xcc] sm:$0x1]
      %v926 = vsel %vm873, %v847, %v925
      %927 = vst [vmem:[#allocation2 + $0xcc] sm:$0x1] %v926
      %v928 = vld [vmem:[#allocation2 + $0xd8] sm:$0x1]
      %v929 = vsel %vm873, %v849, %v928
      %930 = vst [vmem:[#allocation2 + $0xd8] sm:$0x1] %v929
      %v931 = vld [vmem:[#allocation2 + $0xe4] sm:$0x1]
      %v932 = vsel %vm873, %v851, %v931
      %933 = vst [vmem:[#allocation2 + $0xe4] sm:$0x1] %v932
      %v934 = vld [vmem:[#allocation2 + $0x4] sm:$0x8]
      %v935 = vld [vmem:[#allocation2 + $0x10] sm:$0x8]
      %v936 = vld [vmem:[#allocation2 + $0x1c] sm:$0x8]
      %v937 = vld [vmem:[#allocation2 + $0x28] sm:$0x8]
      %v938 = vld [vmem:[#allocation2 + $0x34] sm:$0x8]
      %v939 = vld [vmem:[#allocation2 + $0x40] sm:$0x8]
      %v940 = vld [vmem:[#allocation2 + $0x4c] sm:$0x8]
      %v941 = vld [vmem:[#allocation2 + $0x58] sm:$0x8]
      %v942 = vld [vmem:[#allocation2 + $0x64] sm:$0x8]
      %v943 = vld [vmem:[#allocation2 + $0x70] sm:$0x8]
      %v944 = vld [vmem:[#allocation2 + $0x7c] sm:$0x8]
      %v945 = vld [vmem:[#allocation2 + $0x88] sm:$0x8]
      %v946 = vld [vmem:[#allocation2 + $0x94] sm:$0x8]
      %v947 = vld [vmem:[#allocation2 + $0xa0] sm:$0x8]
      %v948 = vld [vmem:[#allocation2 + $0xac] sm:$0x8]
      %v949 = vld [vmem:[#allocation2 + $0xb8] sm:$0x8]
      %v950 = vld [vmem:[#allocation2 + $0xc4] sm:$0x8]
      %v951 = vld [vmem:[#allocation2 + $0xd0] sm:$0x8]
      %v952 = vld [vmem:[#allocation2 + $0xdc] sm:$0x8]
      %v953 = vld [vmem:[#allocation2 + $0xe8] sm:$0x8]
      %v974 = vrot.slane %v934, 6
      %v975 = vrot.slane %v974, 4
      %v976 = vrot.slane %v935, 6
      %v977 = vrot.slane %v976, 4
      %v978 = vrot.slane %v936, 6
      %v979 = vrot.slane %v978, 4
      %v980 = vrot.slane %v937, 6
      %v981 = vrot.slane %v980, 4
      %v982 = vrot.slane %v938, 6
      %v983 = vrot.slane %v982, 4
      %v984 = vrot.slane %v939, 6
      %v985 = vrot.slane %v984, 4
      %v986 = vrot.slane %v940, 6
      %v987 = vrot.slane %v986, 4
      %v988 = vrot.slane %v941, 6
      %v989 = vrot.slane %v988, 4
      %v990 = vrot.slane %v942, 6
      %v991 = vrot.slane %v990, 4
      %v992 = vrot.slane %v943, 6
      %v993 = vrot.slane %v992, 4
      %v994 = vrot.slane %v944, 6
      %v995 = vrot.slane %v994, 4
      %v996 = vrot.slane %v945, 6
      %v997 = vrot.slane %v996, 4
      %v998 = vrot.slane %v946, 6
      %v999 = vrot.slane %v998, 4
      %v1000 = vrot.slane %v947, 6
      %v1001 = vrot.slane %v1000, 4
      %v1002 = vrot.slane %v948, 6
      %v1003 = vrot.slane %v1002, 4
      %v1004 = vrot.slane %v949, 6
      %v1005 = vrot.slane %v1004, 4
      %v1006 = vrot.slane %v950, 6
      %v1007 = vrot.slane %v1006, 4
      %v1008 = vrot.slane %v951, 6
      %v1009 = vrot.slane %v1008, 4
      %v1010 = vrot.slane %v952, 6
      %v1011 = vrot.slane %v1010, 4
      %v1012 = vrot.slane %v953, 6
      %v1013 = vrot.slane %v1012, 4
      %vm1034 = vsmask.f32 7942
      %vm1035 = vmand %vm709, %vm1034
      %v1036 = vld [vmem:[#allocation2 + $0x8] sm:$0x2]
      %v1037 = vsel %vm1035, %v975, %v1036
      %1038 = vst [vmem:[#allocation2 + $0x8] sm:$0x2] %v1037
      %v1039 = vld [vmem:[#allocation2 + $0x14] sm:$0x2]
      %v1040 = vsel %vm1035, %v977, %v1039
      %1041 = vst [vmem:[#allocation2 + $0x14] sm:$0x2] %v1040
      %v1042 = vld [vmem:[#allocation2 + $0x20] sm:$0x2]
      %v1043 = vsel %vm1035, %v979, %v1042
      %1044 = vst [vmem:[#allocation2 + $0x20] sm:$0x2] %v1043
      %v1045 = vld [vmem:[#allocation2 + $0x2c] sm:$0x2]
      %v1046 = vsel %vm1035, %v981, %v1045
      %1047 = vst [vmem:[#allocation2 + $0x2c] sm:$0x2] %v1046
      %v1048 = vld [vmem:[#allocation2 + $0x38] sm:$0x2]
      %v1049 = vsel %vm1035, %v983, %v1048
      %1050 = vst [vmem:[#allocation2 + $0x38] sm:$0x2] %v1049
      %v1051 = vld [vmem:[#allocation2 + $0x44] sm:$0x2]
      %v1052 = vsel %vm1035, %v985, %v1051
      %1053 = vst [vmem:[#allocation2 + $0x44] sm:$0x2] %v1052
      %v1054 = vld [vmem:[#allocation2 + $0x50] sm:$0x2]
      %v1055 = vsel %vm1035, %v987, %v1054
      %1056 = vst [vmem:[#allocation2 + $0x50] sm:$0x2] %v1055
      %v1057 = vld [vmem:[#allocation2 + $0x5c] sm:$0x2]
      %v1058 = vsel %vm1035, %v989, %v1057
      %1059 = vst [vmem:[#allocation2 + $0x5c] sm:$0x2] %v1058
      %v1060 = vld [vmem:[#allocation2 + $0x68] sm:$0x2]
      %v1061 = vsel %vm1035, %v991, %v1060
      %1062 = vst [vmem:[#allocation2 + $0x68] sm:$0x2] %v1061
      %v1063 = vld [vmem:[#allocation2 + $0x74] sm:$0x2]
      %v1064 = vsel %vm1035, %v993, %v1063
      %1065 = vst [vmem:[#allocation2 + $0x74] sm:$0x2] %v1064
      %v1066 = vld [vmem:[#allocation2 + $0x80] sm:$0x2]
      %v1067 = vsel %vm1035, %v995, %v1066
      %1068 = vst [vmem:[#allocation2 + $0x80] sm:$0x2] %v1067
      %v1069 = vld [vmem:[#allocation2 + $0x8c] sm:$0x2]
      %v1070 = vsel %vm1035, %v997, %v1069
      %1071 = vst [vmem:[#allocation2 + $0x8c] sm:$0x2] %v1070
      %v1072 = vld [vmem:[#allocation2 + $0x98] sm:$0x2]
      %v1073 = vsel %vm1035, %v999, %v1072
      %1074 = vst [vmem:[#allocation2 + $0x98] sm:$0x2] %v1073
      %v1075 = vld [vmem:[#allocation2 + $0xa4] sm:$0x2]
      %v1076 = vsel %vm1035, %v1001, %v1075
      %1077 = vst [vmem:[#allocation2 + $0xa4] sm:$0x2] %v1076
      %v1078 = vld [vmem:[#allocation2 + $0xb0] sm:$0x2]
      %v1079 = vsel %vm1035, %v1003, %v1078
      %1080 = vst [vmem:[#allocation2 + $0xb0] sm:$0x2] %v1079
      %v1081 = vld [vmem:[#allocation2 + $0xbc] sm:$0x2]
      %v1082 = vsel %vm1035, %v1005, %v1081
      %1083 = vst [vmem:[#allocation2 + $0xbc] sm:$0x2] %v1082
      %v1084 = vld [vmem:[#allocation2 + $0xc8] sm:$0x2]
      %v1085 = vsel %vm1035, %v1007, %v1084
      %1086 = vst [vmem:[#allocation2 + $0xc8] sm:$0x2] %v1085
      %v1087 = vld [vmem:[#allocation2 + $0xd4] sm:$0x2]
      %v1088 = vsel %vm1035, %v1009, %v1087
      %1089 = vst [vmem:[#allocation2 + $0xd4] sm:$0x2] %v1088
      %v1090 = vld [vmem:[#allocation2 + $0xe0] sm:$0x2]
      %v1091 = vsel %vm1035, %v1011, %v1090
      %1092 = vst [vmem:[#allocation2 + $0xe0] sm:$0x2] %v1091
      %v1093 = vld [vmem:[#allocation2 + $0xec] sm:$0x2]
      %v1094 = vsel %vm1035, %v1013, %v1093
      %1095 = vst [vmem:[#allocation2 + $0xec] sm:$0x2] %v1094
      %v1096 = vld [vmem:[#allocation2] sm:$0xf]
      %v1097 = vld [vmem:[#allocation2 + $0x4] sm:$0xf]
      %v1098 = vld [vmem:[#allocation2 + $0xc] sm:$0xf]
      %v1099 = vld [vmem:[#allocation2 + $0x10] sm:$0xf]
      %v1100 = vld [vmem:[#allocation2 + $0x18] sm:$0xf]
      %v1101 = vld [vmem:[#allocation2 + $0x1c] sm:$0xf]
      %v1102 = vld [vmem:[#allocation2 + $0x24] sm:$0xf]
      %v1103 = vld [vmem:[#allocation2 + $0x28] sm:$0xf]
      %v1104 = vld [vmem:[#allocation2 + $0x30] sm:$0xf]
      %v1105 = vld [vmem:[#allocation2 + $0x34] sm:$0xf]
      %v1106 = vld [vmem:[#allocation2 + $0x3c] sm:$0xf]
      %v1107 = vld [vmem:[#allocation2 + $0x40] sm:$0xf]
      %v1108 = vld [vmem:[#allocation2 + $0x48] sm:$0xf]
      %v1109 = vld [vmem:[#allocation2 + $0x4c] sm:$0xf]
      %v1110 = vld [vmem:[#allocation2 + $0x54] sm:$0xf]
      %v1111 = vld [vmem:[#allocation2 + $0x58] sm:$0xf]
      %v1112 = vld [vmem:[#allocation2 + $0x60] sm:$0xf]
      %v1113 = vld [vmem:[#allocation2 + $0x64] sm:$0xf]
      %v1114 = vld [vmem:[#allocation2 + $0x6c] sm:$0xf]
      %v1115 = vld [vmem:[#allocation2 + $0x70] sm:$0xf]
      %v1116 = vld [vmem:[#allocation2 + $0x78] sm:$0xf]
      %v1117 = vld [vmem:[#allocation2 + $0x7c] sm:$0xf]
      %v1118 = vld [vmem:[#allocation2 + $0x84] sm:$0xf]
      %v1119 = vld [vmem:[#allocation2 + $0x88] sm:$0xf]
      %v1120 = vld [vmem:[#allocation2 + $0x90] sm:$0xf]
      %v1121 = vld [vmem:[#allocation2 + $0x94] sm:$0xf]
      %v1122 = vld [vmem:[#allocation2 + $0x9c] sm:$0xf]
      %v1123 = vld [vmem:[#allocation2 + $0xa0] sm:$0xf]
      %v1124 = vld [vmem:[#allocation2 + $0xa8] sm:$0xf]
      %v1125 = vld [vmem:[#allocation2 + $0xac] sm:$0xf]
      %v1126 = vld [vmem:[#allocation2 + $0xb4] sm:$0xf]
      %v1127 = vld [vmem:[#allocation2 + $0xb8] sm:$0xf]
      %v1128 = vld [vmem:[%s1] sm:$0x3]
      %v1129 = vld [vmem:[#allocation2] sm:$0xe]
      %v1130 = vld [vmem:[#allocation2 + $0x8] sm:$0x1]
      %v1131 = vld [vmem:[#allocation2 + $0xc] sm:$0xe]
      %v1132 = vld [vmem:[#allocation2 + $0x14] sm:$0x1]
      %v1133 = vld [vmem:[#allocation2 + $0x18] sm:$0xe]
      %v1134 = vld [vmem:[#allocation2 + $0x20] sm:$0x1]
      %v1135 = vld [vmem:[#allocation2 + $0x24] sm:$0xe]
      %v1136 = vld [vmem:[#allocation2 + $0x2c] sm:$0x1]
      %v1137 = vld [vmem:[#allocation2 + $0x30] sm:$0xe]
      %v1138 = vld [vmem:[#allocation2 + $0x38] sm:$0x1]
      %v1139 = vld [vmem:[#allocation2 + $0x3c] sm:$0xe]
      %v1140 = vld [vmem:[#allocation2 + $0x44] sm:$0x1]
      %v1141 = vld [vmem:[#allocation2 + $0x48] sm:$0xe]
      %v1142 = vld [vmem:[#allocation2 + $0x50] sm:$0x1]
      %v1143 = vld [vmem:[#allocation2 + $0x54] sm:$0xe]
      %v1144 = vld [vmem:[#allocation2 + $0x5c] sm:$0x1]
      %v1145 = vld [vmem:[#allocation2 + $0x60] sm:$0xe]
      %v1146 = vld [vmem:[#allocation2 + $0x68] sm:$0x1]
      %v1147 = vld [vmem:[#allocation2 + $0x6c] sm:$0xe]
      %v1148 = vld [vmem:[#allocation2 + $0x74] sm:$0x1]
      %v1149 = vld [vmem:[#allocation2 + $0x78] sm:$0xe]
      %v1150 = vld [vmem:[#allocation2 + $0x80] sm:$0x1]
      %v1151 = vld [vmem:[#allocation2 + $0x84] sm:$0xe]
      %v1152 = vld [vmem:[#allocation2 + $0x8c] sm:$0x1]
      %v1153 = vld [vmem:[#allocation2 + $0x90] sm:$0xe]
      %v1154 = vld [vmem:[#allocation2 + $0x98] sm:$0x1]
      %v1155 = vld [vmem:[#allocation2 + $0x9c] sm:$0xe]
      %v1156 = vld [vmem:[#allocation2 + $0xa4] sm:$0x1]
      %v1157 = vld [vmem:[#allocation2 + $0xa8] sm:$0xe]
      %v1158 = vld [vmem:[#allocation2 + $0xb0] sm:$0x1]
      %v1159 = vld [vmem:[#allocation2 + $0xb4] sm:$0xe]
      %v1160 = vld [vmem:[#allocation2 + $0xbc] sm:$0x1]
      %vm1209 = vcmask 1042432
      %vm1210 = vcmask 1046532
      %vm1211 = vmor %vm1209, %vm1210
      %v1212 = vrot.slane %v1129, 5
      %v1213 = vrot.slane %v1212, 4
      %v1214 = vrot.slane %v1097, 5
      %v1215 = vsel %vm1211, %v1213, %v1214
      %v1216 = vrot.slane %v1214, 4
      %v1217 = vrot.slane %v1130, 5
      %v1218 = vsel %vm1211, %v1216, %v1217
      %v1219 = vrot.slane %v1131, 5
      %v1220 = vrot.slane %v1219, 4
      %v1221 = vrot.slane %v1099, 5
      %v1222 = vsel %vm1211, %v1220, %v1221
      %v1223 = vrot.slane %v1221, 4
      %v1224 = vrot.slane %v1132, 5
      %v1225 = vsel %vm1211, %v1223, %v1224
      %v1226 = vrot.slane %v1133, 5
      %v1227 = vrot.slane %v1226, 4
      %v1228 = vrot.slane %v1101, 5
      %v1229 = vsel %vm1211, %v1227, %v1228
      %v1230 = vrot.slane %v1228, 4
      %v1231 = vrot.slane %v1134, 5
      %v1232 = vsel %vm1211, %v1230, %v1231
      %v1233 = vrot.slane %v1135, 5
      %v1234 = vrot.slane %v1233, 4
      %v1235 = vrot.slane %v1103, 5
      %v1236 = vsel %vm1211, %v1234, %v1235
      %v1237 = vrot.slane %v1235, 4
      %v1238 = vrot.slane %v1136, 5
      %v1239 = vsel %vm1211, %v1237, %v1238
      %v1240 = vrot.slane %v1137, 5
      %v1241 = vrot.slane %v1240, 4
      %v1242 = vrot.slane %v1105, 5
      %v1243 = vsel %vm1211, %v1241, %v1242
      %v1244 = vrot.slane %v1242, 4
      %v1245 = vrot.slane %v1138, 5
      %v1246 = vsel %vm1211, %v1244, %v1245
      %v1247 = vrot.slane %v1139, 5
      %v1248 = vrot.slane %v1247, 4
      %v1249 = vrot.slane %v1107, 5
      %v1250 = vsel %vm1211, %v1248, %v1249
      %v1251 = vrot.slane %v1249, 4
      %v1252 = vrot.slane %v1140, 5
      %v1253 = vsel %vm1211, %v1251, %v1252
      %v1254 = vrot.slane %v1141, 5
      %v1255 = vrot.slane %v1254, 4
      %v1256 = vrot.slane %v1109, 5
      %v1257 = vsel %vm1211, %v1255, %v1256
      %v1258 = vrot.slane %v1256, 4
      %v1259 = vrot.slane %v1142, 5
      %v1260 = vsel %vm1211, %v1258, %v1259
      %v1261 = vrot.slane %v1143, 5
      %v1262 = vrot.slane %v1261, 4
      %v1263 = vrot.slane %v1111, 5
      %v1264 = vsel %vm1211, %v1262, %v1263
      %v1265 = vrot.slane %v1263, 4
      %v1266 = vrot.slane %v1144, 5
      %v1267 = vsel %vm1211, %v1265, %v1266
      %v1268 = vrot.slane %v1145, 5
      %v1269 = vrot.slane %v1268, 4
      %v1270 = vrot.slane %v1113, 5
      %v1271 = vsel %vm1211, %v1269, %v1270
      %v1272 = vrot.slane %v1270, 4
      %v1273 = vrot.slane %v1146, 5
      %v1274 = vsel %vm1211, %v1272, %v1273
      %v1275 = vrot.slane %v1147, 5
      %v1276 = vrot.slane %v1275, 4
      %v1277 = vrot.slane %v1115, 5
      %v1278 = vsel %vm1211, %v1276, %v1277
      %v1279 = vrot.slane %v1277, 4
      %v1280 = vrot.slane %v1148, 5
      %v1281 = vsel %vm1211, %v1279, %v1280
      %v1282 = vrot.slane %v1149, 5
      %v1283 = vrot.slane %v1282, 4
      %v1284 = vrot.slane %v1117, 5
      %v1285 = vsel %vm1211, %v1283, %v1284
      %v1286 = vrot.slane %v1284, 4
      %v1287 = vrot.slane %v1150, 5
      %v1288 = vsel %vm1211, %v1286, %v1287
      %v1289 = vrot.slane %v1151, 5
      %v1290 = vrot.slane %v1289, 4
      %v1291 = vrot.slane %v1119, 5
      %v1292 = vsel %vm1211, %v1290, %v1291
      %v1293 = vrot.slane %v1291, 4
      %v1294 = vrot.slane %v1152, 5
      %v1295 = vsel %vm1211, %v1293, %v1294
      %v1296 = vrot.slane %v1153, 5
      %v1297 = vrot.slane %v1296, 4
      %v1298 = vrot.slane %v1121, 5
      %v1299 = vsel %vm1211, %v1297, %v1298
      %v1300 = vrot.slane %v1298, 4
      %v1301 = vrot.slane %v1154, 5
      %v1302 = vsel %vm1211, %v1300, %v1301
      %v1303 = vrot.slane %v1155, 5
      %v1304 = vrot.slane %v1303, 4
      %v1305 = vrot.slane %v1123, 5
      %v1306 = vsel %vm1211, %v1304, %v1305
      %v1307 = vrot.slane %v1305, 4
      %v1308 = vrot.slane %v1156, 5
      %v1309 = vsel %vm1211, %v1307, %v1308
      %v1310 = vrot.slane %v1157, 5
      %v1311 = vrot.slane %v1310, 4
      %v1312 = vrot.slane %v1125, 5
      %v1313 = vsel %vm1211, %v1311, %v1312
      %v1314 = vrot.slane %v1312, 4
      %v1315 = vrot.slane %v1158, 5
      %v1316 = vsel %vm1211, %v1314, %v1315
      %v1317 = vrot.slane %v1159, 5
      %v1318 = vrot.slane %v1317, 4
      %v1319 = vrot.slane %v1127, 5
      %v1320 = vsel %vm1211, %v1318, %v1319
      %v1321 = vrot.slane %v1319, 4
      %v1322 = vrot.slane %v1160, 5
      %v1323 = vsel %vm1211, %v1321, %v1322
      %s1324 = scalar_lea.vmem %s1, 2
      %v1325 = vld [vmem:[%s1324] sm:$0x3]
      %v1326 = vunpack.c.l.b16 %v1215
      %v1327 = vunpack.c.l.b16 %v1218
      %v1328 = vunpack.c.l.b16 %v1222
      %v1329 = vunpack.c.l.b16 %v1225
      %v1330 = vunpack.c.l.b16 %v1229
      %v1331 = vunpack.c.l.b16 %v1232
      %v1332 = vunpack.c.l.b16 %v1236
      %v1333 = vunpack.c.l.b16 %v1239
      %v1334 = vunpack.c.l.b16 %v1243
      %v1335 = vunpack.c.l.b16 %v1246
      %v1336 = vunpack.c.l.b16 %v1250
      %v1337 = vunpack.c.l.b16 %v1253
      %v1338 = vunpack.c.l.b16 %v1257
      %v1339 = vunpack.c.l.b16 %v1260
      %v1340 = vunpack.c.l.b16 %v1264
      %v1341 = vunpack.c.l.b16 %v1267
      %v1342 = vunpack.c.l.b16 %v1271
      %v1343 = vunpack.c.l.b16 %v1274
      %v1344 = vunpack.c.l.b16 %v1278
      %v1345 = vunpack.c.l.b16 %v1281
      %v1346 = vunpack.c.l.b16 %v1285
      %v1347 = vunpack.c.l.b16 %v1288
      %v1348 = vunpack.c.l.b16 %v1292
      %v1349 = vunpack.c.l.b16 %v1295
      %v1350 = vunpack.c.l.b16 %v1299
      %v1351 = vunpack.c.l.b16 %v1302
      %v1352 = vunpack.c.l.b16 %v1306
      %v1353 = vunpack.c.l.b16 %v1309
      %v1354 = vunpack.c.l.b16 %v1313
      %v1355 = vunpack.c.l.b16 %v1316
      %v1356 = vunpack.c.l.b16 %v1320
      %v1357 = vunpack.c.l.b16 %v1323
      %v1358 = vpack.c.b16 %v1327, %v1326
      %v1359 = vpack.c.b16 %v1329, %v1328
      %v1360 = vpack.c.b16 %v1331, %v1330
      %v1361 = vpack.c.b16 %v1333, %v1332
      %v1362 = vpack.c.b16 %v1335, %v1334
      %v1363 = vpack.c.b16 %v1337, %v1336
      %v1364 = vpack.c.b16 %v1339, %v1338
      %v1365 = vpack.c.b16 %v1341, %v1340
      %v1366 = vpack.c.b16 %v1343, %v1342
      %v1367 = vpack.c.b16 %v1345, %v1344
      %v1368 = vpack.c.b16 %v1347, %v1346
      %v1369 = vpack.c.b16 %v1349, %v1348
      %v1370 = vpack.c.b16 %v1351, %v1350
      %v1371 = vpack.c.b16 %v1353, %v1352
      %v1372 = vpack.c.b16 %v1355, %v1354
      %v1373 = vpack.c.b16 %v1357, %v1356
      %vm1374 = vcmask 31744
      %v1376 = vsel %vm1374, %v1358, 0
      %v1379 = vsel %vm1374, %v1359, 0
      %v1382 = vsel %vm1374, %v1360, 0
      %v1385 = vsel %vm1374, %v1361, 0
      %v1388 = vsel %vm1374, %v1362, 0
      %v1391 = vsel %vm1374, %v1363, 0
      %v1394 = vsel %vm1374, %v1364, 0
      %v1397 = vsel %vm1374, %v1365, 0
      %v1400 = vsel %vm1374, %v1366, 0
      %v1403 = vsel %vm1374, %v1367, 0
      %v1406 = vsel %vm1374, %v1368, 0
      %v1409 = vsel %vm1374, %v1369, 0
      %v1412 = vsel %vm1374, %v1370, 0
      %v1415 = vsel %vm1374, %v1371, 0
      %v1418 = vsel %vm1374, %v1372, 0
      %v1421 = vsel %vm1374, %v1373, 0
      %vm1423 = vcmask 1041408
      %v1425 = vsel %vm1423, %v1325, 0
      %1427 = vmatpush.bf16.msra.mxu0 0
      %1428 = vmatpush.bf16.msra.mxu0 0
      %1429 = vmatpush.bf16.msra.mxu0 0
      %1430 = vmatpush.bf16.msra.mxu0 0
      %1431 = vmatpush.bf16.msra.mxu0 0
      %1432 = vmatpush.bf16.msra.mxu0 0
      %1433 = vmatpush.bf16.msra.mxu0 0
      %1434 = vmatpush.bf16.msra.mxu0 %v1425
      %1435 = vmatmul.bf16.gmra.mxu0 %v1376
      %v1436 = vpop.f32.mrf.mxu0
      %v1437 = vadd.f32 0.0, %v1436
      %v1438 = vpop.f32.mrf.mxu0
      %v1439 = vadd.f32 0.0, %v1438
      %1440 = vmatmul.bf16.gmra.mxu0 %v1379
      %v1441 = vpop.f32.mrf.mxu0
      %v1442 = vadd.f32 0.0, %v1441
      %v1443 = vpop.f32.mrf.mxu0
      %v1444 = vadd.f32 0.0, %v1443
      %1445 = vmatmul.bf16.gmra.mxu0 %v1382
      %v1446 = vpop.f32.mrf.mxu0
      %v1447 = vadd.f32 0.0, %v1446
      %v1448 = vpop.f32.mrf.mxu0
      %v1449 = vadd.f32 0.0, %v1448
      %1450 = vmatmul.bf16.gmra.mxu0 %v1385
      %v1451 = vpop.f32.mrf.mxu0
      %v1452 = vadd.f32 0.0, %v1451
      %v1453 = vpop.f32.mrf.mxu0
      %v1454 = vadd.f32 0.0, %v1453
      %1455 = vmatmul.bf16.gmra.mxu0 %v1388
      %v1456 = vpop.f32.mrf.mxu0
      %v1457 = vadd.f32 0.0, %v1456
      %v1458 = vpop.f32.mrf.mxu0
      %v1459 = vadd.f32 0.0, %v1458
      %1460 = vmatmul.bf16.gmra.mxu0 %v1391
      %v1461 = vpop.f32.mrf.mxu0
      %v1462 = vadd.f32 0.0, %v1461
      %v1463 = vpop.f32.mrf.mxu0
      %v1464 = vadd.f32 0.0, %v1463
      %1465 = vmatmul.bf16.gmra.mxu0 %v1394
      %v1466 = vpop.f32.mrf.mxu0
      %v1467 = vadd.f32 0.0, %v1466
      %v1468 = vpop.f32.mrf.mxu0
      %v1469 = vadd.f32 0.0, %v1468
      %1470 = vmatmul.bf16.gmra.mxu0 %v1397
      %v1471 = vpop.f32.mrf.mxu0
      %v1472 = vadd.f32 0.0, %v1471
      %v1473 = vpop.f32.mrf.mxu0
      %v1474 = vadd.f32 0.0, %v1473
      %1475 = vmatmul.bf16.gmra.mxu0 %v1400
      %v1476 = vpop.f32.mrf.mxu0
      %v1477 = vadd.f32 0.0, %v1476
      %v1478 = vpop.f32.mrf.mxu0
      %v1479 = vadd.f32 0.0, %v1478
      %1480 = vmatmul.bf16.gmra.mxu0 %v1403
      %v1481 = vpop.f32.mrf.mxu0
      %v1482 = vadd.f32 0.0, %v1481
      %v1483 = vpop.f32.mrf.mxu0
      %v1484 = vadd.f32 0.0, %v1483
      %1485 = vmatmul.bf16.gmra.mxu0 %v1406
      %v1486 = vpop.f32.mrf.mxu0
      %v1487 = vadd.f32 0.0, %v1486
      %v1488 = vpop.f32.mrf.mxu0
      %v1489 = vadd.f32 0.0, %v1488
      %1490 = vmatmul.bf16.gmra.mxu0 %v1409
      %v1491 = vpop.f32.mrf.mxu0
      %v1492 = vadd.f32 0.0, %v1491
      %v1493 = vpop.f32.mrf.mxu0
      %v1494 = vadd.f32 0.0, %v1493
      %1495 = vmatmul.bf16.gmra.mxu0 %v1412
      %v1496 = vpop.f32.mrf.mxu0
      %v1497 = vadd.f32 0.0, %v1496
      %v1498 = vpop.f32.mrf.mxu0
      %v1499 = vadd.f32 0.0, %v1498
      %1500 = vmatmul.bf16.gmra.mxu0 %v1415
      %v1501 = vpop.f32.mrf.mxu0
      %v1502 = vadd.f32 0.0, %v1501
      %v1503 = vpop.f32.mrf.mxu0
      %v1504 = vadd.f32 0.0, %v1503
      %1505 = vmatmul.bf16.gmra.mxu0 %v1418
      %v1506 = vpop.f32.mrf.mxu0
      %v1507 = vadd.f32 0.0, %v1506
      %v1508 = vpop.f32.mrf.mxu0
      %v1509 = vadd.f32 0.0, %v1508
      %1510 = vmatmul.bf16.gmra.mxu0 %v1421
      %v1511 = vpop.f32.mrf.mxu0
      %v1512 = vadd.f32 0.0, %v1511
      %v1513 = vpop.f32.mrf.mxu0
      %v1514 = vadd.f32 0.0, %v1513
      %1515 = vdwg.mxu0
      %v1532 = vunpack.c.l.b16 %v1096
      %v1533 = vunpack.c.l.b16 %v1097
      %v1534 = vunpack.c.l.b16 %v1098
      %v1535 = vunpack.c.l.b16 %v1099
      %v1536 = vunpack.c.l.b16 %v1100
      %v1537 = vunpack.c.l.b16 %v1101
      %v1538 = vunpack.c.l.b16 %v1102
      %v1539 = vunpack.c.l.b16 %v1103
      %v1540 = vunpack.c.l.b16 %v1104
      %v1541 = vunpack.c.l.b16 %v1105
      %v1542 = vunpack.c.l.b16 %v1106
      %v1543 = vunpack.c.l.b16 %v1107
      %v1544 = vunpack.c.l.b16 %v1108
      %v1545 = vunpack.c.l.b16 %v1109
      %v1546 = vunpack.c.l.b16 %v1110
      %v1547 = vunpack.c.l.b16 %v1111
      %v1548 = vunpack.c.l.b16 %v1112
      %v1549 = vunpack.c.l.b16 %v1113
      %v1550 = vunpack.c.l.b16 %v1114
      %v1551 = vunpack.c.l.b16 %v1115
      %v1552 = vunpack.c.l.b16 %v1116
      %v1553 = vunpack.c.l.b16 %v1117
      %v1554 = vunpack.c.l.b16 %v1118
      %v1555 = vunpack.c.l.b16 %v1119
      %v1556 = vunpack.c.l.b16 %v1120
      %v1557 = vunpack.c.l.b16 %v1121
      %v1558 = vunpack.c.l.b16 %v1122
      %v1559 = vunpack.c.l.b16 %v1123
      %v1560 = vunpack.c.l.b16 %v1124
      %v1561 = vunpack.c.l.b16 %v1125
      %v1562 = vunpack.c.l.b16 %v1126
      %v1563 = vunpack.c.l.b16 %v1127
      %v1564 = vpack.c.b16 %v1533, %v1532
      %v1565 = vpack.c.b16 %v1535, %v1534
      %v1566 = vpack.c.b16 %v1537, %v1536
      %v1567 = vpack.c.b16 %v1539, %v1538
      %v1568 = vpack.c.b16 %v1541, %v1540
      %v1569 = vpack.c.b16 %v1543, %v1542
      %v1570 = vpack.c.b16 %v1545, %v1544
      %v1571 = vpack.c.b16 %v1547, %v1546
      %v1572 = vpack.c.b16 %v1549, %v1548
      %v1573 = vpack.c.b16 %v1551, %v1550
      %v1574 = vpack.c.b16 %v1553, %v1552
      %v1575 = vpack.c.b16 %v1555, %v1554
      %v1576 = vpack.c.b16 %v1557, %v1556
      %v1577 = vpack.c.b16 %v1559, %v1558
      %v1578 = vpack.c.b16 %v1561, %v1560
      %v1579 = vpack.c.b16 %v1563, %v1562
      %v1581 = vsel %vm1374, %v1564, 0
      %v1584 = vsel %vm1374, %v1565, 0
      %v1587 = vsel %vm1374, %v1566, 0
      %v1590 = vsel %vm1374, %v1567, 0
      %v1593 = vsel %vm1374, %v1568, 0
      %v1596 = vsel %vm1374, %v1569, 0
      %v1599 = vsel %vm1374, %v1570, 0
      %v1602 = vsel %vm1374, %v1571, 0
      %v1605 = vsel %vm1374, %v1572, 0
      %v1608 = vsel %vm1374, %v1573, 0
      %v1611 = vsel %vm1374, %v1574, 0
      %v1614 = vsel %vm1374, %v1575, 0
      %v1617 = vsel %vm1374, %v1576, 0
      %v1620 = vsel %vm1374, %v1577, 0
      %v1623 = vsel %vm1374, %v1578, 0
      %v1626 = vsel %vm1374, %v1579, 0
      %v1629 = vsel %vm1423, %v1128, 0
      %1631 = vmatpush.bf16.msra.mxu0 0
      %1632 = vmatpush.bf16.msra.mxu0 0
      %1633 = vmatpush.bf16.msra.mxu0 0
      %1634 = vmatpush.bf16.msra.mxu0 0
      %1635 = vmatpush.bf16.msra.mxu0 0
      %1636 = vmatpush.bf16.msra.mxu0 0
      %1637 = vmatpush.bf16.msra.mxu0 0
      %1638 = vmatpush.bf16.msra.mxu0 %v1629
      %1639 = vmatmul.bf16.gmra.mxu0 %v1581
      %v1640 = vpop.f32.mrf.mxu0
      %v1641 = vadd.f32 %v1437, %v1640
      %v1642 = vpop.f32.mrf.mxu0
      %v1643 = vadd.f32 %v1439, %v1642
      %1644 = vmatmul.bf16.gmra.mxu0 %v1584
      %v1645 = vpop.f32.mrf.mxu0
      %v1646 = vadd.f32 %v1442, %v1645
      %v1647 = vpop.f32.mrf.mxu0
      %v1648 = vadd.f32 %v1444, %v1647
      %1649 = vmatmul.bf16.gmra.mxu0 %v1587
      %v1650 = vpop.f32.mrf.mxu0
      %v1651 = vadd.f32 %v1447, %v1650
      %v1652 = vpop.f32.mrf.mxu0
      %v1653 = vadd.f32 %v1449, %v1652
      %1654 = vmatmul.bf16.gmra.mxu0 %v1590
      %v1655 = vpop.f32.mrf.mxu0
      %v1656 = vadd.f32 %v1452, %v1655
      %v1657 = vpop.f32.mrf.mxu0
      %v1658 = vadd.f32 %v1454, %v1657
      %1659 = vmatmul.bf16.gmra.mxu0 %v1593
      %v1660 = vpop.f32.mrf.mxu0
      %v1661 = vadd.f32 %v1457, %v1660
      %v1662 = vpop.f32.mrf.mxu0
      %v1663 = vadd.f32 %v1459, %v1662
      %1664 = vmatmul.bf16.gmra.mxu0 %v1596
      %v1665 = vpop.f32.mrf.mxu0
      %v1666 = vadd.f32 %v1462, %v1665
      %v1667 = vpop.f32.mrf.mxu0
      %v1668 = vadd.f32 %v1464, %v1667
      %1669 = vmatmul.bf16.gmra.mxu0 %v1599
      %v1670 = vpop.f32.mrf.mxu0
      %v1671 = vadd.f32 %v1467, %v1670
      %v1672 = vpop.f32.mrf.mxu0
      %v1673 = vadd.f32 %v1469, %v1672
      %1674 = vmatmul.bf16.gmra.mxu0 %v1602
      %v1675 = vpop.f32.mrf.mxu0
      %v1676 = vadd.f32 %v1472, %v1675
      %v1677 = vpop.f32.mrf.mxu0
      %v1678 = vadd.f32 %v1474, %v1677
      %1679 = vmatmul.bf16.gmra.mxu0 %v1605
      %v1680 = vpop.f32.mrf.mxu0
      %v1681 = vadd.f32 %v1477, %v1680
      %v1682 = vpop.f32.mrf.mxu0
      %v1683 = vadd.f32 %v1479, %v1682
      %1684 = vmatmul.bf16.gmra.mxu0 %v1608
      %v1685 = vpop.f32.mrf.mxu0
      %v1686 = vadd.f32 %v1482, %v1685
      %v1687 = vpop.f32.mrf.mxu0
      %v1688 = vadd.f32 %v1484, %v1687
      %1689 = vmatmul.bf16.gmra.mxu0 %v1611
      %v1690 = vpop.f32.mrf.mxu0
      %v1691 = vadd.f32 %v1487, %v1690
      %v1692 = vpop.f32.mrf.mxu0
      %v1693 = vadd.f32 %v1489, %v1692
      %1694 = vmatmul.bf16.gmra.mxu0 %v1614
      %v1695 = vpop.f32.mrf.mxu0
      %v1696 = vadd.f32 %v1492, %v1695
      %v1697 = vpop.f32.mrf.mxu0
      %v1698 = vadd.f32 %v1494, %v1697
      %1699 = vmatmul.bf16.gmra.mxu0 %v1617
      %v1700 = vpop.f32.mrf.mxu0
      %v1701 = vadd.f32 %v1497, %v1700
      %v1702 = vpop.f32.mrf.mxu0
      %v1703 = vadd.f32 %v1499, %v1702
      %1704 = vmatmul.bf16.gmra.mxu0 %v1620
      %v1705 = vpop.f32.mrf.mxu0
      %v1706 = vadd.f32 %v1502, %v1705
      %v1707 = vpop.f32.mrf.mxu0
      %v1708 = vadd.f32 %v1504, %v1707
      %1709 = vmatmul.bf16.gmra.mxu0 %v1623
      %v1710 = vpop.f32.mrf.mxu0
      %v1711 = vadd.f32 %v1507, %v1710
      %v1712 = vpop.f32.mrf.mxu0
      %v1713 = vadd.f32 %v1509, %v1712
      %1714 = vmatmul.bf16.gmra.mxu0 %v1626
      %v1715 = vpop.f32.mrf.mxu0
      %v1716 = vadd.f32 %v1512, %v1715
      %v1717 = vpop.f32.mrf.mxu0
      %v1718 = vadd.f32 %v1514, %v1717
      %1719 = vdwg.mxu0
      %v1720 = vld [vmem:[#allocation2] sm:$0xc]
      %v1721 = vld [vmem:[#allocation2 + $0x8] sm:$0x3]
      %v1722 = vld [vmem:[#allocation2 + $0xc] sm:$0xc]
      %v1723 = vld [vmem:[#allocation2 + $0x14] sm:$0x3]
      %v1724 = vld [vmem:[#allocation2 + $0x18] sm:$0xc]
      %v1725 = vld [vmem:[#allocation2 + $0x20] sm:$0x3]
      %v1726 = vld [vmem:[#allocation2 + $0x24] sm:$0xc]
      %v1727 = vld [vmem:[#allocation2 + $0x2c] sm:$0x3]
      %v1728 = vld [vmem:[#allocation2 + $0x30] sm:$0xc]
      %v1729 = vld [vmem:[#allocation2 + $0x38] sm:$0x3]
      %v1730 = vld [vmem:[#allocation2 + $0x3c] sm:$0xc]
      %v1731 = vld [vmem:[#allocation2 + $0x44] sm:$0x3]
      %v1732 = vld [vmem:[#allocation2 + $0x48] sm:$0xc]
      %v1733 = vld [vmem:[#allocation2 + $0x50] sm:$0x3]
      %v1734 = vld [vmem:[#allocation2 + $0x54] sm:$0xc]
      %v1735 = vld [vmem:[#allocation2 + $0x5c] sm:$0x3]
      %v1736 = vld [vmem:[#allocation2 + $0x60] sm:$0xc]
      %v1737 = vld [vmem:[#allocation2 + $0x68] sm:$0x3]
      %v1738 = vld [vmem:[#allocation2 + $0x6c] sm:$0xc]
      %v1739 = vld [vmem:[#allocation2 + $0x74] sm:$0x3]
      %v1740 = vld [vmem:[#allocation2 + $0x78] sm:$0xc]
      %v1741 = vld [vmem:[#allocation2 + $0x80] sm:$0x3]
      %v1742 = vld [vmem:[#allocation2 + $0x84] sm:$0xc]
      %v1743 = vld [vmem:[#allocation2 + $0x8c] sm:$0x3]
      %v1744 = vld [vmem:[#allocation2 + $0x90] sm:$0xc]
      %v1745 = vld [vmem:[#allocation2 + $0x98] sm:$0x3]
      %v1746 = vld [vmem:[#allocation2 + $0x9c] sm:$0xc]
      %v1747 = vld [vmem:[#allocation2 + $0xa4] sm:$0x3]
      %v1748 = vld [vmem:[#allocation2 + $0xa8] sm:$0xc]
      %v1749 = vld [vmem:[#allocation2 + $0xb0] sm:$0x3]
      %v1750 = vld [vmem:[#allocation2 + $0xb4] sm:$0xc]
      %v1751 = vld [vmem:[#allocation2 + $0xbc] sm:$0x3]
      %vm1784 = vcmask 1041408
      %vm1785 = vcmask 1045508
      %vm1786 = vmor %vm1784, %vm1785
      %v1787 = vrot.slane %v1720, 6
      %v1788 = vrot.slane %v1787, 4
      %v1789 = vrot.slane %v1097, 6
      %v1790 = vsel %vm1786, %v1788, %v1789
      %v1791 = vrot.slane %v1789, 4
      %v1792 = vrot.slane %v1721, 6
      %v1793 = vsel %vm1786, %v1791, %v1792
      %v1794 = vrot.slane %v1722, 6
      %v1795 = vrot.slane %v1794, 4
      %v1796 = vrot.slane %v1099, 6
      %v1797 = vsel %vm1786, %v1795, %v1796
      %v1798 = vrot.slane %v1796, 4
      %v1799 = vrot.slane %v1723, 6
      %v1800 = vsel %vm1786, %v1798, %v1799
      %v1801 = vrot.slane %v1724, 6
      %v1802 = vrot.slane %v1801, 4
      %v1803 = vrot.slane %v1101, 6
      %v1804 = vsel %vm1786, %v1802, %v1803
      %v1805 = vrot.slane %v1803, 4
      %v1806 = vrot.slane %v1725, 6
      %v1807 = vsel %vm1786, %v1805, %v1806
      %v1808 = vrot.slane %v1726, 6
      %v1809 = vrot.slane %v1808, 4
      %v1810 = vrot.slane %v1103, 6
      %v1811 = vsel %vm1786, %v1809, %v1810
      %v1812 = vrot.slane %v1810, 4
      %v1813 = vrot.slane %v1727, 6
      %v1814 = vsel %vm1786, %v1812, %v1813
      %v1815 = vrot.slane %v1728, 6
      %v1816 = vrot.slane %v1815, 4
      %v1817 = vrot.slane %v1105, 6
      %v1818 = vsel %vm1786, %v1816, %v1817
      %v1819 = vrot.slane %v1817, 4
      %v1820 = vrot.slane %v1729, 6
      %v1821 = vsel %vm1786, %v1819, %v1820
      %v1822 = vrot.slane %v1730, 6
      %v1823 = vrot.slane %v1822, 4
      %v1824 = vrot.slane %v1107, 6
      %v1825 = vsel %vm1786, %v1823, %v1824
      %v1826 = vrot.slane %v1824, 4
      %v1827 = vrot.slane %v1731, 6
      %v1828 = vsel %vm1786, %v1826, %v1827
      %v1829 = vrot.slane %v1732, 6
      %v1830 = vrot.slane %v1829, 4
      %v1831 = vrot.slane %v1109, 6
      %v1832 = vsel %vm1786, %v1830, %v1831
      %v1833 = vrot.slane %v1831, 4
      %v1834 = vrot.slane %v1733, 6
      %v1835 = vsel %vm1786, %v1833, %v1834
      %v1836 = vrot.slane %v1734, 6
      %v1837 = vrot.slane %v1836, 4
      %v1838 = vrot.slane %v1111, 6
      %v1839 = vsel %vm1786, %v1837, %v1838
      %v1840 = vrot.slane %v1838, 4
      %v1841 = vrot.slane %v1735, 6
      %v1842 = vsel %vm1786, %v1840, %v1841
      %v1843 = vrot.slane %v1736, 6
      %v1844 = vrot.slane %v1843, 4
      %v1845 = vrot.slane %v1113, 6
      %v1846 = vsel %vm1786, %v1844, %v1845
      %v1847 = vrot.slane %v1845, 4
      %v1848 = vrot.slane %v1737, 6
      %v1849 = vsel %vm1786, %v1847, %v1848
      %v1850 = vrot.slane %v1738, 6
      %v1851 = vrot.slane %v1850, 4
      %v1852 = vrot.slane %v1115, 6
      %v1853 = vsel %vm1786, %v1851, %v1852
      %v1854 = vrot.slane %v1852, 4
      %v1855 = vrot.slane %v1739, 6
      %v1856 = vsel %vm1786, %v1854, %v1855
      %v1857 = vrot.slane %v1740, 6
      %v1858 = vrot.slane %v1857, 4
      %v1859 = vrot.slane %v1117, 6
      %v1860 = vsel %vm1786, %v1858, %v1859
      %v1861 = vrot.slane %v1859, 4
      %v1862 = vrot.slane %v1741, 6
      %v1863 = vsel %vm1786, %v1861, %v1862
      %v1864 = vrot.slane %v1742, 6
      %v1865 = vrot.slane %v1864, 4
      %v1866 = vrot.slane %v1119, 6
      %v1867 = vsel %vm1786, %v1865, %v1866
      %v1868 = vrot.slane %v1866, 4
      %v1869 = vrot.slane %v1743, 6
      %v1870 = vsel %vm1786, %v1868, %v1869
      %v1871 = vrot.slane %v1744, 6
      %v1872 = vrot.slane %v1871, 4
      %v1873 = vrot.slane %v1121, 6
      %v1874 = vsel %vm1786, %v1872, %v1873
      %v1875 = vrot.slane %v1873, 4
      %v1876 = vrot.slane %v1745, 6
      %v1877 = vsel %vm1786, %v1875, %v1876
      %v1878 = vrot.slane %v1746, 6
      %v1879 = vrot.slane %v1878, 4
      %v1880 = vrot.slane %v1123, 6
      %v1881 = vsel %vm1786, %v1879, %v1880
      %v1882 = vrot.slane %v1880, 4
      %v1883 = vrot.slane %v1747, 6
      %v1884 = vsel %vm1786, %v1882, %v1883
      %v1885 = vrot.slane %v1748, 6
      %v1886 = vrot.slane %v1885, 4
      %v1887 = vrot.slane %v1125, 6
      %v1888 = vsel %vm1786, %v1886, %v1887
      %v1889 = vrot.slane %v1887, 4
      %v1890 = vrot.slane %v1749, 6
      %v1891 = vsel %vm1786, %v1889, %v1890
      %v1892 = vrot.slane %v1750, 6
      %v1893 = vrot.slane %v1892, 4
      %v1894 = vrot.slane %v1127, 6
      %v1895 = vsel %vm1786, %v1893, %v1894
      %v1896 = vrot.slane %v1894, 4
      %v1897 = vrot.slane %v1751, 6
      %v1898 = vsel %vm1786, %v1896, %v1897
      %s1899 = scalar_lea.vmem %s1, 4
      %v1900 = vld [vmem:[%s1899] sm:$0x3]
      %v1901 = vunpack.c.l.b16 %v1790
      %v1902 = vunpack.c.l.b16 %v1793
      %v1903 = vunpack.c.l.b16 %v1797
      %v1904 = vunpack.c.l.b16 %v1800
      %v1905 = vunpack.c.l.b16 %v1804
      %v1906 = vunpack.c.l.b16 %v1807
      %v1907 = vunpack.c.l.b16 %v1811
      %v1908 = vunpack.c.l.b16 %v1814
      %v1909 = vunpack.c.l.b16 %v1818
      %v1910 = vunpack.c.l.b16 %v1821
      %v1911 = vunpack.c.l.b16 %v1825
      %v1912 = vunpack.c.l.b16 %v1828
      %v1913 = vunpack.c.l.b16 %v1832
      %v1914 = vunpack.c.l.b16 %v1835
      %v1915 = vunpack.c.l.b16 %v1839
      %v1916 = vunpack.c.l.b16 %v1842
      %v1917 = vunpack.c.l.b16 %v1846
      %v1918 = vunpack.c.l.b16 %v1849
      %v1919 = vunpack.c.l.b16 %v1853
      %v1920 = vunpack.c.l.b16 %v1856
      %v1921 = vunpack.c.l.b16 %v1860
      %v1922 = vunpack.c.l.b16 %v1863
      %v1923 = vunpack.c.l.b16 %v1867
      %v1924 = vunpack.c.l.b16 %v1870
      %v1925 = vunpack.c.l.b16 %v1874
      %v1926 = vunpack.c.l.b16 %v1877
      %v1927 = vunpack.c.l.b16 %v1881
      %v1928 = vunpack.c.l.b16 %v1884
      %v1929 = vunpack.c.l.b16 %v1888
      %v1930 = vunpack.c.l.b16 %v1891
      %v1931 = vunpack.c.l.b16 %v1895
      %v1932 = vunpack.c.l.b16 %v1898
      %v1933 = vpack.c.b16 %v1902, %v1901
      %v1934 = vpack.c.b16 %v1904, %v1903
      %v1935 = vpack.c.b16 %v1906, %v1905
      %v1936 = vpack.c.b16 %v1908, %v1907
      %v1937 = vpack.c.b16 %v1910, %v1909
      %v1938 = vpack.c.b16 %v1912, %v1911
      %v1939 = vpack.c.b16 %v1914, %v1913
      %v1940 = vpack.c.b16 %v1916, %v1915
      %v1941 = vpack.c.b16 %v1918, %v1917
      %v1942 = vpack.c.b16 %v1920, %v1919
      %v1943 = vpack.c.b16 %v1922, %v1921
      %v1944 = vpack.c.b16 %v1924, %v1923
      %v1945 = vpack.c.b16 %v1926, %v1925
      %v1946 = vpack.c.b16 %v1928, %v1927
      %v1947 = vpack.c.b16 %v1930, %v1929
      %v1948 = vpack.c.b16 %v1932, %v1931
      %v1950 = vsel %vm1374, %v1933, 0
      %v1953 = vsel %vm1374, %v1934, 0
      %v1956 = vsel %vm1374, %v1935, 0
      %v1959 = vsel %vm1374, %v1936, 0
      %v1962 = vsel %vm1374, %v1937, 0
      %v1965 = vsel %vm1374, %v1938, 0
      %v1968 = vsel %vm1374, %v1939, 0
      %v1971 = vsel %vm1374, %v1940, 0
      %v1974 = vsel %vm1374, %v1941, 0
      %v1977 = vsel %vm1374, %v1942, 0
      %v1980 = vsel %vm1374, %v1943, 0
      %v1983 = vsel %vm1374, %v1944, 0
      %v1986 = vsel %vm1374, %v1945, 0
      %v1989 = vsel %vm1374, %v1946, 0
      %v1992 = vsel %vm1374, %v1947, 0
      %v1995 = vsel %vm1374, %v1948, 0
      %v1998 = vsel %vm1423, %v1900, 0
      %2000 = vmatpush.bf16.msra.mxu0 0
      %2001 = vmatpush.bf16.msra.mxu0 0
      %2002 = vmatpush.bf16.msra.mxu0 0
      %2003 = vmatpush.bf16.msra.mxu0 0
      %2004 = vmatpush.bf16.msra.mxu0 0
      %2005 = vmatpush.bf16.msra.mxu0 0
      %2006 = vmatpush.bf16.msra.mxu0 0
      %2007 = vmatpush.bf16.msra.mxu0 %v1998
      %2008 = vmatmul.bf16.gmra.mxu0 %v1950
      %v2009 = vpop.f32.mrf.mxu0
      %v2010 = vadd.f32 0.0, %v2009
      %v2011 = vpop.f32.mrf.mxu0
      %v2012 = vadd.f32 0.0, %v2011
      %2013 = vmatmul.bf16.gmra.mxu0 %v1953
      %v2014 = vpop.f32.mrf.mxu0
      %v2015 = vadd.f32 0.0, %v2014
      %v2016 = vpop.f32.mrf.mxu0
      %v2017 = vadd.f32 0.0, %v2016
      %2018 = vmatmul.bf16.gmra.mxu0 %v1956
      %v2019 = vpop.f32.mrf.mxu0
      %v2020 = vadd.f32 0.0, %v2019
      %v2021 = vpop.f32.mrf.mxu0
      %v2022 = vadd.f32 0.0, %v2021
      %2023 = vmatmul.bf16.gmra.mxu0 %v1959
      %v2024 = vpop.f32.mrf.mxu0
      %v2025 = vadd.f32 0.0, %v2024
      %v2026 = vpop.f32.mrf.mxu0
      %v2027 = vadd.f32 0.0, %v2026
      %2028 = vmatmul.bf16.gmra.mxu0 %v1962
      %v2029 = vpop.f32.mrf.mxu0
      %v2030 = vadd.f32 0.0, %v2029
      %v2031 = vpop.f32.mrf.mxu0
      %v2032 = vadd.f32 0.0, %v2031
      %2033 = vmatmul.bf16.gmra.mxu0 %v1965
      %v2034 = vpop.f32.mrf.mxu0
      %v2035 = vadd.f32 0.0, %v2034
      %v2036 = vpop.f32.mrf.mxu0
      %v2037 = vadd.f32 0.0, %v2036
      %2038 = vmatmul.bf16.gmra.mxu0 %v1968
      %v2039 = vpop.f32.mrf.mxu0
      %v2040 = vadd.f32 0.0, %v2039
      %v2041 = vpop.f32.mrf.mxu0
      %v2042 = vadd.f32 0.0, %v2041
      %2043 = vmatmul.bf16.gmra.mxu0 %v1971
      %v2044 = vpop.f32.mrf.mxu0
      %v2045 = vadd.f32 0.0, %v2044
      %v2046 = vpop.f32.mrf.mxu0
      %v2047 = vadd.f32 0.0, %v2046
      %2048 = vmatmul.bf16.gmra.mxu0 %v1974
      %v2049 = vpop.f32.mrf.mxu0
      %v2050 = vadd.f32 0.0, %v2049
      %v2051 = vpop.f32.mrf.mxu0
      %v2052 = vadd.f32 0.0, %v2051
      %2053 = vmatmul.bf16.gmra.mxu0 %v1977
      %v2054 = vpop.f32.mrf.mxu0
      %v2055 = vadd.f32 0.0, %v2054
      %v2056 = vpop.f32.mrf.mxu0
      %v2057 = vadd.f32 0.0, %v2056
      %2058 = vmatmul.bf16.gmra.mxu0 %v1980
      %v2059 = vpop.f32.mrf.mxu0
      %v2060 = vadd.f32 0.0, %v2059
      %v2061 = vpop.f32.mrf.mxu0
      %v2062 = vadd.f32 0.0, %v2061
      %2063 = vmatmul.bf16.gmra.mxu0 %v1983
      %v2064 = vpop.f32.mrf.mxu0
      %v2065 = vadd.f32 0.0, %v2064
      %v2066 = vpop.f32.mrf.mxu0
      %v2067 = vadd.f32 0.0, %v2066
      %2068 = vmatmul.bf16.gmra.mxu0 %v1986
      %v2069 = vpop.f32.mrf.mxu0
      %v2070 = vadd.f32 0.0, %v2069
      %v2071 = vpop.f32.mrf.mxu0
      %v2072 = vadd.f32 0.0, %v2071
      %2073 = vmatmul.bf16.gmra.mxu0 %v1989
      %v2074 = vpop.f32.mrf.mxu0
      %v2075 = vadd.f32 0.0, %v2074
      %v2076 = vpop.f32.mrf.mxu0
      %v2077 = vadd.f32 0.0, %v2076
      %2078 = vmatmul.bf16.gmra.mxu0 %v1992
      %v2079 = vpop.f32.mrf.mxu0
      %v2080 = vadd.f32 0.0, %v2079
      %v2081 = vpop.f32.mrf.mxu0
      %v2082 = vadd.f32 0.0, %v2081
      %2083 = vmatmul.bf16.gmra.mxu0 %v1995
      %v2084 = vpop.f32.mrf.mxu0
      %v2085 = vadd.f32 0.0, %v2084
      %v2086 = vpop.f32.mrf.mxu0
      %v2087 = vadd.f32 0.0, %v2086
      %2088 = vdwg.mxu0
      %v2089 = vadd.f32 %v1641, %v2010
      %v2090 = vadd.f32 %v1643, %v2012
      %v2091 = vadd.f32 %v1646, %v2015
      %v2092 = vadd.f32 %v1648, %v2017
      %v2093 = vadd.f32 %v1651, %v2020
      %v2094 = vadd.f32 %v1653, %v2022
      %v2095 = vadd.f32 %v1656, %v2025
      %v2096 = vadd.f32 %v1658, %v2027
      %v2097 = vadd.f32 %v1661, %v2030
      %v2098 = vadd.f32 %v1663, %v2032
      %v2099 = vadd.f32 %v1666, %v2035
      %v2100 = vadd.f32 %v1668, %v2037
      %v2101 = vadd.f32 %v1671, %v2040
      %v2102 = vadd.f32 %v1673, %v2042
      %v2103 = vadd.f32 %v1676, %v2045
      %v2104 = vadd.f32 %v1678, %v2047
      %v2105 = vadd.f32 %v1681, %v2050
      %v2106 = vadd.f32 %v1683, %v2052
      %v2107 = vadd.f32 %v1686, %v2055
      %v2108 = vadd.f32 %v1688, %v2057
      %v2109 = vadd.f32 %v1691, %v2060
      %v2110 = vadd.f32 %v1693, %v2062
      %v2111 = vadd.f32 %v1696, %v2065
      %v2112 = vadd.f32 %v1698, %v2067
      %v2113 = vadd.f32 %v1701, %v2070
      %v2114 = vadd.f32 %v1703, %v2072
      %v2115 = vadd.f32 %v1706, %v2075
      %v2116 = vadd.f32 %v1708, %v2077
      %v2117 = vadd.f32 %v1711, %v2080
      %v2118 = vadd.f32 %v1713, %v2082
      %v2119 = vadd.f32 %v1716, %v2085
      %v2120 = vadd.f32 %v1718, %v2087
      %v2121 = vld [vmem:[%s399] sm:$0xf]
      %v2122 = vld [vmem:[%s399 + $0x4] sm:$0xf]
      %v2123 = vld [vmem:[%s399 + $0xc] sm:$0xf]
      %v2124 = vld [vmem:[%s399 + $0x10] sm:$0xf]
      %v2125 = vld [vmem:[%s399 + $0x18] sm:$0xf]
      %v2126 = vld [vmem:[%s399 + $0x1c] sm:$0xf]
      %v2127 = vld [vmem:[%s399 + $0x24] sm:$0xf]
      %v2128 = vld [vmem:[%s399 + $0x28] sm:$0xf]
      %v2129 = vld [vmem:[%s399 + $0x30] sm:$0xf]
      %v2130 = vld [vmem:[%s399 + $0x34] sm:$0xf]
      %v2131 = vld [vmem:[%s399 + $0x3c] sm:$0xf]
      %v2132 = vld [vmem:[%s399 + $0x40] sm:$0xf]
      %v2133 = vld [vmem:[%s399 + $0x48] sm:$0xf]
      %v2134 = vld [vmem:[%s399 + $0x4c] sm:$0xf]
      %v2135 = vld [vmem:[%s399 + $0x54] sm:$0xf]
      %v2136 = vld [vmem:[%s399 + $0x58] sm:$0xf]
      %v2137 = vld [vmem:[%s399 + $0x60] sm:$0xf]
      %v2138 = vld [vmem:[%s399 + $0x64] sm:$0xf]
      %v2139 = vld [vmem:[%s399 + $0x6c] sm:$0xf]
      %v2140 = vld [vmem:[%s399 + $0x70] sm:$0xf]
      %v2141 = vld [vmem:[%s399 + $0x78] sm:$0xf]
      %v2142 = vld [vmem:[%s399 + $0x7c] sm:$0xf]
      %v2143 = vld [vmem:[%s399 + $0x84] sm:$0xf]
      %v2144 = vld [vmem:[%s399 + $0x88] sm:$0xf]
      %v2145 = vld [vmem:[%s399 + $0x90] sm:$0xf]
      %v2146 = vld [vmem:[%s399 + $0x94] sm:$0xf]
      %v2147 = vld [vmem:[%s399 + $0x9c] sm:$0xf]
      %v2148 = vld [vmem:[%s399 + $0xa0] sm:$0xf]
      %v2149 = vld [vmem:[%s399 + $0xa8] sm:$0xf]
      %v2150 = vld [vmem:[%s399 + $0xac] sm:$0xf]
      %v2151 = vld [vmem:[%s399 + $0xb4] sm:$0xf]
      %v2152 = vld [vmem:[%s399 + $0xb8] sm:$0xf]
      %s2153 = scalar_lea.vmem %s1, 6
      %v2154 = vld [vmem:[%s2153] sm:$0x3]
      %v2187 = vunpack.c.l.b16 %v2121
      %v2188 = vunpack.c.l.b16 %v2122
      %v2189 = vunpack.c.l.b16 %v2123
      %v2190 = vunpack.c.l.b16 %v2124
      %v2191 = vunpack.c.l.b16 %v2125
      %v2192 = vunpack.c.l.b16 %v2126
      %v2193 = vunpack.c.l.b16 %v2127
      %v2194 = vunpack.c.l.b16 %v2128
      %v2195 = vunpack.c.l.b16 %v2129
      %v2196 = vunpack.c.l.b16 %v2130
      %v2197 = vunpack.c.l.b16 %v2131
      %v2198 = vunpack.c.l.b16 %v2132
      %v2199 = vunpack.c.l.b16 %v2133
      %v2200 = vunpack.c.l.b16 %v2134
      %v2201 = vunpack.c.l.b16 %v2135
      %v2202 = vunpack.c.l.b16 %v2136
      %v2203 = vunpack.c.l.b16 %v2137
      %v2204 = vunpack.c.l.b16 %v2138
      %v2205 = vunpack.c.l.b16 %v2139
      %v2206 = vunpack.c.l.b16 %v2140
      %v2207 = vunpack.c.l.b16 %v2141
      %v2208 = vunpack.c.l.b16 %v2142
      %v2209 = vunpack.c.l.b16 %v2143
      %v2210 = vunpack.c.l.b16 %v2144
      %v2211 = vunpack.c.l.b16 %v2145
      %v2212 = vunpack.c.l.b16 %v2146
      %v2213 = vunpack.c.l.b16 %v2147
      %v2214 = vunpack.c.l.b16 %v2148
      %v2215 = vunpack.c.l.b16 %v2149
      %v2216 = vunpack.c.l.b16 %v2150
      %v2217 = vunpack.c.l.b16 %v2151
      %v2218 = vunpack.c.l.b16 %v2152
      %v2219 = vpack.c.b16 %v2188, %v2187
      %v2220 = vpack.c.b16 %v2190, %v2189
      %v2221 = vpack.c.b16 %v2192, %v2191
      %v2222 = vpack.c.b16 %v2194, %v2193
      %v2223 = vpack.c.b16 %v2196, %v2195
      %v2224 = vpack.c.b16 %v2198, %v2197
      %v2225 = vpack.c.b16 %v2200, %v2199
      %v2226 = vpack.c.b16 %v2202, %v2201
      %v2227 = vpack.c.b16 %v2204, %v2203
      %v2228 = vpack.c.b16 %v2206, %v2205
      %v2229 = vpack.c.b16 %v2208, %v2207
      %v2230 = vpack.c.b16 %v2210, %v2209
      %v2231 = vpack.c.b16 %v2212, %v2211
      %v2232 = vpack.c.b16 %v2214, %v2213
      %v2233 = vpack.c.b16 %v2216, %v2215
      %v2234 = vpack.c.b16 %v2218, %v2217
      %v2236 = vsel %vm1374, %v2219, 0
      %v2239 = vsel %vm1374, %v2220, 0
      %v2242 = vsel %vm1374, %v2221, 0
      %v2245 = vsel %vm1374, %v2222, 0
      %v2248 = vsel %vm1374, %v2223, 0
      %v2251 = vsel %vm1374, %v2224, 0
      %v2254 = vsel %vm1374, %v2225, 0
      %v2257 = vsel %vm1374, %v2226, 0
      %v2260 = vsel %vm1374, %v2227, 0
      %v2263 = vsel %vm1374, %v2228, 0
      %v2266 = vsel %vm1374, %v2229, 0
      %v2269 = vsel %vm1374, %v2230, 0
      %v2272 = vsel %vm1374, %v2231, 0
      %v2275 = vsel %vm1374, %v2232, 0
      %v2278 = vsel %vm1374, %v2233, 0
      %v2281 = vsel %vm1374, %v2234, 0
      %v2284 = vsel %vm1423, %v2154, 0
      %2286 = vmatpush.bf16.msra.mxu0 0
      %2287 = vmatpush.bf16.msra.mxu0 0
      %2288 = vmatpush.bf16.msra.mxu0 0
      %2289 = vmatpush.bf16.msra.mxu0 0
      %2290 = vmatpush.bf16.msra.mxu0 0
      %2291 = vmatpush.bf16.msra.mxu0 0
      %2292 = vmatpush.bf16.msra.mxu0 0
      %2293 = vmatpush.bf16.msra.mxu0 %v2284
      %2294 = vmatmul.bf16.gmra.mxu0 %v2236
      %v2295 = vpop.f32.mrf.mxu0
      %v2296 = vadd.f32 0.0, %v2295
      %v2297 = vpop.f32.mrf.mxu0
      %v2298 = vadd.f32 0.0, %v2297
      %2299 = vmatmul.bf16.gmra.mxu0 %v2239
      %v2300 = vpop.f32.mrf.mxu0
      %v2301 = vadd.f32 0.0, %v2300
      %v2302 = vpop.f32.mrf.mxu0
      %v2303 = vadd.f32 0.0, %v2302
      %2304 = vmatmul.bf16.gmra.mxu0 %v2242
      %v2305 = vpop.f32.mrf.mxu0
      %v2306 = vadd.f32 0.0, %v2305
      %v2307 = vpop.f32.mrf.mxu0
      %v2308 = vadd.f32 0.0, %v2307
      %2309 = vmatmul.bf16.gmra.mxu0 %v2245
      %v2310 = vpop.f32.mrf.mxu0
      %v2311 = vadd.f32 0.0, %v2310
      %v2312 = vpop.f32.mrf.mxu0
      %v2313 = vadd.f32 0.0, %v2312
      %2314 = vmatmul.bf16.gmra.mxu0 %v2248
      %v2315 = vpop.f32.mrf.mxu0
      %v2316 = vadd.f32 0.0, %v2315
      %v2317 = vpop.f32.mrf.mxu0
      %v2318 = vadd.f32 0.0, %v2317
      %2319 = vmatmul.bf16.gmra.mxu0 %v2251
      %v2320 = vpop.f32.mrf.mxu0
      %v2321 = vadd.f32 0.0, %v2320
      %v2322 = vpop.f32.mrf.mxu0
      %v2323 = vadd.f32 0.0, %v2322
      %2324 = vmatmul.bf16.gmra.mxu0 %v2254
      %v2325 = vpop.f32.mrf.mxu0
      %v2326 = vadd.f32 0.0, %v2325
      %v2327 = vpop.f32.mrf.mxu0
      %v2328 = vadd.f32 0.0, %v2327
      %2329 = vmatmul.bf16.gmra.mxu0 %v2257
      %v2330 = vpop.f32.mrf.mxu0
      %v2331 = vadd.f32 0.0, %v2330
      %v2332 = vpop.f32.mrf.mxu0
      %v2333 = vadd.f32 0.0, %v2332
      %2334 = vmatmul.bf16.gmra.mxu0 %v2260
      %v2335 = vpop.f32.mrf.mxu0
      %v2336 = vadd.f32 0.0, %v2335
      %v2337 = vpop.f32.mrf.mxu0
      %v2338 = vadd.f32 0.0, %v2337
      %2339 = vmatmul.bf16.gmra.mxu0 %v2263
      %v2340 = vpop.f32.mrf.mxu0
      %v2341 = vadd.f32 0.0, %v2340
      %v2342 = vpop.f32.mrf.mxu0
      %v2343 = vadd.f32 0.0, %v2342
      %2344 = vmatmul.bf16.gmra.mxu0 %v2266
      %v2345 = vpop.f32.mrf.mxu0
      %v2346 = vadd.f32 0.0, %v2345
      %v2347 = vpop.f32.mrf.mxu0
      %v2348 = vadd.f32 0.0, %v2347
      %2349 = vmatmul.bf16.gmra.mxu0 %v2269
      %v2350 = vpop.f32.mrf.mxu0
      %v2351 = vadd.f32 0.0, %v2350
      %v2352 = vpop.f32.mrf.mxu0
      %v2353 = vadd.f32 0.0, %v2352
      %2354 = vmatmul.bf16.gmra.mxu0 %v2272
      %v2355 = vpop.f32.mrf.mxu0
      %v2356 = vadd.f32 0.0, %v2355
      %v2357 = vpop.f32.mrf.mxu0
      %v2358 = vadd.f32 0.0, %v2357
      %2359 = vmatmul.bf16.gmra.mxu0 %v2275
      %v2360 = vpop.f32.mrf.mxu0
      %v2361 = vadd.f32 0.0, %v2360
      %v2362 = vpop.f32.mrf.mxu0
      %v2363 = vadd.f32 0.0, %v2362
      %2364 = vmatmul.bf16.gmra.mxu0 %v2278
      %v2365 = vpop.f32.mrf.mxu0
      %v2366 = vadd.f32 0.0, %v2365
      %v2367 = vpop.f32.mrf.mxu0
      %v2368 = vadd.f32 0.0, %v2367
      %2369 = vmatmul.bf16.gmra.mxu0 %v2281
      %v2370 = vpop.f32.mrf.mxu0
      %v2371 = vadd.f32 0.0, %v2370
      %v2372 = vpop.f32.mrf.mxu0
      %v2373 = vadd.f32 0.0, %v2372
      %2374 = vdwg.mxu0
      %v2375 = vadd.f32 %v2089, %v2296
      %v2376 = vadd.f32 %v2090, %v2298
      %v2377 = vadd.f32 %v2091, %v2301
      %v2378 = vadd.f32 %v2092, %v2303
      %v2379 = vadd.f32 %v2093, %v2306
      %v2380 = vadd.f32 %v2094, %v2308
      %v2381 = vadd.f32 %v2095, %v2311
      %v2382 = vadd.f32 %v2096, %v2313
      %v2383 = vadd.f32 %v2097, %v2316
      %v2384 = vadd.f32 %v2098, %v2318
      %v2385 = vadd.f32 %v2099, %v2321
      %v2386 = vadd.f32 %v2100, %v2323
      %v2387 = vadd.f32 %v2101, %v2326
      %v2388 = vadd.f32 %v2102, %v2328
      %v2389 = vadd.f32 %v2103, %v2331
      %v2390 = vadd.f32 %v2104, %v2333
      %v2391 = vadd.f32 %v2105, %v2336
      %v2392 = vadd.f32 %v2106, %v2338
      %v2393 = vadd.f32 %v2107, %v2341
      %v2394 = vadd.f32 %v2108, %v2343
      %v2395 = vadd.f32 %v2109, %v2346
      %v2396 = vadd.f32 %v2110, %v2348
      %v2397 = vadd.f32 %v2111, %v2351
      %v2398 = vadd.f32 %v2112, %v2353
      %v2399 = vadd.f32 %v2113, %v2356
      %v2400 = vadd.f32 %v2114, %v2358
      %v2401 = vadd.f32 %v2115, %v2361
      %v2402 = vadd.f32 %v2116, %v2363
      %v2403 = vadd.f32 %v2117, %v2366
      %v2404 = vadd.f32 %v2118, %v2368
      %v2405 = vadd.f32 %v2119, %v2371
      %v2406 = vadd.f32 %v2120, %v2373
      %v2407 = vld [vmem:[%s399] sm:$0xe]
      %v2408 = vld [vmem:[%s399 + $0x4] sm:$0xf]
      %v2409 = vld [vmem:[%s399 + $0x8] sm:$0x1]
      %v2410 = vld [vmem:[%s399 + $0xc] sm:$0xe]
      %v2411 = vld [vmem:[%s399 + $0x10] sm:$0xf]
      %v2412 = vld [vmem:[%s399 + $0x14] sm:$0x1]
      %v2413 = vld [vmem:[%s399 + $0x18] sm:$0xe]
      %v2414 = vld [vmem:[%s399 + $0x1c] sm:$0xf]
      %v2415 = vld [vmem:[%s399 + $0x20] sm:$0x1]
      %v2416 = vld [vmem:[%s399 + $0x24] sm:$0xe]
      %v2417 = vld [vmem:[%s399 + $0x28] sm:$0xf]
      %v2418 = vld [vmem:[%s399 + $0x2c] sm:$0x1]
      %v2419 = vld [vmem:[%s399 + $0x30] sm:$0xe]
      %v2420 = vld [vmem:[%s399 + $0x34] sm:$0xf]
      %v2421 = vld [vmem:[%s399 + $0x38] sm:$0x1]
      %v2422 = vld [vmem:[%s399 + $0x3c] sm:$0xe]
      %v2423 = vld [vmem:[%s399 + $0x40] sm:$0xf]
      %v2424 = vld [vmem:[%s399 + $0x44] sm:$0x1]
      %v2425 = vld [vmem:[%s399 + $0x48] sm:$0xe]
      %v2426 = vld [vmem:[%s399 + $0x4c] sm:$0xf]
      %v2427 = vld [vmem:[%s399 + $0x50] sm:$0x1]
      %v2428 = vld [vmem:[%s399 + $0x54] sm:$0xe]
      %v2429 = vld [vmem:[%s399 + $0x58] sm:$0xf]
      %v2430 = vld [vmem:[%s399 + $0x5c] sm:$0x1]
      %v2431 = vld [vmem:[%s399 + $0x60] sm:$0xe]
      %v2432 = vld [vmem:[%s399 + $0x64] sm:$0xf]
      %v2433 = vld [vmem:[%s399 + $0x68] sm:$0x1]
      %v2434 = vld [vmem:[%s399 + $0x6c] sm:$0xe]
      %v2435 = vld [vmem:[%s399 + $0x70] sm:$0xf]
      %v2436 = vld [vmem:[%s399 + $0x74] sm:$0x1]
      %v2437 = vld [vmem:[%s399 + $0x78] sm:$0xe]
      %v2438 = vld [vmem:[%s399 + $0x7c] sm:$0xf]
      %v2439 = vld [vmem:[%s399 + $0x80] sm:$0x1]
      %v2440 = vld [vmem:[%s399 + $0x84] sm:$0xe]
      %v2441 = vld [vmem:[%s399 + $0x88] sm:$0xf]
      %v2442 = vld [vmem:[%s399 + $0x8c] sm:$0x1]
      %v2443 = vld [vmem:[%s399 + $0x90] sm:$0xe]
      %v2444 = vld [vmem:[%s399 + $0x94] sm:$0xf]
      %v2445 = vld [vmem:[%s399 + $0x98] sm:$0x1]
      %v2446 = vld [vmem:[%s399 + $0x9c] sm:$0xe]
      %v2447 = vld [vmem:[%s399 + $0xa0] sm:$0xf]
      %v2448 = vld [vmem:[%s399 + $0xa4] sm:$0x1]
      %v2449 = vld [vmem:[%s399 + $0xa8] sm:$0xe]
      %v2450 = vld [vmem:[%s399 + $0xac] sm:$0xf]
      %v2451 = vld [vmem:[%s399 + $0xb0] sm:$0x1]
      %v2452 = vld [vmem:[%s399 + $0xb4] sm:$0xe]
      %v2453 = vld [vmem:[%s399 + $0xb8] sm:$0xf]
      %v2454 = vld [vmem:[%s399 + $0xbc] sm:$0x1]
      %v2503 = vrot.slane %v2407, 5
      %v2504 = vrot.slane %v2503, 4
      %v2505 = vrot.slane %v2408, 5
      %v2506 = vsel %vm1211, %v2504, %v2505
      %v2507 = vrot.slane %v2505, 4
      %v2508 = vrot.slane %v2409, 5
      %v2509 = vsel %vm1211, %v2507, %v2508
      %v2510 = vrot.slane %v2410, 5
      %v2511 = vrot.slane %v2510, 4
      %v2512 = vrot.slane %v2411, 5
      %v2513 = vsel %vm1211, %v2511, %v2512
      %v2514 = vrot.slane %v2512, 4
      %v2515 = vrot.slane %v2412, 5
      %v2516 = vsel %vm1211, %v2514, %v2515
      %v2517 = vrot.slane %v2413, 5
      %v2518 = vrot.slane %v2517, 4
      %v2519 = vrot.slane %v2414, 5
      %v2520 = vsel %vm1211, %v2518, %v2519
      %v2521 = vrot.slane %v2519, 4
      %v2522 = vrot.slane %v2415, 5
      %v2523 = vsel %vm1211, %v2521, %v2522
      %v2524 = vrot.slane %v2416, 5
      %v2525 = vrot.slane %v2524, 4
      %v2526 = vrot.slane %v2417, 5
      %v2527 = vsel %vm1211, %v2525, %v2526
      %v2528 = vrot.slane %v2526, 4
      %v2529 = vrot.slane %v2418, 5
      %v2530 = vsel %vm1211, %v2528, %v2529
      %v2531 = vrot.slane %v2419, 5
      %v2532 = vrot.slane %v2531, 4
      %v2533 = vrot.slane %v2420, 5
      %v2534 = vsel %vm1211, %v2532, %v2533
      %v2535 = vrot.slane %v2533, 4
      %v2536 = vrot.slane %v2421, 5
      %v2537 = vsel %vm1211, %v2535, %v2536
      %v2538 = vrot.slane %v2422, 5
      %v2539 = vrot.slane %v2538, 4
      %v2540 = vrot.slane %v2423, 5
      %v2541 = vsel %vm1211, %v2539, %v2540
      %v2542 = vrot.slane %v2540, 4
      %v2543 = vrot.slane %v2424, 5
      %v2544 = vsel %vm1211, %v2542, %v2543
      %v2545 = vrot.slane %v2425, 5
      %v2546 = vrot.slane %v2545, 4
      %v2547 = vrot.slane %v2426, 5
      %v2548 = vsel %vm1211, %v2546, %v2547
      %v2549 = vrot.slane %v2547, 4
      %v2550 = vrot.slane %v2427, 5
      %v2551 = vsel %vm1211, %v2549, %v2550
      %v2552 = vrot.slane %v2428, 5
      %v2553 = vrot.slane %v2552, 4
      %v2554 = vrot.slane %v2429, 5
      %v2555 = vsel %vm1211, %v2553, %v2554
      %v2556 = vrot.slane %v2554, 4
      %v2557 = vrot.slane %v2430, 5
      %v2558 = vsel %vm1211, %v2556, %v2557
      %v2559 = vrot.slane %v2431, 5
      %v2560 = vrot.slane %v2559, 4
      %v2561 = vrot.slane %v2432, 5
      %v2562 = vsel %vm1211, %v2560, %v2561
      %v2563 = vrot.slane %v2561, 4
      %v2564 = vrot.slane %v2433, 5
      %v2565 = vsel %vm1211, %v2563, %v2564
      %v2566 = vrot.slane %v2434, 5
      %v2567 = vrot.slane %v2566, 4
      %v2568 = vrot.slane %v2435, 5
      %v2569 = vsel %vm1211, %v2567, %v2568
      %v2570 = vrot.slane %v2568, 4
      %v2571 = vrot.slane %v2436, 5
      %v2572 = vsel %vm1211, %v2570, %v2571
      %v2573 = vrot.slane %v2437, 5
      %v2574 = vrot.slane %v2573, 4
      %v2575 = vrot.slane %v2438, 5
      %v2576 = vsel %vm1211, %v2574, %v2575
      %v2577 = vrot.slane %v2575, 4
      %v2578 = vrot.slane %v2439, 5
      %v2579 = vsel %vm1211, %v2577, %v2578
      %v2580 = vrot.slane %v2440, 5
      %v2581 = vrot.slane %v2580, 4
      %v2582 = vrot.slane %v2441, 5
      %v2583 = vsel %vm1211, %v2581, %v2582
      %v2584 = vrot.slane %v2582, 4
      %v2585 = vrot.slane %v2442, 5
      %v2586 = vsel %vm1211, %v2584, %v2585
      %v2587 = vrot.slane %v2443, 5
      %v2588 = vrot.slane %v2587, 4
      %v2589 = vrot.slane %v2444, 5
      %v2590 = vsel %vm1211, %v2588, %v2589
      %v2591 = vrot.slane %v2589, 4
      %v2592 = vrot.slane %v2445, 5
      %v2593 = vsel %vm1211, %v2591, %v2592
      %v2594 = vrot.slane %v2446, 5
      %v2595 = vrot.slane %v2594, 4
      %v2596 = vrot.slane %v2447, 5
      %v2597 = vsel %vm1211, %v2595, %v2596
      %v2598 = vrot.slane %v2596, 4
      %v2599 = vrot.slane %v2448, 5
      %v2600 = vsel %vm1211, %v2598, %v2599
      %v2601 = vrot.slane %v2449, 5
      %v2602 = vrot.slane %v2601, 4
      %v2603 = vrot.slane %v2450, 5
      %v2604 = vsel %vm1211, %v2602, %v2603
      %v2605 = vrot.slane %v2603, 4
      %v2606 = vrot.slane %v2451, 5
      %v2607 = vsel %vm1211, %v2605, %v2606
      %v2608 = vrot.slane %v2452, 5
      %v2609 = vrot.slane %v2608, 4
      %v2610 = vrot.slane %v2453, 5
      %v2611 = vsel %vm1211, %v2609, %v2610
      %v2612 = vrot.slane %v2610, 4
      %v2613 = vrot.slane %v2454, 5
      %v2614 = vsel %vm1211, %v2612, %v2613
      %s2615 = scalar_lea.vmem %s1, 8
      %v2616 = vld [vmem:[%s2615] sm:$0x3]
      %v2617 = vunpack.c.l.b16 %v2506
      %v2618 = vunpack.c.l.b16 %v2509
      %v2619 = vunpack.c.l.b16 %v2513
      %v2620 = vunpack.c.l.b16 %v2516
      %v2621 = vunpack.c.l.b16 %v2520
      %v2622 = vunpack.c.l.b16 %v2523
      %v2623 = vunpack.c.l.b16 %v2527
      %v2624 = vunpack.c.l.b16 %v2530
      %v2625 = vunpack.c.l.b16 %v2534
      %v2626 = vunpack.c.l.b16 %v2537
      %v2627 = vunpack.c.l.b16 %v2541
      %v2628 = vunpack.c.l.b16 %v2544
      %v2629 = vunpack.c.l.b16 %v2548
      %v2630 = vunpack.c.l.b16 %v2551
      %v2631 = vunpack.c.l.b16 %v2555
      %v2632 = vunpack.c.l.b16 %v2558
      %v2633 = vunpack.c.l.b16 %v2562
      %v2634 = vunpack.c.l.b16 %v2565
      %v2635 = vunpack.c.l.b16 %v2569
      %v2636 = vunpack.c.l.b16 %v2572
      %v2637 = vunpack.c.l.b16 %v2576
      %v2638 = vunpack.c.l.b16 %v2579
      %v2639 = vunpack.c.l.b16 %v2583
      %v2640 = vunpack.c.l.b16 %v2586
      %v2641 = vunpack.c.l.b16 %v2590
      %v2642 = vunpack.c.l.b16 %v2593
      %v2643 = vunpack.c.l.b16 %v2597
      %v2644 = vunpack.c.l.b16 %v2600
      %v2645 = vunpack.c.l.b16 %v2604
      %v2646 = vunpack.c.l.b16 %v2607
      %v2647 = vunpack.c.l.b16 %v2611
      %v2648 = vunpack.c.l.b16 %v2614
      %v2649 = vpack.c.b16 %v2618, %v2617
      %v2650 = vpack.c.b16 %v2620, %v2619
      %v2651 = vpack.c.b16 %v2622, %v2621
      %v2652 = vpack.c.b16 %v2624, %v2623
      %v2653 = vpack.c.b16 %v2626, %v2625
      %v2654 = vpack.c.b16 %v2628, %v2627
      %v2655 = vpack.c.b16 %v2630, %v2629
      %v2656 = vpack.c.b16 %v2632, %v2631
      %v2657 = vpack.c.b16 %v2634, %v2633
      %v2658 = vpack.c.b16 %v2636, %v2635
      %v2659 = vpack.c.b16 %v2638, %v2637
      %v2660 = vpack.c.b16 %v2640, %v2639
      %v2661 = vpack.c.b16 %v2642, %v2641
      %v2662 = vpack.c.b16 %v2644, %v2643
      %v2663 = vpack.c.b16 %v2646, %v2645
      %v2664 = vpack.c.b16 %v2648, %v2647
      %v2666 = vsel %vm1374, %v2649, 0
      %v2669 = vsel %vm1374, %v2650, 0
      %v2672 = vsel %vm1374, %v2651, 0
      %v2675 = vsel %vm1374, %v2652, 0
      %v2678 = vsel %vm1374, %v2653, 0
      %v2681 = vsel %vm1374, %v2654, 0
      %v2684 = vsel %vm1374, %v2655, 0
      %v2687 = vsel %vm1374, %v2656, 0
      %v2690 = vsel %vm1374, %v2657, 0
      %v2693 = vsel %vm1374, %v2658, 0
      %v2696 = vsel %vm1374, %v2659, 0
      %v2699 = vsel %vm1374, %v2660, 0
      %v2702 = vsel %vm1374, %v2661, 0
      %v2705 = vsel %vm1374, %v2662, 0
      %v2708 = vsel %vm1374, %v2663, 0
      %v2711 = vsel %vm1374, %v2664, 0
      %v2714 = vsel %vm1423, %v2616, 0
      %2716 = vmatpush.bf16.msra.mxu0 0
      %2717 = vmatpush.bf16.msra.mxu0 0
      %2718 = vmatpush.bf16.msra.mxu0 0
      %2719 = vmatpush.bf16.msra.mxu0 0
      %2720 = vmatpush.bf16.msra.mxu0 0
      %2721 = vmatpush.bf16.msra.mxu0 0
      %2722 = vmatpush.bf16.msra.mxu0 0
      %2723 = vmatpush.bf16.msra.mxu0 %v2714
      %2724 = vmatmul.bf16.gmra.mxu0 %v2666
      %v2725 = vpop.f32.mrf.mxu0
      %v2726 = vadd.f32 0.0, %v2725
      %v2727 = vpop.f32.mrf.mxu0
      %v2728 = vadd.f32 0.0, %v2727
      %2729 = vmatmul.bf16.gmra.mxu0 %v2669
      %v2730 = vpop.f32.mrf.mxu0
      %v2731 = vadd.f32 0.0, %v2730
      %v2732 = vpop.f32.mrf.mxu0
      %v2733 = vadd.f32 0.0, %v2732
      %2734 = vmatmul.bf16.gmra.mxu0 %v2672
      %v2735 = vpop.f32.mrf.mxu0
      %v2736 = vadd.f32 0.0, %v2735
      %v2737 = vpop.f32.mrf.mxu0
      %v2738 = vadd.f32 0.0, %v2737
      %2739 = vmatmul.bf16.gmra.mxu0 %v2675
      %v2740 = vpop.f32.mrf.mxu0
      %v2741 = vadd.f32 0.0, %v2740
      %v2742 = vpop.f32.mrf.mxu0
      %v2743 = vadd.f32 0.0, %v2742
      %2744 = vmatmul.bf16.gmra.mxu0 %v2678
      %v2745 = vpop.f32.mrf.mxu0
      %v2746 = vadd.f32 0.0, %v2745
      %v2747 = vpop.f32.mrf.mxu0
      %v2748 = vadd.f32 0.0, %v2747
      %2749 = vmatmul.bf16.gmra.mxu0 %v2681
      %v2750 = vpop.f32.mrf.mxu0
      %v2751 = vadd.f32 0.0, %v2750
      %v2752 = vpop.f32.mrf.mxu0
      %v2753 = vadd.f32 0.0, %v2752
      %2754 = vmatmul.bf16.gmra.mxu0 %v2684
      %v2755 = vpop.f32.mrf.mxu0
      %v2756 = vadd.f32 0.0, %v2755
      %v2757 = vpop.f32.mrf.mxu0
      %v2758 = vadd.f32 0.0, %v2757
      %2759 = vmatmul.bf16.gmra.mxu0 %v2687
      %v2760 = vpop.f32.mrf.mxu0
      %v2761 = vadd.f32 0.0, %v2760
      %v2762 = vpop.f32.mrf.mxu0
      %v2763 = vadd.f32 0.0, %v2762
      %2764 = vmatmul.bf16.gmra.mxu0 %v2690
      %v2765 = vpop.f32.mrf.mxu0
      %v2766 = vadd.f32 0.0, %v2765
      %v2767 = vpop.f32.mrf.mxu0
      %v2768 = vadd.f32 0.0, %v2767
      %2769 = vmatmul.bf16.gmra.mxu0 %v2693
      %v2770 = vpop.f32.mrf.mxu0
      %v2771 = vadd.f32 0.0, %v2770
      %v2772 = vpop.f32.mrf.mxu0
      %v2773 = vadd.f32 0.0, %v2772
      %2774 = vmatmul.bf16.gmra.mxu0 %v2696
      %v2775 = vpop.f32.mrf.mxu0
      %v2776 = vadd.f32 0.0, %v2775
      %v2777 = vpop.f32.mrf.mxu0
      %v2778 = vadd.f32 0.0, %v2777
      %2779 = vmatmul.bf16.gmra.mxu0 %v2699
      %v2780 = vpop.f32.mrf.mxu0
      %v2781 = vadd.f32 0.0, %v2780
      %v2782 = vpop.f32.mrf.mxu0
      %v2783 = vadd.f32 0.0, %v2782
      %2784 = vmatmul.bf16.gmra.mxu0 %v2702
      %v2785 = vpop.f32.mrf.mxu0
      %v2786 = vadd.f32 0.0, %v2785
      %v2787 = vpop.f32.mrf.mxu0
      %v2788 = vadd.f32 0.0, %v2787
      %2789 = vmatmul.bf16.gmra.mxu0 %v2705
      %v2790 = vpop.f32.mrf.mxu0
      %v2791 = vadd.f32 0.0, %v2790
      %v2792 = vpop.f32.mrf.mxu0
      %v2793 = vadd.f32 0.0, %v2792
      %2794 = vmatmul.bf16.gmra.mxu0 %v2708
      %v2795 = vpop.f32.mrf.mxu0
      %v2796 = vadd.f32 0.0, %v2795
      %v2797 = vpop.f32.mrf.mxu0
      %v2798 = vadd.f32 0.0, %v2797
      %2799 = vmatmul.bf16.gmra.mxu0 %v2711
      %v2800 = vpop.f32.mrf.mxu0
      %v2801 = vadd.f32 0.0, %v2800
      %v2802 = vpop.f32.mrf.mxu0
      %v2803 = vadd.f32 0.0, %v2802
      %2804 = vdwg.mxu0
      %v2805 = vadd.f32 %v2375, %v2726
      %v2806 = vadd.f32 %v2376, %v2728
      %v2807 = vadd.f32 %v2377, %v2731
      %v2808 = vadd.f32 %v2378, %v2733
      %v2809 = vadd.f32 %v2379, %v2736
      %v2810 = vadd.f32 %v2380, %v2738
      %v2811 = vadd.f32 %v2381, %v2741
      %v2812 = vadd.f32 %v2382, %v2743
      %v2813 = vadd.f32 %v2383, %v2746
      %v2814 = vadd.f32 %v2384, %v2748
      %v2815 = vadd.f32 %v2385, %v2751
      %v2816 = vadd.f32 %v2386, %v2753
      %v2817 = vadd.f32 %v2387, %v2756
      %v2818 = vadd.f32 %v2388, %v2758
      %v2819 = vadd.f32 %v2389, %v2761
      %v2820 = vadd.f32 %v2390, %v2763
      %v2821 = vadd.f32 %v2391, %v2766
      %v2822 = vadd.f32 %v2392, %v2768
      %v2823 = vadd.f32 %v2393, %v2771
      %v2824 = vadd.f32 %v2394, %v2773
      %v2825 = vadd.f32 %v2395, %v2776
      %v2826 = vadd.f32 %v2396, %v2778
      %v2827 = vadd.f32 %v2397, %v2781
      %v2828 = vadd.f32 %v2398, %v2783
      %v2829 = vadd.f32 %v2399, %v2786
      %v2830 = vadd.f32 %v2400, %v2788
      %v2831 = vadd.f32 %v2401, %v2791
      %v2832 = vadd.f32 %v2402, %v2793
      %v2833 = vadd.f32 %v2403, %v2796
      %v2834 = vadd.f32 %v2404, %v2798
      %v2835 = vadd.f32 %v2405, %v2801
      %v2836 = vadd.f32 %v2406, %v2803
      %v2837 = vld [vmem:[%s399] sm:$0xc]
      %v2838 = vld [vmem:[%s399 + $0x8] sm:$0x3]
      %v2839 = vld [vmem:[%s399 + $0xc] sm:$0xc]
      %v2840 = vld [vmem:[%s399 + $0x14] sm:$0x3]
      %v2841 = vld [vmem:[%s399 + $0x18] sm:$0xc]
      %v2842 = vld [vmem:[%s399 + $0x20] sm:$0x3]
      %v2843 = vld [vmem:[%s399 + $0x24] sm:$0xc]
      %v2844 = vld [vmem:[%s399 + $0x2c] sm:$0x3]
      %v2845 = vld [vmem:[%s399 + $0x30] sm:$0xc]
      %v2846 = vld [vmem:[%s399 + $0x38] sm:$0x3]
      %v2847 = vld [vmem:[%s399 + $0x3c] sm:$0xc]
      %v2848 = vld [vmem:[%s399 + $0x44] sm:$0x3]
      %v2849 = vld [vmem:[%s399 + $0x48] sm:$0xc]
      %v2850 = vld [vmem:[%s399 + $0x50] sm:$0x3]
      %v2851 = vld [vmem:[%s399 + $0x54] sm:$0xc]
      %v2852 = vld [vmem:[%s399 + $0x5c] sm:$0x3]
      %v2853 = vld [vmem:[%s399 + $0x60] sm:$0xc]
      %v2854 = vld [vmem:[%s399 + $0x68] sm:$0x3]
      %v2855 = vld [vmem:[%s399 + $0x6c] sm:$0xc]
      %v2856 = vld [vmem:[%s399 + $0x74] sm:$0x3]
      %v2857 = vld [vmem:[%s399 + $0x78] sm:$0xc]
      %v2858 = vld [vmem:[%s399 + $0x80] sm:$0x3]
      %v2859 = vld [vmem:[%s399 + $0x84] sm:$0xc]
      %v2860 = vld [vmem:[%s399 + $0x8c] sm:$0x3]
      %v2861 = vld [vmem:[%s399 + $0x90] sm:$0xc]
      %v2862 = vld [vmem:[%s399 + $0x98] sm:$0x3]
      %v2863 = vld [vmem:[%s399 + $0x9c] sm:$0xc]
      %v2864 = vld [vmem:[%s399 + $0xa4] sm:$0x3]
      %v2865 = vld [vmem:[%s399 + $0xa8] sm:$0xc]
      %v2866 = vld [vmem:[%s399 + $0xb0] sm:$0x3]
      %v2867 = vld [vmem:[%s399 + $0xb4] sm:$0xc]
      %v2868 = vld [vmem:[%s399 + $0xbc] sm:$0x3]
      %v2901 = vrot.slane %v2837, 6
      %v2902 = vrot.slane %v2901, 4
      %v2903 = vrot.slane %v2408, 6
      %v2904 = vsel %vm1786, %v2902, %v2903
      %v2905 = vrot.slane %v2903, 4
      %v2906 = vrot.slane %v2838, 6
      %v2907 = vsel %vm1786, %v2905, %v2906
      %v2908 = vrot.slane %v2839, 6
      %v2909 = vrot.slane %v2908, 4
      %v2910 = vrot.slane %v2411, 6
      %v2911 = vsel %vm1786, %v2909, %v2910
      %v2912 = vrot.slane %v2910, 4
      %v2913 = vrot.slane %v2840, 6
      %v2914 = vsel %vm1786, %v2912, %v2913
      %v2915 = vrot.slane %v2841, 6
      %v2916 = vrot.slane %v2915, 4
      %v2917 = vrot.slane %v2414, 6
      %v2918 = vsel %vm1786, %v2916, %v2917
      %v2919 = vrot.slane %v2917, 4
      %v2920 = vrot.slane %v2842, 6
      %v2921 = vsel %vm1786, %v2919, %v2920
      %v2922 = vrot.slane %v2843, 6
      %v2923 = vrot.slane %v2922, 4
      %v2924 = vrot.slane %v2417, 6
      %v2925 = vsel %vm1786, %v2923, %v2924
      %v2926 = vrot.slane %v2924, 4
      %v2927 = vrot.slane %v2844, 6
      %v2928 = vsel %vm1786, %v2926, %v2927
      %v2929 = vrot.slane %v2845, 6
      %v2930 = vrot.slane %v2929, 4
      %v2931 = vrot.slane %v2420, 6
      %v2932 = vsel %vm1786, %v2930, %v2931
      %v2933 = vrot.slane %v2931, 4
      %v2934 = vrot.slane %v2846, 6
      %v2935 = vsel %vm1786, %v2933, %v2934
      %v2936 = vrot.slane %v2847, 6
      %v2937 = vrot.slane %v2936, 4
      %v2938 = vrot.slane %v2423, 6
      %v2939 = vsel %vm1786, %v2937, %v2938
      %v2940 = vrot.slane %v2938, 4
      %v2941 = vrot.slane %v2848, 6
      %v2942 = vsel %vm1786, %v2940, %v2941
      %v2943 = vrot.slane %v2849, 6
      %v2944 = vrot.slane %v2943, 4
      %v2945 = vrot.slane %v2426, 6
      %v2946 = vsel %vm1786, %v2944, %v2945
      %v2947 = vrot.slane %v2945, 4
      %v2948 = vrot.slane %v2850, 6
      %v2949 = vsel %vm1786, %v2947, %v2948
      %v2950 = vrot.slane %v2851, 6
      %v2951 = vrot.slane %v2950, 4
      %v2952 = vrot.slane %v2429, 6
      %v2953 = vsel %vm1786, %v2951, %v2952
      %v2954 = vrot.slane %v2952, 4
      %v2955 = vrot.slane %v2852, 6
      %v2956 = vsel %vm1786, %v2954, %v2955
      %v2957 = vrot.slane %v2853, 6
      %v2958 = vrot.slane %v2957, 4
      %v2959 = vrot.slane %v2432, 6
      %v2960 = vsel %vm1786, %v2958, %v2959
      %v2961 = vrot.slane %v2959, 4
      %v2962 = vrot.slane %v2854, 6
      %v2963 = vsel %vm1786, %v2961, %v2962
      %v2964 = vrot.slane %v2855, 6
      %v2965 = vrot.slane %v2964, 4
      %v2966 = vrot.slane %v2435, 6
      %v2967 = vsel %vm1786, %v2965, %v2966
      %v2968 = vrot.slane %v2966, 4
      %v2969 = vrot.slane %v2856, 6
      %v2970 = vsel %vm1786, %v2968, %v2969
      %v2971 = vrot.slane %v2857, 6
      %v2972 = vrot.slane %v2971, 4
      %v2973 = vrot.slane %v2438, 6
      %v2974 = vsel %vm1786, %v2972, %v2973
      %v2975 = vrot.slane %v2973, 4
      %v2976 = vrot.slane %v2858, 6
      %v2977 = vsel %vm1786, %v2975, %v2976
      %v2978 = vrot.slane %v2859, 6
      %v2979 = vrot.slane %v2978, 4
      %v2980 = vrot.slane %v2441, 6
      %v2981 = vsel %vm1786, %v2979, %v2980
      %v2982 = vrot.slane %v2980, 4
      %v2983 = vrot.slane %v2860, 6
      %v2984 = vsel %vm1786, %v2982, %v2983
      %v2985 = vrot.slane %v2861, 6
      %v2986 = vrot.slane %v2985, 4
      %v2987 = vrot.slane %v2444, 6
      %v2988 = vsel %vm1786, %v2986, %v2987
      %v2989 = vrot.slane %v2987, 4
      %v2990 = vrot.slane %v2862, 6
      %v2991 = vsel %vm1786, %v2989, %v2990
      %v2992 = vrot.slane %v2863, 6
      %v2993 = vrot.slane %v2992, 4
      %v2994 = vrot.slane %v2447, 6
      %v2995 = vsel %vm1786, %v2993, %v2994
      %v2996 = vrot.slane %v2994, 4
      %v2997 = vrot.slane %v2864, 6
      %v2998 = vsel %vm1786, %v2996, %v2997
      %v2999 = vrot.slane %v2865, 6
      %v3000 = vrot.slane %v2999, 4
      %v3001 = vrot.slane %v2450, 6
      %v3002 = vsel %vm1786, %v3000, %v3001
      %v3003 = vrot.slane %v3001, 4
      %v3004 = vrot.slane %v2866, 6
      %v3005 = vsel %vm1786, %v3003, %v3004
      %v3006 = vrot.slane %v2867, 6
      %v3007 = vrot.slane %v3006, 4
      %v3008 = vrot.slane %v2453, 6
      %v3009 = vsel %vm1786, %v3007, %v3008
      %v3010 = vrot.slane %v3008, 4
      %v3011 = vrot.slane %v2868, 6
      %v3012 = vsel %vm1786, %v3010, %v3011
      %s3013 = scalar_lea.vmem %s1, 10
      %v3014 = vld [vmem:[%s3013] sm:$0x3]
      %v3015 = vunpack.c.l.b16 %v2904
      %v3016 = vunpack.c.l.b16 %v2907
      %v3017 = vunpack.c.l.b16 %v2911
      %v3018 = vunpack.c.l.b16 %v2914
      %v3019 = vunpack.c.l.b16 %v2918
      %v3020 = vunpack.c.l.b16 %v2921
      %v3021 = vunpack.c.l.b16 %v2925
      %v3022 = vunpack.c.l.b16 %v2928
      %v3023 = vunpack.c.l.b16 %v2932
      %v3024 = vunpack.c.l.b16 %v2935
      %v3025 = vunpack.c.l.b16 %v2939
      %v3026 = vunpack.c.l.b16 %v2942
      %v3027 = vunpack.c.l.b16 %v2946
      %v3028 = vunpack.c.l.b16 %v2949
      %v3029 = vunpack.c.l.b16 %v2953
      %v3030 = vunpack.c.l.b16 %v2956
      %v3031 = vunpack.c.l.b16 %v2960
      %v3032 = vunpack.c.l.b16 %v2963
      %v3033 = vunpack.c.l.b16 %v2967
      %v3034 = vunpack.c.l.b16 %v2970
      %v3035 = vunpack.c.l.b16 %v2974
      %v3036 = vunpack.c.l.b16 %v2977
      %v3037 = vunpack.c.l.b16 %v2981
      %v3038 = vunpack.c.l.b16 %v2984
      %v3039 = vunpack.c.l.b16 %v2988
      %v3040 = vunpack.c.l.b16 %v2991
      %v3041 = vunpack.c.l.b16 %v2995
      %v3042 = vunpack.c.l.b16 %v2998
      %v3043 = vunpack.c.l.b16 %v3002
      %v3044 = vunpack.c.l.b16 %v3005
      %v3045 = vunpack.c.l.b16 %v3009
      %v3046 = vunpack.c.l.b16 %v3012
      %v3047 = vpack.c.b16 %v3016, %v3015
      %v3048 = vpack.c.b16 %v3018, %v3017
      %v3049 = vpack.c.b16 %v3020, %v3019
      %v3050 = vpack.c.b16 %v3022, %v3021
      %v3051 = vpack.c.b16 %v3024, %v3023
      %v3052 = vpack.c.b16 %v3026, %v3025
      %v3053 = vpack.c.b16 %v3028, %v3027
      %v3054 = vpack.c.b16 %v3030, %v3029
      %v3055 = vpack.c.b16 %v3032, %v3031
      %v3056 = vpack.c.b16 %v3034, %v3033
      %v3057 = vpack.c.b16 %v3036, %v3035
      %v3058 = vpack.c.b16 %v3038, %v3037
      %v3059 = vpack.c.b16 %v3040, %v3039
      %v3060 = vpack.c.b16 %v3042, %v3041
      %v3061 = vpack.c.b16 %v3044, %v3043
      %v3062 = vpack.c.b16 %v3046, %v3045
      %v3064 = vsel %vm1374, %v3047, 0
      %v3067 = vsel %vm1374, %v3048, 0
      %v3070 = vsel %vm1374, %v3049, 0
      %v3073 = vsel %vm1374, %v3050, 0
      %v3076 = vsel %vm1374, %v3051, 0
      %v3079 = vsel %vm1374, %v3052, 0
      %v3082 = vsel %vm1374, %v3053, 0
      %v3085 = vsel %vm1374, %v3054, 0
      %v3088 = vsel %vm1374, %v3055, 0
      %v3091 = vsel %vm1374, %v3056, 0
      %v3094 = vsel %vm1374, %v3057, 0
      %v3097 = vsel %vm1374, %v3058, 0
      %v3100 = vsel %vm1374, %v3059, 0
      %v3103 = vsel %vm1374, %v3060, 0
      %v3106 = vsel %vm1374, %v3061, 0
      %v3109 = vsel %vm1374, %v3062, 0
      %v3112 = vsel %vm1423, %v3014, 0
      %3114 = vmatpush.bf16.msra.mxu0 0
      %3115 = vmatpush.bf16.msra.mxu0 0
      %3116 = vmatpush.bf16.msra.mxu0 0
      %3117 = vmatpush.bf16.msra.mxu0 0
      %3118 = vmatpush.bf16.msra.mxu0 0
      %3119 = vmatpush.bf16.msra.mxu0 0
      %3120 = vmatpush.bf16.msra.mxu0 0
      %3121 = vmatpush.bf16.msra.mxu0 %v3112
      %3122 = vmatmul.bf16.gmra.mxu0 %v3064
      %v3123 = vpop.f32.mrf.mxu0
      %v3124 = vadd.f32 0.0, %v3123
      %v3125 = vpop.f32.mrf.mxu0
      %v3126 = vadd.f32 0.0, %v3125
      %3127 = vmatmul.bf16.gmra.mxu0 %v3067
      %v3128 = vpop.f32.mrf.mxu0
      %v3129 = vadd.f32 0.0, %v3128
      %v3130 = vpop.f32.mrf.mxu0
      %v3131 = vadd.f32 0.0, %v3130
      %3132 = vmatmul.bf16.gmra.mxu0 %v3070
      %v3133 = vpop.f32.mrf.mxu0
      %v3134 = vadd.f32 0.0, %v3133
      %v3135 = vpop.f32.mrf.mxu0
      %v3136 = vadd.f32 0.0, %v3135
      %3137 = vmatmul.bf16.gmra.mxu0 %v3073
      %v3138 = vpop.f32.mrf.mxu0
      %v3139 = vadd.f32 0.0, %v3138
      %v3140 = vpop.f32.mrf.mxu0
      %v3141 = vadd.f32 0.0, %v3140
      %3142 = vmatmul.bf16.gmra.mxu0 %v3076
      %v3143 = vpop.f32.mrf.mxu0
      %v3144 = vadd.f32 0.0, %v3143
      %v3145 = vpop.f32.mrf.mxu0
      %v3146 = vadd.f32 0.0, %v3145
      %3147 = vmatmul.bf16.gmra.mxu0 %v3079
      %v3148 = vpop.f32.mrf.mxu0
      %v3149 = vadd.f32 0.0, %v3148
      %v3150 = vpop.f32.mrf.mxu0
      %v3151 = vadd.f32 0.0, %v3150
      %3152 = vmatmul.bf16.gmra.mxu0 %v3082
      %v3153 = vpop.f32.mrf.mxu0
      %v3154 = vadd.f32 0.0, %v3153
      %v3155 = vpop.f32.mrf.mxu0
      %v3156 = vadd.f32 0.0, %v3155
      %3157 = vmatmul.bf16.gmra.mxu0 %v3085
      %v3158 = vpop.f32.mrf.mxu0
      %v3159 = vadd.f32 0.0, %v3158
      %v3160 = vpop.f32.mrf.mxu0
      %v3161 = vadd.f32 0.0, %v3160
      %3162 = vmatmul.bf16.gmra.mxu0 %v3088
      %v3163 = vpop.f32.mrf.mxu0
      %v3164 = vadd.f32 0.0, %v3163
      %v3165 = vpop.f32.mrf.mxu0
      %v3166 = vadd.f32 0.0, %v3165
      %3167 = vmatmul.bf16.gmra.mxu0 %v3091
      %v3168 = vpop.f32.mrf.mxu0
      %v3169 = vadd.f32 0.0, %v3168
      %v3170 = vpop.f32.mrf.mxu0
      %v3171 = vadd.f32 0.0, %v3170
      %3172 = vmatmul.bf16.gmra.mxu0 %v3094
      %v3173 = vpop.f32.mrf.mxu0
      %v3174 = vadd.f32 0.0, %v3173
      %v3175 = vpop.f32.mrf.mxu0
      %v3176 = vadd.f32 0.0, %v3175
      %3177 = vmatmul.bf16.gmra.mxu0 %v3097
      %v3178 = vpop.f32.mrf.mxu0
      %v3179 = vadd.f32 0.0, %v3178
      %v3180 = vpop.f32.mrf.mxu0
      %v3181 = vadd.f32 0.0, %v3180
      %3182 = vmatmul.bf16.gmra.mxu0 %v3100
      %v3183 = vpop.f32.mrf.mxu0
      %v3184 = vadd.f32 0.0, %v3183
      %v3185 = vpop.f32.mrf.mxu0
      %v3186 = vadd.f32 0.0, %v3185
      %3187 = vmatmul.bf16.gmra.mxu0 %v3103
      %v3188 = vpop.f32.mrf.mxu0
      %v3189 = vadd.f32 0.0, %v3188
      %v3190 = vpop.f32.mrf.mxu0
      %v3191 = vadd.f32 0.0, %v3190
      %3192 = vmatmul.bf16.gmra.mxu0 %v3106
      %v3193 = vpop.f32.mrf.mxu0
      %v3194 = vadd.f32 0.0, %v3193
      %v3195 = vpop.f32.mrf.mxu0
      %v3196 = vadd.f32 0.0, %v3195
      %3197 = vmatmul.bf16.gmra.mxu0 %v3109
      %v3198 = vpop.f32.mrf.mxu0
      %v3199 = vadd.f32 0.0, %v3198
      %v3200 = vpop.f32.mrf.mxu0
      %v3201 = vadd.f32 0.0, %v3200
      %3202 = vdwg.mxu0
      %v3203 = vadd.f32 %v2805, %v3124
      %v3204 = vadd.f32 %v2806, %v3126
      %v3205 = vadd.f32 %v2807, %v3129
      %v3206 = vadd.f32 %v2808, %v3131
      %v3207 = vadd.f32 %v2809, %v3134
      %v3208 = vadd.f32 %v2810, %v3136
      %v3209 = vadd.f32 %v2811, %v3139
      %v3210 = vadd.f32 %v2812, %v3141
      %v3211 = vadd.f32 %v2813, %v3144
      %v3212 = vadd.f32 %v2814, %v3146
      %v3213 = vadd.f32 %v2815, %v3149
      %v3214 = vadd.f32 %v2816, %v3151
      %v3215 = vadd.f32 %v2817, %v3154
      %v3216 = vadd.f32 %v2818, %v3156
      %v3217 = vadd.f32 %v2819, %v3159
      %v3218 = vadd.f32 %v2820, %v3161
      %v3219 = vadd.f32 %v2821, %v3164
      %v3220 = vadd.f32 %v2822, %v3166
      %v3221 = vadd.f32 %v2823, %v3169
      %v3222 = vadd.f32 %v2824, %v3171
      %v3223 = vadd.f32 %v2825, %v3174
      %v3224 = vadd.f32 %v2826, %v3176
      %v3225 = vadd.f32 %v2827, %v3179
      %v3226 = vadd.f32 %v2828, %v3181
      %v3227 = vadd.f32 %v2829, %v3184
      %v3228 = vadd.f32 %v2830, %v3186
      %v3229 = vadd.f32 %v2831, %v3189
      %v3230 = vadd.f32 %v2832, %v3191
      %v3231 = vadd.f32 %v2833, %v3194
      %v3232 = vadd.f32 %v2834, %v3196
      %v3233 = vadd.f32 %v2835, %v3199
      %v3234 = vadd.f32 %v2836, %v3201
      %s3235 = scalar_lea.vmem [#allocation2], 48
      %v3236 = vld [vmem:[%s3235] sm:$0xf]
      %v3237 = vld [vmem:[%s3235 + $0x4] sm:$0xf]
      %v3238 = vld [vmem:[%s3235 + $0xc] sm:$0xf]
      %v3239 = vld [vmem:[%s3235 + $0x10] sm:$0xf]
      %v3240 = vld [vmem:[%s3235 + $0x18] sm:$0xf]
      %v3241 = vld [vmem:[%s3235 + $0x1c] sm:$0xf]
      %v3242 = vld [vmem:[%s3235 + $0x24] sm:$0xf]
      %v3243 = vld [vmem:[%s3235 + $0x28] sm:$0xf]
      %v3244 = vld [vmem:[%s3235 + $0x30] sm:$0xf]
      %v3245 = vld [vmem:[%s3235 + $0x34] sm:$0xf]
      %v3246 = vld [vmem:[%s3235 + $0x3c] sm:$0xf]
      %v3247 = vld [vmem:[%s3235 + $0x40] sm:$0xf]
      %v3248 = vld [vmem:[%s3235 + $0x48] sm:$0xf]
      %v3249 = vld [vmem:[%s3235 + $0x4c] sm:$0xf]
      %v3250 = vld [vmem:[%s3235 + $0x54] sm:$0xf]
      %v3251 = vld [vmem:[%s3235 + $0x58] sm:$0xf]
      %v3252 = vld [vmem:[%s3235 + $0x60] sm:$0xf]
      %v3253 = vld [vmem:[%s3235 + $0x64] sm:$0xf]
      %v3254 = vld [vmem:[%s3235 + $0x6c] sm:$0xf]
      %v3255 = vld [vmem:[%s3235 + $0x70] sm:$0xf]
      %v3256 = vld [vmem:[%s3235 + $0x78] sm:$0xf]
      %v3257 = vld [vmem:[%s3235 + $0x7c] sm:$0xf]
      %v3258 = vld [vmem:[%s3235 + $0x84] sm:$0xf]
      %v3259 = vld [vmem:[%s3235 + $0x88] sm:$0xf]
      %v3260 = vld [vmem:[%s3235 + $0x90] sm:$0xf]
      %v3261 = vld [vmem:[%s3235 + $0x94] sm:$0xf]
      %v3262 = vld [vmem:[%s3235 + $0x9c] sm:$0xf]
      %v3263 = vld [vmem:[%s3235 + $0xa0] sm:$0xf]
      %v3264 = vld [vmem:[%s3235 + $0xa8] sm:$0xf]
      %v3265 = vld [vmem:[%s3235 + $0xac] sm:$0xf]
      %v3266 = vld [vmem:[%s3235 + $0xb4] sm:$0xf]
      %v3267 = vld [vmem:[%s3235 + $0xb8] sm:$0xf]
      %s3268 = scalar_lea.vmem %s1, 12
      %v3269 = vld [vmem:[%s3268] sm:$0x3]
      %v3302 = vunpack.c.l.b16 %v3236
      %v3303 = vunpack.c.l.b16 %v3237
      %v3304 = vunpack.c.l.b16 %v3238
      %v3305 = vunpack.c.l.b16 %v3239
      %v3306 = vunpack.c.l.b16 %v3240
      %v3307 = vunpack.c.l.b16 %v3241
      %v3308 = vunpack.c.l.b16 %v3242
      %v3309 = vunpack.c.l.b16 %v3243
      %v3310 = vunpack.c.l.b16 %v3244
      %v3311 = vunpack.c.l.b16 %v3245
      %v3312 = vunpack.c.l.b16 %v3246
      %v3313 = vunpack.c.l.b16 %v3247
      %v3314 = vunpack.c.l.b16 %v3248
      %v3315 = vunpack.c.l.b16 %v3249
      %v3316 = vunpack.c.l.b16 %v3250
      %v3317 = vunpack.c.l.b16 %v3251
      %v3318 = vunpack.c.l.b16 %v3252
      %v3319 = vunpack.c.l.b16 %v3253
      %v3320 = vunpack.c.l.b16 %v3254
      %v3321 = vunpack.c.l.b16 %v3255
      %v3322 = vunpack.c.l.b16 %v3256
      %v3323 = vunpack.c.l.b16 %v3257
      %v3324 = vunpack.c.l.b16 %v3258
      %v3325 = vunpack.c.l.b16 %v3259
      %v3326 = vunpack.c.l.b16 %v3260
      %v3327 = vunpack.c.l.b16 %v3261
      %v3328 = vunpack.c.l.b16 %v3262
      %v3329 = vunpack.c.l.b16 %v3263
      %v3330 = vunpack.c.l.b16 %v3264
      %v3331 = vunpack.c.l.b16 %v3265
      %v3332 = vunpack.c.l.b16 %v3266
      %v3333 = vunpack.c.l.b16 %v3267
      %v3334 = vpack.c.b16 %v3303, %v3302
      %v3335 = vpack.c.b16 %v3305, %v3304
      %v3336 = vpack.c.b16 %v3307, %v3306
      %v3337 = vpack.c.b16 %v3309, %v3308
      %v3338 = vpack.c.b16 %v3311, %v3310
      %v3339 = vpack.c.b16 %v3313, %v3312
      %v3340 = vpack.c.b16 %v3315, %v3314
      %v3341 = vpack.c.b16 %v3317, %v3316
      %v3342 = vpack.c.b16 %v3319, %v3318
      %v3343 = vpack.c.b16 %v3321, %v3320
      %v3344 = vpack.c.b16 %v3323, %v3322
      %v3345 = vpack.c.b16 %v3325, %v3324
      %v3346 = vpack.c.b16 %v3327, %v3326
      %v3347 = vpack.c.b16 %v3329, %v3328
      %v3348 = vpack.c.b16 %v3331, %v3330
      %v3349 = vpack.c.b16 %v3333, %v3332
      %v3351 = vsel %vm1374, %v3334, 0
      %v3354 = vsel %vm1374, %v3335, 0
      %v3357 = vsel %vm1374, %v3336, 0
      %v3360 = vsel %vm1374, %v3337, 0
      %v3363 = vsel %vm1374, %v3338, 0
      %v3366 = vsel %vm1374, %v3339, 0
      %v3369 = vsel %vm1374, %v3340, 0
      %v3372 = vsel %vm1374, %v3341, 0
      %v3375 = vsel %vm1374, %v3342, 0
      %v3378 = vsel %vm1374, %v3343, 0
      %v3381 = vsel %vm1374, %v3344, 0
      %v3384 = vsel %vm1374, %v3345, 0
      %v3387 = vsel %vm1374, %v3346, 0
      %v3390 = vsel %vm1374, %v3347, 0
      %v3393 = vsel %vm1374, %v3348, 0
      %v3396 = vsel %vm1374, %v3349, 0
      %v3399 = vsel %vm1423, %v3269, 0
      %3401 = vmatpush.bf16.msra.mxu0 0
      %3402 = vmatpush.bf16.msra.mxu0 0
      %3403 = vmatpush.bf16.msra.mxu0 0
      %3404 = vmatpush.bf16.msra.mxu0 0
      %3405 = vmatpush.bf16.msra.mxu0 0
      %3406 = vmatpush.bf16.msra.mxu0 0
      %3407 = vmatpush.bf16.msra.mxu0 0
      %3408 = vmatpush.bf16.msra.mxu0 %v3399
      %3409 = vmatmul.bf16.gmra.mxu0 %v3351
      %v3410 = vpop.f32.mrf.mxu0
      %v3411 = vadd.f32 0.0, %v3410
      %v3412 = vpop.f32.mrf.mxu0
      %v3413 = vadd.f32 0.0, %v3412
      %3414 = vmatmul.bf16.gmra.mxu0 %v3354
      %v3415 = vpop.f32.mrf.mxu0
      %v3416 = vadd.f32 0.0, %v3415
      %v3417 = vpop.f32.mrf.mxu0
      %v3418 = vadd.f32 0.0, %v3417
      %3419 = vmatmul.bf16.gmra.mxu0 %v3357
      %v3420 = vpop.f32.mrf.mxu0
      %v3421 = vadd.f32 0.0, %v3420
      %v3422 = vpop.f32.mrf.mxu0
      %v3423 = vadd.f32 0.0, %v3422
      %3424 = vmatmul.bf16.gmra.mxu0 %v3360
      %v3425 = vpop.f32.mrf.mxu0
      %v3426 = vadd.f32 0.0, %v3425
      %v3427 = vpop.f32.mrf.mxu0
      %v3428 = vadd.f32 0.0, %v3427
      %3429 = vmatmul.bf16.gmra.mxu0 %v3363
      %v3430 = vpop.f32.mrf.mxu0
      %v3431 = vadd.f32 0.0, %v3430
      %v3432 = vpop.f32.mrf.mxu0
      %v3433 = vadd.f32 0.0, %v3432
      %3434 = vmatmul.bf16.gmra.mxu0 %v3366
      %v3435 = vpop.f32.mrf.mxu0
      %v3436 = vadd.f32 0.0, %v3435
      %v3437 = vpop.f32.mrf.mxu0
      %v3438 = vadd.f32 0.0, %v3437
      %3439 = vmatmul.bf16.gmra.mxu0 %v3369
      %v3440 = vpop.f32.mrf.mxu0
      %v3441 = vadd.f32 0.0, %v3440
      %v3442 = vpop.f32.mrf.mxu0
      %v3443 = vadd.f32 0.0, %v3442
      %3444 = vmatmul.bf16.gmra.mxu0 %v3372
      %v3445 = vpop.f32.mrf.mxu0
      %v3446 = vadd.f32 0.0, %v3445
      %v3447 = vpop.f32.mrf.mxu0
      %v3448 = vadd.f32 0.0, %v3447
      %3449 = vmatmul.bf16.gmra.mxu0 %v3375
      %v3450 = vpop.f32.mrf.mxu0
      %v3451 = vadd.f32 0.0, %v3450
      %v3452 = vpop.f32.mrf.mxu0
      %v3453 = vadd.f32 0.0, %v3452
      %3454 = vmatmul.bf16.gmra.mxu0 %v3378
      %v3455 = vpop.f32.mrf.mxu0
      %v3456 = vadd.f32 0.0, %v3455
      %v3457 = vpop.f32.mrf.mxu0
      %v3458 = vadd.f32 0.0, %v3457
      %3459 = vmatmul.bf16.gmra.mxu0 %v3381
      %v3460 = vpop.f32.mrf.mxu0
      %v3461 = vadd.f32 0.0, %v3460
      %v3462 = vpop.f32.mrf.mxu0
      %v3463 = vadd.f32 0.0, %v3462
      %3464 = vmatmul.bf16.gmra.mxu0 %v3384
      %v3465 = vpop.f32.mrf.mxu0
      %v3466 = vadd.f32 0.0, %v3465
      %v3467 = vpop.f32.mrf.mxu0
      %v3468 = vadd.f32 0.0, %v3467
      %3469 = vmatmul.bf16.gmra.mxu0 %v3387
      %v3470 = vpop.f32.mrf.mxu0
      %v3471 = vadd.f32 0.0, %v3470
      %v3472 = vpop.f32.mrf.mxu0
      %v3473 = vadd.f32 0.0, %v3472
      %3474 = vmatmul.bf16.gmra.mxu0 %v3390
      %v3475 = vpop.f32.mrf.mxu0
      %v3476 = vadd.f32 0.0, %v3475
      %v3477 = vpop.f32.mrf.mxu0
      %v3478 = vadd.f32 0.0, %v3477
      %3479 = vmatmul.bf16.gmra.mxu0 %v3393
      %v3480 = vpop.f32.mrf.mxu0
      %v3481 = vadd.f32 0.0, %v3480
      %v3482 = vpop.f32.mrf.mxu0
      %v3483 = vadd.f32 0.0, %v3482
      %3484 = vmatmul.bf16.gmra.mxu0 %v3396
      %v3485 = vpop.f32.mrf.mxu0
      %v3486 = vadd.f32 0.0, %v3485
      %v3487 = vpop.f32.mrf.mxu0
      %v3488 = vadd.f32 0.0, %v3487
      %3489 = vdwg.mxu0
      %v3490 = vadd.f32 %v3203, %v3411
      %v3491 = vadd.f32 %v3204, %v3413
      %v3492 = vadd.f32 %v3205, %v3416
      %v3493 = vadd.f32 %v3206, %v3418
      %v3494 = vadd.f32 %v3207, %v3421
      %v3495 = vadd.f32 %v3208, %v3423
      %v3496 = vadd.f32 %v3209, %v3426
      %v3497 = vadd.f32 %v3210, %v3428
      %v3498 = vadd.f32 %v3211, %v3431
      %v3499 = vadd.f32 %v3212, %v3433
      %v3500 = vadd.f32 %v3213, %v3436
      %v3501 = vadd.f32 %v3214, %v3438
      %v3502 = vadd.f32 %v3215, %v3441
      %v3503 = vadd.f32 %v3216, %v3443
      %v3504 = vadd.f32 %v3217, %v3446
      %v3505 = vadd.f32 %v3218, %v3448
      %v3506 = vadd.f32 %v3219, %v3451
      %v3507 = vadd.f32 %v3220, %v3453
      %v3508 = vadd.f32 %v3221, %v3456
      %v3509 = vadd.f32 %v3222, %v3458
      %v3510 = vadd.f32 %v3223, %v3461
      %v3511 = vadd.f32 %v3224, %v3463
      %v3512 = vadd.f32 %v3225, %v3466
      %v3513 = vadd.f32 %v3226, %v3468
      %v3514 = vadd.f32 %v3227, %v3471
      %v3515 = vadd.f32 %v3228, %v3473
      %v3516 = vadd.f32 %v3229, %v3476
      %v3517 = vadd.f32 %v3230, %v3478
      %v3518 = vadd.f32 %v3231, %v3481
      %v3519 = vadd.f32 %v3232, %v3483
      %v3520 = vadd.f32 %v3233, %v3486
      %v3521 = vadd.f32 %v3234, %v3488
      %v3522 = vld [vmem:[%s3235] sm:$0xe]
      %v3523 = vld [vmem:[%s3235 + $0x4] sm:$0xf]
      %v3524 = vld [vmem:[%s3235 + $0x8] sm:$0x1]
      %v3525 = vld [vmem:[%s3235 + $0xc] sm:$0xe]
      %v3526 = vld [vmem:[%s3235 + $0x10] sm:$0xf]
      %v3527 = vld [vmem:[%s3235 + $0x14] sm:$0x1]
      %v3528 = vld [vmem:[%s3235 + $0x18] sm:$0xe]
      %v3529 = vld [vmem:[%s3235 + $0x1c] sm:$0xf]
      %v3530 = vld [vmem:[%s3235 + $0x20] sm:$0x1]
      %v3531 = vld [vmem:[%s3235 + $0x24] sm:$0xe]
      %v3532 = vld [vmem:[%s3235 + $0x28] sm:$0xf]
      %v3533 = vld [vmem:[%s3235 + $0x2c] sm:$0x1]
      %v3534 = vld [vmem:[%s3235 + $0x30] sm:$0xe]
      %v3535 = vld [vmem:[%s3235 + $0x34] sm:$0xf]
      %v3536 = vld [vmem:[%s3235 + $0x38] sm:$0x1]
      %v3537 = vld [vmem:[%s3235 + $0x3c] sm:$0xe]
      %v3538 = vld [vmem:[%s3235 + $0x40] sm:$0xf]
      %v3539 = vld [vmem:[%s3235 + $0x44] sm:$0x1]
      %v3540 = vld [vmem:[%s3235 + $0x48] sm:$0xe]
      %v3541 = vld [vmem:[%s3235 + $0x4c] sm:$0xf]
      %v3542 = vld [vmem:[%s3235 + $0x50] sm:$0x1]
      %v3543 = vld [vmem:[%s3235 + $0x54] sm:$0xe]
      %v3544 = vld [vmem:[%s3235 + $0x58] sm:$0xf]
      %v3545 = vld [vmem:[%s3235 + $0x5c] sm:$0x1]
      %v3546 = vld [vmem:[%s3235 + $0x60] sm:$0xe]
      %v3547 = vld [vmem:[%s3235 + $0x64] sm:$0xf]
      %v3548 = vld [vmem:[%s3235 + $0x68] sm:$0x1]
      %v3549 = vld [vmem:[%s3235 + $0x6c] sm:$0xe]
      %v3550 = vld [vmem:[%s3235 + $0x70] sm:$0xf]
      %v3551 = vld [vmem:[%s3235 + $0x74] sm:$0x1]
      %v3552 = vld [vmem:[%s3235 + $0x78] sm:$0xe]
      %v3553 = vld [vmem:[%s3235 + $0x7c] sm:$0xf]
      %v3554 = vld [vmem:[%s3235 + $0x80] sm:$0x1]
      %v3555 = vld [vmem:[%s3235 + $0x84] sm:$0xe]
      %v3556 = vld [vmem:[%s3235 + $0x88] sm:$0xf]
      %v3557 = vld [vmem:[%s3235 + $0x8c] sm:$0x1]
      %v3558 = vld [vmem:[%s3235 + $0x90] sm:$0xe]
      %v3559 = vld [vmem:[%s3235 + $0x94] sm:$0xf]
      %v3560 = vld [vmem:[%s3235 + $0x98] sm:$0x1]
      %v3561 = vld [vmem:[%s3235 + $0x9c] sm:$0xe]
      %v3562 = vld [vmem:[%s3235 + $0xa0] sm:$0xf]
      %v3563 = vld [vmem:[%s3235 + $0xa4] sm:$0x1]
      %v3564 = vld [vmem:[%s3235 + $0xa8] sm:$0xe]
      %v3565 = vld [vmem:[%s3235 + $0xac] sm:$0xf]
      %v3566 = vld [vmem:[%s3235 + $0xb0] sm:$0x1]
      %v3567 = vld [vmem:[%s3235 + $0xb4] sm:$0xe]
      %v3568 = vld [vmem:[%s3235 + $0xb8] sm:$0xf]
      %v3569 = vld [vmem:[%s3235 + $0xbc] sm:$0x1]
      %v3618 = vrot.slane %v3522, 5
      %v3619 = vrot.slane %v3618, 4
      %v3620 = vrot.slane %v3523, 5
      %v3621 = vsel %vm1211, %v3619, %v3620
      %v3622 = vrot.slane %v3620, 4
      %v3623 = vrot.slane %v3524, 5
      %v3624 = vsel %vm1211, %v3622, %v3623
      %v3625 = vrot.slane %v3525, 5
      %v3626 = vrot.slane %v3625, 4
      %v3627 = vrot.slane %v3526, 5
      %v3628 = vsel %vm1211, %v3626, %v3627
      %v3629 = vrot.slane %v3627, 4
      %v3630 = vrot.slane %v3527, 5
      %v3631 = vsel %vm1211, %v3629, %v3630
      %v3632 = vrot.slane %v3528, 5
      %v3633 = vrot.slane %v3632, 4
      %v3634 = vrot.slane %v3529, 5
      %v3635 = vsel %vm1211, %v3633, %v3634
      %v3636 = vrot.slane %v3634, 4
      %v3637 = vrot.slane %v3530, 5
      %v3638 = vsel %vm1211, %v3636, %v3637
      %v3639 = vrot.slane %v3531, 5
      %v3640 = vrot.slane %v3639, 4
      %v3641 = vrot.slane %v3532, 5
      %v3642 = vsel %vm1211, %v3640, %v3641
      %v3643 = vrot.slane %v3641, 4
      %v3644 = vrot.slane %v3533, 5
      %v3645 = vsel %vm1211, %v3643, %v3644
      %v3646 = vrot.slane %v3534, 5
      %v3647 = vrot.slane %v3646, 4
      %v3648 = vrot.slane %v3535, 5
      %v3649 = vsel %vm1211, %v3647, %v3648
      %v3650 = vrot.slane %v3648, 4
      %v3651 = vrot.slane %v3536, 5
      %v3652 = vsel %vm1211, %v3650, %v3651
      %v3653 = vrot.slane %v3537, 5
      %v3654 = vrot.slane %v3653, 4
      %v3655 = vrot.slane %v3538, 5
      %v3656 = vsel %vm1211, %v3654, %v3655
      %v3657 = vrot.slane %v3655, 4
      %v3658 = vrot.slane %v3539, 5
      %v3659 = vsel %vm1211, %v3657, %v3658
      %v3660 = vrot.slane %v3540, 5
      %v3661 = vrot.slane %v3660, 4
      %v3662 = vrot.slane %v3541, 5
      %v3663 = vsel %vm1211, %v3661, %v3662
      %v3664 = vrot.slane %v3662, 4
      %v3665 = vrot.slane %v3542, 5
      %v3666 = vsel %vm1211, %v3664, %v3665
      %v3667 = vrot.slane %v3543, 5
      %v3668 = vrot.slane %v3667, 4
      %v3669 = vrot.slane %v3544, 5
      %v3670 = vsel %vm1211, %v3668, %v3669
      %v3671 = vrot.slane %v3669, 4
      %v3672 = vrot.slane %v3545, 5
      %v3673 = vsel %vm1211, %v3671, %v3672
      %v3674 = vrot.slane %v3546, 5
      %v3675 = vrot.slane %v3674, 4
      %v3676 = vrot.slane %v3547, 5
      %v3677 = vsel %vm1211, %v3675, %v3676
      %v3678 = vrot.slane %v3676, 4
      %v3679 = vrot.slane %v3548, 5
      %v3680 = vsel %vm1211, %v3678, %v3679
      %v3681 = vrot.slane %v3549, 5
      %v3682 = vrot.slane %v3681, 4
      %v3683 = vrot.slane %v3550, 5
      %v3684 = vsel %vm1211, %v3682, %v3683
      %v3685 = vrot.slane %v3683, 4
      %v3686 = vrot.slane %v3551, 5
      %v3687 = vsel %vm1211, %v3685, %v3686
      %v3688 = vrot.slane %v3552, 5
      %v3689 = vrot.slane %v3688, 4
      %v3690 = vrot.slane %v3553, 5
      %v3691 = vsel %vm1211, %v3689, %v3690
      %v3692 = vrot.slane %v3690, 4
      %v3693 = vrot.slane %v3554, 5
      %v3694 = vsel %vm1211, %v3692, %v3693
      %v3695 = vrot.slane %v3555, 5
      %v3696 = vrot.slane %v3695, 4
      %v3697 = vrot.slane %v3556, 5
      %v3698 = vsel %vm1211, %v3696, %v3697
      %v3699 = vrot.slane %v3697, 4
      %v3700 = vrot.slane %v3557, 5
      %v3701 = vsel %vm1211, %v3699, %v3700
      %v3702 = vrot.slane %v3558, 5
      %v3703 = vrot.slane %v3702, 4
      %v3704 = vrot.slane %v3559, 5
      %v3705 = vsel %vm1211, %v3703, %v3704
      %v3706 = vrot.slane %v3704, 4
      %v3707 = vrot.slane %v3560, 5
      %v3708 = vsel %vm1211, %v3706, %v3707
      %v3709 = vrot.slane %v3561, 5
      %v3710 = vrot.slane %v3709, 4
      %v3711 = vrot.slane %v3562, 5
      %v3712 = vsel %vm1211, %v3710, %v3711
      %v3713 = vrot.slane %v3711, 4
      %v3714 = vrot.slane %v3563, 5
      %v3715 = vsel %vm1211, %v3713, %v3714
      %v3716 = vrot.slane %v3564, 5
      %v3717 = vrot.slane %v3716, 4
      %v3718 = vrot.slane %v3565, 5
      %v3719 = vsel %vm1211, %v3717, %v3718
      %v3720 = vrot.slane %v3718, 4
      %v3721 = vrot.slane %v3566, 5
      %v3722 = vsel %vm1211, %v3720, %v3721
      %v3723 = vrot.slane %v3567, 5
      %v3724 = vrot.slane %v3723, 4
      %v3725 = vrot.slane %v3568, 5
      %v3726 = vsel %vm1211, %v3724, %v3725
      %v3727 = vrot.slane %v3725, 4
      %v3728 = vrot.slane %v3569, 5
      %v3729 = vsel %vm1211, %v3727, %v3728
      %s3730 = scalar_lea.vmem %s1, 14
      %v3731 = vld [vmem:[%s3730] sm:$0x3]
      %v3732 = vunpack.c.l.b16 %v3621
      %v3733 = vunpack.c.l.b16 %v3624
      %v3734 = vunpack.c.l.b16 %v3628
      %v3735 = vunpack.c.l.b16 %v3631
      %v3736 = vunpack.c.l.b16 %v3635
      %v3737 = vunpack.c.l.b16 %v3638
      %v3738 = vunpack.c.l.b16 %v3642
      %v3739 = vunpack.c.l.b16 %v3645
      %v3740 = vunpack.c.l.b16 %v3649
      %v3741 = vunpack.c.l.b16 %v3652
      %v3742 = vunpack.c.l.b16 %v3656
      %v3743 = vunpack.c.l.b16 %v3659
      %v3744 = vunpack.c.l.b16 %v3663
      %v3745 = vunpack.c.l.b16 %v3666
      %v3746 = vunpack.c.l.b16 %v3670
      %v3747 = vunpack.c.l.b16 %v3673
      %v3748 = vunpack.c.l.b16 %v3677
      %v3749 = vunpack.c.l.b16 %v3680
      %v3750 = vunpack.c.l.b16 %v3684
      %v3751 = vunpack.c.l.b16 %v3687
      %v3752 = vunpack.c.l.b16 %v3691
      %v3753 = vunpack.c.l.b16 %v3694
      %v3754 = vunpack.c.l.b16 %v3698
      %v3755 = vunpack.c.l.b16 %v3701
      %v3756 = vunpack.c.l.b16 %v3705
      %v3757 = vunpack.c.l.b16 %v3708
      %v3758 = vunpack.c.l.b16 %v3712
      %v3759 = vunpack.c.l.b16 %v3715
      %v3760 = vunpack.c.l.b16 %v3719
      %v3761 = vunpack.c.l.b16 %v3722
      %v3762 = vunpack.c.l.b16 %v3726
      %v3763 = vunpack.c.l.b16 %v3729
      %v3764 = vpack.c.b16 %v3733, %v3732
      %v3765 = vpack.c.b16 %v3735, %v3734
      %v3766 = vpack.c.b16 %v3737, %v3736
      %v3767 = vpack.c.b16 %v3739, %v3738
      %v3768 = vpack.c.b16 %v3741, %v3740
      %v3769 = vpack.c.b16 %v3743, %v3742
      %v3770 = vpack.c.b16 %v3745, %v3744
      %v3771 = vpack.c.b16 %v3747, %v3746
      %v3772 = vpack.c.b16 %v3749, %v3748
      %v3773 = vpack.c.b16 %v3751, %v3750
      %v3774 = vpack.c.b16 %v3753, %v3752
      %v3775 = vpack.c.b16 %v3755, %v3754
      %v3776 = vpack.c.b16 %v3757, %v3756
      %v3777 = vpack.c.b16 %v3759, %v3758
      %v3778 = vpack.c.b16 %v3761, %v3760
      %v3779 = vpack.c.b16 %v3763, %v3762
      %v3781 = vsel %vm1374, %v3764, 0
      %v3784 = vsel %vm1374, %v3765, 0
      %v3787 = vsel %vm1374, %v3766, 0
      %v3790 = vsel %vm1374, %v3767, 0
      %v3793 = vsel %vm1374, %v3768, 0
      %v3796 = vsel %vm1374, %v3769, 0
      %v3799 = vsel %vm1374, %v3770, 0
      %v3802 = vsel %vm1374, %v3771, 0
      %v3805 = vsel %vm1374, %v3772, 0
      %v3808 = vsel %vm1374, %v3773, 0
      %v3811 = vsel %vm1374, %v3774, 0
      %v3814 = vsel %vm1374, %v3775, 0
      %v3817 = vsel %vm1374, %v3776, 0
      %v3820 = vsel %vm1374, %v3777, 0
      %v3823 = vsel %vm1374, %v3778, 0
      %v3826 = vsel %vm1374, %v3779, 0
      %v3829 = vsel %vm1423, %v3731, 0
      %3831 = vmatpush.bf16.msra.mxu0 0
      %3832 = vmatpush.bf16.msra.mxu0 0
      %3833 = vmatpush.bf16.msra.mxu0 0
      %3834 = vmatpush.bf16.msra.mxu0 0
      %3835 = vmatpush.bf16.msra.mxu0 0
      %3836 = vmatpush.bf16.msra.mxu0 0
      %3837 = vmatpush.bf16.msra.mxu0 0
      %3838 = vmatpush.bf16.msra.mxu0 %v3829
      %3839 = vmatmul.bf16.gmra.mxu0 %v3781
      %v3840 = vpop.f32.mrf.mxu0
      %v3841 = vadd.f32 0.0, %v3840
      %v3842 = vpop.f32.mrf.mxu0
      %v3843 = vadd.f32 0.0, %v3842
      %3844 = vmatmul.bf16.gmra.mxu0 %v3784
      %v3845 = vpop.f32.mrf.mxu0
      %v3846 = vadd.f32 0.0, %v3845
      %v3847 = vpop.f32.mrf.mxu0
      %v3848 = vadd.f32 0.0, %v3847
      %3849 = vmatmul.bf16.gmra.mxu0 %v3787
      %v3850 = vpop.f32.mrf.mxu0
      %v3851 = vadd.f32 0.0, %v3850
      %v3852 = vpop.f32.mrf.mxu0
      %v3853 = vadd.f32 0.0, %v3852
      %3854 = vmatmul.bf16.gmra.mxu0 %v3790
      %v3855 = vpop.f32.mrf.mxu0
      %v3856 = vadd.f32 0.0, %v3855
      %v3857 = vpop.f32.mrf.mxu0
      %v3858 = vadd.f32 0.0, %v3857
      %3859 = vmatmul.bf16.gmra.mxu0 %v3793
      %v3860 = vpop.f32.mrf.mxu0
      %v3861 = vadd.f32 0.0, %v3860
      %v3862 = vpop.f32.mrf.mxu0
      %v3863 = vadd.f32 0.0, %v3862
      %3864 = vmatmul.bf16.gmra.mxu0 %v3796
      %v3865 = vpop.f32.mrf.mxu0
      %v3866 = vadd.f32 0.0, %v3865
      %v3867 = vpop.f32.mrf.mxu0
      %v3868 = vadd.f32 0.0, %v3867
      %3869 = vmatmul.bf16.gmra.mxu0 %v3799
      %v3870 = vpop.f32.mrf.mxu0
      %v3871 = vadd.f32 0.0, %v3870
      %v3872 = vpop.f32.mrf.mxu0
      %v3873 = vadd.f32 0.0, %v3872
      %3874 = vmatmul.bf16.gmra.mxu0 %v3802
      %v3875 = vpop.f32.mrf.mxu0
      %v3876 = vadd.f32 0.0, %v3875
      %v3877 = vpop.f32.mrf.mxu0
      %v3878 = vadd.f32 0.0, %v3877
      %3879 = vmatmul.bf16.gmra.mxu0 %v3805
      %v3880 = vpop.f32.mrf.mxu0
      %v3881 = vadd.f32 0.0, %v3880
      %v3882 = vpop.f32.mrf.mxu0
      %v3883 = vadd.f32 0.0, %v3882
      %3884 = vmatmul.bf16.gmra.mxu0 %v3808
      %v3885 = vpop.f32.mrf.mxu0
      %v3886 = vadd.f32 0.0, %v3885
      %v3887 = vpop.f32.mrf.mxu0
      %v3888 = vadd.f32 0.0, %v3887
      %3889 = vmatmul.bf16.gmra.mxu0 %v3811
      %v3890 = vpop.f32.mrf.mxu0
      %v3891 = vadd.f32 0.0, %v3890
      %v3892 = vpop.f32.mrf.mxu0
      %v3893 = vadd.f32 0.0, %v3892
      %3894 = vmatmul.bf16.gmra.mxu0 %v3814
      %v3895 = vpop.f32.mrf.mxu0
      %v3896 = vadd.f32 0.0, %v3895
      %v3897 = vpop.f32.mrf.mxu0
      %v3898 = vadd.f32 0.0, %v3897
      %3899 = vmatmul.bf16.gmra.mxu0 %v3817
      %v3900 = vpop.f32.mrf.mxu0
      %v3901 = vadd.f32 0.0, %v3900
      %v3902 = vpop.f32.mrf.mxu0
      %v3903 = vadd.f32 0.0, %v3902
      %3904 = vmatmul.bf16.gmra.mxu0 %v3820
      %v3905 = vpop.f32.mrf.mxu0
      %v3906 = vadd.f32 0.0, %v3905
      %v3907 = vpop.f32.mrf.mxu0
      %v3908 = vadd.f32 0.0, %v3907
      %3909 = vmatmul.bf16.gmra.mxu0 %v3823
      %v3910 = vpop.f32.mrf.mxu0
      %v3911 = vadd.f32 0.0, %v3910
      %v3912 = vpop.f32.mrf.mxu0
      %v3913 = vadd.f32 0.0, %v3912
      %3914 = vmatmul.bf16.gmra.mxu0 %v3826
      %v3915 = vpop.f32.mrf.mxu0
      %v3916 = vadd.f32 0.0, %v3915
      %v3917 = vpop.f32.mrf.mxu0
      %v3918 = vadd.f32 0.0, %v3917
      %3919 = vdwg.mxu0
      %v3920 = vadd.f32 %v3490, %v3841
      %v3921 = vadd.f32 %v3491, %v3843
      %v3922 = vadd.f32 %v3492, %v3846
      %v3923 = vadd.f32 %v3493, %v3848
      %v3924 = vadd.f32 %v3494, %v3851
      %v3925 = vadd.f32 %v3495, %v3853
      %v3926 = vadd.f32 %v3496, %v3856
      %v3927 = vadd.f32 %v3497, %v3858
      %v3928 = vadd.f32 %v3498, %v3861
      %v3929 = vadd.f32 %v3499, %v3863
      %v3930 = vadd.f32 %v3500, %v3866
      %v3931 = vadd.f32 %v3501, %v3868
      %v3932 = vadd.f32 %v3502, %v3871
      %v3933 = vadd.f32 %v3503, %v3873
      %v3934 = vadd.f32 %v3504, %v3876
      %v3935 = vadd.f32 %v3505, %v3878
      %v3936 = vadd.f32 %v3506, %v3881
      %v3937 = vadd.f32 %v3507, %v3883
      %v3938 = vadd.f32 %v3508, %v3886
      %v3939 = vadd.f32 %v3509, %v3888
      %v3940 = vadd.f32 %v3510, %v3891
      %v3941 = vadd.f32 %v3511, %v3893
      %v3942 = vadd.f32 %v3512, %v3896
      %v3943 = vadd.f32 %v3513, %v3898
      %v3944 = vadd.f32 %v3514, %v3901
      %v3945 = vadd.f32 %v3515, %v3903
      %v3946 = vadd.f32 %v3516, %v3906
      %v3947 = vadd.f32 %v3517, %v3908
      %v3948 = vadd.f32 %v3518, %v3911
      %v3949 = vadd.f32 %v3519, %v3913
      %v3950 = vadd.f32 %v3520, %v3916
      %v3951 = vadd.f32 %v3521, %v3918
      %v3952 = vld [vmem:[%s3235] sm:$0xc]
      %v3953 = vld [vmem:[%s3235 + $0x8] sm:$0x3]
      %v3954 = vld [vmem:[%s3235 + $0xc] sm:$0xc]
      %v3955 = vld [vmem:[%s3235 + $0x14] sm:$0x3]
      %v3956 = vld [vmem:[%s3235 + $0x18] sm:$0xc]
      %v3957 = vld [vmem:[%s3235 + $0x20] sm:$0x3]
      %v3958 = vld [vmem:[%s3235 + $0x24] sm:$0xc]
      %v3959 = vld [vmem:[%s3235 + $0x2c] sm:$0x3]
      %v3960 = vld [vmem:[%s3235 + $0x30] sm:$0xc]
      %v3961 = vld [vmem:[%s3235 + $0x38] sm:$0x3]
      %v3962 = vld [vmem:[%s3235 + $0x3c] sm:$0xc]
      %v3963 = vld [vmem:[%s3235 + $0x44] sm:$0x3]
      %v3964 = vld [vmem:[%s3235 + $0x48] sm:$0xc]
      %v3965 = vld [vmem:[%s3235 + $0x50] sm:$0x3]
      %v3966 = vld [vmem:[%s3235 + $0x54] sm:$0xc]
      %v3967 = vld [vmem:[%s3235 + $0x5c] sm:$0x3]
      %v3968 = vld [vmem:[%s3235 + $0x60] sm:$0xc]
      %v3969 = vld [vmem:[%s3235 + $0x68] sm:$0x3]
      %v3970 = vld [vmem:[%s3235 + $0x6c] sm:$0xc]
      %v3971 = vld [vmem:[%s3235 + $0x74] sm:$0x3]
      %v3972 = vld [vmem:[%s3235 + $0x78] sm:$0xc]
      %v3973 = vld [vmem:[%s3235 + $0x80] sm:$0x3]
      %v3974 = vld [vmem:[%s3235 + $0x84] sm:$0xc]
      %v3975 = vld [vmem:[%s3235 + $0x8c] sm:$0x3]
      %v3976 = vld [vmem:[%s3235 + $0x90] sm:$0xc]
      %v3977 = vld [vmem:[%s3235 + $0x98] sm:$0x3]
      %v3978 = vld [vmem:[%s3235 + $0x9c] sm:$0xc]
      %v3979 = vld [vmem:[%s3235 + $0xa4] sm:$0x3]
      %v3980 = vld [vmem:[%s3235 + $0xa8] sm:$0xc]
      %v3981 = vld [vmem:[%s3235 + $0xb0] sm:$0x3]
      %v3982 = vld [vmem:[%s3235 + $0xb4] sm:$0xc]
      %v3983 = vld [vmem:[%s3235 + $0xbc] sm:$0x3]
      %v4016 = vrot.slane %v3952, 6
      %v4017 = vrot.slane %v4016, 4
      %v4018 = vrot.slane %v3523, 6
      %v4019 = vsel %vm1786, %v4017, %v4018
      %v4020 = vrot.slane %v4018, 4
      %v4021 = vrot.slane %v3953, 6
      %v4022 = vsel %vm1786, %v4020, %v4021
      %v4023 = vrot.slane %v3954, 6
      %v4024 = vrot.slane %v4023, 4
      %v4025 = vrot.slane %v3526, 6
      %v4026 = vsel %vm1786, %v4024, %v4025
      %v4027 = vrot.slane %v4025, 4
      %v4028 = vrot.slane %v3955, 6
      %v4029 = vsel %vm1786, %v4027, %v4028
      %v4030 = vrot.slane %v3956, 6
      %v4031 = vrot.slane %v4030, 4
      %v4032 = vrot.slane %v3529, 6
      %v4033 = vsel %vm1786, %v4031, %v4032
      %v4034 = vrot.slane %v4032, 4
      %v4035 = vrot.slane %v3957, 6
      %v4036 = vsel %vm1786, %v4034, %v4035
      %v4037 = vrot.slane %v3958, 6
      %v4038 = vrot.slane %v4037, 4
      %v4039 = vrot.slane %v3532, 6
      %v4040 = vsel %vm1786, %v4038, %v4039
      %v4041 = vrot.slane %v4039, 4
      %v4042 = vrot.slane %v3959, 6
      %v4043 = vsel %vm1786, %v4041, %v4042
      %v4044 = vrot.slane %v3960, 6
      %v4045 = vrot.slane %v4044, 4
      %v4046 = vrot.slane %v3535, 6
      %v4047 = vsel %vm1786, %v4045, %v4046
      %v4048 = vrot.slane %v4046, 4
      %v4049 = vrot.slane %v3961, 6
      %v4050 = vsel %vm1786, %v4048, %v4049
      %v4051 = vrot.slane %v3962, 6
      %v4052 = vrot.slane %v4051, 4
      %v4053 = vrot.slane %v3538, 6
      %v4054 = vsel %vm1786, %v4052, %v4053
      %v4055 = vrot.slane %v4053, 4
      %v4056 = vrot.slane %v3963, 6
      %v4057 = vsel %vm1786, %v4055, %v4056
      %v4058 = vrot.slane %v3964, 6
      %v4059 = vrot.slane %v4058, 4
      %v4060 = vrot.slane %v3541, 6
      %v4061 = vsel %vm1786, %v4059, %v4060
      %v4062 = vrot.slane %v4060, 4
      %v4063 = vrot.slane %v3965, 6
      %v4064 = vsel %vm1786, %v4062, %v4063
      %v4065 = vrot.slane %v3966, 6
      %v4066 = vrot.slane %v4065, 4
      %v4067 = vrot.slane %v3544, 6
      %v4068 = vsel %vm1786, %v4066, %v4067
      %v4069 = vrot.slane %v4067, 4
      %v4070 = vrot.slane %v3967, 6
      %v4071 = vsel %vm1786, %v4069, %v4070
      %v4072 = vrot.slane %v3968, 6
      %v4073 = vrot.slane %v4072, 4
      %v4074 = vrot.slane %v3547, 6
      %v4075 = vsel %vm1786, %v4073, %v4074
      %v4076 = vrot.slane %v4074, 4
      %v4077 = vrot.slane %v3969, 6
      %v4078 = vsel %vm1786, %v4076, %v4077
      %v4079 = vrot.slane %v3970, 6
      %v4080 = vrot.slane %v4079, 4
      %v4081 = vrot.slane %v3550, 6
      %v4082 = vsel %vm1786, %v4080, %v4081
      %v4083 = vrot.slane %v4081, 4
      %v4084 = vrot.slane %v3971, 6
      %v4085 = vsel %vm1786, %v4083, %v4084
      %v4086 = vrot.slane %v3972, 6
      %v4087 = vrot.slane %v4086, 4
      %v4088 = vrot.slane %v3553, 6
      %v4089 = vsel %vm1786, %v4087, %v4088
      %v4090 = vrot.slane %v4088, 4
      %v4091 = vrot.slane %v3973, 6
      %v4092 = vsel %vm1786, %v4090, %v4091
      %v4093 = vrot.slane %v3974, 6
      %v4094 = vrot.slane %v4093, 4
      %v4095 = vrot.slane %v3556, 6
      %v4096 = vsel %vm1786, %v4094, %v4095
      %v4097 = vrot.slane %v4095, 4
      %v4098 = vrot.slane %v3975, 6
      %v4099 = vsel %vm1786, %v4097, %v4098
      %v4100 = vrot.slane %v3976, 6
      %v4101 = vrot.slane %v4100, 4
      %v4102 = vrot.slane %v3559, 6
      %v4103 = vsel %vm1786, %v4101, %v4102
      %v4104 = vrot.slane %v4102, 4
      %v4105 = vrot.slane %v3977, 6
      %v4106 = vsel %vm1786, %v4104, %v4105
      %v4107 = vrot.slane %v3978, 6
      %v4108 = vrot.slane %v4107, 4
      %v4109 = vrot.slane %v3562, 6
      %v4110 = vsel %vm1786, %v4108, %v4109
      %v4111 = vrot.slane %v4109, 4
      %v4112 = vrot.slane %v3979, 6
      %v4113 = vsel %vm1786, %v4111, %v4112
      %v4114 = vrot.slane %v3980, 6
      %v4115 = vrot.slane %v4114, 4
      %v4116 = vrot.slane %v3565, 6
      %v4117 = vsel %vm1786, %v4115, %v4116
      %v4118 = vrot.slane %v4116, 4
      %v4119 = vrot.slane %v3981, 6
      %v4120 = vsel %vm1786, %v4118, %v4119
      %v4121 = vrot.slane %v3982, 6
      %v4122 = vrot.slane %v4121, 4
      %v4123 = vrot.slane %v3568, 6
      %v4124 = vsel %vm1786, %v4122, %v4123
      %v4125 = vrot.slane %v4123, 4
      %v4126 = vrot.slane %v3983, 6
      %v4127 = vsel %vm1786, %v4125, %v4126
      %s4128 = scalar_lea.vmem %s1, 16
      %v4129 = vld [vmem:[%s4128] sm:$0x3]
      %v4130 = vunpack.c.l.b16 %v4019
      %v4131 = vunpack.c.l.b16 %v4022
      %v4132 = vunpack.c.l.b16 %v4026
      %v4133 = vunpack.c.l.b16 %v4029
      %v4134 = vunpack.c.l.b16 %v4033
      %v4135 = vunpack.c.l.b16 %v4036
      %v4136 = vunpack.c.l.b16 %v4040
      %v4137 = vunpack.c.l.b16 %v4043
      %v4138 = vunpack.c.l.b16 %v4047
      %v4139 = vunpack.c.l.b16 %v4050
      %v4140 = vunpack.c.l.b16 %v4054
      %v4141 = vunpack.c.l.b16 %v4057
      %v4142 = vunpack.c.l.b16 %v4061
      %v4143 = vunpack.c.l.b16 %v4064
      %v4144 = vunpack.c.l.b16 %v4068
      %v4145 = vunpack.c.l.b16 %v4071
      %v4146 = vunpack.c.l.b16 %v4075
      %v4147 = vunpack.c.l.b16 %v4078
      %v4148 = vunpack.c.l.b16 %v4082
      %v4149 = vunpack.c.l.b16 %v4085
      %v4150 = vunpack.c.l.b16 %v4089
      %v4151 = vunpack.c.l.b16 %v4092
      %v4152 = vunpack.c.l.b16 %v4096
      %v4153 = vunpack.c.l.b16 %v4099
      %v4154 = vunpack.c.l.b16 %v4103
      %v4155 = vunpack.c.l.b16 %v4106
      %v4156 = vunpack.c.l.b16 %v4110
      %v4157 = vunpack.c.l.b16 %v4113
      %v4158 = vunpack.c.l.b16 %v4117
      %v4159 = vunpack.c.l.b16 %v4120
      %v4160 = vunpack.c.l.b16 %v4124
      %v4161 = vunpack.c.l.b16 %v4127
      %v4162 = vpack.c.b16 %v4131, %v4130
      %v4163 = vpack.c.b16 %v4133, %v4132
      %v4164 = vpack.c.b16 %v4135, %v4134
      %v4165 = vpack.c.b16 %v4137, %v4136
      %v4166 = vpack.c.b16 %v4139, %v4138
      %v4167 = vpack.c.b16 %v4141, %v4140
      %v4168 = vpack.c.b16 %v4143, %v4142
      %v4169 = vpack.c.b16 %v4145, %v4144
      %v4170 = vpack.c.b16 %v4147, %v4146
      %v4171 = vpack.c.b16 %v4149, %v4148
      %v4172 = vpack.c.b16 %v4151, %v4150
      %v4173 = vpack.c.b16 %v4153, %v4152
      %v4174 = vpack.c.b16 %v4155, %v4154
      %v4175 = vpack.c.b16 %v4157, %v4156
      %v4176 = vpack.c.b16 %v4159, %v4158
      %v4177 = vpack.c.b16 %v4161, %v4160
      %v4179 = vsel %vm1374, %v4162, 0
      %v4182 = vsel %vm1374, %v4163, 0
      %v4185 = vsel %vm1374, %v4164, 0
      %v4188 = vsel %vm1374, %v4165, 0
      %v4191 = vsel %vm1374, %v4166, 0
      %v4194 = vsel %vm1374, %v4167, 0
      %v4197 = vsel %vm1374, %v4168, 0
      %v4200 = vsel %vm1374, %v4169, 0
      %v4203 = vsel %vm1374, %v4170, 0
      %v4206 = vsel %vm1374, %v4171, 0
      %v4209 = vsel %vm1374, %v4172, 0
      %v4212 = vsel %vm1374, %v4173, 0
      %v4215 = vsel %vm1374, %v4174, 0
      %v4218 = vsel %vm1374, %v4175, 0
      %v4221 = vsel %vm1374, %v4176, 0
      %v4224 = vsel %vm1374, %v4177, 0
      %v4227 = vsel %vm1423, %v4129, 0
      %4229 = vmatpush.bf16.msra.mxu0 0
      %4230 = vmatpush.bf16.msra.mxu0 0
      %4231 = vmatpush.bf16.msra.mxu0 0
      %4232 = vmatpush.bf16.msra.mxu0 0
      %4233 = vmatpush.bf16.msra.mxu0 0
      %4234 = vmatpush.bf16.msra.mxu0 0
      %4235 = vmatpush.bf16.msra.mxu0 0
      %4236 = vmatpush.bf16.msra.mxu0 %v4227
      %4237 = vmatmul.bf16.gmra.mxu0 %v4179
      %v4238 = vpop.f32.mrf.mxu0
      %v4239 = vadd.f32 0.0, %v4238
      %v4240 = vpop.f32.mrf.mxu0
      %v4241 = vadd.f32 0.0, %v4240
      %4242 = vmatmul.bf16.gmra.mxu0 %v4182
      %v4243 = vpop.f32.mrf.mxu0
      %v4244 = vadd.f32 0.0, %v4243
      %v4245 = vpop.f32.mrf.mxu0
      %v4246 = vadd.f32 0.0, %v4245
      %4247 = vmatmul.bf16.gmra.mxu0 %v4185
      %v4248 = vpop.f32.mrf.mxu0
      %v4249 = vadd.f32 0.0, %v4248
      %v4250 = vpop.f32.mrf.mxu0
      %v4251 = vadd.f32 0.0, %v4250
      %4252 = vmatmul.bf16.gmra.mxu0 %v4188
      %v4253 = vpop.f32.mrf.mxu0
      %v4254 = vadd.f32 0.0, %v4253
      %v4255 = vpop.f32.mrf.mxu0
      %v4256 = vadd.f32 0.0, %v4255
      %4257 = vmatmul.bf16.gmra.mxu0 %v4191
      %v4258 = vpop.f32.mrf.mxu0
      %v4259 = vadd.f32 0.0, %v4258
      %v4260 = vpop.f32.mrf.mxu0
      %v4261 = vadd.f32 0.0, %v4260
      %4262 = vmatmul.bf16.gmra.mxu0 %v4194
      %v4263 = vpop.f32.mrf.mxu0
      %v4264 = vadd.f32 0.0, %v4263
      %v4265 = vpop.f32.mrf.mxu0
      %v4266 = vadd.f32 0.0, %v4265
      %4267 = vmatmul.bf16.gmra.mxu0 %v4197
      %v4268 = vpop.f32.mrf.mxu0
      %v4269 = vadd.f32 0.0, %v4268
      %v4270 = vpop.f32.mrf.mxu0
      %v4271 = vadd.f32 0.0, %v4270
      %4272 = vmatmul.bf16.gmra.mxu0 %v4200
      %v4273 = vpop.f32.mrf.mxu0
      %v4274 = vadd.f32 0.0, %v4273
      %v4275 = vpop.f32.mrf.mxu0
      %v4276 = vadd.f32 0.0, %v4275
      %4277 = vmatmul.bf16.gmra.mxu0 %v4203
      %v4278 = vpop.f32.mrf.mxu0
      %v4279 = vadd.f32 0.0, %v4278
      %v4280 = vpop.f32.mrf.mxu0
      %v4281 = vadd.f32 0.0, %v4280
      %4282 = vmatmul.bf16.gmra.mxu0 %v4206
      %v4283 = vpop.f32.mrf.mxu0
      %v4284 = vadd.f32 0.0, %v4283
      %v4285 = vpop.f32.mrf.mxu0
      %v4286 = vadd.f32 0.0, %v4285
      %4287 = vmatmul.bf16.gmra.mxu0 %v4209
      %v4288 = vpop.f32.mrf.mxu0
      %v4289 = vadd.f32 0.0, %v4288
      %v4290 = vpop.f32.mrf.mxu0
      %v4291 = vadd.f32 0.0, %v4290
      %4292 = vmatmul.bf16.gmra.mxu0 %v4212
      %v4293 = vpop.f32.mrf.mxu0
      %v4294 = vadd.f32 0.0, %v4293
      %v4295 = vpop.f32.mrf.mxu0
      %v4296 = vadd.f32 0.0, %v4295
      %4297 = vmatmul.bf16.gmra.mxu0 %v4215
      %v4298 = vpop.f32.mrf.mxu0
      %v4299 = vadd.f32 0.0, %v4298
      %v4300 = vpop.f32.mrf.mxu0
      %v4301 = vadd.f32 0.0, %v4300
      %4302 = vmatmul.bf16.gmra.mxu0 %v4218
      %v4303 = vpop.f32.mrf.mxu0
      %v4304 = vadd.f32 0.0, %v4303
      %v4305 = vpop.f32.mrf.mxu0
      %v4306 = vadd.f32 0.0, %v4305
      %4307 = vmatmul.bf16.gmra.mxu0 %v4221
      %v4308 = vpop.f32.mrf.mxu0
      %v4309 = vadd.f32 0.0, %v4308
      %v4310 = vpop.f32.mrf.mxu0
      %v4311 = vadd.f32 0.0, %v4310
      %4312 = vmatmul.bf16.gmra.mxu0 %v4224
      %v4313 = vpop.f32.mrf.mxu0
      %v4314 = vadd.f32 0.0, %v4313
      %v4315 = vpop.f32.mrf.mxu0
      %v4316 = vadd.f32 0.0, %v4315
      %4317 = vdwg.mxu0
      %v4318 = vadd.f32 %v3920, %v4239
      %v4319 = vadd.f32 %v3921, %v4241
      %v4320 = vadd.f32 %v3922, %v4244
      %v4321 = vadd.f32 %v3923, %v4246
      %v4322 = vadd.f32 %v3924, %v4249
      %v4323 = vadd.f32 %v3925, %v4251
      %v4324 = vadd.f32 %v3926, %v4254
      %v4325 = vadd.f32 %v3927, %v4256
      %v4326 = vadd.f32 %v3928, %v4259
      %v4327 = vadd.f32 %v3929, %v4261
      %v4328 = vadd.f32 %v3930, %v4264
      %v4329 = vadd.f32 %v3931, %v4266
      %v4330 = vadd.f32 %v3932, %v4269
      %v4331 = vadd.f32 %v3933, %v4271
      %v4332 = vadd.f32 %v3934, %v4274
      %v4333 = vadd.f32 %v3935, %v4276
      %v4334 = vadd.f32 %v3936, %v4279
      %v4335 = vadd.f32 %v3937, %v4281
      %v4336 = vadd.f32 %v3938, %v4284
      %v4337 = vadd.f32 %v3939, %v4286
      %v4338 = vadd.f32 %v3940, %v4289
      %v4339 = vadd.f32 %v3941, %v4291
      %v4340 = vadd.f32 %v3942, %v4294
      %v4341 = vadd.f32 %v3943, %v4296
      %v4342 = vadd.f32 %v3944, %v4299
      %v4343 = vadd.f32 %v3945, %v4301
      %v4344 = vadd.f32 %v3946, %v4304
      %v4345 = vadd.f32 %v3947, %v4306
      %v4346 = vadd.f32 %v3948, %v4309
      %v4347 = vadd.f32 %v3949, %v4311
      %v4348 = vadd.f32 %v3950, %v4314
      %v4349 = vadd.f32 %v3951, %v4316
      %v4350 = vsel %vm1374, %v4318, 0.0
      %v4351 = vsel %vm1374, %v4319, 0.0
      %v4352 = vadd.f32 %v4350, %v4351
      %v4353 = vsel %vm1374, %v4320, 0.0
      %v4354 = vadd.f32 %v4352, %v4353
      %v4355 = vsel %vm1374, %v4321, 0.0
      %v4356 = vadd.f32 %v4354, %v4355
      %v4357 = vsel %vm1374, %v4322, 0.0
      %v4358 = vadd.f32 %v4356, %v4357
      %v4359 = vsel %vm1374, %v4323, 0.0
      %v4360 = vadd.f32 %v4358, %v4359
      %v4361 = vsel %vm1374, %v4324, 0.0
      %v4362 = vadd.f32 %v4360, %v4361
      %v4363 = vsel %vm1374, %v4325, 0.0
      %v4364 = vadd.f32 %v4362, %v4363
      %v4365 = vsel %vm1374, %v4326, 0.0
      %v4366 = vadd.f32 %v4364, %v4365
      %v4367 = vsel %vm1374, %v4327, 0.0
      %v4368 = vadd.f32 %v4366, %v4367
      %v4369 = vsel %vm1374, %v4328, 0.0
      %v4370 = vadd.f32 %v4368, %v4369
      %v4371 = vsel %vm1374, %v4329, 0.0
      %v4372 = vadd.f32 %v4370, %v4371
      %v4373 = vsel %vm1374, %v4330, 0.0
      %v4374 = vadd.f32 %v4372, %v4373
      %v4375 = vsel %vm1374, %v4331, 0.0
      %v4376 = vadd.f32 %v4374, %v4375
      %v4377 = vsel %vm1374, %v4332, 0.0
      %v4378 = vadd.f32 %v4376, %v4377
      %v4379 = vsel %vm1374, %v4333, 0.0
      %v4380 = vadd.f32 %v4378, %v4379
      %v4381 = vsel %vm1374, %v4334, 0.0
      %v4382 = vadd.f32 %v4380, %v4381
      %v4383 = vsel %vm1374, %v4335, 0.0
      %v4384 = vadd.f32 %v4382, %v4383
      %v4385 = vsel %vm1374, %v4336, 0.0
      %v4386 = vadd.f32 %v4384, %v4385
      %v4387 = vsel %vm1374, %v4337, 0.0
      %v4388 = vadd.f32 %v4386, %v4387
      %v4389 = vsel %vm1374, %v4338, 0.0
      %v4390 = vadd.f32 %v4388, %v4389
      %v4391 = vsel %vm1374, %v4339, 0.0
      %v4392 = vadd.f32 %v4390, %v4391
      %v4393 = vsel %vm1374, %v4340, 0.0
      %v4394 = vadd.f32 %v4392, %v4393
      %v4395 = vsel %vm1374, %v4341, 0.0
      %v4396 = vadd.f32 %v4394, %v4395
      %v4397 = vsel %vm1374, %v4342, 0.0
      %v4398 = vadd.f32 %v4396, %v4397
      %v4399 = vsel %vm1374, %v4343, 0.0
      %v4400 = vadd.f32 %v4398, %v4399
      %v4401 = vsel %vm1374, %v4344, 0.0
      %v4402 = vadd.f32 %v4400, %v4401
      %v4403 = vsel %vm1374, %v4345, 0.0
      %v4404 = vadd.f32 %v4402, %v4403
      %v4405 = vsel %vm1374, %v4346, 0.0
      %v4406 = vadd.f32 %v4404, %v4405
      %v4407 = vsel %vm1374, %v4347, 0.0
      %v4408 = vadd.f32 %v4406, %v4407
      %v4409 = vsel %vm1374, %v4348, 0.0
      %v4410 = vadd.f32 %v4408, %v4409
      %v4411 = vsel %vm1374, %v4349, 0.0
      %v4412 = vadd.f32 %v4410, %v4411
      %v4413 = vrot.slane %v4412, 4
      %v4414 = vadd.f32 %v4412, %v4413
      %v4415 = vrot.slane %v4414, 2
      %v4416 = vadd.f32 %v4414, %v4415
      %v4417 = vrot.slane %v4416, 1
      %v4418 = vadd.f32 %v4416, %v4417
      %v4419 = vmul.f32 %v4418, 0.00390625
      %v4420 = vsub.f32 %v4318, %v4419
      %v4421 = vsub.f32 %v4319, %v4419
      %v4422 = vsub.f32 %v4320, %v4419
      %v4423 = vsub.f32 %v4321, %v4419
      %v4424 = vsub.f32 %v4322, %v4419
      %v4425 = vsub.f32 %v4323, %v4419
      %v4426 = vsub.f32 %v4324, %v4419
      %v4427 = vsub.f32 %v4325, %v4419
      %v4428 = vsub.f32 %v4326, %v4419
      %v4429 = vsub.f32 %v4327, %v4419
      %v4430 = vsub.f32 %v4328, %v4419
      %v4431 = vsub.f32 %v4329, %v4419
      %v4432 = vsub.f32 %v4330, %v4419
      %v4433 = vsub.f32 %v4331, %v4419
      %v4434 = vsub.f32 %v4332, %v4419
      %v4435 = vsub.f32 %v4333, %v4419
      %v4436 = vsub.f32 %v4334, %v4419
      %v4437 = vsub.f32 %v4335, %v4419
      %v4438 = vsub.f32 %v4336, %v4419
      %v4439 = vsub.f32 %v4337, %v4419
      %v4440 = vsub.f32 %v4338, %v4419
      %v4441 = vsub.f32 %v4339, %v4419
      %v4442 = vsub.f32 %v4340, %v4419
      %v4443 = vsub.f32 %v4341, %v4419
      %v4444 = vsub.f32 %v4342, %v4419
      %v4445 = vsub.f32 %v4343, %v4419
      %v4446 = vsub.f32 %v4344, %v4419
      %v4447 = vsub.f32 %v4345, %v4419
      %v4448 = vsub.f32 %v4346, %v4419
      %v4449 = vsub.f32 %v4347, %v4419
      %v4450 = vsub.f32 %v4348, %v4419
      %v4451 = vsub.f32 %v4349, %v4419
      %v4452 = vmul.f32 %v4420, %v4420
      %v4453 = vmul.f32 %v4421, %v4421
      %v4454 = vmul.f32 %v4422, %v4422
      %v4455 = vmul.f32 %v4423, %v4423
      %v4456 = vmul.f32 %v4424, %v4424
      %v4457 = vmul.f32 %v4425, %v4425
      %v4458 = vmul.f32 %v4426, %v4426
      %v4459 = vmul.f32 %v4427, %v4427
      %v4460 = vmul.f32 %v4428, %v4428
      %v4461 = vmul.f32 %v4429, %v4429
      %v4462 = vmul.f32 %v4430, %v4430
      %v4463 = vmul.f32 %v4431, %v4431
      %v4464 = vmul.f32 %v4432, %v4432
      %v4465 = vmul.f32 %v4433, %v4433
      %v4466 = vmul.f32 %v4434, %v4434
      %v4467 = vmul.f32 %v4435, %v4435
      %v4468 = vmul.f32 %v4436, %v4436
      %v4469 = vmul.f32 %v4437, %v4437
      %v4470 = vmul.f32 %v4438, %v4438
      %v4471 = vmul.f32 %v4439, %v4439
      %v4472 = vmul.f32 %v4440, %v4440
      %v4473 = vmul.f32 %v4441, %v4441
      %v4474 = vmul.f32 %v4442, %v4442
      %v4475 = vmul.f32 %v4443, %v4443
      %v4476 = vmul.f32 %v4444, %v4444
      %v4477 = vmul.f32 %v4445, %v4445
      %v4478 = vmul.f32 %v4446, %v4446
      %v4479 = vmul.f32 %v4447, %v4447
      %v4480 = vmul.f32 %v4448, %v4448
      %v4481 = vmul.f32 %v4449, %v4449
      %v4482 = vmul.f32 %v4450, %v4450
      %v4483 = vmul.f32 %v4451, %v4451
      %v4484 = vsel %vm1374, %v4452, 0.0
      %v4485 = vsel %vm1374, %v4453, 0.0
      %v4486 = vadd.f32 %v4484, %v4485
      %v4487 = vsel %vm1374, %v4454, 0.0
      %v4488 = vadd.f32 %v4486, %v4487
      %v4489 = vsel %vm1374, %v4455, 0.0
      %v4490 = vadd.f32 %v4488, %v4489
      %v4491 = vsel %vm1374, %v4456, 0.0
      %v4492 = vadd.f32 %v4490, %v4491
      %v4493 = vsel %vm1374, %v4457, 0.0
      %v4494 = vadd.f32 %v4492, %v4493
      %v4495 = vsel %vm1374, %v4458, 0.0
      %v4496 = vadd.f32 %v4494, %v4495
      %v4497 = vsel %vm1374, %v4459, 0.0
      %v4498 = vadd.f32 %v4496, %v4497
      %v4499 = vsel %vm1374, %v4460, 0.0
      %v4500 = vadd.f32 %v4498, %v4499
      %v4501 = vsel %vm1374, %v4461, 0.0
      %v4502 = vadd.f32 %v4500, %v4501
      %v4503 = vsel %vm1374, %v4462, 0.0
      %v4504 = vadd.f32 %v4502, %v4503
      %v4505 = vsel %vm1374, %v4463, 0.0
      %v4506 = vadd.f32 %v4504, %v4505
      %v4507 = vsel %vm1374, %v4464, 0.0
      %v4508 = vadd.f32 %v4506, %v4507
      %v4509 = vsel %vm1374, %v4465, 0.0
      %v4510 = vadd.f32 %v4508, %v4509
      %v4511 = vsel %vm1374, %v4466, 0.0
      %v4512 = vadd.f32 %v4510, %v4511
      %v4513 = vsel %vm1374, %v4467, 0.0
      %v4514 = vadd.f32 %v4512, %v4513
      %v4515 = vsel %vm1374, %v4468, 0.0
      %v4516 = vadd.f32 %v4514, %v4515
      %v4517 = vsel %vm1374, %v4469, 0.0
      %v4518 = vadd.f32 %v4516, %v4517
      %v4519 = vsel %vm1374, %v4470, 0.0
      %v4520 = vadd.f32 %v4518, %v4519
      %v4521 = vsel %vm1374, %v4471, 0.0
      %v4522 = vadd.f32 %v4520, %v4521
      %v4523 = vsel %vm1374, %v4472, 0.0
      %v4524 = vadd.f32 %v4522, %v4523
      %v4525 = vsel %vm1374, %v4473, 0.0
      %v4526 = vadd.f32 %v4524, %v4525
      %v4527 = vsel %vm1374, %v4474, 0.0
      %v4528 = vadd.f32 %v4526, %v4527
      %v4529 = vsel %vm1374, %v4475, 0.0
      %v4530 = vadd.f32 %v4528, %v4529
      %v4531 = vsel %vm1374, %v4476, 0.0
      %v4532 = vadd.f32 %v4530, %v4531
      %v4533 = vsel %vm1374, %v4477, 0.0
      %v4534 = vadd.f32 %v4532, %v4533
      %v4535 = vsel %vm1374, %v4478, 0.0
      %v4536 = vadd.f32 %v4534, %v4535
      %v4537 = vsel %vm1374, %v4479, 0.0
      %v4538 = vadd.f32 %v4536, %v4537
      %v4539 = vsel %vm1374, %v4480, 0.0
      %v4540 = vadd.f32 %v4538, %v4539
      %v4541 = vsel %vm1374, %v4481, 0.0
      %v4542 = vadd.f32 %v4540, %v4541
      %v4543 = vsel %vm1374, %v4482, 0.0
      %v4544 = vadd.f32 %v4542, %v4543
      %v4545 = vsel %vm1374, %v4483, 0.0
      %v4546 = vadd.f32 %v4544, %v4545
      %v4547 = vrot.slane %v4546, 4
      %v4548 = vadd.f32 %v4546, %v4547
      %v4549 = vrot.slane %v4548, 2
      %v4550 = vadd.f32 %v4548, %v4549
      %v4551 = vrot.slane %v4550, 1
      %v4552 = vadd.f32 %v4550, %v4551
      %v4553 = vmul.f32 %v4552, 0.00390625
      %v4554 = vadd.f32 %v4553, 1e-05
      %v4555 = vrsqrt.pop %v4554
      %v4556 = vmul.f32 %v4555, %v4554
      %v4557 = vmul.f32 %v4556, %v4555
      %v4558 = vmul.f32 0.5, %v4557
      %v4559 = vsub.f32 1.5, %v4558
      %v4560 = vmul.f32 %v4555, %v4559
      %vm4561 = vweird.f32 %v4554
      %vm4562 = vweird.f32 %v4555
      %vm4563 = vmor %vm4561, %vm4562
      %v4564 = vsel %vm4563, %v4555, %v4560
      %v4565 = vmul.f32 %v4420, %v4564
      %v4566 = vmul.f32 %v4421, %v4564
      %v4567 = vmul.f32 %v4422, %v4564
      %v4568 = vmul.f32 %v4423, %v4564
      %v4569 = vmul.f32 %v4424, %v4564
      %v4570 = vmul.f32 %v4425, %v4564
      %v4571 = vmul.f32 %v4426, %v4564
      %v4572 = vmul.f32 %v4427, %v4564
      %v4573 = vmul.f32 %v4428, %v4564
      %v4574 = vmul.f32 %v4429, %v4564
      %v4575 = vmul.f32 %v4430, %v4564
      %v4576 = vmul.f32 %v4431, %v4564
      %v4577 = vmul.f32 %v4432, %v4564
      %v4578 = vmul.f32 %v4433, %v4564
      %v4579 = vmul.f32 %v4434, %v4564
      %v4580 = vmul.f32 %v4435, %v4564
      %v4581 = vmul.f32 %v4436, %v4564
      %v4582 = vmul.f32 %v4437, %v4564
      %v4583 = vmul.f32 %v4438, %v4564
      %v4584 = vmul.f32 %v4439, %v4564
      %v4585 = vmul.f32 %v4440, %v4564
      %v4586 = vmul.f32 %v4441, %v4564
      %v4587 = vmul.f32 %v4442, %v4564
      %v4588 = vmul.f32 %v4443, %v4564
      %v4589 = vmul.f32 %v4444, %v4564
      %v4590 = vmul.f32 %v4445, %v4564
      %v4591 = vmul.f32 %v4446, %v4564
      %v4592 = vmul.f32 %v4447, %v4564
      %v4593 = vmul.f32 %v4448, %v4564
      %v4594 = vmul.f32 %v4449, %v4564
      %v4595 = vmul.f32 %v4450, %v4564
      %v4596 = vmul.f32 %v4451, %v4564
      %v4597 = vmax.f32 %v4565, 0.0
      %v4598 = vmax.f32 %v4566, 0.0
      %v4599 = vmax.f32 %v4567, 0.0
      %v4600 = vmax.f32 %v4568, 0.0
      %v4601 = vmax.f32 %v4569, 0.0
      %v4602 = vmax.f32 %v4570, 0.0
      %v4603 = vmax.f32 %v4571, 0.0
      %v4604 = vmax.f32 %v4572, 0.0
      %v4605 = vmax.f32 %v4573, 0.0
      %v4606 = vmax.f32 %v4574, 0.0
      %v4607 = vmax.f32 %v4575, 0.0
      %v4608 = vmax.f32 %v4576, 0.0
      %v4609 = vmax.f32 %v4577, 0.0
      %v4610 = vmax.f32 %v4578, 0.0
      %v4611 = vmax.f32 %v4579, 0.0
      %v4612 = vmax.f32 %v4580, 0.0
      %v4613 = vmax.f32 %v4581, 0.0
      %v4614 = vmax.f32 %v4582, 0.0
      %v4615 = vmax.f32 %v4583, 0.0
      %v4616 = vmax.f32 %v4584, 0.0
      %v4617 = vmax.f32 %v4585, 0.0
      %v4618 = vmax.f32 %v4586, 0.0
      %v4619 = vmax.f32 %v4587, 0.0
      %v4620 = vmax.f32 %v4588, 0.0
      %v4621 = vmax.f32 %v4589, 0.0
      %v4622 = vmax.f32 %v4590, 0.0
      %v4623 = vmax.f32 %v4591, 0.0
      %v4624 = vmax.f32 %v4592, 0.0
      %v4625 = vmax.f32 %v4593, 0.0
      %v4626 = vmax.f32 %v4594, 0.0
      %v4627 = vmax.f32 %v4595, 0.0
      %v4628 = vmax.f32 %v4596, 0.0
      %v4629 = vpack.c.bf16 %v4597, %v4597
      %v4630 = vpack.c.bf16 %v4598, %v4598
      %v4631 = vpack.c.bf16 %v4599, %v4599
      %v4632 = vpack.c.bf16 %v4600, %v4600
      %v4633 = vpack.c.bf16 %v4601, %v4601
      %v4634 = vpack.c.bf16 %v4602, %v4602
      %v4635 = vpack.c.bf16 %v4603, %v4603
      %v4636 = vpack.c.bf16 %v4604, %v4604
      %v4637 = vpack.c.bf16 %v4605, %v4605
      %v4638 = vpack.c.bf16 %v4606, %v4606
      %v4639 = vpack.c.bf16 %v4607, %v4607
      %v4640 = vpack.c.bf16 %v4608, %v4608
      %v4641 = vpack.c.bf16 %v4609, %v4609
      %v4642 = vpack.c.bf16 %v4610, %v4610
      %v4643 = vpack.c.bf16 %v4611, %v4611
      %v4644 = vpack.c.bf16 %v4612, %v4612
      %v4645 = vpack.c.bf16 %v4613, %v4613
      %v4646 = vpack.c.bf16 %v4614, %v4614
      %v4647 = vpack.c.bf16 %v4615, %v4615
      %v4648 = vpack.c.bf16 %v4616, %v4616
      %v4649 = vpack.c.bf16 %v4617, %v4617
      %v4650 = vpack.c.bf16 %v4618, %v4618
      %v4651 = vpack.c.bf16 %v4619, %v4619
      %v4652 = vpack.c.bf16 %v4620, %v4620
      %v4653 = vpack.c.bf16 %v4621, %v4621
      %v4654 = vpack.c.bf16 %v4622, %v4622
      %v4655 = vpack.c.bf16 %v4623, %v4623
      %v4656 = vpack.c.bf16 %v4624, %v4624
      %v4657 = vpack.c.bf16 %v4625, %v4625
      %v4658 = vpack.c.bf16 %v4626, %v4626
      %v4659 = vpack.c.bf16 %v4627, %v4627
      %v4660 = vpack.c.bf16 %v4628, %v4628
      %vm4661 = vsmask.f32 4368
      %vm4662 = vmor %vm872, %vm4661
      %v4664 = vshrl.u32 %v4629, 16
      %v4666 = vrot.slane %v4664, 7
      %v4667 = vshll.u32 %v4629, 16
      %v4669 = vor.u32 %v4666, %v4667
      %v4670 = vrot.slane %v4666, 4
      %v4672 = vshrl.u32 %v4630, 16
      %v4674 = vrot.slane %v4672, 7
      %v4675 = vshll.u32 %v4630, 16
      %v4677 = vor.u32 %v4674, %v4675
      %v4678 = vsel %vm4662, %v4670, %v4677
      %v4679 = vrot.slane %v4674, 4
      %v4681 = vshrl.u32 %v4631, 16
      %v4683 = vrot.slane %v4681, 7
      %v4684 = vshll.u32 %v4631, 16
      %v4686 = vor.u32 %v4683, %v4684
      %v4687 = vrot.slane %v4683, 4
      %v4689 = vshrl.u32 %v4632, 16
      %v4691 = vrot.slane %v4689, 7
      %v4692 = vshll.u32 %v4632, 16
      %v4694 = vor.u32 %v4691, %v4692
      %v4695 = vsel %vm4662, %v4687, %v4694
      %v4696 = vrot.slane %v4691, 4
      %v4698 = vshrl.u32 %v4633, 16
      %v4700 = vrot.slane %v4698, 7
      %v4701 = vshll.u32 %v4633, 16
      %v4703 = vor.u32 %v4700, %v4701
      %v4704 = vrot.slane %v4700, 4
      %v4706 = vshrl.u32 %v4634, 16
      %v4708 = vrot.slane %v4706, 7
      %v4709 = vshll.u32 %v4634, 16
      %v4711 = vor.u32 %v4708, %v4709
      %v4712 = vsel %vm4662, %v4704, %v4711
      %v4713 = vrot.slane %v4708, 4
      %v4715 = vshrl.u32 %v4635, 16
      %v4717 = vrot.slane %v4715, 7
      %v4718 = vshll.u32 %v4635, 16
      %v4720 = vor.u32 %v4717, %v4718
      %v4721 = vrot.slane %v4717, 4
      %v4723 = vshrl.u32 %v4636, 16
      %v4725 = vrot.slane %v4723, 7
      %v4726 = vshll.u32 %v4636, 16
      %v4728 = vor.u32 %v4725, %v4726
      %v4729 = vsel %vm4662, %v4721, %v4728
      %v4730 = vrot.slane %v4725, 4
      %v4732 = vshrl.u32 %v4637, 16
      %v4734 = vrot.slane %v4732, 7
      %v4735 = vshll.u32 %v4637, 16
      %v4737 = vor.u32 %v4734, %v4735
      %v4738 = vrot.slane %v4734, 4
      %v4740 = vshrl.u32 %v4638, 16
      %v4742 = vrot.slane %v4740, 7
      %v4743 = vshll.u32 %v4638, 16
      %v4745 = vor.u32 %v4742, %v4743
      %v4746 = vsel %vm4662, %v4738, %v4745
      %v4747 = vrot.slane %v4742, 4
      %v4749 = vshrl.u32 %v4639, 16
      %v4751 = vrot.slane %v4749, 7
      %v4752 = vshll.u32 %v4639, 16
      %v4754 = vor.u32 %v4751, %v4752
      %v4755 = vrot.slane %v4751, 4
      %v4757 = vshrl.u32 %v4640, 16
      %v4759 = vrot.slane %v4757, 7
      %v4760 = vshll.u32 %v4640, 16
      %v4762 = vor.u32 %v4759, %v4760
      %v4763 = vsel %vm4662, %v4755, %v4762
      %v4764 = vrot.slane %v4759, 4
      %v4766 = vshrl.u32 %v4641, 16
      %v4768 = vrot.slane %v4766, 7
      %v4769 = vshll.u32 %v4641, 16
      %v4771 = vor.u32 %v4768, %v4769
      %v4772 = vrot.slane %v4768, 4
      %v4774 = vshrl.u32 %v4642, 16
      %v4776 = vrot.slane %v4774, 7
      %v4777 = vshll.u32 %v4642, 16
      %v4779 = vor.u32 %v4776, %v4777
      %v4780 = vsel %vm4662, %v4772, %v4779
      %v4781 = vrot.slane %v4776, 4
      %v4783 = vshrl.u32 %v4643, 16
      %v4785 = vrot.slane %v4783, 7
      %v4786 = vshll.u32 %v4643, 16
      %v4788 = vor.u32 %v4785, %v4786
      %v4789 = vrot.slane %v4785, 4
      %v4791 = vshrl.u32 %v4644, 16
      %v4793 = vrot.slane %v4791, 7
      %v4794 = vshll.u32 %v4644, 16
      %v4796 = vor.u32 %v4793, %v4794
      %v4797 = vsel %vm4662, %v4789, %v4796
      %v4798 = vrot.slane %v4793, 4
      %v4800 = vshrl.u32 %v4645, 16
      %v4802 = vrot.slane %v4800, 7
      %v4803 = vshll.u32 %v4645, 16
      %v4805 = vor.u32 %v4802, %v4803
      %v4806 = vrot.slane %v4802, 4
      %v4808 = vshrl.u32 %v4646, 16
      %v4810 = vrot.slane %v4808, 7
      %v4811 = vshll.u32 %v4646, 16
      %v4813 = vor.u32 %v4810, %v4811
      %v4814 = vsel %vm4662, %v4806, %v4813
      %v4815 = vrot.slane %v4810, 4
      %v4817 = vshrl.u32 %v4647, 16
      %v4819 = vrot.slane %v4817, 7
      %v4820 = vshll.u32 %v4647, 16
      %v4822 = vor.u32 %v4819, %v4820
      %v4823 = vrot.slane %v4819, 4
      %v4825 = vshrl.u32 %v4648, 16
      %v4827 = vrot.slane %v4825, 7
      %v4828 = vshll.u32 %v4648, 16
      %v4830 = vor.u32 %v4827, %v4828
      %v4831 = vsel %vm4662, %v4823, %v4830
      %v4832 = vrot.slane %v4827, 4
      %v4834 = vshrl.u32 %v4649, 16
      %v4836 = vrot.slane %v4834, 7
      %v4837 = vshll.u32 %v4649, 16
      %v4839 = vor.u32 %v4836, %v4837
      %v4840 = vrot.slane %v4836, 4
      %v4842 = vshrl.u32 %v4650, 16
      %v4844 = vrot.slane %v4842, 7
      %v4845 = vshll.u32 %v4650, 16
      %v4847 = vor.u32 %v4844, %v4845
      %v4848 = vsel %vm4662, %v4840, %v4847
      %v4849 = vrot.slane %v4844, 4
      %v4851 = vshrl.u32 %v4651, 16
      %v4853 = vrot.slane %v4851, 7
      %v4854 = vshll.u32 %v4651, 16
      %v4856 = vor.u32 %v4853, %v4854
      %v4857 = vrot.slane %v4853, 4
      %v4859 = vshrl.u32 %v4652, 16
      %v4861 = vrot.slane %v4859, 7
      %v4862 = vshll.u32 %v4652, 16
      %v4864 = vor.u32 %v4861, %v4862
      %v4865 = vsel %vm4662, %v4857, %v4864
      %v4866 = vrot.slane %v4861, 4
      %v4868 = vshrl.u32 %v4653, 16
      %v4870 = vrot.slane %v4868, 7
      %v4871 = vshll.u32 %v4653, 16
      %v4873 = vor.u32 %v4870, %v4871
      %v4874 = vrot.slane %v4870, 4
      %v4876 = vshrl.u32 %v4654, 16
      %v4878 = vrot.slane %v4876, 7
      %v4879 = vshll.u32 %v4654, 16
      %v4881 = vor.u32 %v4878, %v4879
      %v4882 = vsel %vm4662, %v4874, %v4881
      %v4883 = vrot.slane %v4878, 4
      %v4885 = vshrl.u32 %v4655, 16
      %v4887 = vrot.slane %v4885, 7
      %v4888 = vshll.u32 %v4655, 16
      %v4890 = vor.u32 %v4887, %v4888
      %v4891 = vrot.slane %v4887, 4
      %v4893 = vshrl.u32 %v4656, 16
      %v4895 = vrot.slane %v4893, 7
      %v4896 = vshll.u32 %v4656, 16
      %v4898 = vor.u32 %v4895, %v4896
      %v4899 = vsel %vm4662, %v4891, %v4898
      %v4900 = vrot.slane %v4895, 4
      %v4902 = vshrl.u32 %v4657, 16
      %v4904 = vrot.slane %v4902, 7
      %v4905 = vshll.u32 %v4657, 16
      %v4907 = vor.u32 %v4904, %v4905
      %v4908 = vrot.slane %v4904, 4
      %v4910 = vshrl.u32 %v4658, 16
      %v4912 = vrot.slane %v4910, 7
      %v4913 = vshll.u32 %v4658, 16
      %v4915 = vor.u32 %v4912, %v4913
      %v4916 = vsel %vm4662, %v4908, %v4915
      %v4917 = vrot.slane %v4912, 4
      %v4919 = vshrl.u32 %v4659, 16
      %v4921 = vrot.slane %v4919, 7
      %v4922 = vshll.u32 %v4659, 16
      %v4924 = vor.u32 %v4921, %v4922
      %v4925 = vrot.slane %v4921, 4
      %v4927 = vshrl.u32 %v4660, 16
      %v4929 = vrot.slane %v4927, 7
      %v4930 = vshll.u32 %v4660, 16
      %v4932 = vor.u32 %v4929, %v4930
      %v4933 = vsel %vm4662, %v4925, %v4932
      %v4934 = vrot.slane %v4929, 4
      %vm4983 = vcmask 27648
      %vm4984 = vmand %vm4983, %vm567
      %v4985 = vld [vmem:[%s451] sm:$0xf]
      %v4986 = vsel %vm4984, %v4669, %v4985
      %4987 = vst [vmem:[%s451] sm:$0xf] %v4986
      %4988 = vst.msk [vmem:[%s451 + $0x4] sm:$0xf] %vm402, %v4678
      %v4989 = vld [vmem:[%s451 + $0x8] sm:$0x1]
      %v4990 = vsel %vm873, %v4679, %v4989
      %4991 = vst [vmem:[%s451 + $0x8] sm:$0x1] %v4990
      %v4992 = vld [vmem:[%s451 + $0xc] sm:$0xf]
      %v4993 = vsel %vm4984, %v4686, %v4992
      %4994 = vst [vmem:[%s451 + $0xc] sm:$0xf] %v4993
      %4995 = vst.msk [vmem:[%s451 + $0x10] sm:$0xf] %vm402, %v4695
      %v4996 = vld [vmem:[%s451 + $0x14] sm:$0x1]
      %v4997 = vsel %vm873, %v4696, %v4996
      %4998 = vst [vmem:[%s451 + $0x14] sm:$0x1] %v4997
      %v4999 = vld [vmem:[%s451 + $0x18] sm:$0xf]
      %v5000 = vsel %vm4984, %v4703, %v4999
      %5001 = vst [vmem:[%s451 + $0x18] sm:$0xf] %v5000
      %5002 = vst.msk [vmem:[%s451 + $0x1c] sm:$0xf] %vm402, %v4712
      %v5003 = vld [vmem:[%s451 + $0x20] sm:$0x1]
      %v5004 = vsel %vm873, %v4713, %v5003
      %5005 = vst [vmem:[%s451 + $0x20] sm:$0x1] %v5004
      %v5006 = vld [vmem:[%s451 + $0x24] sm:$0xf]
      %v5007 = vsel %vm4984, %v4720, %v5006
      %5008 = vst [vmem:[%s451 + $0x24] sm:$0xf] %v5007
      %5009 = vst.msk [vmem:[%s451 + $0x28] sm:$0xf] %vm402, %v4729
      %v5010 = vld [vmem:[%s451 + $0x2c] sm:$0x1]
      %v5011 = vsel %vm873, %v4730, %v5010
      %5012 = vst [vmem:[%s451 + $0x2c] sm:$0x1] %v5011
      %v5013 = vld [vmem:[%s451 + $0x30] sm:$0xf]
      %v5014 = vsel %vm4984, %v4737, %v5013
      %5015 = vst [vmem:[%s451 + $0x30] sm:$0xf] %v5014
      %5016 = vst.msk [vmem:[%s451 + $0x34] sm:$0xf] %vm402, %v4746
      %v5017 = vld [vmem:[%s451 + $0x38] sm:$0x1]
      %v5018 = vsel %vm873, %v4747, %v5017
      %5019 = vst [vmem:[%s451 + $0x38] sm:$0x1] %v5018
      %v5020 = vld [vmem:[%s451 + $0x3c] sm:$0xf]
      %v5021 = vsel %vm4984, %v4754, %v5020
      %5022 = vst [vmem:[%s451 + $0x3c] sm:$0xf] %v5021
      %5023 = vst.msk [vmem:[%s451 + $0x40] sm:$0xf] %vm402, %v4763
      %v5024 = vld [vmem:[%s451 + $0x44] sm:$0x1]
      %v5025 = vsel %vm873, %v4764, %v5024
      %5026 = vst [vmem:[%s451 + $0x44] sm:$0x1] %v5025
      %v5027 = vld [vmem:[%s451 + $0x48] sm:$0xf]
      %v5028 = vsel %vm4984, %v4771, %v5027
      %5029 = vst [vmem:[%s451 + $0x48] sm:$0xf] %v5028
      %5030 = vst.msk [vmem:[%s451 + $0x4c] sm:$0xf] %vm402, %v4780
      %v5031 = vld [vmem:[%s451 + $0x50] sm:$0x1]
      %v5032 = vsel %vm873, %v4781, %v5031
      %5033 = vst [vmem:[%s451 + $0x50] sm:$0x1] %v5032
      %v5034 = vld [vmem:[%s451 + $0x54] sm:$0xf]
      %v5035 = vsel %vm4984, %v4788, %v5034
      %5036 = vst [vmem:[%s451 + $0x54] sm:$0xf] %v5035
      %5037 = vst.msk [vmem:[%s451 + $0x58] sm:$0xf] %vm402, %v4797
      %v5038 = vld [vmem:[%s451 + $0x5c] sm:$0x1]
      %v5039 = vsel %vm873, %v4798, %v5038
      %5040 = vst [vmem:[%s451 + $0x5c] sm:$0x1] %v5039
      %v5041 = vld [vmem:[%s451 + $0x60] sm:$0xf]
      %v5042 = vsel %vm4984, %v4805, %v5041
      %5043 = vst [vmem:[%s451 + $0x60] sm:$0xf] %v5042
      %5044 = vst.msk [vmem:[%s451 + $0x64] sm:$0xf] %vm402, %v4814
      %v5045 = vld [vmem:[%s451 + $0x68] sm:$0x1]
      %v5046 = vsel %vm873, %v4815, %v5045
      %5047 = vst [vmem:[%s451 + $0x68] sm:$0x1] %v5046
      %v5048 = vld [vmem:[%s451 + $0x6c] sm:$0xf]
      %v5049 = vsel %vm4984, %v4822, %v5048
      %5050 = vst [vmem:[%s451 + $0x6c] sm:$0xf] %v5049
      %5051 = vst.msk [vmem:[%s451 + $0x70] sm:$0xf] %vm402, %v4831
      %v5052 = vld [vmem:[%s451 + $0x74] sm:$0x1]
      %v5053 = vsel %vm873, %v4832, %v5052
      %5054 = vst [vmem:[%s451 + $0x74] sm:$0x1] %v5053
      %v5055 = vld [vmem:[%s451 + $0x78] sm:$0xf]
      %v5056 = vsel %vm4984, %v4839, %v5055
      %5057 = vst [vmem:[%s451 + $0x78] sm:$0xf] %v5056
      %5058 = vst.msk [vmem:[%s451 + $0x7c] sm:$0xf] %vm402, %v4848
      %v5059 = vld [vmem:[%s451 + $0x80] sm:$0x1]
      %v5060 = vsel %vm873, %v4849, %v5059
      %5061 = vst [vmem:[%s451 + $0x80] sm:$0x1] %v5060
      %v5062 = vld [vmem:[%s451 + $0x84] sm:$0xf]
      %v5063 = vsel %vm4984, %v4856, %v5062
      %5064 = vst [vmem:[%s451 + $0x84] sm:$0xf] %v5063
      %5065 = vst.msk [vmem:[%s451 + $0x88] sm:$0xf] %vm402, %v4865
      %v5066 = vld [vmem:[%s451 + $0x8c] sm:$0x1]
      %v5067 = vsel %vm873, %v4866, %v5066
      %5068 = vst [vmem:[%s451 + $0x8c] sm:$0x1] %v5067
      %v5069 = vld [vmem:[%s451 + $0x90] sm:$0xf]
      %v5070 = vsel %vm4984, %v4873, %v5069
      %5071 = vst [vmem:[%s451 + $0x90] sm:$0xf] %v5070
      %5072 = vst.msk [vmem:[%s451 + $0x94] sm:$0xf] %vm402, %v4882
      %v5073 = vld [vmem:[%s451 + $0x98] sm:$0x1]
      %v5074 = vsel %vm873, %v4883, %v5073
      %5075 = vst [vmem:[%s451 + $0x98] sm:$0x1] %v5074
      %v5076 = vld [vmem:[%s451 + $0x9c] sm:$0xf]
      %v5077 = vsel %vm4984, %v4890, %v5076
      %5078 = vst [vmem:[%s451 + $0x9c] sm:$0xf] %v5077
      %5079 = vst.msk [vmem:[%s451 + $0xa0] sm:$0xf] %vm402, %v4899
      %v5080 = vld [vmem:[%s451 + $0xa4] sm:$0x1]
      %v5081 = vsel %vm873, %v4900, %v5080
      %5082 = vst [vmem:[%s451 + $0xa4] sm:$0x1] %v5081
      %v5083 = vld [vmem:[%s451 + $0xa8] sm:$0xf]
      %v5084 = vsel %vm4984, %v4907, %v5083
      %5085 = vst [vmem:[%s451 + $0xa8] sm:$0xf] %v5084
      %5086 = vst.msk [vmem:[%s451 + $0xac] sm:$0xf] %vm402, %v4916
      %v5087 = vld [vmem:[%s451 + $0xb0] sm:$0x1]
      %v5088 = vsel %vm873, %v4917, %v5087
      %5089 = vst [vmem:[%s451 + $0xb0] sm:$0x1] %v5088
      %v5090 = vld [vmem:[%s451 + $0xb4] sm:$0xf]
      %v5091 = vsel %vm4984, %v4924, %v5090
      %5092 = vst [vmem:[%s451 + $0xb4] sm:$0xf] %v5091
      %5093 = vst.msk [vmem:[%s451 + $0xb8] sm:$0xf] %vm402, %v4933
      %v5094 = vld [vmem:[%s451 + $0xbc] sm:$0x1]
      %v5095 = vsel %vm873, %v4934, %v5094
      %5096 = vst [vmem:[%s451 + $0xbc] sm:$0x1] %v5095
      %v5097 = vld [vmem:[#allocation2] sm:$0xf]
      %v5098 = vsel %vm4984, %v4686, %v5097
      %5099 = vst [vmem:[#allocation2] sm:$0xf] %v5098
      %5100 = vst.msk [vmem:[#allocation2 + $0x4] sm:$0xf] %vm402, %v4695
      %v5101 = vld [vmem:[#allocation2 + $0x8] sm:$0x1]
      %v5102 = vsel %vm873, %v4696, %v5101
      %5103 = vst [vmem:[#allocation2 + $0x8] sm:$0x1] %v5102
      %s5104 = scalar_lea.vmem [#allocation2], 204
      %v5105 = vld [vmem:[%s5104] sm:$0xf]
      %v5106 = vsel %vm4984, %v4907, %v5105
      %5107 = vst [vmem:[%s5104] sm:$0xf] %v5106
      %5108 = vst.msk [vmem:[%s5104 + $0x4] sm:$0xf] %vm402, %v4916
      %v5109 = vld [vmem:[%s5104 + $0x8] sm:$0x1]
      %v5110 = vsel %vm873, %v4917, %v5109
      %5111 = vst [vmem:[%s5104 + $0x8] sm:$0x1] %v5110
      %v5112 = vld [vmem:[#allocation2] sm:$0x2]
      %v5113 = vld [vmem:[#allocation2 + $0xc] sm:$0x2]
      %v5114 = vld [vmem:[#allocation2 + $0x18] sm:$0x2]
      %v5115 = vld [vmem:[#allocation2 + $0x24] sm:$0x2]
      %v5116 = vld [vmem:[#allocation2 + $0x30] sm:$0x2]
      %v5117 = vld [vmem:[#allocation2 + $0x3c] sm:$0x2]
      %v5118 = vld [vmem:[#allocation2 + $0x48] sm:$0x2]
      %v5119 = vld [vmem:[#allocation2 + $0x54] sm:$0x2]
      %v5120 = vld [vmem:[#allocation2 + $0x60] sm:$0x2]
      %v5121 = vld [vmem:[#allocation2 + $0x6c] sm:$0x2]
      %v5122 = vld [vmem:[#allocation2 + $0x78] sm:$0x2]
      %v5123 = vld [vmem:[#allocation2 + $0x84] sm:$0x2]
      %v5124 = vld [vmem:[#allocation2 + $0x90] sm:$0x2]
      %v5125 = vld [vmem:[#allocation2 + $0x9c] sm:$0x2]
      %v5126 = vld [vmem:[#allocation2 + $0xa8] sm:$0x2]
      %v5127 = vld [vmem:[#allocation2 + $0xb4] sm:$0x2]
      %v5128 = vld [vmem:[#allocation2 + $0xc0] sm:$0x2]
      %v5129 = vld [vmem:[#allocation2 + $0xcc] sm:$0x2]
      %v5148 = vrot.slane %v5112, 5
      %v5149 = vrot.slane %v5148, 4
      %v5150 = vrot.slane %v5113, 5
      %v5151 = vrot.slane %v5150, 4
      %v5152 = vrot.slane %v5114, 5
      %v5153 = vrot.slane %v5152, 4
      %v5154 = vrot.slane %v5115, 5
      %v5155 = vrot.slane %v5154, 4
      %v5156 = vrot.slane %v5116, 5
      %v5157 = vrot.slane %v5156, 4
      %v5158 = vrot.slane %v5117, 5
      %v5159 = vrot.slane %v5158, 4
      %v5160 = vrot.slane %v5118, 5
      %v5161 = vrot.slane %v5160, 4
      %v5162 = vrot.slane %v5119, 5
      %v5163 = vrot.slane %v5162, 4
      %v5164 = vrot.slane %v5120, 5
      %v5165 = vrot.slane %v5164, 4
      %v5166 = vrot.slane %v5121, 5
      %v5167 = vrot.slane %v5166, 4
      %v5168 = vrot.slane %v5122, 5
      %v5169 = vrot.slane %v5168, 4
      %v5170 = vrot.slane %v5123, 5
      %v5171 = vrot.slane %v5170, 4
      %v5172 = vrot.slane %v5124, 5
      %v5173 = vrot.slane %v5172, 4
      %v5174 = vrot.slane %v5125, 5
      %v5175 = vrot.slane %v5174, 4
      %v5176 = vrot.slane %v5126, 5
      %v5177 = vrot.slane %v5176, 4
      %v5178 = vrot.slane %v5127, 5
      %v5179 = vrot.slane %v5178, 4
      %v5180 = vrot.slane %v5128, 5
      %v5181 = vrot.slane %v5180, 4
      %v5182 = vrot.slane %v5129, 5
      %v5183 = vrot.slane %v5182, 4
      %v5202 = vld [vmem:[#allocation2] sm:$0x1]
      %v5203 = vsel %vm873, %v5149, %v5202
      %5204 = vst [vmem:[#allocation2] sm:$0x1] %v5203
      %v5205 = vld [vmem:[#allocation2 + $0xc] sm:$0x1]
      %v5206 = vsel %vm873, %v5151, %v5205
      %5207 = vst [vmem:[#allocation2 + $0xc] sm:$0x1] %v5206
      %v5208 = vld [vmem:[#allocation2 + $0x18] sm:$0x1]
      %v5209 = vsel %vm873, %v5153, %v5208
      %5210 = vst [vmem:[#allocation2 + $0x18] sm:$0x1] %v5209
      %v5211 = vld [vmem:[#allocation2 + $0x24] sm:$0x1]
      %v5212 = vsel %vm873, %v5155, %v5211
      %5213 = vst [vmem:[#allocation2 + $0x24] sm:$0x1] %v5212
      %v5214 = vld [vmem:[#allocation2 + $0x30] sm:$0x1]
      %v5215 = vsel %vm873, %v5157, %v5214
      %5216 = vst [vmem:[#allocation2 + $0x30] sm:$0x1] %v5215
      %v5217 = vld [vmem:[#allocation2 + $0x3c] sm:$0x1]
      %v5218 = vsel %vm873, %v5159, %v5217
      %5219 = vst [vmem:[#allocation2 + $0x3c] sm:$0x1] %v5218
      %v5220 = vld [vmem:[#allocation2 + $0x48] sm:$0x1]
      %v5221 = vsel %vm873, %v5161, %v5220
      %5222 = vst [vmem:[#allocation2 + $0x48] sm:$0x1] %v5221
      %v5223 = vld [vmem:[#allocation2 + $0x54] sm:$0x1]
      %v5224 = vsel %vm873, %v5163, %v5223
      %5225 = vst [vmem:[#allocation2 + $0x54] sm:$0x1] %v5224
      %v5226 = vld [vmem:[#allocation2 + $0x60] sm:$0x1]
      %v5227 = vsel %vm873, %v5165, %v5226
      %5228 = vst [vmem:[#allocation2 + $0x60] sm:$0x1] %v5227
      %v5229 = vld [vmem:[#allocation2 + $0x6c] sm:$0x1]
      %v5230 = vsel %vm873, %v5167, %v5229
      %5231 = vst [vmem:[#allocation2 + $0x6c] sm:$0x1] %v5230
      %v5232 = vld [vmem:[#allocation2 + $0x78] sm:$0x1]
      %v5233 = vsel %vm873, %v5169, %v5232
      %5234 = vst [vmem:[#allocation2 + $0x78] sm:$0x1] %v5233
      %v5235 = vld [vmem:[#allocation2 + $0x84] sm:$0x1]
      %v5236 = vsel %vm873, %v5171, %v5235
      %5237 = vst [vmem:[#allocation2 + $0x84] sm:$0x1] %v5236
      %v5238 = vld [vmem:[#allocation2 + $0x90] sm:$0x1]
      %v5239 = vsel %vm873, %v5173, %v5238
      %5240 = vst [vmem:[#allocation2 + $0x90] sm:$0x1] %v5239
      %v5241 = vld [vmem:[#allocation2 + $0x9c] sm:$0x1]
      %v5242 = vsel %vm873, %v5175, %v5241
      %5243 = vst [vmem:[#allocation2 + $0x9c] sm:$0x1] %v5242
      %v5244 = vld [vmem:[#allocation2 + $0xa8] sm:$0x1]
      %v5245 = vsel %vm873, %v5177, %v5244
      %5246 = vst [vmem:[#allocation2 + $0xa8] sm:$0x1] %v5245
      %v5247 = vld [vmem:[#allocation2 + $0xb4] sm:$0x1]
      %v5248 = vsel %vm873, %v5179, %v5247
      %5249 = vst [vmem:[#allocation2 + $0xb4] sm:$0x1] %v5248
      %v5250 = vld [vmem:[#allocation2 + $0xc0] sm:$0x1]
      %v5251 = vsel %vm873, %v5181, %v5250
      %5252 = vst [vmem:[#allocation2 + $0xc0] sm:$0x1] %v5251
      %v5253 = vld [vmem:[#allocation2 + $0xcc] sm:$0x1]
      %v5254 = vsel %vm873, %v5183, %v5253
      %5255 = vst [vmem:[#allocation2 + $0xcc] sm:$0x1] %v5254
      %v5256 = vld [vmem:[#allocation2 + $0x4] sm:$0x8]
      %v5257 = vld [vmem:[#allocation2 + $0x10] sm:$0x8]
      %v5258 = vld [vmem:[#allocation2 + $0x1c] sm:$0x8]
      %v5259 = vld [vmem:[#allocation2 + $0x28] sm:$0x8]
      %v5260 = vld [vmem:[#allocation2 + $0x34] sm:$0x8]
      %v5261 = vld [vmem:[#allocation2 + $0x40] sm:$0x8]
      %v5262 = vld [vmem:[#allocation2 + $0x4c] sm:$0x8]
      %v5263 = vld [vmem:[#allocation2 + $0x58] sm:$0x8]
      %v5264 = vld [vmem:[#allocation2 + $0x64] sm:$0x8]
      %v5265 = vld [vmem:[#allocation2 + $0x70] sm:$0x8]
      %v5266 = vld [vmem:[#allocation2 + $0x7c] sm:$0x8]
      %v5267 = vld [vmem:[#allocation2 + $0x88] sm:$0x8]
      %v5268 = vld [vmem:[#allocation2 + $0x94] sm:$0x8]
      %v5269 = vld [vmem:[#allocation2 + $0xa0] sm:$0x8]
      %v5270 = vld [vmem:[#allocation2 + $0xac] sm:$0x8]
      %v5271 = vld [vmem:[#allocation2 + $0xb8] sm:$0x8]
      %v5272 = vld [vmem:[#allocation2 + $0xc4] sm:$0x8]
      %v5273 = vld [vmem:[#allocation2 + $0xd0] sm:$0x8]
      %v5292 = vrot.slane %v5256, 7
      %v5293 = vrot.slane %v5292, 4
      %v5294 = vrot.slane %v5257, 7
      %v5295 = vrot.slane %v5294, 4
      %v5296 = vrot.slane %v5258, 7
      %v5297 = vrot.slane %v5296, 4
      %v5298 = vrot.slane %v5259, 7
      %v5299 = vrot.slane %v5298, 4
      %v5300 = vrot.slane %v5260, 7
      %v5301 = vrot.slane %v5300, 4
      %v5302 = vrot.slane %v5261, 7
      %v5303 = vrot.slane %v5302, 4
      %v5304 = vrot.slane %v5262, 7
      %v5305 = vrot.slane %v5304, 4
      %v5306 = vrot.slane %v5263, 7
      %v5307 = vrot.slane %v5306, 4
      %v5308 = vrot.slane %v5264, 7
      %v5309 = vrot.slane %v5308, 4
      %v5310 = vrot.slane %v5265, 7
      %v5311 = vrot.slane %v5310, 4
      %v5312 = vrot.slane %v5266, 7
      %v5313 = vrot.slane %v5312, 4
      %v5314 = vrot.slane %v5267, 7
      %v5315 = vrot.slane %v5314, 4
      %v5316 = vrot.slane %v5268, 7
      %v5317 = vrot.slane %v5316, 4
      %v5318 = vrot.slane %v5269, 7
      %v5319 = vrot.slane %v5318, 4
      %v5320 = vrot.slane %v5270, 7
      %v5321 = vrot.slane %v5320, 4
      %v5322 = vrot.slane %v5271, 7
      %v5323 = vrot.slane %v5322, 4
      %v5324 = vrot.slane %v5272, 7
      %v5325 = vrot.slane %v5324, 4
      %v5326 = vrot.slane %v5273, 7
      %v5327 = vrot.slane %v5326, 4
      %v5346 = vld [vmem:[#allocation2 + $0x8] sm:$0x1]
      %v5347 = vsel %vm568, %v5293, %v5346
      %5348 = vst [vmem:[#allocation2 + $0x8] sm:$0x1] %v5347
      %v5349 = vld [vmem:[#allocation2 + $0x14] sm:$0x1]
      %v5350 = vsel %vm568, %v5295, %v5349
      %5351 = vst [vmem:[#allocation2 + $0x14] sm:$0x1] %v5350
      %v5352 = vld [vmem:[#allocation2 + $0x20] sm:$0x1]
      %v5353 = vsel %vm568, %v5297, %v5352
      %5354 = vst [vmem:[#allocation2 + $0x20] sm:$0x1] %v5353
      %v5355 = vld [vmem:[#allocation2 + $0x2c] sm:$0x1]
      %v5356 = vsel %vm568, %v5299, %v5355
      %5357 = vst [vmem:[#allocation2 + $0x2c] sm:$0x1] %v5356
      %v5358 = vld [vmem:[#allocation2 + $0x38] sm:$0x1]
      %v5359 = vsel %vm568, %v5301, %v5358
      %5360 = vst [vmem:[#allocation2 + $0x38] sm:$0x1] %v5359
      %v5361 = vld [vmem:[#allocation2 + $0x44] sm:$0x1]
      %v5362 = vsel %vm568, %v5303, %v5361
      %5363 = vst [vmem:[#allocation2 + $0x44] sm:$0x1] %v5362
      %v5364 = vld [vmem:[#allocation2 + $0x50] sm:$0x1]
      %v5365 = vsel %vm568, %v5305, %v5364
      %5366 = vst [vmem:[#allocation2 + $0x50] sm:$0x1] %v5365
      %v5367 = vld [vmem:[#allocation2 + $0x5c] sm:$0x1]
      %v5368 = vsel %vm568, %v5307, %v5367
      %5369 = vst [vmem:[#allocation2 + $0x5c] sm:$0x1] %v5368
      %v5370 = vld [vmem:[#allocation2 + $0x68] sm:$0x1]
      %v5371 = vsel %vm568, %v5309, %v5370
      %5372 = vst [vmem:[#allocation2 + $0x68] sm:$0x1] %v5371
      %v5373 = vld [vmem:[#allocation2 + $0x74] sm:$0x1]
      %v5374 = vsel %vm568, %v5311, %v5373
      %5375 = vst [vmem:[#allocation2 + $0x74] sm:$0x1] %v5374
      %v5376 = vld [vmem:[#allocation2 + $0x80] sm:$0x1]
      %v5377 = vsel %vm568, %v5313, %v5376
      %5378 = vst [vmem:[#allocation2 + $0x80] sm:$0x1] %v5377
      %v5379 = vld [vmem:[#allocation2 + $0x8c] sm:$0x1]
      %v5380 = vsel %vm568, %v5315, %v5379
      %5381 = vst [vmem:[#allocation2 + $0x8c] sm:$0x1] %v5380
      %v5382 = vld [vmem:[#allocation2 + $0x98] sm:$0x1]
      %v5383 = vsel %vm568, %v5317, %v5382
      %5384 = vst [vmem:[#allocation2 + $0x98] sm:$0x1] %v5383
      %v5385 = vld [vmem:[#allocation2 + $0xa4] sm:$0x1]
      %v5386 = vsel %vm568, %v5319, %v5385
      %5387 = vst [vmem:[#allocation2 + $0xa4] sm:$0x1] %v5386
      %v5388 = vld [vmem:[#allocation2 + $0xb0] sm:$0x1]
      %v5389 = vsel %vm568, %v5321, %v5388
      %5390 = vst [vmem:[#allocation2 + $0xb0] sm:$0x1] %v5389
      %v5391 = vld [vmem:[#allocation2 + $0xbc] sm:$0x1]
      %v5392 = vsel %vm568, %v5323, %v5391
      %5393 = vst [vmem:[#allocation2 + $0xbc] sm:$0x1] %v5392
      %v5394 = vld [vmem:[#allocation2 + $0xc8] sm:$0x1]
      %v5395 = vsel %vm568, %v5325, %v5394
      %5396 = vst [vmem:[#allocation2 + $0xc8] sm:$0x1] %v5395
      %v5397 = vld [vmem:[#allocation2 + $0xd4] sm:$0x1]
      %v5398 = vsel %vm568, %v5327, %v5397
      %5399 = vst [vmem:[#allocation2 + $0xd4] sm:$0x1] %v5398
      %v5400 = vld [vmem:[#allocation2] sm:$0xf]
      %v5401 = vld [vmem:[#allocation2 + $0x4] sm:$0xf]
      %v5402 = vld [vmem:[#allocation2 + $0xc] sm:$0xf]
      %v5403 = vld [vmem:[#allocation2 + $0x10] sm:$0xf]
      %v5404 = vld [vmem:[#allocation2 + $0x18] sm:$0xf]
      %v5405 = vld [vmem:[#allocation2 + $0x1c] sm:$0xf]
      %v5406 = vld [vmem:[#allocation2 + $0x24] sm:$0xf]
      %v5407 = vld [vmem:[#allocation2 + $0x28] sm:$0xf]
      %v5408 = vld [vmem:[#allocation2 + $0x30] sm:$0xf]
      %v5409 = vld [vmem:[#allocation2 + $0x34] sm:$0xf]
      %v5410 = vld [vmem:[#allocation2 + $0x3c] sm:$0xf]
      %v5411 = vld [vmem:[#allocation2 + $0x40] sm:$0xf]
      %v5412 = vld [vmem:[#allocation2 + $0x48] sm:$0xf]
      %v5413 = vld [vmem:[#allocation2 + $0x4c] sm:$0xf]
      %v5414 = vld [vmem:[#allocation2 + $0x54] sm:$0xf]
      %v5415 = vld [vmem:[#allocation2 + $0x58] sm:$0xf]
      %v5416 = vld [vmem:[#allocation2 + $0x60] sm:$0xf]
      %v5417 = vld [vmem:[#allocation2 + $0x64] sm:$0xf]
      %v5418 = vld [vmem:[#allocation2 + $0x6c] sm:$0xf]
      %v5419 = vld [vmem:[#allocation2 + $0x70] sm:$0xf]
      %v5420 = vld [vmem:[#allocation2 + $0x78] sm:$0xf]
      %v5421 = vld [vmem:[#allocation2 + $0x7c] sm:$0xf]
      %v5422 = vld [vmem:[#allocation2 + $0x84] sm:$0xf]
      %v5423 = vld [vmem:[#allocation2 + $0x88] sm:$0xf]
      %v5424 = vld [vmem:[#allocation2 + $0x90] sm:$0xf]
      %v5425 = vld [vmem:[#allocation2 + $0x94] sm:$0xf]
      %v5426 = vld [vmem:[#allocation2 + $0x9c] sm:$0xf]
      %v5427 = vld [vmem:[#allocation2 + $0xa0] sm:$0xf]
      %v5428 = vld [vmem:[#allocation2 + $0xa8] sm:$0xf]
      %v5429 = vld [vmem:[#allocation2 + $0xac] sm:$0xf]
      %v5430 = vld [vmem:[#allocation2 + $0xb4] sm:$0xf]
      %v5431 = vld [vmem:[#allocation2 + $0xb8] sm:$0xf]
      %v5432 = vld [vmem:[%s2] sm:$0x3]
      %v5433 = vld [vmem:[#allocation2 + $0x8] sm:$0x1]
      %v5434 = vld [vmem:[#allocation2 + $0x14] sm:$0x1]
      %v5435 = vld [vmem:[#allocation2 + $0x20] sm:$0x1]
      %v5436 = vld [vmem:[#allocation2 + $0x2c] sm:$0x1]
      %v5437 = vld [vmem:[#allocation2 + $0x38] sm:$0x1]
      %v5438 = vld [vmem:[#allocation2 + $0x44] sm:$0x1]
      %v5439 = vld [vmem:[#allocation2 + $0x50] sm:$0x1]
      %v5440 = vld [vmem:[#allocation2 + $0x5c] sm:$0x1]
      %v5441 = vld [vmem:[#allocation2 + $0x68] sm:$0x1]
      %v5442 = vld [vmem:[#allocation2 + $0x74] sm:$0x1]
      %v5443 = vld [vmem:[#allocation2 + $0x80] sm:$0x1]
      %v5444 = vld [vmem:[#allocation2 + $0x8c] sm:$0x1]
      %v5445 = vld [vmem:[#allocation2 + $0x98] sm:$0x1]
      %v5446 = vld [vmem:[#allocation2 + $0xa4] sm:$0x1]
      %v5447 = vld [vmem:[#allocation2 + $0xb0] sm:$0x1]
      %v5448 = vld [vmem:[#allocation2 + $0xbc] sm:$0x1]
      %vm5449 = vsmask.f32 3328
      %vm5450 = vsmask.f32 7440
      %vm5451 = vmor %vm5449, %vm5450
      %v5453 = vshrl.u32 %v5400, 16
      %v5455 = vrot.slane %v5453, 4
      %v5456 = vshll.u32 %v5400, 16
      %v5458 = vrot.slane %v5456, 5
      %v5459 = vor.u32 %v5455, %v5458
      %v5460 = vrot.slane %v5459, 4
      %v5462 = vshll.u32 %v5401, 16
      %v5464 = vrot.slane %v5462, 5
      %v5465 = vsel %vm5451, %v5460, %v5464
      %v5466 = vshrl.u32 %v5401, 16
      %v5468 = vrot.slane %v5466, 4
      %v5469 = vor.u32 %v5468, %v5464
      %v5470 = vrot.slane %v5469, 4
      %v5472 = vshll.u32 %v5433, 16
      %v5474 = vrot.slane %v5472, 5
      %v5475 = vsel %vm5451, %v5470, %v5474
      %v5477 = vshrl.u32 %v5402, 16
      %v5479 = vrot.slane %v5477, 4
      %v5480 = vshll.u32 %v5402, 16
      %v5482 = vrot.slane %v5480, 5
      %v5483 = vor.u32 %v5479, %v5482
      %v5484 = vrot.slane %v5483, 4
      %v5486 = vshll.u32 %v5403, 16
      %v5488 = vrot.slane %v5486, 5
      %v5489 = vsel %vm5451, %v5484, %v5488
      %v5490 = vshrl.u32 %v5403, 16
      %v5492 = vrot.slane %v5490, 4
      %v5493 = vor.u32 %v5492, %v5488
      %v5494 = vrot.slane %v5493, 4
      %v5496 = vshll.u32 %v5434, 16
      %v5498 = vrot.slane %v5496, 5
      %v5499 = vsel %vm5451, %v5494, %v5498
      %v5501 = vshrl.u32 %v5404, 16
      %v5503 = vrot.slane %v5501, 4
      %v5504 = vshll.u32 %v5404, 16
      %v5506 = vrot.slane %v5504, 5
      %v5507 = vor.u32 %v5503, %v5506
      %v5508 = vrot.slane %v5507, 4
      %v5510 = vshll.u32 %v5405, 16
      %v5512 = vrot.slane %v5510, 5
      %v5513 = vsel %vm5451, %v5508, %v5512
      %v5514 = vshrl.u32 %v5405, 16
      %v5516 = vrot.slane %v5514, 4
      %v5517 = vor.u32 %v5516, %v5512
      %v5518 = vrot.slane %v5517, 4
      %v5520 = vshll.u32 %v5435, 16
      %v5522 = vrot.slane %v5520, 5
      %v5523 = vsel %vm5451, %v5518, %v5522
      %v5525 = vshrl.u32 %v5406, 16
      %v5527 = vrot.slane %v5525, 4
      %v5528 = vshll.u32 %v5406, 16
      %v5530 = vrot.slane %v5528, 5
      %v5531 = vor.u32 %v5527, %v5530
      %v5532 = vrot.slane %v5531, 4
      %v5534 = vshll.u32 %v5407, 16
      %v5536 = vrot.slane %v5534, 5
      %v5537 = vsel %vm5451, %v5532, %v5536
      %v5538 = vshrl.u32 %v5407, 16
      %v5540 = vrot.slane %v5538, 4
      %v5541 = vor.u32 %v5540, %v5536
      %v5542 = vrot.slane %v5541, 4
      %v5544 = vshll.u32 %v5436, 16
      %v5546 = vrot.slane %v5544, 5
      %v5547 = vsel %vm5451, %v5542, %v5546
      %v5549 = vshrl.u32 %v5408, 16
      %v5551 = vrot.slane %v5549, 4
      %v5552 = vshll.u32 %v5408, 16
      %v5554 = vrot.slane %v5552, 5
      %v5555 = vor.u32 %v5551, %v5554
      %v5556 = vrot.slane %v5555, 4
      %v5558 = vshll.u32 %v5409, 16
      %v5560 = vrot.slane %v5558, 5
      %v5561 = vsel %vm5451, %v5556, %v5560
      %v5562 = vshrl.u32 %v5409, 16
      %v5564 = vrot.slane %v5562, 4
      %v5565 = vor.u32 %v5564, %v5560
      %v5566 = vrot.slane %v5565, 4
      %v5568 = vshll.u32 %v5437, 16
      %v5570 = vrot.slane %v5568, 5
      %v5571 = vsel %vm5451, %v5566, %v5570
      %v5573 = vshrl.u32 %v5410, 16
      %v5575 = vrot.slane %v5573, 4
      %v5576 = vshll.u32 %v5410, 16
      %v5578 = vrot.slane %v5576, 5
      %v5579 = vor.u32 %v5575, %v5578
      %v5580 = vrot.slane %v5579, 4
      %v5582 = vshll.u32 %v5411, 16
      %v5584 = vrot.slane %v5582, 5
      %v5585 = vsel %vm5451, %v5580, %v5584
      %v5586 = vshrl.u32 %v5411, 16
      %v5588 = vrot.slane %v5586, 4
      %v5589 = vor.u32 %v5588, %v5584
      %v5590 = vrot.slane %v5589, 4
      %v5592 = vshll.u32 %v5438, 16
      %v5594 = vrot.slane %v5592, 5
      %v5595 = vsel %vm5451, %v5590, %v5594
      %v5597 = vshrl.u32 %v5412, 16
      %v5599 = vrot.slane %v5597, 4
      %v5600 = vshll.u32 %v5412, 16
      %v5602 = vrot.slane %v5600, 5
      %v5603 = vor.u32 %v5599, %v5602
      %v5604 = vrot.slane %v5603, 4
      %v5606 = vshll.u32 %v5413, 16
      %v5608 = vrot.slane %v5606, 5
      %v5609 = vsel %vm5451, %v5604, %v5608
      %v5610 = vshrl.u32 %v5413, 16
      %v5612 = vrot.slane %v5610, 4
      %v5613 = vor.u32 %v5612, %v5608
      %v5614 = vrot.slane %v5613, 4
      %v5616 = vshll.u32 %v5439, 16
      %v5618 = vrot.slane %v5616, 5
      %v5619 = vsel %vm5451, %v5614, %v5618
      %v5621 = vshrl.u32 %v5414, 16
      %v5623 = vrot.slane %v5621, 4
      %v5624 = vshll.u32 %v5414, 16
      %v5626 = vrot.slane %v5624, 5
      %v5627 = vor.u32 %v5623, %v5626
      %v5628 = vrot.slane %v5627, 4
      %v5630 = vshll.u32 %v5415, 16
      %v5632 = vrot.slane %v5630, 5
      %v5633 = vsel %vm5451, %v5628, %v5632
      %v5634 = vshrl.u32 %v5415, 16
      %v5636 = vrot.slane %v5634, 4
      %v5637 = vor.u32 %v5636, %v5632
      %v5638 = vrot.slane %v5637, 4
      %v5640 = vshll.u32 %v5440, 16
      %v5642 = vrot.slane %v5640, 5
      %v5643 = vsel %vm5451, %v5638, %v5642
      %v5645 = vshrl.u32 %v5416, 16
      %v5647 = vrot.slane %v5645, 4
      %v5648 = vshll.u32 %v5416, 16
      %v5650 = vrot.slane %v5648, 5
      %v5651 = vor.u32 %v5647, %v5650
      %v5652 = vrot.slane %v5651, 4
      %v5654 = vshll.u32 %v5417, 16
      %v5656 = vrot.slane %v5654, 5
      %v5657 = vsel %vm5451, %v5652, %v5656
      %v5658 = vshrl.u32 %v5417, 16
      %v5660 = vrot.slane %v5658, 4
      %v5661 = vor.u32 %v5660, %v5656
      %v5662 = vrot.slane %v5661, 4
      %v5664 = vshll.u32 %v5441, 16
      %v5666 = vrot.slane %v5664, 5
      %v5667 = vsel %vm5451, %v5662, %v5666
      %v5669 = vshrl.u32 %v5418, 16
      %v5671 = vrot.slane %v5669, 4
      %v5672 = vshll.u32 %v5418, 16
      %v5674 = vrot.slane %v5672, 5
      %v5675 = vor.u32 %v5671, %v5674
      %v5676 = vrot.slane %v5675, 4
      %v5678 = vshll.u32 %v5419, 16
      %v5680 = vrot.slane %v5678, 5
      %v5681 = vsel %vm5451, %v5676, %v5680
      %v5682 = vshrl.u32 %v5419, 16
      %v5684 = vrot.slane %v5682, 4
      %v5685 = vor.u32 %v5684, %v5680
      %v5686 = vrot.slane %v5685, 4
      %v5688 = vshll.u32 %v5442, 16
      %v5690 = vrot.slane %v5688, 5
      %v5691 = vsel %vm5451, %v5686, %v5690
      %v5693 = vshrl.u32 %v5420, 16
      %v5695 = vrot.slane %v5693, 4
      %v5696 = vshll.u32 %v5420, 16
      %v5698 = vrot.slane %v5696, 5
      %v5699 = vor.u32 %v5695, %v5698
      %v5700 = vrot.slane %v5699, 4
      %v5702 = vshll.u32 %v5421, 16
      %v5704 = vrot.slane %v5702, 5
      %v5705 = vsel %vm5451, %v5700, %v5704
      %v5706 = vshrl.u32 %v5421, 16
      %v5708 = vrot.slane %v5706, 4
      %v5709 = vor.u32 %v5708, %v5704
      %v5710 = vrot.slane %v5709, 4
      %v5712 = vshll.u32 %v5443, 16
      %v5714 = vrot.slane %v5712, 5
      %v5715 = vsel %vm5451, %v5710, %v5714
      %v5717 = vshrl.u32 %v5422, 16
      %v5719 = vrot.slane %v5717, 4
      %v5720 = vshll.u32 %v5422, 16
      %v5722 = vrot.slane %v5720, 5
      %v5723 = vor.u32 %v5719, %v5722
      %v5724 = vrot.slane %v5723, 4
      %v5726 = vshll.u32 %v5423, 16
      %v5728 = vrot.slane %v5726, 5
      %v5729 = vsel %vm5451, %v5724, %v5728
      %v5730 = vshrl.u32 %v5423, 16
      %v5732 = vrot.slane %v5730, 4
      %v5733 = vor.u32 %v5732, %v5728
      %v5734 = vrot.slane %v5733, 4
      %v5736 = vshll.u32 %v5444, 16
      %v5738 = vrot.slane %v5736, 5
      %v5739 = vsel %vm5451, %v5734, %v5738
      %v5741 = vshrl.u32 %v5424, 16
      %v5743 = vrot.slane %v5741, 4
      %v5744 = vshll.u32 %v5424, 16
      %v5746 = vrot.slane %v5744, 5
      %v5747 = vor.u32 %v5743, %v5746
      %v5748 = vrot.slane %v5747, 4
      %v5750 = vshll.u32 %v5425, 16
      %v5752 = vrot.slane %v5750, 5
      %v5753 = vsel %vm5451, %v5748, %v5752
      %v5754 = vshrl.u32 %v5425, 16
      %v5756 = vrot.slane %v5754, 4
      %v5757 = vor.u32 %v5756, %v5752
      %v5758 = vrot.slane %v5757, 4
      %v5760 = vshll.u32 %v5445, 16
      %v5762 = vrot.slane %v5760, 5
      %v5763 = vsel %vm5451, %v5758, %v5762
      %v5765 = vshrl.u32 %v5426, 16
      %v5767 = vrot.slane %v5765, 4
      %v5768 = vshll.u32 %v5426, 16
      %v5770 = vrot.slane %v5768, 5
      %v5771 = vor.u32 %v5767, %v5770
      %v5772 = vrot.slane %v5771, 4
      %v5774 = vshll.u32 %v5427, 16
      %v5776 = vrot.slane %v5774, 5
      %v5777 = vsel %vm5451, %v5772, %v5776
      %v5778 = vshrl.u32 %v5427, 16
      %v5780 = vrot.slane %v5778, 4
      %v5781 = vor.u32 %v5780, %v5776
      %v5782 = vrot.slane %v5781, 4
      %v5784 = vshll.u32 %v5446, 16
      %v5786 = vrot.slane %v5784, 5
      %v5787 = vsel %vm5451, %v5782, %v5786
      %v5789 = vshrl.u32 %v5428, 16
      %v5791 = vrot.slane %v5789, 4
      %v5792 = vshll.u32 %v5428, 16
      %v5794 = vrot.slane %v5792, 5
      %v5795 = vor.u32 %v5791, %v5794
      %v5796 = vrot.slane %v5795, 4
      %v5798 = vshll.u32 %v5429, 16
      %v5800 = vrot.slane %v5798, 5
      %v5801 = vsel %vm5451, %v5796, %v5800
      %v5802 = vshrl.u32 %v5429, 16
      %v5804 = vrot.slane %v5802, 4
      %v5805 = vor.u32 %v5804, %v5800
      %v5806 = vrot.slane %v5805, 4
      %v5808 = vshll.u32 %v5447, 16
      %v5810 = vrot.slane %v5808, 5
      %v5811 = vsel %vm5451, %v5806, %v5810
      %v5813 = vshrl.u32 %v5430, 16
      %v5815 = vrot.slane %v5813, 4
      %v5816 = vshll.u32 %v5430, 16
      %v5818 = vrot.slane %v5816, 5
      %v5819 = vor.u32 %v5815, %v5818
      %v5820 = vrot.slane %v5819, 4
      %v5822 = vshll.u32 %v5431, 16
      %v5824 = vrot.slane %v5822, 5
      %v5825 = vsel %vm5451, %v5820, %v5824
      %v5826 = vshrl.u32 %v5431, 16
      %v5828 = vrot.slane %v5826, 4
      %v5829 = vor.u32 %v5828, %v5824
      %v5830 = vrot.slane %v5829, 4
      %v5832 = vshll.u32 %v5448, 16
      %v5834 = vrot.slane %v5832, 5
      %v5835 = vsel %vm5451, %v5830, %v5834
      %s5836 = scalar_lea.vmem %s2, 2
      %v5837 = vld [vmem:[%s5836] sm:$0x3]
      %v5838 = vunpack.c.l.b16 %v5465
      %v5839 = vunpack.c.l.b16 %v5475
      %v5840 = vunpack.c.l.b16 %v5489
      %v5841 = vunpack.c.l.b16 %v5499
      %v5842 = vunpack.c.l.b16 %v5513
      %v5843 = vunpack.c.l.b16 %v5523
      %v5844 = vunpack.c.l.b16 %v5537
      %v5845 = vunpack.c.l.b16 %v5547
      %v5846 = vunpack.c.l.b16 %v5561
      %v5847 = vunpack.c.l.b16 %v5571
      %v5848 = vunpack.c.l.b16 %v5585
      %v5849 = vunpack.c.l.b16 %v5595
      %v5850 = vunpack.c.l.b16 %v5609
      %v5851 = vunpack.c.l.b16 %v5619
      %v5852 = vunpack.c.l.b16 %v5633
      %v5853 = vunpack.c.l.b16 %v5643
      %v5854 = vunpack.c.l.b16 %v5657
      %v5855 = vunpack.c.l.b16 %v5667
      %v5856 = vunpack.c.l.b16 %v5681
      %v5857 = vunpack.c.l.b16 %v5691
      %v5858 = vunpack.c.l.b16 %v5705
      %v5859 = vunpack.c.l.b16 %v5715
      %v5860 = vunpack.c.l.b16 %v5729
      %v5861 = vunpack.c.l.b16 %v5739
      %v5862 = vunpack.c.l.b16 %v5753
      %v5863 = vunpack.c.l.b16 %v5763
      %v5864 = vunpack.c.l.b16 %v5777
      %v5865 = vunpack.c.l.b16 %v5787
      %v5866 = vunpack.c.l.b16 %v5801
      %v5867 = vunpack.c.l.b16 %v5811
      %v5868 = vunpack.c.l.b16 %v5825
      %v5869 = vunpack.c.l.b16 %v5835
      %v5870 = vpack.c.b16 %v5839, %v5838
      %v5871 = vpack.c.b16 %v5841, %v5840
      %v5872 = vpack.c.b16 %v5843, %v5842
      %v5873 = vpack.c.b16 %v5845, %v5844
      %v5874 = vpack.c.b16 %v5847, %v5846
      %v5875 = vpack.c.b16 %v5849, %v5848
      %v5876 = vpack.c.b16 %v5851, %v5850
      %v5877 = vpack.c.b16 %v5853, %v5852
      %v5878 = vpack.c.b16 %v5855, %v5854
      %v5879 = vpack.c.b16 %v5857, %v5856
      %v5880 = vpack.c.b16 %v5859, %v5858
      %v5881 = vpack.c.b16 %v5861, %v5860
      %v5882 = vpack.c.b16 %v5863, %v5862
      %v5883 = vpack.c.b16 %v5865, %v5864
      %v5884 = vpack.c.b16 %v5867, %v5866
      %v5885 = vpack.c.b16 %v5869, %v5868
      %v5887 = vsel %vm1374, %v5870, 0
      %v5890 = vsel %vm1374, %v5871, 0
      %v5893 = vsel %vm1374, %v5872, 0
      %v5896 = vsel %vm1374, %v5873, 0
      %v5899 = vsel %vm1374, %v5874, 0
      %v5902 = vsel %vm1374, %v5875, 0
      %v5905 = vsel %vm1374, %v5876, 0
      %v5908 = vsel %vm1374, %v5877, 0
      %v5911 = vsel %vm1374, %v5878, 0
      %v5914 = vsel %vm1374, %v5879, 0
      %v5917 = vsel %vm1374, %v5880, 0
      %v5920 = vsel %vm1374, %v5881, 0
      %v5923 = vsel %vm1374, %v5882, 0
      %v5926 = vsel %vm1374, %v5883, 0
      %v5929 = vsel %vm1374, %v5884, 0
      %v5932 = vsel %vm1374, %v5885, 0
      %v5935 = vsel %vm1423, %v5837, 0
      %5937 = vmatpush.bf16.msra.mxu0 0
      %5938 = vmatpush.bf16.msra.mxu0 0
      %5939 = vmatpush.bf16.msra.mxu0 0
      %5940 = vmatpush.bf16.msra.mxu0 0
      %5941 = vmatpush.bf16.msra.mxu0 0
      %5942 = vmatpush.bf16.msra.mxu0 0
      %5943 = vmatpush.bf16.msra.mxu0 0
      %5944 = vmatpush.bf16.msra.mxu0 %v5935
      %5945 = vmatmul.bf16.gmra.mxu0 %v5887
      %v5946 = vpop.f32.mrf.mxu0
      %v5947 = vadd.f32 0.0, %v5946
      %v5948 = vpop.f32.mrf.mxu0
      %v5949 = vadd.f32 0.0, %v5948
      %5950 = vmatmul.bf16.gmra.mxu0 %v5890
      %v5951 = vpop.f32.mrf.mxu0
      %v5952 = vadd.f32 0.0, %v5951
      %v5953 = vpop.f32.mrf.mxu0
      %v5954 = vadd.f32 0.0, %v5953
      %5955 = vmatmul.bf16.gmra.mxu0 %v5893
      %v5956 = vpop.f32.mrf.mxu0
      %v5957 = vadd.f32 0.0, %v5956
      %v5958 = vpop.f32.mrf.mxu0
      %v5959 = vadd.f32 0.0, %v5958
      %5960 = vmatmul.bf16.gmra.mxu0 %v5896
      %v5961 = vpop.f32.mrf.mxu0
      %v5962 = vadd.f32 0.0, %v5961
      %v5963 = vpop.f32.mrf.mxu0
      %v5964 = vadd.f32 0.0, %v5963
      %5965 = vmatmul.bf16.gmra.mxu0 %v5899
      %v5966 = vpop.f32.mrf.mxu0
      %v5967 = vadd.f32 0.0, %v5966
      %v5968 = vpop.f32.mrf.mxu0
      %v5969 = vadd.f32 0.0, %v5968
      %5970 = vmatmul.bf16.gmra.mxu0 %v5902
      %v5971 = vpop.f32.mrf.mxu0
      %v5972 = vadd.f32 0.0, %v5971
      %v5973 = vpop.f32.mrf.mxu0
      %v5974 = vadd.f32 0.0, %v5973
      %5975 = vmatmul.bf16.gmra.mxu0 %v5905
      %v5976 = vpop.f32.mrf.mxu0
      %v5977 = vadd.f32 0.0, %v5976
      %v5978 = vpop.f32.mrf.mxu0
      %v5979 = vadd.f32 0.0, %v5978
      %5980 = vmatmul.bf16.gmra.mxu0 %v5908
      %v5981 = vpop.f32.mrf.mxu0
      %v5982 = vadd.f32 0.0, %v5981
      %v5983 = vpop.f32.mrf.mxu0
      %v5984 = vadd.f32 0.0, %v5983
      %5985 = vmatmul.bf16.gmra.mxu0 %v5911
      %v5986 = vpop.f32.mrf.mxu0
      %v5987 = vadd.f32 0.0, %v5986
      %v5988 = vpop.f32.mrf.mxu0
      %v5989 = vadd.f32 0.0, %v5988
      %5990 = vmatmul.bf16.gmra.mxu0 %v5914
      %v5991 = vpop.f32.mrf.mxu0
      %v5992 = vadd.f32 0.0, %v5991
      %v5993 = vpop.f32.mrf.mxu0
      %v5994 = vadd.f32 0.0, %v5993
      %5995 = vmatmul.bf16.gmra.mxu0 %v5917
      %v5996 = vpop.f32.mrf.mxu0
      %v5997 = vadd.f32 0.0, %v5996
      %v5998 = vpop.f32.mrf.mxu0
      %v5999 = vadd.f32 0.0, %v5998
      %6000 = vmatmul.bf16.gmra.mxu0 %v5920
      %v6001 = vpop.f32.mrf.mxu0
      %v6002 = vadd.f32 0.0, %v6001
      %v6003 = vpop.f32.mrf.mxu0
      %v6004 = vadd.f32 0.0, %v6003
      %6005 = vmatmul.bf16.gmra.mxu0 %v5923
      %v6006 = vpop.f32.mrf.mxu0
      %v6007 = vadd.f32 0.0, %v6006
      %v6008 = vpop.f32.mrf.mxu0
      %v6009 = vadd.f32 0.0, %v6008
      %6010 = vmatmul.bf16.gmra.mxu0 %v5926
      %v6011 = vpop.f32.mrf.mxu0
      %v6012 = vadd.f32 0.0, %v6011
      %v6013 = vpop.f32.mrf.mxu0
      %v6014 = vadd.f32 0.0, %v6013
      %6015 = vmatmul.bf16.gmra.mxu0 %v5929
      %v6016 = vpop.f32.mrf.mxu0
      %v6017 = vadd.f32 0.0, %v6016
      %v6018 = vpop.f32.mrf.mxu0
      %v6019 = vadd.f32 0.0, %v6018
      %6020 = vmatmul.bf16.gmra.mxu0 %v5932
      %v6021 = vpop.f32.mrf.mxu0
      %v6022 = vadd.f32 0.0, %v6021
      %v6023 = vpop.f32.mrf.mxu0
      %v6024 = vadd.f32 0.0, %v6023
      %6025 = vdwg.mxu0
      %v6058 = vunpack.c.l.b16 %v5400
      %v6059 = vunpack.c.l.b16 %v5401
      %v6060 = vunpack.c.l.b16 %v5402
      %v6061 = vunpack.c.l.b16 %v5403
      %v6062 = vunpack.c.l.b16 %v5404
      %v6063 = vunpack.c.l.b16 %v5405
      %v6064 = vunpack.c.l.b16 %v5406
      %v6065 = vunpack.c.l.b16 %v5407
      %v6066 = vunpack.c.l.b16 %v5408
      %v6067 = vunpack.c.l.b16 %v5409
      %v6068 = vunpack.c.l.b16 %v5410
      %v6069 = vunpack.c.l.b16 %v5411
      %v6070 = vunpack.c.l.b16 %v5412
      %v6071 = vunpack.c.l.b16 %v5413
      %v6072 = vunpack.c.l.b16 %v5414
      %v6073 = vunpack.c.l.b16 %v5415
      %v6074 = vunpack.c.l.b16 %v5416
      %v6075 = vunpack.c.l.b16 %v5417
      %v6076 = vunpack.c.l.b16 %v5418
      %v6077 = vunpack.c.l.b16 %v5419
      %v6078 = vunpack.c.l.b16 %v5420
      %v6079 = vunpack.c.l.b16 %v5421
      %v6080 = vunpack.c.l.b16 %v5422
      %v6081 = vunpack.c.l.b16 %v5423
      %v6082 = vunpack.c.l.b16 %v5424
      %v6083 = vunpack.c.l.b16 %v5425
      %v6084 = vunpack.c.l.b16 %v5426
      %v6085 = vunpack.c.l.b16 %v5427
      %v6086 = vunpack.c.l.b16 %v5428
      %v6087 = vunpack.c.l.b16 %v5429
      %v6088 = vunpack.c.l.b16 %v5430
      %v6089 = vunpack.c.l.b16 %v5431
      %v6090 = vpack.c.b16 %v6059, %v6058
      %v6091 = vpack.c.b16 %v6061, %v6060
      %v6092 = vpack.c.b16 %v6063, %v6062
      %v6093 = vpack.c.b16 %v6065, %v6064
      %v6094 = vpack.c.b16 %v6067, %v6066
      %v6095 = vpack.c.b16 %v6069, %v6068
      %v6096 = vpack.c.b16 %v6071, %v6070
      %v6097 = vpack.c.b16 %v6073, %v6072
      %v6098 = vpack.c.b16 %v6075, %v6074
      %v6099 = vpack.c.b16 %v6077, %v6076
      %v6100 = vpack.c.b16 %v6079, %v6078
      %v6101 = vpack.c.b16 %v6081, %v6080
      %v6102 = vpack.c.b16 %v6083, %v6082
      %v6103 = vpack.c.b16 %v6085, %v6084
      %v6104 = vpack.c.b16 %v6087, %v6086
      %v6105 = vpack.c.b16 %v6089, %v6088
      %v6107 = vsel %vm1374, %v6090, 0
      %v6110 = vsel %vm1374, %v6091, 0
      %v6113 = vsel %vm1374, %v6092, 0
      %v6116 = vsel %vm1374, %v6093, 0
      %v6119 = vsel %vm1374, %v6094, 0
      %v6122 = vsel %vm1374, %v6095, 0
      %v6125 = vsel %vm1374, %v6096, 0
      %v6128 = vsel %vm1374, %v6097, 0
      %v6131 = vsel %vm1374, %v6098, 0
      %v6134 = vsel %vm1374, %v6099, 0
      %v6137 = vsel %vm1374, %v6100, 0
      %v6140 = vsel %vm1374, %v6101, 0
      %v6143 = vsel %vm1374, %v6102, 0
      %v6146 = vsel %vm1374, %v6103, 0
      %v6149 = vsel %vm1374, %v6104, 0
      %v6152 = vsel %vm1374, %v6105, 0
      %v6155 = vsel %vm1423, %v5432, 0
      %6157 = vmatpush.bf16.msra.mxu0 0
      %6158 = vmatpush.bf16.msra.mxu0 0
      %6159 = vmatpush.bf16.msra.mxu0 0
      %6160 = vmatpush.bf16.msra.mxu0 0
      %6161 = vmatpush.bf16.msra.mxu0 0
      %6162 = vmatpush.bf16.msra.mxu0 0
      %6163 = vmatpush.bf16.msra.mxu0 0
      %6164 = vmatpush.bf16.msra.mxu0 %v6155
      %6165 = vmatmul.bf16.gmra.mxu0 %v6107
      %v6166 = vpop.f32.mrf.mxu0
      %v6167 = vadd.f32 %v5947, %v6166
      %v6168 = vpop.f32.mrf.mxu0
      %v6169 = vadd.f32 %v5949, %v6168
      %6170 = vmatmul.bf16.gmra.mxu0 %v6110
      %v6171 = vpop.f32.mrf.mxu0
      %v6172 = vadd.f32 %v5952, %v6171
      %v6173 = vpop.f32.mrf.mxu0
      %v6174 = vadd.f32 %v5954, %v6173
      %6175 = vmatmul.bf16.gmra.mxu0 %v6113
      %v6176 = vpop.f32.mrf.mxu0
      %v6177 = vadd.f32 %v5957, %v6176
      %v6178 = vpop.f32.mrf.mxu0
      %v6179 = vadd.f32 %v5959, %v6178
      %6180 = vmatmul.bf16.gmra.mxu0 %v6116
      %v6181 = vpop.f32.mrf.mxu0
      %v6182 = vadd.f32 %v5962, %v6181
      %v6183 = vpop.f32.mrf.mxu0
      %v6184 = vadd.f32 %v5964, %v6183
      %6185 = vmatmul.bf16.gmra.mxu0 %v6119
      %v6186 = vpop.f32.mrf.mxu0
      %v6187 = vadd.f32 %v5967, %v6186
      %v6188 = vpop.f32.mrf.mxu0
      %v6189 = vadd.f32 %v5969, %v6188
      %6190 = vmatmul.bf16.gmra.mxu0 %v6122
      %v6191 = vpop.f32.mrf.mxu0
      %v6192 = vadd.f32 %v5972, %v6191
      %v6193 = vpop.f32.mrf.mxu0
      %v6194 = vadd.f32 %v5974, %v6193
      %6195 = vmatmul.bf16.gmra.mxu0 %v6125
      %v6196 = vpop.f32.mrf.mxu0
      %v6197 = vadd.f32 %v5977, %v6196
      %v6198 = vpop.f32.mrf.mxu0
      %v6199 = vadd.f32 %v5979, %v6198
      %6200 = vmatmul.bf16.gmra.mxu0 %v6128
      %v6201 = vpop.f32.mrf.mxu0
      %v6202 = vadd.f32 %v5982, %v6201
      %v6203 = vpop.f32.mrf.mxu0
      %v6204 = vadd.f32 %v5984, %v6203
      %6205 = vmatmul.bf16.gmra.mxu0 %v6131
      %v6206 = vpop.f32.mrf.mxu0
      %v6207 = vadd.f32 %v5987, %v6206
      %v6208 = vpop.f32.mrf.mxu0
      %v6209 = vadd.f32 %v5989, %v6208
      %6210 = vmatmul.bf16.gmra.mxu0 %v6134
      %v6211 = vpop.f32.mrf.mxu0
      %v6212 = vadd.f32 %v5992, %v6211
      %v6213 = vpop.f32.mrf.mxu0
      %v6214 = vadd.f32 %v5994, %v6213
      %6215 = vmatmul.bf16.gmra.mxu0 %v6137
      %v6216 = vpop.f32.mrf.mxu0
      %v6217 = vadd.f32 %v5997, %v6216
      %v6218 = vpop.f32.mrf.mxu0
      %v6219 = vadd.f32 %v5999, %v6218
      %6220 = vmatmul.bf16.gmra.mxu0 %v6140
      %v6221 = vpop.f32.mrf.mxu0
      %v6222 = vadd.f32 %v6002, %v6221
      %v6223 = vpop.f32.mrf.mxu0
      %v6224 = vadd.f32 %v6004, %v6223
      %6225 = vmatmul.bf16.gmra.mxu0 %v6143
      %v6226 = vpop.f32.mrf.mxu0
      %v6227 = vadd.f32 %v6007, %v6226
      %v6228 = vpop.f32.mrf.mxu0
      %v6229 = vadd.f32 %v6009, %v6228
      %6230 = vmatmul.bf16.gmra.mxu0 %v6146
      %v6231 = vpop.f32.mrf.mxu0
      %v6232 = vadd.f32 %v6012, %v6231
      %v6233 = vpop.f32.mrf.mxu0
      %v6234 = vadd.f32 %v6014, %v6233
      %6235 = vmatmul.bf16.gmra.mxu0 %v6149
      %v6236 = vpop.f32.mrf.mxu0
      %v6237 = vadd.f32 %v6017, %v6236
      %v6238 = vpop.f32.mrf.mxu0
      %v6239 = vadd.f32 %v6019, %v6238
      %6240 = vmatmul.bf16.gmra.mxu0 %v6152
      %v6241 = vpop.f32.mrf.mxu0
      %v6242 = vadd.f32 %v6022, %v6241
      %v6243 = vpop.f32.mrf.mxu0
      %v6244 = vadd.f32 %v6024, %v6243
      %6245 = vdwg.mxu0
      %v6246 = vld [vmem:[#allocation2] sm:$0xe]
      %v6247 = vld [vmem:[#allocation2 + $0xc] sm:$0xe]
      %v6248 = vld [vmem:[#allocation2 + $0x18] sm:$0xe]
      %v6249 = vld [vmem:[#allocation2 + $0x24] sm:$0xe]
      %v6250 = vld [vmem:[#allocation2 + $0x30] sm:$0xe]
      %v6251 = vld [vmem:[#allocation2 + $0x3c] sm:$0xe]
      %v6252 = vld [vmem:[#allocation2 + $0x48] sm:$0xe]
      %v6253 = vld [vmem:[#allocation2 + $0x54] sm:$0xe]
      %v6254 = vld [vmem:[#allocation2 + $0x60] sm:$0xe]
      %v6255 = vld [vmem:[#allocation2 + $0x6c] sm:$0xe]
      %v6256 = vld [vmem:[#allocation2 + $0x78] sm:$0xe]
      %v6257 = vld [vmem:[#allocation2 + $0x84] sm:$0xe]
      %v6258 = vld [vmem:[#allocation2 + $0x90] sm:$0xe]
      %v6259 = vld [vmem:[#allocation2 + $0x9c] sm:$0xe]
      %v6260 = vld [vmem:[#allocation2 + $0xa8] sm:$0xe]
      %v6261 = vld [vmem:[#allocation2 + $0xb4] sm:$0xe]
      %v6294 = vrot.slane %v6246, 5
      %v6295 = vrot.slane %v6294, 4
      %v6296 = vrot.slane %v5401, 5
      %v6297 = vsel %vm1211, %v6295, %v6296
      %v6298 = vrot.slane %v6296, 4
      %v6299 = vrot.slane %v5433, 5
      %v6300 = vsel %vm1211, %v6298, %v6299
      %v6301 = vrot.slane %v6247, 5
      %v6302 = vrot.slane %v6301, 4
      %v6303 = vrot.slane %v5403, 5
      %v6304 = vsel %vm1211, %v6302, %v6303
      %v6305 = vrot.slane %v6303, 4
      %v6306 = vrot.slane %v5434, 5
      %v6307 = vsel %vm1211, %v6305, %v6306
      %v6308 = vrot.slane %v6248, 5
      %v6309 = vrot.slane %v6308, 4
      %v6310 = vrot.slane %v5405, 5
      %v6311 = vsel %vm1211, %v6309, %v6310
      %v6312 = vrot.slane %v6310, 4
      %v6313 = vrot.slane %v5435, 5
      %v6314 = vsel %vm1211, %v6312, %v6313
      %v6315 = vrot.slane %v6249, 5
      %v6316 = vrot.slane %v6315, 4
      %v6317 = vrot.slane %v5407, 5
      %v6318 = vsel %vm1211, %v6316, %v6317
      %v6319 = vrot.slane %v6317, 4
      %v6320 = vrot.slane %v5436, 5
      %v6321 = vsel %vm1211, %v6319, %v6320
      %v6322 = vrot.slane %v6250, 5
      %v6323 = vrot.slane %v6322, 4
      %v6324 = vrot.slane %v5409, 5
      %v6325 = vsel %vm1211, %v6323, %v6324
      %v6326 = vrot.slane %v6324, 4
      %v6327 = vrot.slane %v5437, 5
      %v6328 = vsel %vm1211, %v6326, %v6327
      %v6329 = vrot.slane %v6251, 5
      %v6330 = vrot.slane %v6329, 4
      %v6331 = vrot.slane %v5411, 5
      %v6332 = vsel %vm1211, %v6330, %v6331
      %v6333 = vrot.slane %v6331, 4
      %v6334 = vrot.slane %v5438, 5
      %v6335 = vsel %vm1211, %v6333, %v6334
      %v6336 = vrot.slane %v6252, 5
      %v6337 = vrot.slane %v6336, 4
      %v6338 = vrot.slane %v5413, 5
      %v6339 = vsel %vm1211, %v6337, %v6338
      %v6340 = vrot.slane %v6338, 4
      %v6341 = vrot.slane %v5439, 5
      %v6342 = vsel %vm1211, %v6340, %v6341
      %v6343 = vrot.slane %v6253, 5
      %v6344 = vrot.slane %v6343, 4
      %v6345 = vrot.slane %v5415, 5
      %v6346 = vsel %vm1211, %v6344, %v6345
      %v6347 = vrot.slane %v6345, 4
      %v6348 = vrot.slane %v5440, 5
      %v6349 = vsel %vm1211, %v6347, %v6348
      %v6350 = vrot.slane %v6254, 5
      %v6351 = vrot.slane %v6350, 4
      %v6352 = vrot.slane %v5417, 5
      %v6353 = vsel %vm1211, %v6351, %v6352
      %v6354 = vrot.slane %v6352, 4
      %v6355 = vrot.slane %v5441, 5
      %v6356 = vsel %vm1211, %v6354, %v6355
      %v6357 = vrot.slane %v6255, 5
      %v6358 = vrot.slane %v6357, 4
      %v6359 = vrot.slane %v5419, 5
      %v6360 = vsel %vm1211, %v6358, %v6359
      %v6361 = vrot.slane %v6359, 4
      %v6362 = vrot.slane %v5442, 5
      %v6363 = vsel %vm1211, %v6361, %v6362
      %v6364 = vrot.slane %v6256, 5
      %v6365 = vrot.slane %v6364, 4
      %v6366 = vrot.slane %v5421, 5
      %v6367 = vsel %vm1211, %v6365, %v6366
      %v6368 = vrot.slane %v6366, 4
      %v6369 = vrot.slane %v5443, 5
      %v6370 = vsel %vm1211, %v6368, %v6369
      %v6371 = vrot.slane %v6257, 5
      %v6372 = vrot.slane %v6371, 4
      %v6373 = vrot.slane %v5423, 5
      %v6374 = vsel %vm1211, %v6372, %v6373
      %v6375 = vrot.slane %v6373, 4
      %v6376 = vrot.slane %v5444, 5
      %v6377 = vsel %vm1211, %v6375, %v6376
      %v6378 = vrot.slane %v6258, 5
      %v6379 = vrot.slane %v6378, 4
      %v6380 = vrot.slane %v5425, 5
      %v6381 = vsel %vm1211, %v6379, %v6380
      %v6382 = vrot.slane %v6380, 4
      %v6383 = vrot.slane %v5445, 5
      %v6384 = vsel %vm1211, %v6382, %v6383
      %v6385 = vrot.slane %v6259, 5
      %v6386 = vrot.slane %v6385, 4
      %v6387 = vrot.slane %v5427, 5
      %v6388 = vsel %vm1211, %v6386, %v6387
      %v6389 = vrot.slane %v6387, 4
      %v6390 = vrot.slane %v5446, 5
      %v6391 = vsel %vm1211, %v6389, %v6390
      %v6392 = vrot.slane %v6260, 5
      %v6393 = vrot.slane %v6392, 4
      %v6394 = vrot.slane %v5429, 5
      %v6395 = vsel %vm1211, %v6393, %v6394
      %v6396 = vrot.slane %v6394, 4
      %v6397 = vrot.slane %v5447, 5
      %v6398 = vsel %vm1211, %v6396, %v6397
      %v6399 = vrot.slane %v6261, 5
      %v6400 = vrot.slane %v6399, 4
      %v6401 = vrot.slane %v5431, 5
      %v6402 = vsel %vm1211, %v6400, %v6401
      %v6403 = vrot.slane %v6401, 4
      %v6404 = vrot.slane %v5448, 5
      %v6405 = vsel %vm1211, %v6403, %v6404
      %s6406 = scalar_lea.vmem %s2, 4
      %v6407 = vld [vmem:[%s6406] sm:$0x3]
      %v6408 = vunpack.c.l.b16 %v6297
      %v6409 = vunpack.c.l.b16 %v6300
      %v6410 = vunpack.c.l.b16 %v6304
      %v6411 = vunpack.c.l.b16 %v6307
      %v6412 = vunpack.c.l.b16 %v6311
      %v6413 = vunpack.c.l.b16 %v6314
      %v6414 = vunpack.c.l.b16 %v6318
      %v6415 = vunpack.c.l.b16 %v6321
      %v6416 = vunpack.c.l.b16 %v6325
      %v6417 = vunpack.c.l.b16 %v6328
      %v6418 = vunpack.c.l.b16 %v6332
      %v6419 = vunpack.c.l.b16 %v6335
      %v6420 = vunpack.c.l.b16 %v6339
      %v6421 = vunpack.c.l.b16 %v6342
      %v6422 = vunpack.c.l.b16 %v6346
      %v6423 = vunpack.c.l.b16 %v6349
      %v6424 = vunpack.c.l.b16 %v6353
      %v6425 = vunpack.c.l.b16 %v6356
      %v6426 = vunpack.c.l.b16 %v6360
      %v6427 = vunpack.c.l.b16 %v6363
      %v6428 = vunpack.c.l.b16 %v6367
      %v6429 = vunpack.c.l.b16 %v6370
      %v6430 = vunpack.c.l.b16 %v6374
      %v6431 = vunpack.c.l.b16 %v6377
      %v6432 = vunpack.c.l.b16 %v6381
      %v6433 = vunpack.c.l.b16 %v6384
      %v6434 = vunpack.c.l.b16 %v6388
      %v6435 = vunpack.c.l.b16 %v6391
      %v6436 = vunpack.c.l.b16 %v6395
      %v6437 = vunpack.c.l.b16 %v6398
      %v6438 = vunpack.c.l.b16 %v6402
      %v6439 = vunpack.c.l.b16 %v6405
      %v6440 = vpack.c.b16 %v6409, %v6408
      %v6441 = vpack.c.b16 %v6411, %v6410
      %v6442 = vpack.c.b16 %v6413, %v6412
      %v6443 = vpack.c.b16 %v6415, %v6414
      %v6444 = vpack.c.b16 %v6417, %v6416
      %v6445 = vpack.c.b16 %v6419, %v6418
      %v6446 = vpack.c.b16 %v6421, %v6420
      %v6447 = vpack.c.b16 %v6423, %v6422
      %v6448 = vpack.c.b16 %v6425, %v6424
      %v6449 = vpack.c.b16 %v6427, %v6426
      %v6450 = vpack.c.b16 %v6429, %v6428
      %v6451 = vpack.c.b16 %v6431, %v6430
      %v6452 = vpack.c.b16 %v6433, %v6432
      %v6453 = vpack.c.b16 %v6435, %v6434
      %v6454 = vpack.c.b16 %v6437, %v6436
      %v6455 = vpack.c.b16 %v6439, %v6438
      %v6457 = vsel %vm1374, %v6440, 0
      %v6460 = vsel %vm1374, %v6441, 0
      %v6463 = vsel %vm1374, %v6442, 0
      %v6466 = vsel %vm1374, %v6443, 0
      %v6469 = vsel %vm1374, %v6444, 0
      %v6472 = vsel %vm1374, %v6445, 0
      %v6475 = vsel %vm1374, %v6446, 0
      %v6478 = vsel %vm1374, %v6447, 0
      %v6481 = vsel %vm1374, %v6448, 0
      %v6484 = vsel %vm1374, %v6449, 0
      %v6487 = vsel %vm1374, %v6450, 0
      %v6490 = vsel %vm1374, %v6451, 0
      %v6493 = vsel %vm1374, %v6452, 0
      %v6496 = vsel %vm1374, %v6453, 0
      %v6499 = vsel %vm1374, %v6454, 0
      %v6502 = vsel %vm1374, %v6455, 0
      %v6505 = vsel %vm1423, %v6407, 0
      %6507 = vmatpush.bf16.msra.mxu0 0
      %6508 = vmatpush.bf16.msra.mxu0 0
      %6509 = vmatpush.bf16.msra.mxu0 0
      %6510 = vmatpush.bf16.msra.mxu0 0
      %6511 = vmatpush.bf16.msra.mxu0 0
      %6512 = vmatpush.bf16.msra.mxu0 0
      %6513 = vmatpush.bf16.msra.mxu0 0
      %6514 = vmatpush.bf16.msra.mxu0 %v6505
      %6515 = vmatmul.bf16.gmra.mxu0 %v6457
      %v6516 = vpop.f32.mrf.mxu0
      %v6517 = vadd.f32 0.0, %v6516
      %v6518 = vpop.f32.mrf.mxu0
      %v6519 = vadd.f32 0.0, %v6518
      %6520 = vmatmul.bf16.gmra.mxu0 %v6460
      %v6521 = vpop.f32.mrf.mxu0
      %v6522 = vadd.f32 0.0, %v6521
      %v6523 = vpop.f32.mrf.mxu0
      %v6524 = vadd.f32 0.0, %v6523
      %6525 = vmatmul.bf16.gmra.mxu0 %v6463
      %v6526 = vpop.f32.mrf.mxu0
      %v6527 = vadd.f32 0.0, %v6526
      %v6528 = vpop.f32.mrf.mxu0
      %v6529 = vadd.f32 0.0, %v6528
      %6530 = vmatmul.bf16.gmra.mxu0 %v6466
      %v6531 = vpop.f32.mrf.mxu0
      %v6532 = vadd.f32 0.0, %v6531
      %v6533 = vpop.f32.mrf.mxu0
      %v6534 = vadd.f32 0.0, %v6533
      %6535 = vmatmul.bf16.gmra.mxu0 %v6469
      %v6536 = vpop.f32.mrf.mxu0
      %v6537 = vadd.f32 0.0, %v6536
      %v6538 = vpop.f32.mrf.mxu0
      %v6539 = vadd.f32 0.0, %v6538
      %6540 = vmatmul.bf16.gmra.mxu0 %v6472
      %v6541 = vpop.f32.mrf.mxu0
      %v6542 = vadd.f32 0.0, %v6541
      %v6543 = vpop.f32.mrf.mxu0
      %v6544 = vadd.f32 0.0, %v6543
      %6545 = vmatmul.bf16.gmra.mxu0 %v6475
      %v6546 = vpop.f32.mrf.mxu0
      %v6547 = vadd.f32 0.0, %v6546
      %v6548 = vpop.f32.mrf.mxu0
      %v6549 = vadd.f32 0.0, %v6548
      %6550 = vmatmul.bf16.gmra.mxu0 %v6478
      %v6551 = vpop.f32.mrf.mxu0
      %v6552 = vadd.f32 0.0, %v6551
      %v6553 = vpop.f32.mrf.mxu0
      %v6554 = vadd.f32 0.0, %v6553
      %6555 = vmatmul.bf16.gmra.mxu0 %v6481
      %v6556 = vpop.f32.mrf.mxu0
      %v6557 = vadd.f32 0.0, %v6556
      %v6558 = vpop.f32.mrf.mxu0
      %v6559 = vadd.f32 0.0, %v6558
      %6560 = vmatmul.bf16.gmra.mxu0 %v6484
      %v6561 = vpop.f32.mrf.mxu0
      %v6562 = vadd.f32 0.0, %v6561
      %v6563 = vpop.f32.mrf.mxu0
      %v6564 = vadd.f32 0.0, %v6563
      %6565 = vmatmul.bf16.gmra.mxu0 %v6487
      %v6566 = vpop.f32.mrf.mxu0
      %v6567 = vadd.f32 0.0, %v6566
      %v6568 = vpop.f32.mrf.mxu0
      %v6569 = vadd.f32 0.0, %v6568
      %6570 = vmatmul.bf16.gmra.mxu0 %v6490
      %v6571 = vpop.f32.mrf.mxu0
      %v6572 = vadd.f32 0.0, %v6571
      %v6573 = vpop.f32.mrf.mxu0
      %v6574 = vadd.f32 0.0, %v6573
      %6575 = vmatmul.bf16.gmra.mxu0 %v6493
      %v6576 = vpop.f32.mrf.mxu0
      %v6577 = vadd.f32 0.0, %v6576
      %v6578 = vpop.f32.mrf.mxu0
      %v6579 = vadd.f32 0.0, %v6578
      %6580 = vmatmul.bf16.gmra.mxu0 %v6496
      %v6581 = vpop.f32.mrf.mxu0
      %v6582 = vadd.f32 0.0, %v6581
      %v6583 = vpop.f32.mrf.mxu0
      %v6584 = vadd.f32 0.0, %v6583
      %6585 = vmatmul.bf16.gmra.mxu0 %v6499
      %v6586 = vpop.f32.mrf.mxu0
      %v6587 = vadd.f32 0.0, %v6586
      %v6588 = vpop.f32.mrf.mxu0
      %v6589 = vadd.f32 0.0, %v6588
      %6590 = vmatmul.bf16.gmra.mxu0 %v6502
      %v6591 = vpop.f32.mrf.mxu0
      %v6592 = vadd.f32 0.0, %v6591
      %v6593 = vpop.f32.mrf.mxu0
      %v6594 = vadd.f32 0.0, %v6593
      %6595 = vdwg.mxu0
      %v6596 = vadd.f32 %v6167, %v6517
      %v6597 = vadd.f32 %v6169, %v6519
      %v6598 = vadd.f32 %v6172, %v6522
      %v6599 = vadd.f32 %v6174, %v6524
      %v6600 = vadd.f32 %v6177, %v6527
      %v6601 = vadd.f32 %v6179, %v6529
      %v6602 = vadd.f32 %v6182, %v6532
      %v6603 = vadd.f32 %v6184, %v6534
      %v6604 = vadd.f32 %v6187, %v6537
      %v6605 = vadd.f32 %v6189, %v6539
      %v6606 = vadd.f32 %v6192, %v6542
      %v6607 = vadd.f32 %v6194, %v6544
      %v6608 = vadd.f32 %v6197, %v6547
      %v6609 = vadd.f32 %v6199, %v6549
      %v6610 = vadd.f32 %v6202, %v6552
      %v6611 = vadd.f32 %v6204, %v6554
      %v6612 = vadd.f32 %v6207, %v6557
      %v6613 = vadd.f32 %v6209, %v6559
      %v6614 = vadd.f32 %v6212, %v6562
      %v6615 = vadd.f32 %v6214, %v6564
      %v6616 = vadd.f32 %v6217, %v6567
      %v6617 = vadd.f32 %v6219, %v6569
      %v6618 = vadd.f32 %v6222, %v6572
      %v6619 = vadd.f32 %v6224, %v6574
      %v6620 = vadd.f32 %v6227, %v6577
      %v6621 = vadd.f32 %v6229, %v6579
      %v6622 = vadd.f32 %v6232, %v6582
      %v6623 = vadd.f32 %v6234, %v6584
      %v6624 = vadd.f32 %v6237, %v6587
      %v6625 = vadd.f32 %v6239, %v6589
      %v6626 = vadd.f32 %v6242, %v6592
      %v6627 = vadd.f32 %v6244, %v6594
      %v6628 = vld [vmem:[%s451] sm:$0xf]
      %v6629 = vld [vmem:[%s451 + $0x4] sm:$0xf]
      %v6630 = vld [vmem:[%s451 + $0xc] sm:$0xf]
      %v6631 = vld [vmem:[%s451 + $0x10] sm:$0xf]
      %v6632 = vld [vmem:[%s451 + $0x18] sm:$0xf]
      %v6633 = vld [vmem:[%s451 + $0x1c] sm:$0xf]
      %v6634 = vld [vmem:[%s451 + $0x24] sm:$0xf]
      %v6635 = vld [vmem:[%s451 + $0x28] sm:$0xf]
      %v6636 = vld [vmem:[%s451 + $0x30] sm:$0xf]
      %v6637 = vld [vmem:[%s451 + $0x34] sm:$0xf]
      %v6638 = vld [vmem:[%s451 + $0x3c] sm:$0xf]
      %v6639 = vld [vmem:[%s451 + $0x40] sm:$0xf]
      %v6640 = vld [vmem:[%s451 + $0x48] sm:$0xf]
      %v6641 = vld [vmem:[%s451 + $0x4c] sm:$0xf]
      %v6642 = vld [vmem:[%s451 + $0x54] sm:$0xf]
      %v6643 = vld [vmem:[%s451 + $0x58] sm:$0xf]
      %v6644 = vld [vmem:[%s451 + $0x60] sm:$0xf]
      %v6645 = vld [vmem:[%s451 + $0x64] sm:$0xf]
      %v6646 = vld [vmem:[%s451 + $0x6c] sm:$0xf]
      %v6647 = vld [vmem:[%s451 + $0x70] sm:$0xf]
      %v6648 = vld [vmem:[%s451 + $0x78] sm:$0xf]
      %v6649 = vld [vmem:[%s451 + $0x7c] sm:$0xf]
      %v6650 = vld [vmem:[%s451 + $0x84] sm:$0xf]
      %v6651 = vld [vmem:[%s451 + $0x88] sm:$0xf]
      %v6652 = vld [vmem:[%s451 + $0x90] sm:$0xf]
      %v6653 = vld [vmem:[%s451 + $0x94] sm:$0xf]
      %v6654 = vld [vmem:[%s451 + $0x9c] sm:$0xf]
      %v6655 = vld [vmem:[%s451 + $0xa0] sm:$0xf]
      %v6656 = vld [vmem:[%s451 + $0xa8] sm:$0xf]
      %v6657 = vld [vmem:[%s451 + $0xac] sm:$0xf]
      %v6658 = vld [vmem:[%s451 + $0xb4] sm:$0xf]
      %v6659 = vld [vmem:[%s451 + $0xb8] sm:$0xf]
      %s6660 = scalar_lea.vmem %s2, 6
      %v6661 = vld [vmem:[%s6660] sm:$0x3]
      %v6694 = vunpack.c.l.b16 %v6628
      %v6695 = vunpack.c.l.b16 %v6629
      %v6696 = vunpack.c.l.b16 %v6630
      %v6697 = vunpack.c.l.b16 %v6631
      %v6698 = vunpack.c.l.b16 %v6632
      %v6699 = vunpack.c.l.b16 %v6633
      %v6700 = vunpack.c.l.b16 %v6634
      %v6701 = vunpack.c.l.b16 %v6635
      %v6702 = vunpack.c.l.b16 %v6636
      %v6703 = vunpack.c.l.b16 %v6637
      %v6704 = vunpack.c.l.b16 %v6638
      %v6705 = vunpack.c.l.b16 %v6639
      %v6706 = vunpack.c.l.b16 %v6640
      %v6707 = vunpack.c.l.b16 %v6641
      %v6708 = vunpack.c.l.b16 %v6642
      %v6709 = vunpack.c.l.b16 %v6643
      %v6710 = vunpack.c.l.b16 %v6644
      %v6711 = vunpack.c.l.b16 %v6645
      %v6712 = vunpack.c.l.b16 %v6646
      %v6713 = vunpack.c.l.b16 %v6647
      %v6714 = vunpack.c.l.b16 %v6648
      %v6715 = vunpack.c.l.b16 %v6649
      %v6716 = vunpack.c.l.b16 %v6650
      %v6717 = vunpack.c.l.b16 %v6651
      %v6718 = vunpack.c.l.b16 %v6652
      %v6719 = vunpack.c.l.b16 %v6653
      %v6720 = vunpack.c.l.b16 %v6654
      %v6721 = vunpack.c.l.b16 %v6655
      %v6722 = vunpack.c.l.b16 %v6656
      %v6723 = vunpack.c.l.b16 %v6657
      %v6724 = vunpack.c.l.b16 %v6658
      %v6725 = vunpack.c.l.b16 %v6659
      %v6726 = vpack.c.b16 %v6695, %v6694
      %v6727 = vpack.c.b16 %v6697, %v6696
      %v6728 = vpack.c.b16 %v6699, %v6698
      %v6729 = vpack.c.b16 %v6701, %v6700
      %v6730 = vpack.c.b16 %v6703, %v6702
      %v6731 = vpack.c.b16 %v6705, %v6704
      %v6732 = vpack.c.b16 %v6707, %v6706
      %v6733 = vpack.c.b16 %v6709, %v6708
      %v6734 = vpack.c.b16 %v6711, %v6710
      %v6735 = vpack.c.b16 %v6713, %v6712
      %v6736 = vpack.c.b16 %v6715, %v6714
      %v6737 = vpack.c.b16 %v6717, %v6716
      %v6738 = vpack.c.b16 %v6719, %v6718
      %v6739 = vpack.c.b16 %v6721, %v6720
      %v6740 = vpack.c.b16 %v6723, %v6722
      %v6741 = vpack.c.b16 %v6725, %v6724
      %v6743 = vsel %vm1374, %v6726, 0
      %v6746 = vsel %vm1374, %v6727, 0
      %v6749 = vsel %vm1374, %v6728, 0
      %v6752 = vsel %vm1374, %v6729, 0
      %v6755 = vsel %vm1374, %v6730, 0
      %v6758 = vsel %vm1374, %v6731, 0
      %v6761 = vsel %vm1374, %v6732, 0
      %v6764 = vsel %vm1374, %v6733, 0
      %v6767 = vsel %vm1374, %v6734, 0
      %v6770 = vsel %vm1374, %v6735, 0
      %v6773 = vsel %vm1374, %v6736, 0
      %v6776 = vsel %vm1374, %v6737, 0
      %v6779 = vsel %vm1374, %v6738, 0
      %v6782 = vsel %vm1374, %v6739, 0
      %v6785 = vsel %vm1374, %v6740, 0
      %v6788 = vsel %vm1374, %v6741, 0
      %v6791 = vsel %vm1423, %v6661, 0
      %6793 = vmatpush.bf16.msra.mxu0 0
      %6794 = vmatpush.bf16.msra.mxu0 0
      %6795 = vmatpush.bf16.msra.mxu0 0
      %6796 = vmatpush.bf16.msra.mxu0 0
      %6797 = vmatpush.bf16.msra.mxu0 0
      %6798 = vmatpush.bf16.msra.mxu0 0
      %6799 = vmatpush.bf16.msra.mxu0 0
      %6800 = vmatpush.bf16.msra.mxu0 %v6791
      %6801 = vmatmul.bf16.gmra.mxu0 %v6743
      %v6802 = vpop.f32.mrf.mxu0
      %v6803 = vadd.f32 0.0, %v6802
      %v6804 = vpop.f32.mrf.mxu0
      %v6805 = vadd.f32 0.0, %v6804
      %6806 = vmatmul.bf16.gmra.mxu0 %v6746
      %v6807 = vpop.f32.mrf.mxu0
      %v6808 = vadd.f32 0.0, %v6807
      %v6809 = vpop.f32.mrf.mxu0
      %v6810 = vadd.f32 0.0, %v6809
      %6811 = vmatmul.bf16.gmra.mxu0 %v6749
      %v6812 = vpop.f32.mrf.mxu0
      %v6813 = vadd.f32 0.0, %v6812
      %v6814 = vpop.f32.mrf.mxu0
      %v6815 = vadd.f32 0.0, %v6814
      %6816 = vmatmul.bf16.gmra.mxu0 %v6752
      %v6817 = vpop.f32.mrf.mxu0
      %v6818 = vadd.f32 0.0, %v6817
      %v6819 = vpop.f32.mrf.mxu0
      %v6820 = vadd.f32 0.0, %v6819
      %6821 = vmatmul.bf16.gmra.mxu0 %v6755
      %v6822 = vpop.f32.mrf.mxu0
      %v6823 = vadd.f32 0.0, %v6822
      %v6824 = vpop.f32.mrf.mxu0
      %v6825 = vadd.f32 0.0, %v6824
      %6826 = vmatmul.bf16.gmra.mxu0 %v6758
      %v6827 = vpop.f32.mrf.mxu0
      %v6828 = vadd.f32 0.0, %v6827
      %v6829 = vpop.f32.mrf.mxu0
      %v6830 = vadd.f32 0.0, %v6829
      %6831 = vmatmul.bf16.gmra.mxu0 %v6761
      %v6832 = vpop.f32.mrf.mxu0
      %v6833 = vadd.f32 0.0, %v6832
      %v6834 = vpop.f32.mrf.mxu0
      %v6835 = vadd.f32 0.0, %v6834
      %6836 = vmatmul.bf16.gmra.mxu0 %v6764
      %v6837 = vpop.f32.mrf.mxu0
      %v6838 = vadd.f32 0.0, %v6837
      %v6839 = vpop.f32.mrf.mxu0
      %v6840 = vadd.f32 0.0, %v6839
      %6841 = vmatmul.bf16.gmra.mxu0 %v6767
      %v6842 = vpop.f32.mrf.mxu0
      %v6843 = vadd.f32 0.0, %v6842
      %v6844 = vpop.f32.mrf.mxu0
      %v6845 = vadd.f32 0.0, %v6844
      %6846 = vmatmul.bf16.gmra.mxu0 %v6770
      %v6847 = vpop.f32.mrf.mxu0
      %v6848 = vadd.f32 0.0, %v6847
      %v6849 = vpop.f32.mrf.mxu0
      %v6850 = vadd.f32 0.0, %v6849
      %6851 = vmatmul.bf16.gmra.mxu0 %v6773
      %v6852 = vpop.f32.mrf.mxu0
      %v6853 = vadd.f32 0.0, %v6852
      %v6854 = vpop.f32.mrf.mxu0
      %v6855 = vadd.f32 0.0, %v6854
      %6856 = vmatmul.bf16.gmra.mxu0 %v6776
      %v6857 = vpop.f32.mrf.mxu0
      %v6858 = vadd.f32 0.0, %v6857
      %v6859 = vpop.f32.mrf.mxu0
      %v6860 = vadd.f32 0.0, %v6859
      %6861 = vmatmul.bf16.gmra.mxu0 %v6779
      %v6862 = vpop.f32.mrf.mxu0
      %v6863 = vadd.f32 0.0, %v6862
      %v6864 = vpop.f32.mrf.mxu0
      %v6865 = vadd.f32 0.0, %v6864
      %6866 = vmatmul.bf16.gmra.mxu0 %v6782
      %v6867 = vpop.f32.mrf.mxu0
      %v6868 = vadd.f32 0.0, %v6867
      %v6869 = vpop.f32.mrf.mxu0
      %v6870 = vadd.f32 0.0, %v6869
      %6871 = vmatmul.bf16.gmra.mxu0 %v6785
      %v6872 = vpop.f32.mrf.mxu0
      %v6873 = vadd.f32 0.0, %v6872
      %v6874 = vpop.f32.mrf.mxu0
      %v6875 = vadd.f32 0.0, %v6874
      %6876 = vmatmul.bf16.gmra.mxu0 %v6788
      %v6877 = vpop.f32.mrf.mxu0
      %v6878 = vadd.f32 0.0, %v6877
      %v6879 = vpop.f32.mrf.mxu0
      %v6880 = vadd.f32 0.0, %v6879
      %6881 = vdwg.mxu0
      %v6882 = vadd.f32 %v6596, %v6803
      %v6883 = vadd.f32 %v6597, %v6805
      %v6884 = vadd.f32 %v6598, %v6808
      %v6885 = vadd.f32 %v6599, %v6810
      %v6886 = vadd.f32 %v6600, %v6813
      %v6887 = vadd.f32 %v6601, %v6815
      %v6888 = vadd.f32 %v6602, %v6818
      %v6889 = vadd.f32 %v6603, %v6820
      %v6890 = vadd.f32 %v6604, %v6823
      %v6891 = vadd.f32 %v6605, %v6825
      %v6892 = vadd.f32 %v6606, %v6828
      %v6893 = vadd.f32 %v6607, %v6830
      %v6894 = vadd.f32 %v6608, %v6833
      %v6895 = vadd.f32 %v6609, %v6835
      %v6896 = vadd.f32 %v6610, %v6838
      %v6897 = vadd.f32 %v6611, %v6840
      %v6898 = vadd.f32 %v6612, %v6843
      %v6899 = vadd.f32 %v6613, %v6845
      %v6900 = vadd.f32 %v6614, %v6848
      %v6901 = vadd.f32 %v6615, %v6850
      %v6902 = vadd.f32 %v6616, %v6853
      %v6903 = vadd.f32 %v6617, %v6855
      %v6904 = vadd.f32 %v6618, %v6858
      %v6905 = vadd.f32 %v6619, %v6860
      %v6906 = vadd.f32 %v6620, %v6863
      %v6907 = vadd.f32 %v6621, %v6865
      %v6908 = vadd.f32 %v6622, %v6868
      %v6909 = vadd.f32 %v6623, %v6870
      %v6910 = vadd.f32 %v6624, %v6873
      %v6911 = vadd.f32 %v6625, %v6875
      %v6912 = vadd.f32 %v6626, %v6878
      %v6913 = vadd.f32 %v6627, %v6880
      %v6914 = vld [vmem:[%s451] sm:$0xf]
      %v6915 = vld [vmem:[%s451 + $0x4] sm:$0xf]
      %v6916 = vld [vmem:[%s451 + $0x8] sm:$0x1]
      %v6917 = vld [vmem:[%s451 + $0xc] sm:$0xf]
      %v6918 = vld [vmem:[%s451 + $0x10] sm:$0xf]
      %v6919 = vld [vmem:[%s451 + $0x14] sm:$0x1]
      %v6920 = vld [vmem:[%s451 + $0x18] sm:$0xf]
      %v6921 = vld [vmem:[%s451 + $0x1c] sm:$0xf]
      %v6922 = vld [vmem:[%s451 + $0x20] sm:$0x1]
      %v6923 = vld [vmem:[%s451 + $0x24] sm:$0xf]
      %v6924 = vld [vmem:[%s451 + $0x28] sm:$0xf]
      %v6925 = vld [vmem:[%s451 + $0x2c] sm:$0x1]
      %v6926 = vld [vmem:[%s451 + $0x30] sm:$0xf]
      %v6927 = vld [vmem:[%s451 + $0x34] sm:$0xf]
      %v6928 = vld [vmem:[%s451 + $0x38] sm:$0x1]
      %v6929 = vld [vmem:[%s451 + $0x3c] sm:$0xf]
      %v6930 = vld [vmem:[%s451 + $0x40] sm:$0xf]
      %v6931 = vld [vmem:[%s451 + $0x44] sm:$0x1]
      %v6932 = vld [vmem:[%s451 + $0x48] sm:$0xf]
      %v6933 = vld [vmem:[%s451 + $0x4c] sm:$0xf]
      %v6934 = vld [vmem:[%s451 + $0x50] sm:$0x1]
      %v6935 = vld [vmem:[%s451 + $0x54] sm:$0xf]
      %v6936 = vld [vmem:[%s451 + $0x58] sm:$0xf]
      %v6937 = vld [vmem:[%s451 + $0x5c] sm:$0x1]
      %v6938 = vld [vmem:[%s451 + $0x60] sm:$0xf]
      %v6939 = vld [vmem:[%s451 + $0x64] sm:$0xf]
      %v6940 = vld [vmem:[%s451 + $0x68] sm:$0x1]
      %v6941 = vld [vmem:[%s451 + $0x6c] sm:$0xf]
      %v6942 = vld [vmem:[%s451 + $0x70] sm:$0xf]
      %v6943 = vld [vmem:[%s451 + $0x74] sm:$0x1]
      %v6944 = vld [vmem:[%s451 + $0x78] sm:$0xf]
      %v6945 = vld [vmem:[%s451 + $0x7c] sm:$0xf]
      %v6946 = vld [vmem:[%s451 + $0x80] sm:$0x1]
      %v6947 = vld [vmem:[%s451 + $0x84] sm:$0xf]
      %v6948 = vld [vmem:[%s451 + $0x88] sm:$0xf]
      %v6949 = vld [vmem:[%s451 + $0x8c] sm:$0x1]
      %v6950 = vld [vmem:[%s451 + $0x90] sm:$0xf]
      %v6951 = vld [vmem:[%s451 + $0x94] sm:$0xf]
      %v6952 = vld [vmem:[%s451 + $0x98] sm:$0x1]
      %v6953 = vld [vmem:[%s451 + $0x9c] sm:$0xf]
      %v6954 = vld [vmem:[%s451 + $0xa0] sm:$0xf]
      %v6955 = vld [vmem:[%s451 + $0xa4] sm:$0x1]
      %v6956 = vld [vmem:[%s451 + $0xa8] sm:$0xf]
      %v6957 = vld [vmem:[%s451 + $0xac] sm:$0xf]
      %v6958 = vld [vmem:[%s451 + $0xb0] sm:$0x1]
      %v6959 = vld [vmem:[%s451 + $0xb4] sm:$0xf]
      %v6960 = vld [vmem:[%s451 + $0xb8] sm:$0xf]
      %v6961 = vld [vmem:[%s451 + $0xbc] sm:$0x1]
      %v6963 = vshrl.u32 %v6914, 16
      %v6965 = vrot.slane %v6963, 4
      %v6966 = vshll.u32 %v6914, 16
      %v6968 = vrot.slane %v6966, 5
      %v6969 = vor.u32 %v6965, %v6968
      %v6970 = vrot.slane %v6969, 4
      %v6972 = vshll.u32 %v6915, 16
      %v6974 = vrot.slane %v6972, 5
      %v6975 = vsel %vm5451, %v6970, %v6974
      %v6976 = vshrl.u32 %v6915, 16
      %v6978 = vrot.slane %v6976, 4
      %v6979 = vor.u32 %v6978, %v6974
      %v6980 = vrot.slane %v6979, 4
      %v6982 = vshll.u32 %v6916, 16
      %v6984 = vrot.slane %v6982, 5
      %v6985 = vsel %vm5451, %v6980, %v6984
      %v6987 = vshrl.u32 %v6917, 16
      %v6989 = vrot.slane %v6987, 4
      %v6990 = vshll.u32 %v6917, 16
      %v6992 = vrot.slane %v6990, 5
      %v6993 = vor.u32 %v6989, %v6992
      %v6994 = vrot.slane %v6993, 4
      %v6996 = vshll.u32 %v6918, 16
      %v6998 = vrot.slane %v6996, 5
      %v6999 = vsel %vm5451, %v6994, %v6998
      %v7000 = vshrl.u32 %v6918, 16
      %v7002 = vrot.slane %v7000, 4
      %v7003 = vor.u32 %v7002, %v6998
      %v7004 = vrot.slane %v7003, 4
      %v7006 = vshll.u32 %v6919, 16
      %v7008 = vrot.slane %v7006, 5
      %v7009 = vsel %vm5451, %v7004, %v7008
      %v7011 = vshrl.u32 %v6920, 16
      %v7013 = vrot.slane %v7011, 4
      %v7014 = vshll.u32 %v6920, 16
      %v7016 = vrot.slane %v7014, 5
      %v7017 = vor.u32 %v7013, %v7016
      %v7018 = vrot.slane %v7017, 4
      %v7020 = vshll.u32 %v6921, 16
      %v7022 = vrot.slane %v7020, 5
      %v7023 = vsel %vm5451, %v7018, %v7022
      %v7024 = vshrl.u32 %v6921, 16
      %v7026 = vrot.slane %v7024, 4
      %v7027 = vor.u32 %v7026, %v7022
      %v7028 = vrot.slane %v7027, 4
      %v7030 = vshll.u32 %v6922, 16
      %v7032 = vrot.slane %v7030, 5
      %v7033 = vsel %vm5451, %v7028, %v7032
      %v7035 = vshrl.u32 %v6923, 16
      %v7037 = vrot.slane %v7035, 4
      %v7038 = vshll.u32 %v6923, 16
      %v7040 = vrot.slane %v7038, 5
      %v7041 = vor.u32 %v7037, %v7040
      %v7042 = vrot.slane %v7041, 4
      %v7044 = vshll.u32 %v6924, 16
      %v7046 = vrot.slane %v7044, 5
      %v7047 = vsel %vm5451, %v7042, %v7046
      %v7048 = vshrl.u32 %v6924, 16
      %v7050 = vrot.slane %v7048, 4
      %v7051 = vor.u32 %v7050, %v7046
      %v7052 = vrot.slane %v7051, 4
      %v7054 = vshll.u32 %v6925, 16
      %v7056 = vrot.slane %v7054, 5
      %v7057 = vsel %vm5451, %v7052, %v7056
      %v7059 = vshrl.u32 %v6926, 16
      %v7061 = vrot.slane %v7059, 4
      %v7062 = vshll.u32 %v6926, 16
      %v7064 = vrot.slane %v7062, 5
      %v7065 = vor.u32 %v7061, %v7064
      %v7066 = vrot.slane %v7065, 4
      %v7068 = vshll.u32 %v6927, 16
      %v7070 = vrot.slane %v7068, 5
      %v7071 = vsel %vm5451, %v7066, %v7070
      %v7072 = vshrl.u32 %v6927, 16
      %v7074 = vrot.slane %v7072, 4
      %v7075 = vor.u32 %v7074, %v7070
      %v7076 = vrot.slane %v7075, 4
      %v7078 = vshll.u32 %v6928, 16
      %v7080 = vrot.slane %v7078, 5
      %v7081 = vsel %vm5451, %v7076, %v7080
      %v7083 = vshrl.u32 %v6929, 16
      %v7085 = vrot.slane %v7083, 4
      %v7086 = vshll.u32 %v6929, 16
      %v7088 = vrot.slane %v7086, 5
      %v7089 = vor.u32 %v7085, %v7088
      %v7090 = vrot.slane %v7089, 4
      %v7092 = vshll.u32 %v6930, 16
      %v7094 = vrot.slane %v7092, 5
      %v7095 = vsel %vm5451, %v7090, %v7094
      %v7096 = vshrl.u32 %v6930, 16
      %v7098 = vrot.slane %v7096, 4
      %v7099 = vor.u32 %v7098, %v7094
      %v7100 = vrot.slane %v7099, 4
      %v7102 = vshll.u32 %v6931, 16
      %v7104 = vrot.slane %v7102, 5
      %v7105 = vsel %vm5451, %v7100, %v7104
      %v7107 = vshrl.u32 %v6932, 16
      %v7109 = vrot.slane %v7107, 4
      %v7110 = vshll.u32 %v6932, 16
      %v7112 = vrot.slane %v7110, 5
      %v7113 = vor.u32 %v7109, %v7112
      %v7114 = vrot.slane %v7113, 4
      %v7116 = vshll.u32 %v6933, 16
      %v7118 = vrot.slane %v7116, 5
      %v7119 = vsel %vm5451, %v7114, %v7118
      %v7120 = vshrl.u32 %v6933, 16
      %v7122 = vrot.slane %v7120, 4
      %v7123 = vor.u32 %v7122, %v7118
      %v7124 = vrot.slane %v7123, 4
      %v7126 = vshll.u32 %v6934, 16
      %v7128 = vrot.slane %v7126, 5
      %v7129 = vsel %vm5451, %v7124, %v7128
      %v7131 = vshrl.u32 %v6935, 16
      %v7133 = vrot.slane %v7131, 4
      %v7134 = vshll.u32 %v6935, 16
      %v7136 = vrot.slane %v7134, 5
      %v7137 = vor.u32 %v7133, %v7136
      %v7138 = vrot.slane %v7137, 4
      %v7140 = vshll.u32 %v6936, 16
      %v7142 = vrot.slane %v7140, 5
      %v7143 = vsel %vm5451, %v7138, %v7142
      %v7144 = vshrl.u32 %v6936, 16
      %v7146 = vrot.slane %v7144, 4
      %v7147 = vor.u32 %v7146, %v7142
      %v7148 = vrot.slane %v7147, 4
      %v7150 = vshll.u32 %v6937, 16
      %v7152 = vrot.slane %v7150, 5
      %v7153 = vsel %vm5451, %v7148, %v7152
      %v7155 = vshrl.u32 %v6938, 16
      %v7157 = vrot.slane %v7155, 4
      %v7158 = vshll.u32 %v6938, 16
      %v7160 = vrot.slane %v7158, 5
      %v7161 = vor.u32 %v7157, %v7160
      %v7162 = vrot.slane %v7161, 4
      %v7164 = vshll.u32 %v6939, 16
      %v7166 = vrot.slane %v7164, 5
      %v7167 = vsel %vm5451, %v7162, %v7166
      %v7168 = vshrl.u32 %v6939, 16
      %v7170 = vrot.slane %v7168, 4
      %v7171 = vor.u32 %v7170, %v7166
      %v7172 = vrot.slane %v7171, 4
      %v7174 = vshll.u32 %v6940, 16
      %v7176 = vrot.slane %v7174, 5
      %v7177 = vsel %vm5451, %v7172, %v7176
      %v7179 = vshrl.u32 %v6941, 16
      %v7181 = vrot.slane %v7179, 4
      %v7182 = vshll.u32 %v6941, 16
      %v7184 = vrot.slane %v7182, 5
      %v7185 = vor.u32 %v7181, %v7184
      %v7186 = vrot.slane %v7185, 4
      %v7188 = vshll.u32 %v6942, 16
      %v7190 = vrot.slane %v7188, 5
      %v7191 = vsel %vm5451, %v7186, %v7190
      %v7192 = vshrl.u32 %v6942, 16
      %v7194 = vrot.slane %v7192, 4
      %v7195 = vor.u32 %v7194, %v7190
      %v7196 = vrot.slane %v7195, 4
      %v7198 = vshll.u32 %v6943, 16
      %v7200 = vrot.slane %v7198, 5
      %v7201 = vsel %vm5451, %v7196, %v7200
      %v7203 = vshrl.u32 %v6944, 16
      %v7205 = vrot.slane %v7203, 4
      %v7206 = vshll.u32 %v6944, 16
      %v7208 = vrot.slane %v7206, 5
      %v7209 = vor.u32 %v7205, %v7208
      %v7210 = vrot.slane %v7209, 4
      %v7212 = vshll.u32 %v6945, 16
      %v7214 = vrot.slane %v7212, 5
      %v7215 = vsel %vm5451, %v7210, %v7214
      %v7216 = vshrl.u32 %v6945, 16
      %v7218 = vrot.slane %v7216, 4
      %v7219 = vor.u32 %v7218, %v7214
      %v7220 = vrot.slane %v7219, 4
      %v7222 = vshll.u32 %v6946, 16
      %v7224 = vrot.slane %v7222, 5
      %v7225 = vsel %vm5451, %v7220, %v7224
      %v7227 = vshrl.u32 %v6947, 16
      %v7229 = vrot.slane %v7227, 4
      %v7230 = vshll.u32 %v6947, 16
      %v7232 = vrot.slane %v7230, 5
      %v7233 = vor.u32 %v7229, %v7232
      %v7234 = vrot.slane %v7233, 4
      %v7236 = vshll.u32 %v6948, 16
      %v7238 = vrot.slane %v7236, 5
      %v7239 = vsel %vm5451, %v7234, %v7238
      %v7240 = vshrl.u32 %v6948, 16
      %v7242 = vrot.slane %v7240, 4
      %v7243 = vor.u32 %v7242, %v7238
      %v7244 = vrot.slane %v7243, 4
      %v7246 = vshll.u32 %v6949, 16
      %v7248 = vrot.slane %v7246, 5
      %v7249 = vsel %vm5451, %v7244, %v7248
      %v7251 = vshrl.u32 %v6950, 16
      %v7253 = vrot.slane %v7251, 4
      %v7254 = vshll.u32 %v6950, 16
      %v7256 = vrot.slane %v7254, 5
      %v7257 = vor.u32 %v7253, %v7256
      %v7258 = vrot.slane %v7257, 4
      %v7260 = vshll.u32 %v6951, 16
      %v7262 = vrot.slane %v7260, 5
      %v7263 = vsel %vm5451, %v7258, %v7262
      %v7264 = vshrl.u32 %v6951, 16
      %v7266 = vrot.slane %v7264, 4
      %v7267 = vor.u32 %v7266, %v7262
      %v7268 = vrot.slane %v7267, 4
      %v7270 = vshll.u32 %v6952, 16
      %v7272 = vrot.slane %v7270, 5
      %v7273 = vsel %vm5451, %v7268, %v7272
      %v7275 = vshrl.u32 %v6953, 16
      %v7277 = vrot.slane %v7275, 4
      %v7278 = vshll.u32 %v6953, 16
      %v7280 = vrot.slane %v7278, 5
      %v7281 = vor.u32 %v7277, %v7280
      %v7282 = vrot.slane %v7281, 4
      %v7284 = vshll.u32 %v6954, 16
      %v7286 = vrot.slane %v7284, 5
      %v7287 = vsel %vm5451, %v7282, %v7286
      %v7288 = vshrl.u32 %v6954, 16
      %v7290 = vrot.slane %v7288, 4
      %v7291 = vor.u32 %v7290, %v7286
      %v7292 = vrot.slane %v7291, 4
      %v7294 = vshll.u32 %v6955, 16
      %v7296 = vrot.slane %v7294, 5
      %v7297 = vsel %vm5451, %v7292, %v7296
      %v7299 = vshrl.u32 %v6956, 16
      %v7301 = vrot.slane %v7299, 4
      %v7302 = vshll.u32 %v6956, 16
      %v7304 = vrot.slane %v7302, 5
      %v7305 = vor.u32 %v7301, %v7304
      %v7306 = vrot.slane %v7305, 4
      %v7308 = vshll.u32 %v6957, 16
      %v7310 = vrot.slane %v7308, 5
      %v7311 = vsel %vm5451, %v7306, %v7310
      %v7312 = vshrl.u32 %v6957, 16
      %v7314 = vrot.slane %v7312, 4
      %v7315 = vor.u32 %v7314, %v7310
      %v7316 = vrot.slane %v7315, 4
      %v7318 = vshll.u32 %v6958, 16
      %v7320 = vrot.slane %v7318, 5
      %v7321 = vsel %vm5451, %v7316, %v7320
      %v7323 = vshrl.u32 %v6959, 16
      %v7325 = vrot.slane %v7323, 4
      %v7326 = vshll.u32 %v6959, 16
      %v7328 = vrot.slane %v7326, 5
      %v7329 = vor.u32 %v7325, %v7328
      %v7330 = vrot.slane %v7329, 4
      %v7332 = vshll.u32 %v6960, 16
      %v7334 = vrot.slane %v7332, 5
      %v7335 = vsel %vm5451, %v7330, %v7334
      %v7336 = vshrl.u32 %v6960, 16
      %v7338 = vrot.slane %v7336, 4
      %v7339 = vor.u32 %v7338, %v7334
      %v7340 = vrot.slane %v7339, 4
      %v7342 = vshll.u32 %v6961, 16
      %v7344 = vrot.slane %v7342, 5
      %v7345 = vsel %vm5451, %v7340, %v7344
      %s7346 = scalar_lea.vmem %s2, 8
      %v7347 = vld [vmem:[%s7346] sm:$0x3]
      %v7348 = vunpack.c.l.b16 %v6975
      %v7349 = vunpack.c.l.b16 %v6985
      %v7350 = vunpack.c.l.b16 %v6999
      %v7351 = vunpack.c.l.b16 %v7009
      %v7352 = vunpack.c.l.b16 %v7023
      %v7353 = vunpack.c.l.b16 %v7033
      %v7354 = vunpack.c.l.b16 %v7047
      %v7355 = vunpack.c.l.b16 %v7057
      %v7356 = vunpack.c.l.b16 %v7071
      %v7357 = vunpack.c.l.b16 %v7081
      %v7358 = vunpack.c.l.b16 %v7095
      %v7359 = vunpack.c.l.b16 %v7105
      %v7360 = vunpack.c.l.b16 %v7119
      %v7361 = vunpack.c.l.b16 %v7129
      %v7362 = vunpack.c.l.b16 %v7143
      %v7363 = vunpack.c.l.b16 %v7153
      %v7364 = vunpack.c.l.b16 %v7167
      %v7365 = vunpack.c.l.b16 %v7177
      %v7366 = vunpack.c.l.b16 %v7191
      %v7367 = vunpack.c.l.b16 %v7201
      %v7368 = vunpack.c.l.b16 %v7215
      %v7369 = vunpack.c.l.b16 %v7225
      %v7370 = vunpack.c.l.b16 %v7239
      %v7371 = vunpack.c.l.b16 %v7249
      %v7372 = vunpack.c.l.b16 %v7263
      %v7373 = vunpack.c.l.b16 %v7273
      %v7374 = vunpack.c.l.b16 %v7287
      %v7375 = vunpack.c.l.b16 %v7297
      %v7376 = vunpack.c.l.b16 %v7311
      %v7377 = vunpack.c.l.b16 %v7321
      %v7378 = vunpack.c.l.b16 %v7335
      %v7379 = vunpack.c.l.b16 %v7345
      %v7380 = vpack.c.b16 %v7349, %v7348
      %v7381 = vpack.c.b16 %v7351, %v7350
      %v7382 = vpack.c.b16 %v7353, %v7352
      %v7383 = vpack.c.b16 %v7355, %v7354
      %v7384 = vpack.c.b16 %v7357, %v7356
      %v7385 = vpack.c.b16 %v7359, %v7358
      %v7386 = vpack.c.b16 %v7361, %v7360
      %v7387 = vpack.c.b16 %v7363, %v7362
      %v7388 = vpack.c.b16 %v7365, %v7364
      %v7389 = vpack.c.b16 %v7367, %v7366
      %v7390 = vpack.c.b16 %v7369, %v7368
      %v7391 = vpack.c.b16 %v7371, %v7370
      %v7392 = vpack.c.b16 %v7373, %v7372
      %v7393 = vpack.c.b16 %v7375, %v7374
      %v7394 = vpack.c.b16 %v7377, %v7376
      %v7395 = vpack.c.b16 %v7379, %v7378
      %v7397 = vsel %vm1374, %v7380, 0
      %v7400 = vsel %vm1374, %v7381, 0
      %v7403 = vsel %vm1374, %v7382, 0
      %v7406 = vsel %vm1374, %v7383, 0
      %v7409 = vsel %vm1374, %v7384, 0
      %v7412 = vsel %vm1374, %v7385, 0
      %v7415 = vsel %vm1374, %v7386, 0
      %v7418 = vsel %vm1374, %v7387, 0
      %v7421 = vsel %vm1374, %v7388, 0
      %v7424 = vsel %vm1374, %v7389, 0
      %v7427 = vsel %vm1374, %v7390, 0
      %v7430 = vsel %vm1374, %v7391, 0
      %v7433 = vsel %vm1374, %v7392, 0
      %v7436 = vsel %vm1374, %v7393, 0
      %v7439 = vsel %vm1374, %v7394, 0
      %v7442 = vsel %vm1374, %v7395, 0
      %v7445 = vsel %vm1423, %v7347, 0
      %7447 = vmatpush.bf16.msra.mxu0 0
      %7448 = vmatpush.bf16.msra.mxu0 0
      %7449 = vmatpush.bf16.msra.mxu0 0
      %7450 = vmatpush.bf16.msra.mxu0 0
      %7451 = vmatpush.bf16.msra.mxu0 0
      %7452 = vmatpush.bf16.msra.mxu0 0
      %7453 = vmatpush.bf16.msra.mxu0 0
      %7454 = vmatpush.bf16.msra.mxu0 %v7445
      %7455 = vmatmul.bf16.gmra.mxu0 %v7397
      %v7456 = vpop.f32.mrf.mxu0
      %v7457 = vadd.f32 0.0, %v7456
      %v7458 = vpop.f32.mrf.mxu0
      %v7459 = vadd.f32 0.0, %v7458
      %7460 = vmatmul.bf16.gmra.mxu0 %v7400
      %v7461 = vpop.f32.mrf.mxu0
      %v7462 = vadd.f32 0.0, %v7461
      %v7463 = vpop.f32.mrf.mxu0
      %v7464 = vadd.f32 0.0, %v7463
      %7465 = vmatmul.bf16.gmra.mxu0 %v7403
      %v7466 = vpop.f32.mrf.mxu0
      %v7467 = vadd.f32 0.0, %v7466
      %v7468 = vpop.f32.mrf.mxu0
      %v7469 = vadd.f32 0.0, %v7468
      %7470 = vmatmul.bf16.gmra.mxu0 %v7406
      %v7471 = vpop.f32.mrf.mxu0
      %v7472 = vadd.f32 0.0, %v7471
      %v7473 = vpop.f32.mrf.mxu0
      %v7474 = vadd.f32 0.0, %v7473
      %7475 = vmatmul.bf16.gmra.mxu0 %v7409
      %v7476 = vpop.f32.mrf.mxu0
      %v7477 = vadd.f32 0.0, %v7476
      %v7478 = vpop.f32.mrf.mxu0
      %v7479 = vadd.f32 0.0, %v7478
      %7480 = vmatmul.bf16.gmra.mxu0 %v7412
      %v7481 = vpop.f32.mrf.mxu0
      %v7482 = vadd.f32 0.0, %v7481
      %v7483 = vpop.f32.mrf.mxu0
      %v7484 = vadd.f32 0.0, %v7483
      %7485 = vmatmul.bf16.gmra.mxu0 %v7415
      %v7486 = vpop.f32.mrf.mxu0
      %v7487 = vadd.f32 0.0, %v7486
      %v7488 = vpop.f32.mrf.mxu0
      %v7489 = vadd.f32 0.0, %v7488
      %7490 = vmatmul.bf16.gmra.mxu0 %v7418
      %v7491 = vpop.f32.mrf.mxu0
      %v7492 = vadd.f32 0.0, %v7491
      %v7493 = vpop.f32.mrf.mxu0
      %v7494 = vadd.f32 0.0, %v7493
      %7495 = vmatmul.bf16.gmra.mxu0 %v7421
      %v7496 = vpop.f32.mrf.mxu0
      %v7497 = vadd.f32 0.0, %v7496
      %v7498 = vpop.f32.mrf.mxu0
      %v7499 = vadd.f32 0.0, %v7498
      %7500 = vmatmul.bf16.gmra.mxu0 %v7424
      %v7501 = vpop.f32.mrf.mxu0
      %v7502 = vadd.f32 0.0, %v7501
      %v7503 = vpop.f32.mrf.mxu0
      %v7504 = vadd.f32 0.0, %v7503
      %7505 = vmatmul.bf16.gmra.mxu0 %v7427
      %v7506 = vpop.f32.mrf.mxu0
      %v7507 = vadd.f32 0.0, %v7506
      %v7508 = vpop.f32.mrf.mxu0
      %v7509 = vadd.f32 0.0, %v7508
      %7510 = vmatmul.bf16.gmra.mxu0 %v7430
      %v7511 = vpop.f32.mrf.mxu0
      %v7512 = vadd.f32 0.0, %v7511
      %v7513 = vpop.f32.mrf.mxu0
      %v7514 = vadd.f32 0.0, %v7513
      %7515 = vmatmul.bf16.gmra.mxu0 %v7433
      %v7516 = vpop.f32.mrf.mxu0
      %v7517 = vadd.f32 0.0, %v7516
      %v7518 = vpop.f32.mrf.mxu0
      %v7519 = vadd.f32 0.0, %v7518
      %7520 = vmatmul.bf16.gmra.mxu0 %v7436
      %v7521 = vpop.f32.mrf.mxu0
      %v7522 = vadd.f32 0.0, %v7521
      %v7523 = vpop.f32.mrf.mxu0
      %v7524 = vadd.f32 0.0, %v7523
      %7525 = vmatmul.bf16.gmra.mxu0 %v7439
      %v7526 = vpop.f32.mrf.mxu0
      %v7527 = vadd.f32 0.0, %v7526
      %v7528 = vpop.f32.mrf.mxu0
      %v7529 = vadd.f32 0.0, %v7528
      %7530 = vmatmul.bf16.gmra.mxu0 %v7442
      %v7531 = vpop.f32.mrf.mxu0
      %v7532 = vadd.f32 0.0, %v7531
      %v7533 = vpop.f32.mrf.mxu0
      %v7534 = vadd.f32 0.0, %v7533
      %7535 = vdwg.mxu0
      %v7536 = vadd.f32 %v6882, %v7457
      %v7537 = vadd.f32 %v6883, %v7459
      %v7538 = vadd.f32 %v6884, %v7462
      %v7539 = vadd.f32 %v6885, %v7464
      %v7540 = vadd.f32 %v6886, %v7467
      %v7541 = vadd.f32 %v6887, %v7469
      %v7542 = vadd.f32 %v6888, %v7472
      %v7543 = vadd.f32 %v6889, %v7474
      %v7544 = vadd.f32 %v6890, %v7477
      %v7545 = vadd.f32 %v6891, %v7479
      %v7546 = vadd.f32 %v6892, %v7482
      %v7547 = vadd.f32 %v6893, %v7484
      %v7548 = vadd.f32 %v6894, %v7487
      %v7549 = vadd.f32 %v6895, %v7489
      %v7550 = vadd.f32 %v6896, %v7492
      %v7551 = vadd.f32 %v6897, %v7494
      %v7552 = vadd.f32 %v6898, %v7497
      %v7553 = vadd.f32 %v6899, %v7499
      %v7554 = vadd.f32 %v6900, %v7502
      %v7555 = vadd.f32 %v6901, %v7504
      %v7556 = vadd.f32 %v6902, %v7507
      %v7557 = vadd.f32 %v6903, %v7509
      %v7558 = vadd.f32 %v6904, %v7512
      %v7559 = vadd.f32 %v6905, %v7514
      %v7560 = vadd.f32 %v6906, %v7517
      %v7561 = vadd.f32 %v6907, %v7519
      %v7562 = vadd.f32 %v6908, %v7522
      %v7563 = vadd.f32 %v6909, %v7524
      %v7564 = vadd.f32 %v6910, %v7527
      %v7565 = vadd.f32 %v6911, %v7529
      %v7566 = vadd.f32 %v6912, %v7532
      %v7567 = vadd.f32 %v6913, %v7534
      %v7568 = vld [vmem:[%s451] sm:$0xe]
      %v7569 = vld [vmem:[%s451 + $0xc] sm:$0xe]
      %v7570 = vld [vmem:[%s451 + $0x18] sm:$0xe]
      %v7571 = vld [vmem:[%s451 + $0x24] sm:$0xe]
      %v7572 = vld [vmem:[%s451 + $0x30] sm:$0xe]
      %v7573 = vld [vmem:[%s451 + $0x3c] sm:$0xe]
      %v7574 = vld [vmem:[%s451 + $0x48] sm:$0xe]
      %v7575 = vld [vmem:[%s451 + $0x54] sm:$0xe]
      %v7576 = vld [vmem:[%s451 + $0x60] sm:$0xe]
      %v7577 = vld [vmem:[%s451 + $0x6c] sm:$0xe]
      %v7578 = vld [vmem:[%s451 + $0x78] sm:$0xe]
      %v7579 = vld [vmem:[%s451 + $0x84] sm:$0xe]
      %v7580 = vld [vmem:[%s451 + $0x90] sm:$0xe]
      %v7581 = vld [vmem:[%s451 + $0x9c] sm:$0xe]
      %v7582 = vld [vmem:[%s451 + $0xa8] sm:$0xe]
      %v7583 = vld [vmem:[%s451 + $0xb4] sm:$0xe]
      %v7632 = vrot.slane %v7568, 5
      %v7633 = vrot.slane %v7632, 4
      %v7634 = vrot.slane %v6915, 5
      %v7635 = vsel %vm1211, %v7633, %v7634
      %v7636 = vrot.slane %v7634, 4
      %v7637 = vrot.slane %v6916, 5
      %v7638 = vsel %vm1211, %v7636, %v7637
      %v7639 = vrot.slane %v7569, 5
      %v7640 = vrot.slane %v7639, 4
      %v7641 = vrot.slane %v6918, 5
      %v7642 = vsel %vm1211, %v7640, %v7641
      %v7643 = vrot.slane %v7641, 4
      %v7644 = vrot.slane %v6919, 5
      %v7645 = vsel %vm1211, %v7643, %v7644
      %v7646 = vrot.slane %v7570, 5
      %v7647 = vrot.slane %v7646, 4
      %v7648 = vrot.slane %v6921, 5
      %v7649 = vsel %vm1211, %v7647, %v7648
      %v7650 = vrot.slane %v7648, 4
      %v7651 = vrot.slane %v6922, 5
      %v7652 = vsel %vm1211, %v7650, %v7651
      %v7653 = vrot.slane %v7571, 5
      %v7654 = vrot.slane %v7653, 4
      %v7655 = vrot.slane %v6924, 5
      %v7656 = vsel %vm1211, %v7654, %v7655
      %v7657 = vrot.slane %v7655, 4
      %v7658 = vrot.slane %v6925, 5
      %v7659 = vsel %vm1211, %v7657, %v7658
      %v7660 = vrot.slane %v7572, 5
      %v7661 = vrot.slane %v7660, 4
      %v7662 = vrot.slane %v6927, 5
      %v7663 = vsel %vm1211, %v7661, %v7662
      %v7664 = vrot.slane %v7662, 4
      %v7665 = vrot.slane %v6928, 5
      %v7666 = vsel %vm1211, %v7664, %v7665
      %v7667 = vrot.slane %v7573, 5
      %v7668 = vrot.slane %v7667, 4
      %v7669 = vrot.slane %v6930, 5
      %v7670 = vsel %vm1211, %v7668, %v7669
      %v7671 = vrot.slane %v7669, 4
      %v7672 = vrot.slane %v6931, 5
      %v7673 = vsel %vm1211, %v7671, %v7672
      %v7674 = vrot.slane %v7574, 5
      %v7675 = vrot.slane %v7674, 4
      %v7676 = vrot.slane %v6933, 5
      %v7677 = vsel %vm1211, %v7675, %v7676
      %v7678 = vrot.slane %v7676, 4
      %v7679 = vrot.slane %v6934, 5
      %v7680 = vsel %vm1211, %v7678, %v7679
      %v7681 = vrot.slane %v7575, 5
      %v7682 = vrot.slane %v7681, 4
      %v7683 = vrot.slane %v6936, 5
      %v7684 = vsel %vm1211, %v7682, %v7683
      %v7685 = vrot.slane %v7683, 4
      %v7686 = vrot.slane %v6937, 5
      %v7687 = vsel %vm1211, %v7685, %v7686
      %v7688 = vrot.slane %v7576, 5
      %v7689 = vrot.slane %v7688, 4
      %v7690 = vrot.slane %v6939, 5
      %v7691 = vsel %vm1211, %v7689, %v7690
      %v7692 = vrot.slane %v7690, 4
      %v7693 = vrot.slane %v6940, 5
      %v7694 = vsel %vm1211, %v7692, %v7693
      %v7695 = vrot.slane %v7577, 5
      %v7696 = vrot.slane %v7695, 4
      %v7697 = vrot.slane %v6942, 5
      %v7698 = vsel %vm1211, %v7696, %v7697
      %v7699 = vrot.slane %v7697, 4
      %v7700 = vrot.slane %v6943, 5
      %v7701 = vsel %vm1211, %v7699, %v7700
      %v7702 = vrot.slane %v7578, 5
      %v7703 = vrot.slane %v7702, 4
      %v7704 = vrot.slane %v6945, 5
      %v7705 = vsel %vm1211, %v7703, %v7704
      %v7706 = vrot.slane %v7704, 4
      %v7707 = vrot.slane %v6946, 5
      %v7708 = vsel %vm1211, %v7706, %v7707
      %v7709 = vrot.slane %v7579, 5
      %v7710 = vrot.slane %v7709, 4
      %v7711 = vrot.slane %v6948, 5
      %v7712 = vsel %vm1211, %v7710, %v7711
      %v7713 = vrot.slane %v7711, 4
      %v7714 = vrot.slane %v6949, 5
      %v7715 = vsel %vm1211, %v7713, %v7714
      %v7716 = vrot.slane %v7580, 5
      %v7717 = vrot.slane %v7716, 4
      %v7718 = vrot.slane %v6951, 5
      %v7719 = vsel %vm1211, %v7717, %v7718
      %v7720 = vrot.slane %v7718, 4
      %v7721 = vrot.slane %v6952, 5
      %v7722 = vsel %vm1211, %v7720, %v7721
      %v7723 = vrot.slane %v7581, 5
      %v7724 = vrot.slane %v7723, 4
      %v7725 = vrot.slane %v6954, 5
      %v7726 = vsel %vm1211, %v7724, %v7725
      %v7727 = vrot.slane %v7725, 4
      %v7728 = vrot.slane %v6955, 5
      %v7729 = vsel %vm1211, %v7727, %v7728
      %v7730 = vrot.slane %v7582, 5
      %v7731 = vrot.slane %v7730, 4
      %v7732 = vrot.slane %v6957, 5
      %v7733 = vsel %vm1211, %v7731, %v7732
      %v7734 = vrot.slane %v7732, 4
      %v7735 = vrot.slane %v6958, 5
      %v7736 = vsel %vm1211, %v7734, %v7735
      %v7737 = vrot.slane %v7583, 5
      %v7738 = vrot.slane %v7737, 4
      %v7739 = vrot.slane %v6960, 5
      %v7740 = vsel %vm1211, %v7738, %v7739
      %v7741 = vrot.slane %v7739, 4
      %v7742 = vrot.slane %v6961, 5
      %v7743 = vsel %vm1211, %v7741, %v7742
      %s7744 = scalar_lea.vmem %s2, 10
      %v7745 = vld [vmem:[%s7744] sm:$0x3]
      %v7746 = vunpack.c.l.b16 %v7635
      %v7747 = vunpack.c.l.b16 %v7638
      %v7748 = vunpack.c.l.b16 %v7642
      %v7749 = vunpack.c.l.b16 %v7645
      %v7750 = vunpack.c.l.b16 %v7649
      %v7751 = vunpack.c.l.b16 %v7652
      %v7752 = vunpack.c.l.b16 %v7656
      %v7753 = vunpack.c.l.b16 %v7659
      %v7754 = vunpack.c.l.b16 %v7663
      %v7755 = vunpack.c.l.b16 %v7666
      %v7756 = vunpack.c.l.b16 %v7670
      %v7757 = vunpack.c.l.b16 %v7673
      %v7758 = vunpack.c.l.b16 %v7677
      %v7759 = vunpack.c.l.b16 %v7680
      %v7760 = vunpack.c.l.b16 %v7684
      %v7761 = vunpack.c.l.b16 %v7687
      %v7762 = vunpack.c.l.b16 %v7691
      %v7763 = vunpack.c.l.b16 %v7694
      %v7764 = vunpack.c.l.b16 %v7698
      %v7765 = vunpack.c.l.b16 %v7701
      %v7766 = vunpack.c.l.b16 %v7705
      %v7767 = vunpack.c.l.b16 %v7708
      %v7768 = vunpack.c.l.b16 %v7712
      %v7769 = vunpack.c.l.b16 %v7715
      %v7770 = vunpack.c.l.b16 %v7719
      %v7771 = vunpack.c.l.b16 %v7722
      %v7772 = vunpack.c.l.b16 %v7726
      %v7773 = vunpack.c.l.b16 %v7729
      %v7774 = vunpack.c.l.b16 %v7733
      %v7775 = vunpack.c.l.b16 %v7736
      %v7776 = vunpack.c.l.b16 %v7740
      %v7777 = vunpack.c.l.b16 %v7743
      %v7778 = vpack.c.b16 %v7747, %v7746
      %v7779 = vpack.c.b16 %v7749, %v7748
      %v7780 = vpack.c.b16 %v7751, %v7750
      %v7781 = vpack.c.b16 %v7753, %v7752
      %v7782 = vpack.c.b16 %v7755, %v7754
      %v7783 = vpack.c.b16 %v7757, %v7756
      %v7784 = vpack.c.b16 %v7759, %v7758
      %v7785 = vpack.c.b16 %v7761, %v7760
      %v7786 = vpack.c.b16 %v7763, %v7762
      %v7787 = vpack.c.b16 %v7765, %v7764
      %v7788 = vpack.c.b16 %v7767, %v7766
      %v7789 = vpack.c.b16 %v7769, %v7768
      %v7790 = vpack.c.b16 %v7771, %v7770
      %v7791 = vpack.c.b16 %v7773, %v7772
      %v7792 = vpack.c.b16 %v7775, %v7774
      %v7793 = vpack.c.b16 %v7777, %v7776
      %v7795 = vsel %vm1374, %v7778, 0
      %v7798 = vsel %vm1374, %v7779, 0
      %v7801 = vsel %vm1374, %v7780, 0
      %v7804 = vsel %vm1374, %v7781, 0
      %v7807 = vsel %vm1374, %v7782, 0
      %v7810 = vsel %vm1374, %v7783, 0
      %v7813 = vsel %vm1374, %v7784, 0
      %v7816 = vsel %vm1374, %v7785, 0
      %v7819 = vsel %vm1374, %v7786, 0
      %v7822 = vsel %vm1374, %v7787, 0
      %v7825 = vsel %vm1374, %v7788, 0
      %v7828 = vsel %vm1374, %v7789, 0
      %v7831 = vsel %vm1374, %v7790, 0
      %v7834 = vsel %vm1374, %v7791, 0
      %v7837 = vsel %vm1374, %v7792, 0
      %v7840 = vsel %vm1374, %v7793, 0
      %v7843 = vsel %vm1423, %v7745, 0
      %7845 = vmatpush.bf16.msra.mxu0 0
      %7846 = vmatpush.bf16.msra.mxu0 0
      %7847 = vmatpush.bf16.msra.mxu0 0
      %7848 = vmatpush.bf16.msra.mxu0 0
      %7849 = vmatpush.bf16.msra.mxu0 0
      %7850 = vmatpush.bf16.msra.mxu0 0
      %7851 = vmatpush.bf16.msra.mxu0 0
      %7852 = vmatpush.bf16.msra.mxu0 %v7843
      %7853 = vmatmul.bf16.gmra.mxu0 %v7795
      %v7854 = vpop.f32.mrf.mxu0
      %v7855 = vadd.f32 0.0, %v7854
      %v7856 = vpop.f32.mrf.mxu0
      %v7857 = vadd.f32 0.0, %v7856
      %7858 = vmatmul.bf16.gmra.mxu0 %v7798
      %v7859 = vpop.f32.mrf.mxu0
      %v7860 = vadd.f32 0.0, %v7859
      %v7861 = vpop.f32.mrf.mxu0
      %v7862 = vadd.f32 0.0, %v7861
      %7863 = vmatmul.bf16.gmra.mxu0 %v7801
      %v7864 = vpop.f32.mrf.mxu0
      %v7865 = vadd.f32 0.0, %v7864
      %v7866 = vpop.f32.mrf.mxu0
      %v7867 = vadd.f32 0.0, %v7866
      %7868 = vmatmul.bf16.gmra.mxu0 %v7804
      %v7869 = vpop.f32.mrf.mxu0
      %v7870 = vadd.f32 0.0, %v7869
      %v7871 = vpop.f32.mrf.mxu0
      %v7872 = vadd.f32 0.0, %v7871
      %7873 = vmatmul.bf16.gmra.mxu0 %v7807
      %v7874 = vpop.f32.mrf.mxu0
      %v7875 = vadd.f32 0.0, %v7874
      %v7876 = vpop.f32.mrf.mxu0
      %v7877 = vadd.f32 0.0, %v7876
      %7878 = vmatmul.bf16.gmra.mxu0 %v7810
      %v7879 = vpop.f32.mrf.mxu0
      %v7880 = vadd.f32 0.0, %v7879
      %v7881 = vpop.f32.mrf.mxu0
      %v7882 = vadd.f32 0.0, %v7881
      %7883 = vmatmul.bf16.gmra.mxu0 %v7813
      %v7884 = vpop.f32.mrf.mxu0
      %v7885 = vadd.f32 0.0, %v7884
      %v7886 = vpop.f32.mrf.mxu0
      %v7887 = vadd.f32 0.0, %v7886
      %7888 = vmatmul.bf16.gmra.mxu0 %v7816
      %v7889 = vpop.f32.mrf.mxu0
      %v7890 = vadd.f32 0.0, %v7889
      %v7891 = vpop.f32.mrf.mxu0
      %v7892 = vadd.f32 0.0, %v7891
      %7893 = vmatmul.bf16.gmra.mxu0 %v7819
      %v7894 = vpop.f32.mrf.mxu0
      %v7895 = vadd.f32 0.0, %v7894
      %v7896 = vpop.f32.mrf.mxu0
      %v7897 = vadd.f32 0.0, %v7896
      %7898 = vmatmul.bf16.gmra.mxu0 %v7822
      %v7899 = vpop.f32.mrf.mxu0
      %v7900 = vadd.f32 0.0, %v7899
      %v7901 = vpop.f32.mrf.mxu0
      %v7902 = vadd.f32 0.0, %v7901
      %7903 = vmatmul.bf16.gmra.mxu0 %v7825
      %v7904 = vpop.f32.mrf.mxu0
      %v7905 = vadd.f32 0.0, %v7904
      %v7906 = vpop.f32.mrf.mxu0
      %v7907 = vadd.f32 0.0, %v7906
      %7908 = vmatmul.bf16.gmra.mxu0 %v7828
      %v7909 = vpop.f32.mrf.mxu0
      %v7910 = vadd.f32 0.0, %v7909
      %v7911 = vpop.f32.mrf.mxu0
      %v7912 = vadd.f32 0.0, %v7911
      %7913 = vmatmul.bf16.gmra.mxu0 %v7831
      %v7914 = vpop.f32.mrf.mxu0
      %v7915 = vadd.f32 0.0, %v7914
      %v7916 = vpop.f32.mrf.mxu0
      %v7917 = vadd.f32 0.0, %v7916
      %7918 = vmatmul.bf16.gmra.mxu0 %v7834
      %v7919 = vpop.f32.mrf.mxu0
      %v7920 = vadd.f32 0.0, %v7919
      %v7921 = vpop.f32.mrf.mxu0
      %v7922 = vadd.f32 0.0, %v7921
      %7923 = vmatmul.bf16.gmra.mxu0 %v7837
      %v7924 = vpop.f32.mrf.mxu0
      %v7925 = vadd.f32 0.0, %v7924
      %v7926 = vpop.f32.mrf.mxu0
      %v7927 = vadd.f32 0.0, %v7926
      %7928 = vmatmul.bf16.gmra.mxu0 %v7840
      %v7929 = vpop.f32.mrf.mxu0
      %v7930 = vadd.f32 0.0, %v7929
      %v7931 = vpop.f32.mrf.mxu0
      %v7932 = vadd.f32 0.0, %v7931
      %7933 = vdwg.mxu0
      %v7934 = vadd.f32 %v7536, %v7855
      %v7935 = vadd.f32 %v7537, %v7857
      %v7936 = vadd.f32 %v7538, %v7860
      %v7937 = vadd.f32 %v7539, %v7862
      %v7938 = vadd.f32 %v7540, %v7865
      %v7939 = vadd.f32 %v7541, %v7867
      %v7940 = vadd.f32 %v7542, %v7870
      %v7941 = vadd.f32 %v7543, %v7872
      %v7942 = vadd.f32 %v7544, %v7875
      %v7943 = vadd.f32 %v7545, %v7877
      %v7944 = vadd.f32 %v7546, %v7880
      %v7945 = vadd.f32 %v7547, %v7882
      %v7946 = vadd.f32 %v7548, %v7885
      %v7947 = vadd.f32 %v7549, %v7887
      %v7948 = vadd.f32 %v7550, %v7890
      %v7949 = vadd.f32 %v7551, %v7892
      %v7950 = vadd.f32 %v7552, %v7895
      %v7951 = vadd.f32 %v7553, %v7897
      %v7952 = vadd.f32 %v7554, %v7900
      %v7953 = vadd.f32 %v7555, %v7902
      %v7954 = vadd.f32 %v7556, %v7905
      %v7955 = vadd.f32 %v7557, %v7907
      %v7956 = vadd.f32 %v7558, %v7910
      %v7957 = vadd.f32 %v7559, %v7912
      %v7958 = vadd.f32 %v7560, %v7915
      %v7959 = vadd.f32 %v7561, %v7917
      %v7960 = vadd.f32 %v7562, %v7920
      %v7961 = vadd.f32 %v7563, %v7922
      %v7962 = vadd.f32 %v7564, %v7925
      %v7963 = vadd.f32 %v7565, %v7927
      %v7964 = vadd.f32 %v7566, %v7930
      %v7965 = vadd.f32 %v7567, %v7932
      %v7966 = vld [vmem:[%s399] sm:$0xf]
      %v7967 = vld [vmem:[%s399 + $0x4] sm:$0xf]
      %v7968 = vld [vmem:[%s399 + $0xc] sm:$0xf]
      %v7969 = vld [vmem:[%s399 + $0x10] sm:$0xf]
      %v7970 = vld [vmem:[%s399 + $0x18] sm:$0xf]
      %v7971 = vld [vmem:[%s399 + $0x1c] sm:$0xf]
      %v7972 = vld [vmem:[%s399 + $0x24] sm:$0xf]
      %v7973 = vld [vmem:[%s399 + $0x28] sm:$0xf]
      %v7974 = vld [vmem:[%s399 + $0x30] sm:$0xf]
      %v7975 = vld [vmem:[%s399 + $0x34] sm:$0xf]
      %v7976 = vld [vmem:[%s399 + $0x3c] sm:$0xf]
      %v7977 = vld [vmem:[%s399 + $0x40] sm:$0xf]
      %v7978 = vld [vmem:[%s399 + $0x48] sm:$0xf]
      %v7979 = vld [vmem:[%s399 + $0x4c] sm:$0xf]
      %v7980 = vld [vmem:[%s399 + $0x54] sm:$0xf]
      %v7981 = vld [vmem:[%s399 + $0x58] sm:$0xf]
      %v7982 = vld [vmem:[%s399 + $0x60] sm:$0xf]
      %v7983 = vld [vmem:[%s399 + $0x64] sm:$0xf]
      %v7984 = vld [vmem:[%s399 + $0x6c] sm:$0xf]
      %v7985 = vld [vmem:[%s399 + $0x70] sm:$0xf]
      %v7986 = vld [vmem:[%s399 + $0x78] sm:$0xf]
      %v7987 = vld [vmem:[%s399 + $0x7c] sm:$0xf]
      %v7988 = vld [vmem:[%s399 + $0x84] sm:$0xf]
      %v7989 = vld [vmem:[%s399 + $0x88] sm:$0xf]
      %v7990 = vld [vmem:[%s399 + $0x90] sm:$0xf]
      %v7991 = vld [vmem:[%s399 + $0x94] sm:$0xf]
      %v7992 = vld [vmem:[%s399 + $0x9c] sm:$0xf]
      %v7993 = vld [vmem:[%s399 + $0xa0] sm:$0xf]
      %v7994 = vld [vmem:[%s399 + $0xa8] sm:$0xf]
      %v7995 = vld [vmem:[%s399 + $0xac] sm:$0xf]
      %v7996 = vld [vmem:[%s399 + $0xb4] sm:$0xf]
      %v7997 = vld [vmem:[%s399 + $0xb8] sm:$0xf]
      %s7998 = scalar_lea.vmem %s2, 12
      %v7999 = vld [vmem:[%s7998] sm:$0x3]
      %v8032 = vunpack.c.l.b16 %v7966
      %v8033 = vunpack.c.l.b16 %v7967
      %v8034 = vunpack.c.l.b16 %v7968
      %v8035 = vunpack.c.l.b16 %v7969
      %v8036 = vunpack.c.l.b16 %v7970
      %v8037 = vunpack.c.l.b16 %v7971
      %v8038 = vunpack.c.l.b16 %v7972
      %v8039 = vunpack.c.l.b16 %v7973
      %v8040 = vunpack.c.l.b16 %v7974
      %v8041 = vunpack.c.l.b16 %v7975
      %v8042 = vunpack.c.l.b16 %v7976
      %v8043 = vunpack.c.l.b16 %v7977
      %v8044 = vunpack.c.l.b16 %v7978
      %v8045 = vunpack.c.l.b16 %v7979
      %v8046 = vunpack.c.l.b16 %v7980
      %v8047 = vunpack.c.l.b16 %v7981
      %v8048 = vunpack.c.l.b16 %v7982
      %v8049 = vunpack.c.l.b16 %v7983
      %v8050 = vunpack.c.l.b16 %v7984
      %v8051 = vunpack.c.l.b16 %v7985
      %v8052 = vunpack.c.l.b16 %v7986
      %v8053 = vunpack.c.l.b16 %v7987
      %v8054 = vunpack.c.l.b16 %v7988
      %v8055 = vunpack.c.l.b16 %v7989
      %v8056 = vunpack.c.l.b16 %v7990
      %v8057 = vunpack.c.l.b16 %v7991
      %v8058 = vunpack.c.l.b16 %v7992
      %v8059 = vunpack.c.l.b16 %v7993
      %v8060 = vunpack.c.l.b16 %v7994
      %v8061 = vunpack.c.l.b16 %v7995
      %v8062 = vunpack.c.l.b16 %v7996
      %v8063 = vunpack.c.l.b16 %v7997
      %v8064 = vpack.c.b16 %v8033, %v8032
      %v8065 = vpack.c.b16 %v8035, %v8034
      %v8066 = vpack.c.b16 %v8037, %v8036
      %v8067 = vpack.c.b16 %v8039, %v8038
      %v8068 = vpack.c.b16 %v8041, %v8040
      %v8069 = vpack.c.b16 %v8043, %v8042
      %v8070 = vpack.c.b16 %v8045, %v8044
      %v8071 = vpack.c.b16 %v8047, %v8046
      %v8072 = vpack.c.b16 %v8049, %v8048
      %v8073 = vpack.c.b16 %v8051, %v8050
      %v8074 = vpack.c.b16 %v8053, %v8052
      %v8075 = vpack.c.b16 %v8055, %v8054
      %v8076 = vpack.c.b16 %v8057, %v8056
      %v8077 = vpack.c.b16 %v8059, %v8058
      %v8078 = vpack.c.b16 %v8061, %v8060
      %v8079 = vpack.c.b16 %v8063, %v8062
      %v8081 = vsel %vm1374, %v8064, 0
      %v8084 = vsel %vm1374, %v8065, 0
      %v8087 = vsel %vm1374, %v8066, 0
      %v8090 = vsel %vm1374, %v8067, 0
      %v8093 = vsel %vm1374, %v8068, 0
      %v8096 = vsel %vm1374, %v8069, 0
      %v8099 = vsel %vm1374, %v8070, 0
      %v8102 = vsel %vm1374, %v8071, 0
      %v8105 = vsel %vm1374, %v8072, 0
      %v8108 = vsel %vm1374, %v8073, 0
      %v8111 = vsel %vm1374, %v8074, 0
      %v8114 = vsel %vm1374, %v8075, 0
      %v8117 = vsel %vm1374, %v8076, 0
      %v8120 = vsel %vm1374, %v8077, 0
      %v8123 = vsel %vm1374, %v8078, 0
      %v8126 = vsel %vm1374, %v8079, 0
      %v8129 = vsel %vm1423, %v7999, 0
      %8131 = vmatpush.bf16.msra.mxu0 0
      %8132 = vmatpush.bf16.msra.mxu0 0
      %8133 = vmatpush.bf16.msra.mxu0 0
      %8134 = vmatpush.bf16.msra.mxu0 0
      %8135 = vmatpush.bf16.msra.mxu0 0
      %8136 = vmatpush.bf16.msra.mxu0 0
      %8137 = vmatpush.bf16.msra.mxu0 0
      %8138 = vmatpush.bf16.msra.mxu0 %v8129
      %8139 = vmatmul.bf16.gmra.mxu0 %v8081
      %v8140 = vpop.f32.mrf.mxu0
      %v8141 = vadd.f32 0.0, %v8140
      %v8142 = vpop.f32.mrf.mxu0
      %v8143 = vadd.f32 0.0, %v8142
      %8144 = vmatmul.bf16.gmra.mxu0 %v8084
      %v8145 = vpop.f32.mrf.mxu0
      %v8146 = vadd.f32 0.0, %v8145
      %v8147 = vpop.f32.mrf.mxu0
      %v8148 = vadd.f32 0.0, %v8147
      %8149 = vmatmul.bf16.gmra.mxu0 %v8087
      %v8150 = vpop.f32.mrf.mxu0
      %v8151 = vadd.f32 0.0, %v8150
      %v8152 = vpop.f32.mrf.mxu0
      %v8153 = vadd.f32 0.0, %v8152
      %8154 = vmatmul.bf16.gmra.mxu0 %v8090
      %v8155 = vpop.f32.mrf.mxu0
      %v8156 = vadd.f32 0.0, %v8155
      %v8157 = vpop.f32.mrf.mxu0
      %v8158 = vadd.f32 0.0, %v8157
      %8159 = vmatmul.bf16.gmra.mxu0 %v8093
      %v8160 = vpop.f32.mrf.mxu0
      %v8161 = vadd.f32 0.0, %v8160
      %v8162 = vpop.f32.mrf.mxu0
      %v8163 = vadd.f32 0.0, %v8162
      %8164 = vmatmul.bf16.gmra.mxu0 %v8096
      %v8165 = vpop.f32.mrf.mxu0
      %v8166 = vadd.f32 0.0, %v8165
      %v8167 = vpop.f32.mrf.mxu0
      %v8168 = vadd.f32 0.0, %v8167
      %8169 = vmatmul.bf16.gmra.mxu0 %v8099
      %v8170 = vpop.f32.mrf.mxu0
      %v8171 = vadd.f32 0.0, %v8170
      %v8172 = vpop.f32.mrf.mxu0
      %v8173 = vadd.f32 0.0, %v8172
      %8174 = vmatmul.bf16.gmra.mxu0 %v8102
      %v8175 = vpop.f32.mrf.mxu0
      %v8176 = vadd.f32 0.0, %v8175
      %v8177 = vpop.f32.mrf.mxu0
      %v8178 = vadd.f32 0.0, %v8177
      %8179 = vmatmul.bf16.gmra.mxu0 %v8105
      %v8180 = vpop.f32.mrf.mxu0
      %v8181 = vadd.f32 0.0, %v8180
      %v8182 = vpop.f32.mrf.mxu0
      %v8183 = vadd.f32 0.0, %v8182
      %8184 = vmatmul.bf16.gmra.mxu0 %v8108
      %v8185 = vpop.f32.mrf.mxu0
      %v8186 = vadd.f32 0.0, %v8185
      %v8187 = vpop.f32.mrf.mxu0
      %v8188 = vadd.f32 0.0, %v8187
      %8189 = vmatmul.bf16.gmra.mxu0 %v8111
      %v8190 = vpop.f32.mrf.mxu0
      %v8191 = vadd.f32 0.0, %v8190
      %v8192 = vpop.f32.mrf.mxu0
      %v8193 = vadd.f32 0.0, %v8192
      %8194 = vmatmul.bf16.gmra.mxu0 %v8114
      %v8195 = vpop.f32.mrf.mxu0
      %v8196 = vadd.f32 0.0, %v8195
      %v8197 = vpop.f32.mrf.mxu0
      %v8198 = vadd.f32 0.0, %v8197
      %8199 = vmatmul.bf16.gmra.mxu0 %v8117
      %v8200 = vpop.f32.mrf.mxu0
      %v8201 = vadd.f32 0.0, %v8200
      %v8202 = vpop.f32.mrf.mxu0
      %v8203 = vadd.f32 0.0, %v8202
      %8204 = vmatmul.bf16.gmra.mxu0 %v8120
      %v8205 = vpop.f32.mrf.mxu0
      %v8206 = vadd.f32 0.0, %v8205
      %v8207 = vpop.f32.mrf.mxu0
      %v8208 = vadd.f32 0.0, %v8207
      %8209 = vmatmul.bf16.gmra.mxu0 %v8123
      %v8210 = vpop.f32.mrf.mxu0
      %v8211 = vadd.f32 0.0, %v8210
      %v8212 = vpop.f32.mrf.mxu0
      %v8213 = vadd.f32 0.0, %v8212
      %8214 = vmatmul.bf16.gmra.mxu0 %v8126
      %v8215 = vpop.f32.mrf.mxu0
      %v8216 = vadd.f32 0.0, %v8215
      %v8217 = vpop.f32.mrf.mxu0
      %v8218 = vadd.f32 0.0, %v8217
      %8219 = vdwg.mxu0
      %v8220 = vadd.f32 %v7934, %v8141
      %v8221 = vadd.f32 %v7935, %v8143
      %v8222 = vadd.f32 %v7936, %v8146
      %v8223 = vadd.f32 %v7937, %v8148
      %v8224 = vadd.f32 %v7938, %v8151
      %v8225 = vadd.f32 %v7939, %v8153
      %v8226 = vadd.f32 %v7940, %v8156
      %v8227 = vadd.f32 %v7941, %v8158
      %v8228 = vadd.f32 %v7942, %v8161
      %v8229 = vadd.f32 %v7943, %v8163
      %v8230 = vadd.f32 %v7944, %v8166
      %v8231 = vadd.f32 %v7945, %v8168
      %v8232 = vadd.f32 %v7946, %v8171
      %v8233 = vadd.f32 %v7947, %v8173
      %v8234 = vadd.f32 %v7948, %v8176
      %v8235 = vadd.f32 %v7949, %v8178
      %v8236 = vadd.f32 %v7950, %v8181
      %v8237 = vadd.f32 %v7951, %v8183
      %v8238 = vadd.f32 %v7952, %v8186
      %v8239 = vadd.f32 %v7953, %v8188
      %v8240 = vadd.f32 %v7954, %v8191
      %v8241 = vadd.f32 %v7955, %v8193
      %v8242 = vadd.f32 %v7956, %v8196
      %v8243 = vadd.f32 %v7957, %v8198
      %v8244 = vadd.f32 %v7958, %v8201
      %v8245 = vadd.f32 %v7959, %v8203
      %v8246 = vadd.f32 %v7960, %v8206
      %v8247 = vadd.f32 %v7961, %v8208
      %v8248 = vadd.f32 %v7962, %v8211
      %v8249 = vadd.f32 %v7963, %v8213
      %v8250 = vadd.f32 %v7964, %v8216
      %v8251 = vadd.f32 %v7965, %v8218
      %v8252 = vld [vmem:[%s399] sm:$0xf]
      %v8253 = vld [vmem:[%s399 + $0x4] sm:$0xf]
      %v8254 = vld [vmem:[%s399 + $0x8] sm:$0x1]
      %v8255 = vld [vmem:[%s399 + $0xc] sm:$0xf]
      %v8256 = vld [vmem:[%s399 + $0x10] sm:$0xf]
      %v8257 = vld [vmem:[%s399 + $0x14] sm:$0x1]
      %v8258 = vld [vmem:[%s399 + $0x18] sm:$0xf]
      %v8259 = vld [vmem:[%s399 + $0x1c] sm:$0xf]
      %v8260 = vld [vmem:[%s399 + $0x20] sm:$0x1]
      %v8261 = vld [vmem:[%s399 + $0x24] sm:$0xf]
      %v8262 = vld [vmem:[%s399 + $0x28] sm:$0xf]
      %v8263 = vld [vmem:[%s399 + $0x2c] sm:$0x1]
      %v8264 = vld [vmem:[%s399 + $0x30] sm:$0xf]
      %v8265 = vld [vmem:[%s399 + $0x34] sm:$0xf]
      %v8266 = vld [vmem:[%s399 + $0x38] sm:$0x1]
      %v8267 = vld [vmem:[%s399 + $0x3c] sm:$0xf]
      %v8268 = vld [vmem:[%s399 + $0x40] sm:$0xf]
      %v8269 = vld [vmem:[%s399 + $0x44] sm:$0x1]
      %v8270 = vld [vmem:[%s399 + $0x48] sm:$0xf]
      %v8271 = vld [vmem:[%s399 + $0x4c] sm:$0xf]
      %v8272 = vld [vmem:[%s399 + $0x50] sm:$0x1]
      %v8273 = vld [vmem:[%s399 + $0x54] sm:$0xf]
      %v8274 = vld [vmem:[%s399 + $0x58] sm:$0xf]
      %v8275 = vld [vmem:[%s399 + $0x5c] sm:$0x1]
      %v8276 = vld [vmem:[%s399 + $0x60] sm:$0xf]
      %v8277 = vld [vmem:[%s399 + $0x64] sm:$0xf]
      %v8278 = vld [vmem:[%s399 + $0x68] sm:$0x1]
      %v8279 = vld [vmem:[%s399 + $0x6c] sm:$0xf]
      %v8280 = vld [vmem:[%s399 + $0x70] sm:$0xf]
      %v8281 = vld [vmem:[%s399 + $0x74] sm:$0x1]
      %v8282 = vld [vmem:[%s399 + $0x78] sm:$0xf]
      %v8283 = vld [vmem:[%s399 + $0x7c] sm:$0xf]
      %v8284 = vld [vmem:[%s399 + $0x80] sm:$0x1]
      %v8285 = vld [vmem:[%s399 + $0x84] sm:$0xf]
      %v8286 = vld [vmem:[%s399 + $0x88] sm:$0xf]
      %v8287 = vld [vmem:[%s399 + $0x8c] sm:$0x1]
      %v8288 = vld [vmem:[%s399 + $0x90] sm:$0xf]
      %v8289 = vld [vmem:[%s399 + $0x94] sm:$0xf]
      %v8290 = vld [vmem:[%s399 + $0x98] sm:$0x1]
      %v8291 = vld [vmem:[%s399 + $0x9c] sm:$0xf]
      %v8292 = vld [vmem:[%s399 + $0xa0] sm:$0xf]
      %v8293 = vld [vmem:[%s399 + $0xa4] sm:$0x1]
      %v8294 = vld [vmem:[%s399 + $0xa8] sm:$0xf]
      %v8295 = vld [vmem:[%s399 + $0xac] sm:$0xf]
      %v8296 = vld [vmem:[%s399 + $0xb0] sm:$0x1]
      %v8297 = vld [vmem:[%s399 + $0xb4] sm:$0xf]
      %v8298 = vld [vmem:[%s399 + $0xb8] sm:$0xf]
      %v8299 = vld [vmem:[%s399 + $0xbc] sm:$0x1]
      %v8301 = vshrl.u32 %v8252, 16
      %v8303 = vrot.slane %v8301, 4
      %v8304 = vshll.u32 %v8252, 16
      %v8306 = vrot.slane %v8304, 5
      %v8307 = vor.u32 %v8303, %v8306
      %v8308 = vrot.slane %v8307, 4
      %v8310 = vshll.u32 %v8253, 16
      %v8312 = vrot.slane %v8310, 5
      %v8313 = vsel %vm5451, %v8308, %v8312
      %v8314 = vshrl.u32 %v8253, 16
      %v8316 = vrot.slane %v8314, 4
      %v8317 = vor.u32 %v8316, %v8312
      %v8318 = vrot.slane %v8317, 4
      %v8320 = vshll.u32 %v8254, 16
      %v8322 = vrot.slane %v8320, 5
      %v8323 = vsel %vm5451, %v8318, %v8322
      %v8325 = vshrl.u32 %v8255, 16
      %v8327 = vrot.slane %v8325, 4
      %v8328 = vshll.u32 %v8255, 16
      %v8330 = vrot.slane %v8328, 5
      %v8331 = vor.u32 %v8327, %v8330
      %v8332 = vrot.slane %v8331, 4
      %v8334 = vshll.u32 %v8256, 16
      %v8336 = vrot.slane %v8334, 5
      %v8337 = vsel %vm5451, %v8332, %v8336
      %v8338 = vshrl.u32 %v8256, 16
      %v8340 = vrot.slane %v8338, 4
      %v8341 = vor.u32 %v8340, %v8336
      %v8342 = vrot.slane %v8341, 4
      %v8344 = vshll.u32 %v8257, 16
      %v8346 = vrot.slane %v8344, 5
      %v8347 = vsel %vm5451, %v8342, %v8346
      %v8349 = vshrl.u32 %v8258, 16
      %v8351 = vrot.slane %v8349, 4
      %v8352 = vshll.u32 %v8258, 16
      %v8354 = vrot.slane %v8352, 5
      %v8355 = vor.u32 %v8351, %v8354
      %v8356 = vrot.slane %v8355, 4
      %v8358 = vshll.u32 %v8259, 16
      %v8360 = vrot.slane %v8358, 5
      %v8361 = vsel %vm5451, %v8356, %v8360
      %v8362 = vshrl.u32 %v8259, 16
      %v8364 = vrot.slane %v8362, 4
      %v8365 = vor.u32 %v8364, %v8360
      %v8366 = vrot.slane %v8365, 4
      %v8368 = vshll.u32 %v8260, 16
      %v8370 = vrot.slane %v8368, 5
      %v8371 = vsel %vm5451, %v8366, %v8370
      %v8373 = vshrl.u32 %v8261, 16
      %v8375 = vrot.slane %v8373, 4
      %v8376 = vshll.u32 %v8261, 16
      %v8378 = vrot.slane %v8376, 5
      %v8379 = vor.u32 %v8375, %v8378
      %v8380 = vrot.slane %v8379, 4
      %v8382 = vshll.u32 %v8262, 16
      %v8384 = vrot.slane %v8382, 5
      %v8385 = vsel %vm5451, %v8380, %v8384
      %v8386 = vshrl.u32 %v8262, 16
      %v8388 = vrot.slane %v8386, 4
      %v8389 = vor.u32 %v8388, %v8384
      %v8390 = vrot.slane %v8389, 4
      %v8392 = vshll.u32 %v8263, 16
      %v8394 = vrot.slane %v8392, 5
      %v8395 = vsel %vm5451, %v8390, %v8394
      %v8397 = vshrl.u32 %v8264, 16
      %v8399 = vrot.slane %v8397, 4
      %v8400 = vshll.u32 %v8264, 16
      %v8402 = vrot.slane %v8400, 5
      %v8403 = vor.u32 %v8399, %v8402
      %v8404 = vrot.slane %v8403, 4
      %v8406 = vshll.u32 %v8265, 16
      %v8408 = vrot.slane %v8406, 5
      %v8409 = vsel %vm5451, %v8404, %v8408
      %v8410 = vshrl.u32 %v8265, 16
      %v8412 = vrot.slane %v8410, 4
      %v8413 = vor.u32 %v8412, %v8408
      %v8414 = vrot.slane %v8413, 4
      %v8416 = vshll.u32 %v8266, 16
      %v8418 = vrot.slane %v8416, 5
      %v8419 = vsel %vm5451, %v8414, %v8418
      %v8421 = vshrl.u32 %v8267, 16
      %v8423 = vrot.slane %v8421, 4
      %v8424 = vshll.u32 %v8267, 16
      %v8426 = vrot.slane %v8424, 5
      %v8427 = vor.u32 %v8423, %v8426
      %v8428 = vrot.slane %v8427, 4
      %v8430 = vshll.u32 %v8268, 16
      %v8432 = vrot.slane %v8430, 5
      %v8433 = vsel %vm5451, %v8428, %v8432
      %v8434 = vshrl.u32 %v8268, 16
      %v8436 = vrot.slane %v8434, 4
      %v8437 = vor.u32 %v8436, %v8432
      %v8438 = vrot.slane %v8437, 4
      %v8440 = vshll.u32 %v8269, 16
      %v8442 = vrot.slane %v8440, 5
      %v8443 = vsel %vm5451, %v8438, %v8442
      %v8445 = vshrl.u32 %v8270, 16
      %v8447 = vrot.slane %v8445, 4
      %v8448 = vshll.u32 %v8270, 16
      %v8450 = vrot.slane %v8448, 5
      %v8451 = vor.u32 %v8447, %v8450
      %v8452 = vrot.slane %v8451, 4
      %v8454 = vshll.u32 %v8271, 16
      %v8456 = vrot.slane %v8454, 5
      %v8457 = vsel %vm5451, %v8452, %v8456
      %v8458 = vshrl.u32 %v8271, 16
      %v8460 = vrot.slane %v8458, 4
      %v8461 = vor.u32 %v8460, %v8456
      %v8462 = vrot.slane %v8461, 4
      %v8464 = vshll.u32 %v8272, 16
      %v8466 = vrot.slane %v8464, 5
      %v8467 = vsel %vm5451, %v8462, %v8466
      %v8469 = vshrl.u32 %v8273, 16
      %v8471 = vrot.slane %v8469, 4
      %v8472 = vshll.u32 %v8273, 16
      %v8474 = vrot.slane %v8472, 5
      %v8475 = vor.u32 %v8471, %v8474
      %v8476 = vrot.slane %v8475, 4
      %v8478 = vshll.u32 %v8274, 16
      %v8480 = vrot.slane %v8478, 5
      %v8481 = vsel %vm5451, %v8476, %v8480
      %v8482 = vshrl.u32 %v8274, 16
      %v8484 = vrot.slane %v8482, 4
      %v8485 = vor.u32 %v8484, %v8480
      %v8486 = vrot.slane %v8485, 4
      %v8488 = vshll.u32 %v8275, 16
      %v8490 = vrot.slane %v8488, 5
      %v8491 = vsel %vm5451, %v8486, %v8490
      %v8493 = vshrl.u32 %v8276, 16
      %v8495 = vrot.slane %v8493, 4
      %v8496 = vshll.u32 %v8276, 16
      %v8498 = vrot.slane %v8496, 5
      %v8499 = vor.u32 %v8495, %v8498
      %v8500 = vrot.slane %v8499, 4
      %v8502 = vshll.u32 %v8277, 16
      %v8504 = vrot.slane %v8502, 5
      %v8505 = vsel %vm5451, %v8500, %v8504
      %v8506 = vshrl.u32 %v8277, 16
      %v8508 = vrot.slane %v8506, 4
      %v8509 = vor.u32 %v8508, %v8504
      %v8510 = vrot.slane %v8509, 4
      %v8512 = vshll.u32 %v8278, 16
      %v8514 = vrot.slane %v8512, 5
      %v8515 = vsel %vm5451, %v8510, %v8514
      %v8517 = vshrl.u32 %v8279, 16
      %v8519 = vrot.slane %v8517, 4
      %v8520 = vshll.u32 %v8279, 16
      %v8522 = vrot.slane %v8520, 5
      %v8523 = vor.u32 %v8519, %v8522
      %v8524 = vrot.slane %v8523, 4
      %v8526 = vshll.u32 %v8280, 16
      %v8528 = vrot.slane %v8526, 5
      %v8529 = vsel %vm5451, %v8524, %v8528
      %v8530 = vshrl.u32 %v8280, 16
      %v8532 = vrot.slane %v8530, 4
      %v8533 = vor.u32 %v8532, %v8528
      %v8534 = vrot.slane %v8533, 4
      %v8536 = vshll.u32 %v8281, 16
      %v8538 = vrot.slane %v8536, 5
      %v8539 = vsel %vm5451, %v8534, %v8538
      %v8541 = vshrl.u32 %v8282, 16
      %v8543 = vrot.slane %v8541, 4
      %v8544 = vshll.u32 %v8282, 16
      %v8546 = vrot.slane %v8544, 5
      %v8547 = vor.u32 %v8543, %v8546
      %v8548 = vrot.slane %v8547, 4
      %v8550 = vshll.u32 %v8283, 16
      %v8552 = vrot.slane %v8550, 5
      %v8553 = vsel %vm5451, %v8548, %v8552
      %v8554 = vshrl.u32 %v8283, 16
      %v8556 = vrot.slane %v8554, 4
      %v8557 = vor.u32 %v8556, %v8552
      %v8558 = vrot.slane %v8557, 4
      %v8560 = vshll.u32 %v8284, 16
      %v8562 = vrot.slane %v8560, 5
      %v8563 = vsel %vm5451, %v8558, %v8562
      %v8565 = vshrl.u32 %v8285, 16
      %v8567 = vrot.slane %v8565, 4
      %v8568 = vshll.u32 %v8285, 16
      %v8570 = vrot.slane %v8568, 5
      %v8571 = vor.u32 %v8567, %v8570
      %v8572 = vrot.slane %v8571, 4
      %v8574 = vshll.u32 %v8286, 16
      %v8576 = vrot.slane %v8574, 5
      %v8577 = vsel %vm5451, %v8572, %v8576
      %v8578 = vshrl.u32 %v8286, 16
      %v8580 = vrot.slane %v8578, 4
      %v8581 = vor.u32 %v8580, %v8576
      %v8582 = vrot.slane %v8581, 4
      %v8584 = vshll.u32 %v8287, 16
      %v8586 = vrot.slane %v8584, 5
      %v8587 = vsel %vm5451, %v8582, %v8586
      %v8589 = vshrl.u32 %v8288, 16
      %v8591 = vrot.slane %v8589, 4
      %v8592 = vshll.u32 %v8288, 16
      %v8594 = vrot.slane %v8592, 5
      %v8595 = vor.u32 %v8591, %v8594
      %v8596 = vrot.slane %v8595, 4
      %v8598 = vshll.u32 %v8289, 16
      %v8600 = vrot.slane %v8598, 5
      %v8601 = vsel %vm5451, %v8596, %v8600
      %v8602 = vshrl.u32 %v8289, 16
      %v8604 = vrot.slane %v8602, 4
      %v8605 = vor.u32 %v8604, %v8600
      %v8606 = vrot.slane %v8605, 4
      %v8608 = vshll.u32 %v8290, 16
      %v8610 = vrot.slane %v8608, 5
      %v8611 = vsel %vm5451, %v8606, %v8610
      %v8613 = vshrl.u32 %v8291, 16
      %v8615 = vrot.slane %v8613, 4
      %v8616 = vshll.u32 %v8291, 16
      %v8618 = vrot.slane %v8616, 5
      %v8619 = vor.u32 %v8615, %v8618
      %v8620 = vrot.slane %v8619, 4
      %v8622 = vshll.u32 %v8292, 16
      %v8624 = vrot.slane %v8622, 5
      %v8625 = vsel %vm5451, %v8620, %v8624
      %v8626 = vshrl.u32 %v8292, 16
      %v8628 = vrot.slane %v8626, 4
      %v8629 = vor.u32 %v8628, %v8624
      %v8630 = vrot.slane %v8629, 4
      %v8632 = vshll.u32 %v8293, 16
      %v8634 = vrot.slane %v8632, 5
      %v8635 = vsel %vm5451, %v8630, %v8634
      %v8637 = vshrl.u32 %v8294, 16
      %v8639 = vrot.slane %v8637, 4
      %v8640 = vshll.u32 %v8294, 16
      %v8642 = vrot.slane %v8640, 5
      %v8643 = vor.u32 %v8639, %v8642
      %v8644 = vrot.slane %v8643, 4
      %v8646 = vshll.u32 %v8295, 16
      %v8648 = vrot.slane %v8646, 5
      %v8649 = vsel %vm5451, %v8644, %v8648
      %v8650 = vshrl.u32 %v8295, 16
      %v8652 = vrot.slane %v8650, 4
      %v8653 = vor.u32 %v8652, %v8648
      %v8654 = vrot.slane %v8653, 4
      %v8656 = vshll.u32 %v8296, 16
      %v8658 = vrot.slane %v8656, 5
      %v8659 = vsel %vm5451, %v8654, %v8658
      %v8661 = vshrl.u32 %v8297, 16
      %v8663 = vrot.slane %v8661, 4
      %v8664 = vshll.u32 %v8297, 16
      %v8666 = vrot.slane %v8664, 5
      %v8667 = vor.u32 %v8663, %v8666
      %v8668 = vrot.slane %v8667, 4
      %v8670 = vshll.u32 %v8298, 16
      %v8672 = vrot.slane %v8670, 5
      %v8673 = vsel %vm5451, %v8668, %v8672
      %v8674 = vshrl.u32 %v8298, 16
      %v8676 = vrot.slane %v8674, 4
      %v8677 = vor.u32 %v8676, %v8672
      %v8678 = vrot.slane %v8677, 4
      %v8680 = vshll.u32 %v8299, 16
      %v8682 = vrot.slane %v8680, 5
      %v8683 = vsel %vm5451, %v8678, %v8682
      %s8684 = scalar_lea.vmem %s2, 14
      %v8685 = vld [vmem:[%s8684] sm:$0x3]
      %v8686 = vunpack.c.l.b16 %v8313
      %v8687 = vunpack.c.l.b16 %v8323
      %v8688 = vunpack.c.l.b16 %v8337
      %v8689 = vunpack.c.l.b16 %v8347
      %v8690 = vunpack.c.l.b16 %v8361
      %v8691 = vunpack.c.l.b16 %v8371
      %v8692 = vunpack.c.l.b16 %v8385
      %v8693 = vunpack.c.l.b16 %v8395
      %v8694 = vunpack.c.l.b16 %v8409
      %v8695 = vunpack.c.l.b16 %v8419
      %v8696 = vunpack.c.l.b16 %v8433
      %v8697 = vunpack.c.l.b16 %v8443
      %v8698 = vunpack.c.l.b16 %v8457
      %v8699 = vunpack.c.l.b16 %v8467
      %v8700 = vunpack.c.l.b16 %v8481
      %v8701 = vunpack.c.l.b16 %v8491
      %v8702 = vunpack.c.l.b16 %v8505
      %v8703 = vunpack.c.l.b16 %v8515
      %v8704 = vunpack.c.l.b16 %v8529
      %v8705 = vunpack.c.l.b16 %v8539
      %v8706 = vunpack.c.l.b16 %v8553
      %v8707 = vunpack.c.l.b16 %v8563
      %v8708 = vunpack.c.l.b16 %v8577
      %v8709 = vunpack.c.l.b16 %v8587
      %v8710 = vunpack.c.l.b16 %v8601
      %v8711 = vunpack.c.l.b16 %v8611
      %v8712 = vunpack.c.l.b16 %v8625
      %v8713 = vunpack.c.l.b16 %v8635
      %v8714 = vunpack.c.l.b16 %v8649
      %v8715 = vunpack.c.l.b16 %v8659
      %v8716 = vunpack.c.l.b16 %v8673
      %v8717 = vunpack.c.l.b16 %v8683
      %v8718 = vpack.c.b16 %v8687, %v8686
      %v8719 = vpack.c.b16 %v8689, %v8688
      %v8720 = vpack.c.b16 %v8691, %v8690
      %v8721 = vpack.c.b16 %v8693, %v8692
      %v8722 = vpack.c.b16 %v8695, %v8694
      %v8723 = vpack.c.b16 %v8697, %v8696
      %v8724 = vpack.c.b16 %v8699, %v8698
      %v8725 = vpack.c.b16 %v8701, %v8700
      %v8726 = vpack.c.b16 %v8703, %v8702
      %v8727 = vpack.c.b16 %v8705, %v8704
      %v8728 = vpack.c.b16 %v8707, %v8706
      %v8729 = vpack.c.b16 %v8709, %v8708
      %v8730 = vpack.c.b16 %v8711, %v8710
      %v8731 = vpack.c.b16 %v8713, %v8712
      %v8732 = vpack.c.b16 %v8715, %v8714
      %v8733 = vpack.c.b16 %v8717, %v8716
      %v8735 = vsel %vm1374, %v8718, 0
      %v8738 = vsel %vm1374, %v8719, 0
      %v8741 = vsel %vm1374, %v8720, 0
      %v8744 = vsel %vm1374, %v8721, 0
      %v8747 = vsel %vm1374, %v8722, 0
      %v8750 = vsel %vm1374, %v8723, 0
      %v8753 = vsel %vm1374, %v8724, 0
      %v8756 = vsel %vm1374, %v8725, 0
      %v8759 = vsel %vm1374, %v8726, 0
      %v8762 = vsel %vm1374, %v8727, 0
      %v8765 = vsel %vm1374, %v8728, 0
      %v8768 = vsel %vm1374, %v8729, 0
      %v8771 = vsel %vm1374, %v8730, 0
      %v8774 = vsel %vm1374, %v8731, 0
      %v8777 = vsel %vm1374, %v8732, 0
      %v8780 = vsel %vm1374, %v8733, 0
      %v8783 = vsel %vm1423, %v8685, 0
      %8785 = vmatpush.bf16.msra.mxu0 0
      %8786 = vmatpush.bf16.msra.mxu0 0
      %8787 = vmatpush.bf16.msra.mxu0 0
      %8788 = vmatpush.bf16.msra.mxu0 0
      %8789 = vmatpush.bf16.msra.mxu0 0
      %8790 = vmatpush.bf16.msra.mxu0 0
      %8791 = vmatpush.bf16.msra.mxu0 0
      %8792 = vmatpush.bf16.msra.mxu0 %v8783
      %8793 = vmatmul.bf16.gmra.mxu0 %v8735
      %v8794 = vpop.f32.mrf.mxu0
      %v8795 = vadd.f32 0.0, %v8794
      %v8796 = vpop.f32.mrf.mxu0
      %v8797 = vadd.f32 0.0, %v8796
      %8798 = vmatmul.bf16.gmra.mxu0 %v8738
      %v8799 = vpop.f32.mrf.mxu0
      %v8800 = vadd.f32 0.0, %v8799
      %v8801 = vpop.f32.mrf.mxu0
      %v8802 = vadd.f32 0.0, %v8801
      %8803 = vmatmul.bf16.gmra.mxu0 %v8741
      %v8804 = vpop.f32.mrf.mxu0
      %v8805 = vadd.f32 0.0, %v8804
      %v8806 = vpop.f32.mrf.mxu0
      %v8807 = vadd.f32 0.0, %v8806
      %8808 = vmatmul.bf16.gmra.mxu0 %v8744
      %v8809 = vpop.f32.mrf.mxu0
      %v8810 = vadd.f32 0.0, %v8809
      %v8811 = vpop.f32.mrf.mxu0
      %v8812 = vadd.f32 0.0, %v8811
      %8813 = vmatmul.bf16.gmra.mxu0 %v8747
      %v8814 = vpop.f32.mrf.mxu0
      %v8815 = vadd.f32 0.0, %v8814
      %v8816 = vpop.f32.mrf.mxu0
      %v8817 = vadd.f32 0.0, %v8816
      %8818 = vmatmul.bf16.gmra.mxu0 %v8750
      %v8819 = vpop.f32.mrf.mxu0
      %v8820 = vadd.f32 0.0, %v8819
      %v8821 = vpop.f32.mrf.mxu0
      %v8822 = vadd.f32 0.0, %v8821
      %8823 = vmatmul.bf16.gmra.mxu0 %v8753
      %v8824 = vpop.f32.mrf.mxu0
      %v8825 = vadd.f32 0.0, %v8824
      %v8826 = vpop.f32.mrf.mxu0
      %v8827 = vadd.f32 0.0, %v8826
      %8828 = vmatmul.bf16.gmra.mxu0 %v8756
      %v8829 = vpop.f32.mrf.mxu0
      %v8830 = vadd.f32 0.0, %v8829
      %v8831 = vpop.f32.mrf.mxu0
      %v8832 = vadd.f32 0.0, %v8831
      %8833 = vmatmul.bf16.gmra.mxu0 %v8759
      %v8834 = vpop.f32.mrf.mxu0
      %v8835 = vadd.f32 0.0, %v8834
      %v8836 = vpop.f32.mrf.mxu0
      %v8837 = vadd.f32 0.0, %v8836
      %8838 = vmatmul.bf16.gmra.mxu0 %v8762
      %v8839 = vpop.f32.mrf.mxu0
      %v8840 = vadd.f32 0.0, %v8839
      %v8841 = vpop.f32.mrf.mxu0
      %v8842 = vadd.f32 0.0, %v8841
      %8843 = vmatmul.bf16.gmra.mxu0 %v8765
      %v8844 = vpop.f32.mrf.mxu0
      %v8845 = vadd.f32 0.0, %v8844
      %v8846 = vpop.f32.mrf.mxu0
      %v8847 = vadd.f32 0.0, %v8846
      %8848 = vmatmul.bf16.gmra.mxu0 %v8768
      %v8849 = vpop.f32.mrf.mxu0
      %v8850 = vadd.f32 0.0, %v8849
      %v8851 = vpop.f32.mrf.mxu0
      %v8852 = vadd.f32 0.0, %v8851
      %8853 = vmatmul.bf16.gmra.mxu0 %v8771
      %v8854 = vpop.f32.mrf.mxu0
      %v8855 = vadd.f32 0.0, %v8854
      %v8856 = vpop.f32.mrf.mxu0
      %v8857 = vadd.f32 0.0, %v8856
      %8858 = vmatmul.bf16.gmra.mxu0 %v8774
      %v8859 = vpop.f32.mrf.mxu0
      %v8860 = vadd.f32 0.0, %v8859
      %v8861 = vpop.f32.mrf.mxu0
      %v8862 = vadd.f32 0.0, %v8861
      %8863 = vmatmul.bf16.gmra.mxu0 %v8777
      %v8864 = vpop.f32.mrf.mxu0
      %v8865 = vadd.f32 0.0, %v8864
      %v8866 = vpop.f32.mrf.mxu0
      %v8867 = vadd.f32 0.0, %v8866
      %8868 = vmatmul.bf16.gmra.mxu0 %v8780
      %v8869 = vpop.f32.mrf.mxu0
      %v8870 = vadd.f32 0.0, %v8869
      %v8871 = vpop.f32.mrf.mxu0
      %v8872 = vadd.f32 0.0, %v8871
      %8873 = vdwg.mxu0
      %v8874 = vadd.f32 %v8220, %v8795
      %v8875 = vadd.f32 %v8221, %v8797
      %v8876 = vadd.f32 %v8222, %v8800
      %v8877 = vadd.f32 %v8223, %v8802
      %v8878 = vadd.f32 %v8224, %v8805
      %v8879 = vadd.f32 %v8225, %v8807
      %v8880 = vadd.f32 %v8226, %v8810
      %v8881 = vadd.f32 %v8227, %v8812
      %v8882 = vadd.f32 %v8228, %v8815
      %v8883 = vadd.f32 %v8229, %v8817
      %v8884 = vadd.f32 %v8230, %v8820
      %v8885 = vadd.f32 %v8231, %v8822
      %v8886 = vadd.f32 %v8232, %v8825
      %v8887 = vadd.f32 %v8233, %v8827
      %v8888 = vadd.f32 %v8234, %v8830
      %v8889 = vadd.f32 %v8235, %v8832
      %v8890 = vadd.f32 %v8236, %v8835
      %v8891 = vadd.f32 %v8237, %v8837
      %v8892 = vadd.f32 %v8238, %v8840
      %v8893 = vadd.f32 %v8239, %v8842
      %v8894 = vadd.f32 %v8240, %v8845
      %v8895 = vadd.f32 %v8241, %v8847
      %v8896 = vadd.f32 %v8242, %v8850
      %v8897 = vadd.f32 %v8243, %v8852
      %v8898 = vadd.f32 %v8244, %v8855
      %v8899 = vadd.f32 %v8245, %v8857
      %v8900 = vadd.f32 %v8246, %v8860
      %v8901 = vadd.f32 %v8247, %v8862
      %v8902 = vadd.f32 %v8248, %v8865
      %v8903 = vadd.f32 %v8249, %v8867
      %v8904 = vadd.f32 %v8250, %v8870
      %v8905 = vadd.f32 %v8251, %v8872
      %v8906 = vld [vmem:[%s399] sm:$0xe]
      %v8907 = vld [vmem:[%s399 + $0xc] sm:$0xe]
      %v8908 = vld [vmem:[%s399 + $0x18] sm:$0xe]
      %v8909 = vld [vmem:[%s399 + $0x24] sm:$0xe]
      %v8910 = vld [vmem:[%s399 + $0x30] sm:$0xe]
      %v8911 = vld [vmem:[%s399 + $0x3c] sm:$0xe]
      %v8912 = vld [vmem:[%s399 + $0x48] sm:$0xe]
      %v8913 = vld [vmem:[%s399 + $0x54] sm:$0xe]
      %v8914 = vld [vmem:[%s399 + $0x60] sm:$0xe]
      %v8915 = vld [vmem:[%s399 + $0x6c] sm:$0xe]
      %v8916 = vld [vmem:[%s399 + $0x78] sm:$0xe]
      %v8917 = vld [vmem:[%s399 + $0x84] sm:$0xe]
      %v8918 = vld [vmem:[%s399 + $0x90] sm:$0xe]
      %v8919 = vld [vmem:[%s399 + $0x9c] sm:$0xe]
      %v8920 = vld [vmem:[%s399 + $0xa8] sm:$0xe]
      %v8921 = vld [vmem:[%s399 + $0xb4] sm:$0xe]
      %v8970 = vrot.slane %v8906, 5
      %v8971 = vrot.slane %v8970, 4
      %v8972 = vrot.slane %v8253, 5
      %v8973 = vsel %vm1211, %v8971, %v8972
      %v8974 = vrot.slane %v8972, 4
      %v8975 = vrot.slane %v8254, 5
      %v8976 = vsel %vm1211, %v8974, %v8975
      %v8977 = vrot.slane %v8907, 5
      %v8978 = vrot.slane %v8977, 4
      %v8979 = vrot.slane %v8256, 5
      %v8980 = vsel %vm1211, %v8978, %v8979
      %v8981 = vrot.slane %v8979, 4
      %v8982 = vrot.slane %v8257, 5
      %v8983 = vsel %vm1211, %v8981, %v8982
      %v8984 = vrot.slane %v8908, 5
      %v8985 = vrot.slane %v8984, 4
      %v8986 = vrot.slane %v8259, 5
      %v8987 = vsel %vm1211, %v8985, %v8986
      %v8988 = vrot.slane %v8986, 4
      %v8989 = vrot.slane %v8260, 5
      %v8990 = vsel %vm1211, %v8988, %v8989
      %v8991 = vrot.slane %v8909, 5
      %v8992 = vrot.slane %v8991, 4
      %v8993 = vrot.slane %v8262, 5
      %v8994 = vsel %vm1211, %v8992, %v8993
      %v8995 = vrot.slane %v8993, 4
      %v8996 = vrot.slane %v8263, 5
      %v8997 = vsel %vm1211, %v8995, %v8996
      %v8998 = vrot.slane %v8910, 5
      %v8999 = vrot.slane %v8998, 4
      %v9000 = vrot.slane %v8265, 5
      %v9001 = vsel %vm1211, %v8999, %v9000
      %v9002 = vrot.slane %v9000, 4
      %v9003 = vrot.slane %v8266, 5
      %v9004 = vsel %vm1211, %v9002, %v9003
      %v9005 = vrot.slane %v8911, 5
      %v9006 = vrot.slane %v9005, 4
      %v9007 = vrot.slane %v8268, 5
      %v9008 = vsel %vm1211, %v9006, %v9007
      %v9009 = vrot.slane %v9007, 4
      %v9010 = vrot.slane %v8269, 5
      %v9011 = vsel %vm1211, %v9009, %v9010
      %v9012 = vrot.slane %v8912, 5
      %v9013 = vrot.slane %v9012, 4
      %v9014 = vrot.slane %v8271, 5
      %v9015 = vsel %vm1211, %v9013, %v9014
      %v9016 = vrot.slane %v9014, 4
      %v9017 = vrot.slane %v8272, 5
      %v9018 = vsel %vm1211, %v9016, %v9017
      %v9019 = vrot.slane %v8913, 5
      %v9020 = vrot.slane %v9019, 4
      %v9021 = vrot.slane %v8274, 5
      %v9022 = vsel %vm1211, %v9020, %v9021
      %v9023 = vrot.slane %v9021, 4
      %v9024 = vrot.slane %v8275, 5
      %v9025 = vsel %vm1211, %v9023, %v9024
      %v9026 = vrot.slane %v8914, 5
      %v9027 = vrot.slane %v9026, 4
      %v9028 = vrot.slane %v8277, 5
      %v9029 = vsel %vm1211, %v9027, %v9028
      %v9030 = vrot.slane %v9028, 4
      %v9031 = vrot.slane %v8278, 5
      %v9032 = vsel %vm1211, %v9030, %v9031
      %v9033 = vrot.slane %v8915, 5
      %v9034 = vrot.slane %v9033, 4
      %v9035 = vrot.slane %v8280, 5
      %v9036 = vsel %vm1211, %v9034, %v9035
      %v9037 = vrot.slane %v9035, 4
      %v9038 = vrot.slane %v8281, 5
      %v9039 = vsel %vm1211, %v9037, %v9038
      %v9040 = vrot.slane %v8916, 5
      %v9041 = vrot.slane %v9040, 4
      %v9042 = vrot.slane %v8283, 5
      %v9043 = vsel %vm1211, %v9041, %v9042
      %v9044 = vrot.slane %v9042, 4
      %v9045 = vrot.slane %v8284, 5
      %v9046 = vsel %vm1211, %v9044, %v9045
      %v9047 = vrot.slane %v8917, 5
      %v9048 = vrot.slane %v9047, 4
      %v9049 = vrot.slane %v8286, 5
      %v9050 = vsel %vm1211, %v9048, %v9049
      %v9051 = vrot.slane %v9049, 4
      %v9052 = vrot.slane %v8287, 5
      %v9053 = vsel %vm1211, %v9051, %v9052
      %v9054 = vrot.slane %v8918, 5
      %v9055 = vrot.slane %v9054, 4
      %v9056 = vrot.slane %v8289, 5
      %v9057 = vsel %vm1211, %v9055, %v9056
      %v9058 = vrot.slane %v9056, 4
      %v9059 = vrot.slane %v8290, 5
      %v9060 = vsel %vm1211, %v9058, %v9059
      %v9061 = vrot.slane %v8919, 5
      %v9062 = vrot.slane %v9061, 4
      %v9063 = vrot.slane %v8292, 5
      %v9064 = vsel %vm1211, %v9062, %v9063
      %v9065 = vrot.slane %v9063, 4
      %v9066 = vrot.slane %v8293, 5
      %v9067 = vsel %vm1211, %v9065, %v9066
      %v9068 = vrot.slane %v8920, 5
      %v9069 = vrot.slane %v9068, 4
      %v9070 = vrot.slane %v8295, 5
      %v9071 = vsel %vm1211, %v9069, %v9070
      %v9072 = vrot.slane %v9070, 4
      %v9073 = vrot.slane %v8296, 5
      %v9074 = vsel %vm1211, %v9072, %v9073
      %v9075 = vrot.slane %v8921, 5
      %v9076 = vrot.slane %v9075, 4
      %v9077 = vrot.slane %v8298, 5
      %v9078 = vsel %vm1211, %v9076, %v9077
      %v9079 = vrot.slane %v9077, 4
      %v9080 = vrot.slane %v8299, 5
      %v9081 = vsel %vm1211, %v9079, %v9080
      %s9082 = scalar_lea.vmem %s2, 16
      %v9083 = vld [vmem:[%s9082] sm:$0x3]
      %v9084 = vunpack.c.l.b16 %v8973
      %v9085 = vunpack.c.l.b16 %v8976
      %v9086 = vunpack.c.l.b16 %v8980
      %v9087 = vunpack.c.l.b16 %v8983
      %v9088 = vunpack.c.l.b16 %v8987
      %v9089 = vunpack.c.l.b16 %v8990
      %v9090 = vunpack.c.l.b16 %v8994
      %v9091 = vunpack.c.l.b16 %v8997
      %v9092 = vunpack.c.l.b16 %v9001
      %v9093 = vunpack.c.l.b16 %v9004
      %v9094 = vunpack.c.l.b16 %v9008
      %v9095 = vunpack.c.l.b16 %v9011
      %v9096 = vunpack.c.l.b16 %v9015
      %v9097 = vunpack.c.l.b16 %v9018
      %v9098 = vunpack.c.l.b16 %v9022
      %v9099 = vunpack.c.l.b16 %v9025
      %v9100 = vunpack.c.l.b16 %v9029
      %v9101 = vunpack.c.l.b16 %v9032
      %v9102 = vunpack.c.l.b16 %v9036
      %v9103 = vunpack.c.l.b16 %v9039
      %v9104 = vunpack.c.l.b16 %v9043
      %v9105 = vunpack.c.l.b16 %v9046
      %v9106 = vunpack.c.l.b16 %v9050
      %v9107 = vunpack.c.l.b16 %v9053
      %v9108 = vunpack.c.l.b16 %v9057
      %v9109 = vunpack.c.l.b16 %v9060
      %v9110 = vunpack.c.l.b16 %v9064
      %v9111 = vunpack.c.l.b16 %v9067
      %v9112 = vunpack.c.l.b16 %v9071
      %v9113 = vunpack.c.l.b16 %v9074
      %v9114 = vunpack.c.l.b16 %v9078
      %v9115 = vunpack.c.l.b16 %v9081
      %v9116 = vpack.c.b16 %v9085, %v9084
      %v9117 = vpack.c.b16 %v9087, %v9086
      %v9118 = vpack.c.b16 %v9089, %v9088
      %v9119 = vpack.c.b16 %v9091, %v9090
      %v9120 = vpack.c.b16 %v9093, %v9092
      %v9121 = vpack.c.b16 %v9095, %v9094
      %v9122 = vpack.c.b16 %v9097, %v9096
      %v9123 = vpack.c.b16 %v9099, %v9098
      %v9124 = vpack.c.b16 %v9101, %v9100
      %v9125 = vpack.c.b16 %v9103, %v9102
      %v9126 = vpack.c.b16 %v9105, %v9104
      %v9127 = vpack.c.b16 %v9107, %v9106
      %v9128 = vpack.c.b16 %v9109, %v9108
      %v9129 = vpack.c.b16 %v9111, %v9110
      %v9130 = vpack.c.b16 %v9113, %v9112
      %v9131 = vpack.c.b16 %v9115, %v9114
      %v9133 = vsel %vm1374, %v9116, 0
      %v9136 = vsel %vm1374, %v9117, 0
      %v9139 = vsel %vm1374, %v9118, 0
      %v9142 = vsel %vm1374, %v9119, 0
      %v9145 = vsel %vm1374, %v9120, 0
      %v9148 = vsel %vm1374, %v9121, 0
      %v9151 = vsel %vm1374, %v9122, 0
      %v9154 = vsel %vm1374, %v9123, 0
      %v9157 = vsel %vm1374, %v9124, 0
      %v9160 = vsel %vm1374, %v9125, 0
      %v9163 = vsel %vm1374, %v9126, 0
      %v9166 = vsel %vm1374, %v9127, 0
      %v9169 = vsel %vm1374, %v9128, 0
      %v9172 = vsel %vm1374, %v9129, 0
      %v9175 = vsel %vm1374, %v9130, 0
      %v9178 = vsel %vm1374, %v9131, 0
      %v9181 = vsel %vm1423, %v9083, 0
      %9183 = vmatpush.bf16.msra.mxu0 0
      %9184 = vmatpush.bf16.msra.mxu0 0
      %9185 = vmatpush.bf16.msra.mxu0 0
      %9186 = vmatpush.bf16.msra.mxu0 0
      %9187 = vmatpush.bf16.msra.mxu0 0
      %9188 = vmatpush.bf16.msra.mxu0 0
      %9189 = vmatpush.bf16.msra.mxu0 0
      %9190 = vmatpush.bf16.msra.mxu0 %v9181
      %9191 = vmatmul.bf16.gmra.mxu0 %v9133
      %v9192 = vpop.f32.mrf.mxu0
      %v9193 = vadd.f32 0.0, %v9192
      %v9194 = vpop.f32.mrf.mxu0
      %v9195 = vadd.f32 0.0, %v9194
      %9196 = vmatmul.bf16.gmra.mxu0 %v9136
      %v9197 = vpop.f32.mrf.mxu0
      %v9198 = vadd.f32 0.0, %v9197
      %v9199 = vpop.f32.mrf.mxu0
      %v9200 = vadd.f32 0.0, %v9199
      %9201 = vmatmul.bf16.gmra.mxu0 %v9139
      %v9202 = vpop.f32.mrf.mxu0
      %v9203 = vadd.f32 0.0, %v9202
      %v9204 = vpop.f32.mrf.mxu0
      %v9205 = vadd.f32 0.0, %v9204
      %9206 = vmatmul.bf16.gmra.mxu0 %v9142
      %v9207 = vpop.f32.mrf.mxu0
      %v9208 = vadd.f32 0.0, %v9207
      %v9209 = vpop.f32.mrf.mxu0
      %v9210 = vadd.f32 0.0, %v9209
      %9211 = vmatmul.bf16.gmra.mxu0 %v9145
      %v9212 = vpop.f32.mrf.mxu0
      %v9213 = vadd.f32 0.0, %v9212
      %v9214 = vpop.f32.mrf.mxu0
      %v9215 = vadd.f32 0.0, %v9214
      %9216 = vmatmul.bf16.gmra.mxu0 %v9148
      %v9217 = vpop.f32.mrf.mxu0
      %v9218 = vadd.f32 0.0, %v9217
      %v9219 = vpop.f32.mrf.mxu0
      %v9220 = vadd.f32 0.0, %v9219
      %9221 = vmatmul.bf16.gmra.mxu0 %v9151
      %v9222 = vpop.f32.mrf.mxu0
      %v9223 = vadd.f32 0.0, %v9222
      %v9224 = vpop.f32.mrf.mxu0
      %v9225 = vadd.f32 0.0, %v9224
      %9226 = vmatmul.bf16.gmra.mxu0 %v9154
      %v9227 = vpop.f32.mrf.mxu0
      %v9228 = vadd.f32 0.0, %v9227
      %v9229 = vpop.f32.mrf.mxu0
      %v9230 = vadd.f32 0.0, %v9229
      %9231 = vmatmul.bf16.gmra.mxu0 %v9157
      %v9232 = vpop.f32.mrf.mxu0
      %v9233 = vadd.f32 0.0, %v9232
      %v9234 = vpop.f32.mrf.mxu0
      %v9235 = vadd.f32 0.0, %v9234
      %9236 = vmatmul.bf16.gmra.mxu0 %v9160
      %v9237 = vpop.f32.mrf.mxu0
      %v9238 = vadd.f32 0.0, %v9237
      %v9239 = vpop.f32.mrf.mxu0
      %v9240 = vadd.f32 0.0, %v9239
      %9241 = vmatmul.bf16.gmra.mxu0 %v9163
      %v9242 = vpop.f32.mrf.mxu0
      %v9243 = vadd.f32 0.0, %v9242
      %v9244 = vpop.f32.mrf.mxu0
      %v9245 = vadd.f32 0.0, %v9244
      %9246 = vmatmul.bf16.gmra.mxu0 %v9166
      %v9247 = vpop.f32.mrf.mxu0
      %v9248 = vadd.f32 0.0, %v9247
      %v9249 = vpop.f32.mrf.mxu0
      %v9250 = vadd.f32 0.0, %v9249
      %9251 = vmatmul.bf16.gmra.mxu0 %v9169
      %v9252 = vpop.f32.mrf.mxu0
      %v9253 = vadd.f32 0.0, %v9252
      %v9254 = vpop.f32.mrf.mxu0
      %v9255 = vadd.f32 0.0, %v9254
      %9256 = vmatmul.bf16.gmra.mxu0 %v9172
      %v9257 = vpop.f32.mrf.mxu0
      %v9258 = vadd.f32 0.0, %v9257
      %v9259 = vpop.f32.mrf.mxu0
      %v9260 = vadd.f32 0.0, %v9259
      %9261 = vmatmul.bf16.gmra.mxu0 %v9175
      %v9262 = vpop.f32.mrf.mxu0
      %v9263 = vadd.f32 0.0, %v9262
      %v9264 = vpop.f32.mrf.mxu0
      %v9265 = vadd.f32 0.0, %v9264
      %9266 = vmatmul.bf16.gmra.mxu0 %v9178
      %v9267 = vpop.f32.mrf.mxu0
      %v9268 = vadd.f32 0.0, %v9267
      %v9269 = vpop.f32.mrf.mxu0
      %v9270 = vadd.f32 0.0, %v9269
      %9271 = vdwg.mxu0
      %v9272 = vadd.f32 %v8874, %v9193
      %v9273 = vadd.f32 %v8875, %v9195
      %v9274 = vadd.f32 %v8876, %v9198
      %v9275 = vadd.f32 %v8877, %v9200
      %v9276 = vadd.f32 %v8878, %v9203
      %v9277 = vadd.f32 %v8879, %v9205
      %v9278 = vadd.f32 %v8880, %v9208
      %v9279 = vadd.f32 %v8881, %v9210
      %v9280 = vadd.f32 %v8882, %v9213
      %v9281 = vadd.f32 %v8883, %v9215
      %v9282 = vadd.f32 %v8884, %v9218
      %v9283 = vadd.f32 %v8885, %v9220
      %v9284 = vadd.f32 %v8886, %v9223
      %v9285 = vadd.f32 %v8887, %v9225
      %v9286 = vadd.f32 %v8888, %v9228
      %v9287 = vadd.f32 %v8889, %v9230
      %v9288 = vadd.f32 %v8890, %v9233
      %v9289 = vadd.f32 %v8891, %v9235
      %v9290 = vadd.f32 %v8892, %v9238
      %v9291 = vadd.f32 %v8893, %v9240
      %v9292 = vadd.f32 %v8894, %v9243
      %v9293 = vadd.f32 %v8895, %v9245
      %v9294 = vadd.f32 %v8896, %v9248
      %v9295 = vadd.f32 %v8897, %v9250
      %v9296 = vadd.f32 %v8898, %v9253
      %v9297 = vadd.f32 %v8899, %v9255
      %v9298 = vadd.f32 %v8900, %v9258
      %v9299 = vadd.f32 %v8901, %v9260
      %v9300 = vadd.f32 %v8902, %v9263
      %v9301 = vadd.f32 %v8903, %v9265
      %v9302 = vadd.f32 %v8904, %v9268
      %v9303 = vadd.f32 %v8905, %v9270
      %v9304 = vsel %vm1374, %v9272, 0.0
      %v9305 = vsel %vm1374, %v9273, 0.0
      %v9306 = vadd.f32 %v9304, %v9305
      %v9307 = vsel %vm1374, %v9274, 0.0
      %v9308 = vadd.f32 %v9306, %v9307
      %v9309 = vsel %vm1374, %v9275, 0.0
      %v9310 = vadd.f32 %v9308, %v9309
      %v9311 = vsel %vm1374, %v9276, 0.0
      %v9312 = vadd.f32 %v9310, %v9311
      %v9313 = vsel %vm1374, %v9277, 0.0
      %v9314 = vadd.f32 %v9312, %v9313
      %v9315 = vsel %vm1374, %v9278, 0.0
      %v9316 = vadd.f32 %v9314, %v9315
      %v9317 = vsel %vm1374, %v9279, 0.0
      %v9318 = vadd.f32 %v9316, %v9317
      %v9319 = vsel %vm1374, %v9280, 0.0
      %v9320 = vadd.f32 %v9318, %v9319
      %v9321 = vsel %vm1374, %v9281, 0.0
      %v9322 = vadd.f32 %v9320, %v9321
      %v9323 = vsel %vm1374, %v9282, 0.0
      %v9324 = vadd.f32 %v9322, %v9323
      %v9325 = vsel %vm1374, %v9283, 0.0
      %v9326 = vadd.f32 %v9324, %v9325
      %v9327 = vsel %vm1374, %v9284, 0.0
      %v9328 = vadd.f32 %v9326, %v9327
      %v9329 = vsel %vm1374, %v9285, 0.0
      %v9330 = vadd.f32 %v9328, %v9329
      %v9331 = vsel %vm1374, %v9286, 0.0
      %v9332 = vadd.f32 %v9330, %v9331
      %v9333 = vsel %vm1374, %v9287, 0.0
      %v9334 = vadd.f32 %v9332, %v9333
      %v9335 = vsel %vm1374, %v9288, 0.0
      %v9336 = vadd.f32 %v9334, %v9335
      %v9337 = vsel %vm1374, %v9289, 0.0
      %v9338 = vadd.f32 %v9336, %v9337
      %v9339 = vsel %vm1374, %v9290, 0.0
      %v9340 = vadd.f32 %v9338, %v9339
      %v9341 = vsel %vm1374, %v9291, 0.0
      %v9342 = vadd.f32 %v9340, %v9341
      %v9343 = vsel %vm1374, %v9292, 0.0
      %v9344 = vadd.f32 %v9342, %v9343
      %v9345 = vsel %vm1374, %v9293, 0.0
      %v9346 = vadd.f32 %v9344, %v9345
      %v9347 = vsel %vm1374, %v9294, 0.0
      %v9348 = vadd.f32 %v9346, %v9347
      %v9349 = vsel %vm1374, %v9295, 0.0
      %v9350 = vadd.f32 %v9348, %v9349
      %v9351 = vsel %vm1374, %v9296, 0.0
      %v9352 = vadd.f32 %v9350, %v9351
      %v9353 = vsel %vm1374, %v9297, 0.0
      %v9354 = vadd.f32 %v9352, %v9353
      %v9355 = vsel %vm1374, %v9298, 0.0
      %v9356 = vadd.f32 %v9354, %v9355
      %v9357 = vsel %vm1374, %v9299, 0.0
      %v9358 = vadd.f32 %v9356, %v9357
      %v9359 = vsel %vm1374, %v9300, 0.0
      %v9360 = vadd.f32 %v9358, %v9359
      %v9361 = vsel %vm1374, %v9301, 0.0
      %v9362 = vadd.f32 %v9360, %v9361
      %v9363 = vsel %vm1374, %v9302, 0.0
      %v9364 = vadd.f32 %v9362, %v9363
      %v9365 = vsel %vm1374, %v9303, 0.0
      %v9366 = vadd.f32 %v9364, %v9365
      %v9367 = vrot.slane %v9366, 4
      %v9368 = vadd.f32 %v9366, %v9367
      %v9369 = vrot.slane %v9368, 2
      %v9370 = vadd.f32 %v9368, %v9369
      %v9371 = vrot.slane %v9370, 1
      %v9372 = vadd.f32 %v9370, %v9371
      %v9373 = vmul.f32 %v9372, 0.00390625
      %v9374 = vsub.f32 %v9272, %v9373
      %v9375 = vsub.f32 %v9273, %v9373
      %v9376 = vsub.f32 %v9274, %v9373
      %v9377 = vsub.f32 %v9275, %v9373
      %v9378 = vsub.f32 %v9276, %v9373
      %v9379 = vsub.f32 %v9277, %v9373
      %v9380 = vsub.f32 %v9278, %v9373
      %v9381 = vsub.f32 %v9279, %v9373
      %v9382 = vsub.f32 %v9280, %v9373
      %v9383 = vsub.f32 %v9281, %v9373
      %v9384 = vsub.f32 %v9282, %v9373
      %v9385 = vsub.f32 %v9283, %v9373
      %v9386 = vsub.f32 %v9284, %v9373
      %v9387 = vsub.f32 %v9285, %v9373
      %v9388 = vsub.f32 %v9286, %v9373
      %v9389 = vsub.f32 %v9287, %v9373
      %v9390 = vsub.f32 %v9288, %v9373
      %v9391 = vsub.f32 %v9289, %v9373
      %v9392 = vsub.f32 %v9290, %v9373
      %v9393 = vsub.f32 %v9291, %v9373
      %v9394 = vsub.f32 %v9292, %v9373
      %v9395 = vsub.f32 %v9293, %v9373
      %v9396 = vsub.f32 %v9294, %v9373
      %v9397 = vsub.f32 %v9295, %v9373
      %v9398 = vsub.f32 %v9296, %v9373
      %v9399 = vsub.f32 %v9297, %v9373
      %v9400 = vsub.f32 %v9298, %v9373
      %v9401 = vsub.f32 %v9299, %v9373
      %v9402 = vsub.f32 %v9300, %v9373
      %v9403 = vsub.f32 %v9301, %v9373
      %v9404 = vsub.f32 %v9302, %v9373
      %v9405 = vsub.f32 %v9303, %v9373
      %v9406 = vmul.f32 %v9374, %v9374
      %v9407 = vmul.f32 %v9375, %v9375
      %v9408 = vmul.f32 %v9376, %v9376
      %v9409 = vmul.f32 %v9377, %v9377
      %v9410 = vmul.f32 %v9378, %v9378
      %v9411 = vmul.f32 %v9379, %v9379
      %v9412 = vmul.f32 %v9380, %v9380
      %v9413 = vmul.f32 %v9381, %v9381
      %v9414 = vmul.f32 %v9382, %v9382
      %v9415 = vmul.f32 %v9383, %v9383
      %v9416 = vmul.f32 %v9384, %v9384
      %v9417 = vmul.f32 %v9385, %v9385
      %v9418 = vmul.f32 %v9386, %v9386
      %v9419 = vmul.f32 %v9387, %v9387
      %v9420 = vmul.f32 %v9388, %v9388
      %v9421 = vmul.f32 %v9389, %v9389
      %v9422 = vmul.f32 %v9390, %v9390
      %v9423 = vmul.f32 %v9391, %v9391
      %v9424 = vmul.f32 %v9392, %v9392
      %v9425 = vmul.f32 %v9393, %v9393
      %v9426 = vmul.f32 %v9394, %v9394
      %v9427 = vmul.f32 %v9395, %v9395
      %v9428 = vmul.f32 %v9396, %v9396
      %v9429 = vmul.f32 %v9397, %v9397
      %v9430 = vmul.f32 %v9398, %v9398
      %v9431 = vmul.f32 %v9399, %v9399
      %v9432 = vmul.f32 %v9400, %v9400
      %v9433 = vmul.f32 %v9401, %v9401
      %v9434 = vmul.f32 %v9402, %v9402
      %v9435 = vmul.f32 %v9403, %v9403
      %v9436 = vmul.f32 %v9404, %v9404
      %v9437 = vmul.f32 %v9405, %v9405
      %v9438 = vsel %vm1374, %v9406, 0.0
      %v9439 = vsel %vm1374, %v9407, 0.0
      %v9440 = vadd.f32 %v9438, %v9439
      %v9441 = vsel %vm1374, %v9408, 0.0
      %v9442 = vadd.f32 %v9440, %v9441
      %v9443 = vsel %vm1374, %v9409, 0.0
      %v9444 = vadd.f32 %v9442, %v9443
      %v9445 = vsel %vm1374, %v9410, 0.0
      %v9446 = vadd.f32 %v9444, %v9445
      %v9447 = vsel %vm1374, %v9411, 0.0
      %v9448 = vadd.f32 %v9446, %v9447
      %v9449 = vsel %vm1374, %v9412, 0.0
      %v9450 = vadd.f32 %v9448, %v9449
      %v9451 = vsel %vm1374, %v9413, 0.0
      %v9452 = vadd.f32 %v9450, %v9451
      %v9453 = vsel %vm1374, %v9414, 0.0
      %v9454 = vadd.f32 %v9452, %v9453
      %v9455 = vsel %vm1374, %v9415, 0.0
      %v9456 = vadd.f32 %v9454, %v9455
      %v9457 = vsel %vm1374, %v9416, 0.0
      %v9458 = vadd.f32 %v9456, %v9457
      %v9459 = vsel %vm1374, %v9417, 0.0
      %v9460 = vadd.f32 %v9458, %v9459
      %v9461 = vsel %vm1374, %v9418, 0.0
      %v9462 = vadd.f32 %v9460, %v9461
      %v9463 = vsel %vm1374, %v9419, 0.0
      %v9464 = vadd.f32 %v9462, %v9463
      %v9465 = vsel %vm1374, %v9420, 0.0
      %v9466 = vadd.f32 %v9464, %v9465
      %v9467 = vsel %vm1374, %v9421, 0.0
      %v9468 = vadd.f32 %v9466, %v9467
      %v9469 = vsel %vm1374, %v9422, 0.0
      %v9470 = vadd.f32 %v9468, %v9469
      %v9471 = vsel %vm1374, %v9423, 0.0
      %v9472 = vadd.f32 %v9470, %v9471
      %v9473 = vsel %vm1374, %v9424, 0.0
      %v9474 = vadd.f32 %v9472, %v9473
      %v9475 = vsel %vm1374, %v9425, 0.0
      %v9476 = vadd.f32 %v9474, %v9475
      %v9477 = vsel %vm1374, %v9426, 0.0
      %v9478 = vadd.f32 %v9476, %v9477
      %v9479 = vsel %vm1374, %v9427, 0.0
      %v9480 = vadd.f32 %v9478, %v9479
      %v9481 = vsel %vm1374, %v9428, 0.0
      %v9482 = vadd.f32 %v9480, %v9481
      %v9483 = vsel %vm1374, %v9429, 0.0
      %v9484 = vadd.f32 %v9482, %v9483
      %v9485 = vsel %vm1374, %v9430, 0.0
      %v9486 = vadd.f32 %v9484, %v9485
      %v9487 = vsel %vm1374, %v9431, 0.0
      %v9488 = vadd.f32 %v9486, %v9487
      %v9489 = vsel %vm1374, %v9432, 0.0
      %v9490 = vadd.f32 %v9488, %v9489
      %v9491 = vsel %vm1374, %v9433, 0.0
      %v9492 = vadd.f32 %v9490, %v9491
      %v9493 = vsel %vm1374, %v9434, 0.0
      %v9494 = vadd.f32 %v9492, %v9493
      %v9495 = vsel %vm1374, %v9435, 0.0
      %v9496 = vadd.f32 %v9494, %v9495
      %v9497 = vsel %vm1374, %v9436, 0.0
      %v9498 = vadd.f32 %v9496, %v9497
      %v9499 = vsel %vm1374, %v9437, 0.0
      %v9500 = vadd.f32 %v9498, %v9499
      %v9501 = vrot.slane %v9500, 4
      %v9502 = vadd.f32 %v9500, %v9501
      %v9503 = vrot.slane %v9502, 2
      %v9504 = vadd.f32 %v9502, %v9503
      %v9505 = vrot.slane %v9504, 1
      %v9506 = vadd.f32 %v9504, %v9505
      %v9507 = vmul.f32 %v9506, 0.00390625
      %v9508 = vadd.f32 %v9507, 1e-05
      %v9509 = vrsqrt.pop %v9508
      %v9510 = vmul.f32 %v9509, %v9508
      %v9511 = vmul.f32 %v9510, %v9509
      %v9512 = vmul.f32 0.5, %v9511
      %v9513 = vsub.f32 1.5, %v9512
      %v9514 = vmul.f32 %v9509, %v9513
      %vm9515 = vweird.f32 %v9508
      %vm9516 = vweird.f32 %v9509
      %vm9517 = vmor %vm9515, %vm9516
      %v9518 = vsel %vm9517, %v9509, %v9514
      %v9519 = vmul.f32 %v9374, %v9518
      %v9520 = vmul.f32 %v9375, %v9518
      %v9521 = vmul.f32 %v9376, %v9518
      %v9522 = vmul.f32 %v9377, %v9518
      %v9523 = vmul.f32 %v9378, %v9518
      %v9524 = vmul.f32 %v9379, %v9518
      %v9525 = vmul.f32 %v9380, %v9518
      %v9526 = vmul.f32 %v9381, %v9518
      %v9527 = vmul.f32 %v9382, %v9518
      %v9528 = vmul.f32 %v9383, %v9518
      %v9529 = vmul.f32 %v9384, %v9518
      %v9530 = vmul.f32 %v9385, %v9518
      %v9531 = vmul.f32 %v9386, %v9518
      %v9532 = vmul.f32 %v9387, %v9518
      %v9533 = vmul.f32 %v9388, %v9518
      %v9534 = vmul.f32 %v9389, %v9518
      %v9535 = vmul.f32 %v9390, %v9518
      %v9536 = vmul.f32 %v9391, %v9518
      %v9537 = vmul.f32 %v9392, %v9518
      %v9538 = vmul.f32 %v9393, %v9518
      %v9539 = vmul.f32 %v9394, %v9518
      %v9540 = vmul.f32 %v9395, %v9518
      %v9541 = vmul.f32 %v9396, %v9518
      %v9542 = vmul.f32 %v9397, %v9518
      %v9543 = vmul.f32 %v9398, %v9518
      %v9544 = vmul.f32 %v9399, %v9518
      %v9545 = vmul.f32 %v9400, %v9518
      %v9546 = vmul.f32 %v9401, %v9518
      %v9547 = vmul.f32 %v9402, %v9518
      %v9548 = vmul.f32 %v9403, %v9518
      %v9549 = vmul.f32 %v9404, %v9518
      %v9550 = vmul.f32 %v9405, %v9518
      %v9551 = vld [vmem:[%s165] sm:$0xff]
      %v9552 = vld [vmem:[%s165 + $0x8] sm:$0xff]
      %v9553 = vld [vmem:[%s165 + $0x10] sm:$0xff]
      %v9554 = vld [vmem:[%s165 + $0x18] sm:$0xff]
      %v9555 = vld [vmem:[%s165 + $0x20] sm:$0xff]
      %v9556 = vld [vmem:[%s165 + $0x28] sm:$0xff]
      %v9557 = vld [vmem:[%s165 + $0x30] sm:$0xff]
      %v9558 = vld [vmem:[%s165 + $0x38] sm:$0xff]
      %v9559 = vld [vmem:[%s165 + $0x40] sm:$0xff]
      %v9560 = vld [vmem:[%s165 + $0x48] sm:$0xff]
      %v9561 = vld [vmem:[%s165 + $0x50] sm:$0xff]
      %v9562 = vld [vmem:[%s165 + $0x58] sm:$0xff]
      %v9563 = vld [vmem:[%s165 + $0x60] sm:$0xff]
      %v9564 = vld [vmem:[%s165 + $0x68] sm:$0xff]
      %v9565 = vld [vmem:[%s165 + $0x70] sm:$0xff]
      %v9566 = vld [vmem:[%s165 + $0x78] sm:$0xff]
      %v9567 = vld [vmem:[%s165 + $0x80] sm:$0xff]
      %v9568 = vld [vmem:[%s165 + $0x88] sm:$0xff]
      %v9569 = vld [vmem:[%s165 + $0x90] sm:$0xff]
      %v9570 = vld [vmem:[%s165 + $0x98] sm:$0xff]
      %v9571 = vld [vmem:[%s165 + $0xa0] sm:$0xff]
      %v9572 = vld [vmem:[%s165 + $0xa8] sm:$0xff]
      %v9573 = vld [vmem:[%s165 + $0xb0] sm:$0xff]
      %v9574 = vld [vmem:[%s165 + $0xb8] sm:$0xff]
      %v9575 = vld [vmem:[%s165 + $0xc0] sm:$0xff]
      %v9576 = vld [vmem:[%s165 + $0xc8] sm:$0xff]
      %v9577 = vld [vmem:[%s165 + $0xd0] sm:$0xff]
      %v9578 = vld [vmem:[%s165 + $0xd8] sm:$0xff]
      %v9579 = vld [vmem:[%s165 + $0xe0] sm:$0xff]
      %v9580 = vld [vmem:[%s165 + $0xe8] sm:$0xff]
      %v9581 = vld [vmem:[%s165 + $0xf0] sm:$0xff]
      %v9582 = vld [vmem:[%s165 + $0xf8] sm:$0xff]
      %v9583 = vadd.f32 %v9551, %v9519
      %v9584 = vadd.f32 %v9552, %v9520
      %v9585 = vadd.f32 %v9553, %v9521
      %v9586 = vadd.f32 %v9554, %v9522
      %v9587 = vadd.f32 %v9555, %v9523
      %v9588 = vadd.f32 %v9556, %v9524
      %v9589 = vadd.f32 %v9557, %v9525
      %v9590 = vadd.f32 %v9558, %v9526
      %v9591 = vadd.f32 %v9559, %v9527
      %v9592 = vadd.f32 %v9560, %v9528
      %v9593 = vadd.f32 %v9561, %v9529
      %v9594 = vadd.f32 %v9562, %v9530
      %v9595 = vadd.f32 %v9563, %v9531
      %v9596 = vadd.f32 %v9564, %v9532
      %v9597 = vadd.f32 %v9565, %v9533
      %v9598 = vadd.f32 %v9566, %v9534
      %v9599 = vadd.f32 %v9567, %v9535
      %v9600 = vadd.f32 %v9568, %v9536
      %v9601 = vadd.f32 %v9569, %v9537
      %v9602 = vadd.f32 %v9570, %v9538
      %v9603 = vadd.f32 %v9571, %v9539
      %v9604 = vadd.f32 %v9572, %v9540
      %v9605 = vadd.f32 %v9573, %v9541
      %v9606 = vadd.f32 %v9574, %v9542
      %v9607 = vadd.f32 %v9575, %v9543
      %v9608 = vadd.f32 %v9576, %v9544
      %v9609 = vadd.f32 %v9577, %v9545
      %v9610 = vadd.f32 %v9578, %v9546
      %v9611 = vadd.f32 %v9579, %v9547
      %v9612 = vadd.f32 %v9580, %v9548
      %v9613 = vadd.f32 %v9581, %v9549
      %v9614 = vadd.f32 %v9582, %v9550
      %9615 = vst.msk [vmem:[%s170] sm:$0xff] %vm1374, %v9583
      %9616 = vst.msk [vmem:[%s170 + $0x8] sm:$0xff] %vm1374, %v9584
      %9617 = vst.msk [vmem:[%s170 + $0x10] sm:$0xff] %vm1374, %v9585
      %9618 = vst.msk [vmem:[%s170 + $0x18] sm:$0xff] %vm1374, %v9586
      %9619 = vst.msk [vmem:[%s170 + $0x20] sm:$0xff] %vm1374, %v9587
      %9620 = vst.msk [vmem:[%s170 + $0x28] sm:$0xff] %vm1374, %v9588
      %9621 = vst.msk [vmem:[%s170 + $0x30] sm:$0xff] %vm1374, %v9589
      %9622 = vst.msk [vmem:[%s170 + $0x38] sm:$0xff] %vm1374, %v9590
      %9623 = vst.msk [vmem:[%s170 + $0x40] sm:$0xff] %vm1374, %v9591
      %9624 = vst.msk [vmem:[%s170 + $0x48] sm:$0xff] %vm1374, %v9592
      %9625 = vst.msk [vmem:[%s170 + $0x50] sm:$0xff] %vm1374, %v9593
      %9626 = vst.msk [vmem:[%s170 + $0x58] sm:$0xff] %vm1374, %v9594
      %9627 = vst.msk [vmem:[%s170 + $0x60] sm:$0xff] %vm1374, %v9595
      %9628 = vst.msk [vmem:[%s170 + $0x68] sm:$0xff] %vm1374, %v9596
      %9629 = vst.msk [vmem:[%s170 + $0x70] sm:$0xff] %vm1374, %v9597
      %9630 = vst.msk [vmem:[%s170 + $0x78] sm:$0xff] %vm1374, %v9598
      %9631 = vst.msk [vmem:[%s170 + $0x80] sm:$0xff] %vm1374, %v9599
      %9632 = vst.msk [vmem:[%s170 + $0x88] sm:$0xff] %vm1374, %v9600
      %9633 = vst.msk [vmem:[%s170 + $0x90] sm:$0xff] %vm1374, %v9601
      %9634 = vst.msk [vmem:[%s170 + $0x98] sm:$0xff] %vm1374, %v9602
      %9635 = vst.msk [vmem:[%s170 + $0xa0] sm:$0xff] %vm1374, %v9603
      %9636 = vst.msk [vmem:[%s170 + $0xa8] sm:$0xff] %vm1374, %v9604
      %9637 = vst.msk [vmem:[%s170 + $0xb0] sm:$0xff] %vm1374, %v9605
      %9638 = vst.msk [vmem:[%s170 + $0xb8] sm:$0xff] %vm1374, %v9606
      %9639 = vst.msk [vmem:[%s170 + $0xc0] sm:$0xff] %vm1374, %v9607
      %9640 = vst.msk [vmem:[%s170 + $0xc8] sm:$0xff] %vm1374, %v9608
      %9641 = vst.msk [vmem:[%s170 + $0xd0] sm:$0xff] %vm1374, %v9609
      %9642 = vst.msk [vmem:[%s170 + $0xd8] sm:$0xff] %vm1374, %v9610
      %9643 = vst.msk [vmem:[%s170 + $0xe0] sm:$0xff] %vm1374, %v9611
      %9644 = vst.msk [vmem:[%s170 + $0xe8] sm:$0xff] %vm1374, %v9612
      %9645 = vst.msk [vmem:[%s170 + $0xf0] sm:$0xff] %vm1374, %v9613
      %9646 = vst.msk [vmem:[%s170 + $0xf8] sm:$0xff] %vm1374, %v9614
      %p9647 = scmp.lt.s32.totalorder %s14, 1
      %s9648 = scalar_select %p9647, %s14, 1
      %s9649 = smul.addr %s9648, 32
      %s9650 = smul.addr %s9649, 8
      %s9651 = scalar_lea.vmem %s3, %s9650
      // Predicated region
      $region33: #{_lambda_.1} parent=31 // pred_check
        %p9652 = pneg %p100
      $region34: #{_lambda_.1} parent=31 // pred_check_branch
        %9654 = sbr.rel (%p9652) target = $region36
      $region35: #{_lambda_.1} parent=31 // pred_region
        _
      $region36: #{_lambda_.1} parent=31 // pred_fallthru
        _
    $region32: #{_lambda_.1} parent=5 // pred_fallthru
      _
    %p9655 = scmp.le.s32.totalorder 2, %s9
    // Predicated region
    $region37: #{_lambda_.1} parent=5 // pred_check
      %p9656 = pneg %p9655
    $region38: #{_lambda_.1} parent=5 // pred_check_branch
      %9658 = sbr.rel (%p9656) target = $region40
    $region39: #{_lambda_.1} parent=5 // pred_region
      %s9659 = ssub.s32 %s9, 2
      // Predicated region
      $region41: #{_lambda_.1} parent=39 // pred_check
        %p9660 = pneg %p106
      $region42: #{_lambda_.1} parent=39 // pred_check_branch
        %9662 = sbr.rel (%p9660) target = $region44
      $region43: #{_lambda_.1} parent=39 // pred_region
        %p9663 = scmp.lt.s32.totalorder %s15, 1
        %s9664 = scalar_select %p9663, %s15, 1
        %s9665 = smul.addr %s9664, 32
        %s9666 = smul.addr %s9665, 8
        %s9667 = scalar_lea.vmem %s3, %s9666
      $region44: #{_lambda_.1} parent=39 // pred_fallthru
        _
    $region40: #{_lambda_.1} parent=5 // pred_fallthru
      _
  $region6: #{_lambda_.1} parent=0 // loop_footer
    %s13 = sadd.s32 1, %s9
  $region7: #{_lambda_.1} parent=0 // loop_footer_branch
    %8 = sbr.rel target = $region3
  $region8: #{_lambda_.1} parent=0 // loop_exit
    _

</llo_original>
